<compile_context>
chip_gen: v7x
topology: tpu7x:2x2x1
jax: 0.10.0
libtpu: 0.0.40
codegen_flags: <defaults>
</compile_context>

<pallas_src>
import functools

import numpy as np
import jax
import jax.numpy as jnp
from jax.experimental import pallas as pl
from jax.experimental.pallas import tpu as pltpu


# ----------------------------------------------------------------------------
# In-kernel building blocks: one MXU matmul per conv layer; shifts on XLU/VPU.
# ----------------------------------------------------------------------------
def _conv3x3(x, w_ref, masks_ref, b_row, act, H):
    """3x3x3 conv (stride 1, pad 1) in the rows=(d,h) / lanes=(w,c) layout.

    x:         (R, W*Cin)     f32, R = D*H
    w_ref:     (W*Cin, 9*128) bf16; tap t = kd*3+kh occupies lanes
               [128*t, 128*t + W*Cout) as a kw-banded block, rest zero.
    masks_ref: (9, R, 1)      f32 0/1 validity of the (kd,kh)-shifted source row
    b_row:     (1, W*Cout)    f32
    """
    R = x.shape[0]
    n_out = b_row.shape[1]
    # ONE wide matmul produces all 9 (un-shifted) tap contributions.
    p = jnp.dot(x.astype(w_ref.dtype), w_ref[...],
                preferred_element_type=jnp.float32)                # (R, 9*128)
    acc = None
    for kd in range(3):
        for kh in range(3):
            t = kd * 3 + kh
            blk = p[:, t * 128:(t + 1) * 128]                      # lane-aligned
            off = (kd - 1) * H + (kh - 1)                          # source-row offset
            if off != 0:
                blk = pltpu.roll(blk, shift=(-off) % R, axis=0)    # XLU sublane roll
            if kd != 1 or kh != 1:
                blk = blk * masks_ref[t]                           # zero padded rows
            acc = blk if acc is None else acc + blk
    acc = acc[:, :n_out] + b_row
    if act == "relu":
        return jnp.maximum(acc, 0.0)
    if act == "tanh":
        return jnp.tanh(acc)
    return acc


def _maxpool2(y, sel_l_ref, sel_r_ref, C, H):
    """2x2x2 max pool, stride 2.  y: (D*H, W*C) f32 -> (D/2*H/2, W/2*C) f32.

    Pair maxes are rolls + jnp.maximum; wrapped rows/lanes only pollute odd
    (d, h, w) positions, which the even-subsample matmuls discard.
    """
    R, L = y.shape
    bf = sel_l_ref.dtype
    m = jnp.maximum(y, pltpu.roll(y, shift=(L - C) % L, axis=1))   # (w, w+1)
    m = jnp.maximum(m, pltpu.roll(m, shift=(R - 1) % R, axis=0))   # (h, h+1)
    m = jnp.maximum(m, pltpu.roll(m, shift=(R - H) % R, axis=0))   # (d, d+1)
    m = jnp.dot(sel_l_ref[...], m.astype(bf),
                preferred_element_type=jnp.float32)                # keep even (d, h)
    return jnp.dot(m.astype(bf), sel_r_ref[...],
                   preferred_element_type=jnp.float32)             # keep even w


def _conv_transpose2x(z, m_ref, u_ref, b_row):
    """ConvTranspose3d(kernel=2, stride=2, pad=0) + ReLU.

    z:     (Dp*Hp, Wp*Cin)     f32 (pooled layout)
    m_ref: (Wp*Cin, 4*W*Cout)  bf16: lane block ab=(a,b) holds the w/cout expansion
    u_ref: (4, D*H, Dp*Hp)     bf16 0/1 row expansion to output parity (a, b)
    """
    bf = m_ref.dtype
    n_out = b_row.shape[1]
    t = jnp.dot(z.astype(bf), m_ref[...],
                preferred_element_type=jnp.float32)                # (Dp*Hp, 4*n_out)
    acc = None
    for ab in range(4):
        blk = t[:, ab * n_out:(ab + 1) * n_out].astype(bf)
        y = jnp.dot(u_ref[ab], blk, preferred_element_type=jnp.float32)
        acc = y if acc is None else acc + y
    return jnp.maximum(acc + b_row, 0.0)


def _aecv3d_kernel(x_ref, m_full_ref, m_pool_ref,
                   w_e1_ref, w_e2_ref, w_e3_ref, w_e4_ref,
                   w_d1m_ref, w_d1u_ref, w_d2_ref, w_d3_ref,
                   sel_l_ref, sel_r_ref, bias_ref, o_ref, *, H, W):
    Hp, Wp = H // 2, W // 2
    x = x_ref[...].astype(jnp.float32)                    # (D*H, W), Cin = 1

    def b(i, n):
        return bias_ref[i:i + 1, 0:n]

    # encoder
    h = _conv3x3(x, w_e1_ref, m_full_ref, b(0, W * 8), "relu", H)
    h = _conv3x3(h, w_e2_ref, m_full_ref, b(1, W * 16), "relu", H)
    h = _maxpool2(h, sel_l_ref, sel_r_ref, C=16, H=H)
    h = _conv3x3(h, w_e3_ref, m_pool_ref, b(2, Wp * 32), "relu", Hp)
    h = _conv3x3(h, w_e4_ref, m_pool_ref, b(3, Wp * 32), "relu", Hp)
    # decoder
    h = _conv_transpose2x(h, w_d1m_ref, w_d1u_ref, b(4, W * 16))
    h = _conv3x3(h, w_d2_ref, m_full_ref, b(5, W * 8), "relu", H)
    h = _conv3x3(h, w_d3_ref, m_full_ref, b(6, W * 1), "tanh", H)
    o_ref[...] = h.astype(o_ref.dtype)


# ----------------------------------------------------------------------------
# One fused pallas_call for the whole forward pass
# ----------------------------------------------------------------------------
_PARAM_ORDER = ("m_full", "m_pool", "w_e1", "w_e2", "w_e3", "w_e4",
                "w_d1m", "w_d1u", "w_d2", "w_d3", "sel_l", "sel_r", "bias")


@jax.jit
def aecv3d_forward(x_ncdhw, params):
    """x_ncdhw: (N, 1, D, H, W) float32 -> (N, 1, D, H, W) float32."""
    N, C, D, H, W = x_ncdhw.shape
    assert C == 1
    R = D * H
    x2d = x_ncdhw[:, 0].reshape(N * R, W).astype(jnp.float32)

    ordered = [params[k] for k in _PARAM_ORDER]

    def const_spec(a):
        nd = a.ndim
        return pl.BlockSpec(a.shape, lambda n, _nd=nd: (0,) * _nd)

    in_specs = [pl.BlockSpec((R, W), lambda n: (n, 0))] + [const_spec(a) for a in ordered]

    kernel = functools.partial(_aecv3d_kernel, H=H, W=W)

    out2d = pl.pallas_call(
        kernel,
        out_shape=jax.ShapeDtypeStruct((N * R, W), jnp.float32),
        grid=(N,),                                        # 2 steps -> both TCs on v7x
        in_specs=in_specs,
        out_specs=pl.BlockSpec((R, W), lambda n: (n, 0)),
        compiler_params=pltpu.CompilerParams(
            dimension_semantics=("parallel",),
            # actual working set is a few MiB; comfortably inside every gen
            vmem_limit_bytes=32 * 1024 * 1024,
        ),
    )(x2d, *ordered)

    return out2d.reshape(N, D, H, W)[:, None]             # -> NCDHW (C=1)


# ----------------------------------------------------------------------------
# Parameter init + one-time packing (all layout work happens here, not per call)
# ----------------------------------------------------------------------------
def _init_conv(key, cin, cout, k):
    fan_in = cin * k ** 3
    bound = 1.0 / float(fan_in) ** 0.5
    kw_, kb_ = jax.random.split(key)
    w = jax.random.uniform(kw_, (k, k, k, cin, cout), jnp.float32, -bound, bound)
    b = jax.random.uniform(kb_, (cout,), jnp.float32, -bound, bound)
    return np.asarray(w), np.asarray(b)


def _init_convT(key, cin, cout, k):
    fan_in = cin * k ** 3
    bound = 1.0 / float(fan_in) ** 0.5
    kw_, kb_ = jax.random.split(key)
    w = jax.random.uniform(kw_, (cin, k, k, k, cout), jnp.float32, -bound, bound)
    b = jax.random.uniform(kb_, (cout,), jnp.float32, -bound, bound)
    return np.asarray(w), np.asarray(b)


def _band_w(wgt_kdkh, W, cin, cout):
    """(3, cin, cout) kw-slice -> (W*cin, W*cout) block-banded matrix."""
    B = np.zeros((W * cin, W * cout), np.float32)
    for w_out in range(W):
        for kw in range(3):
            w_in = w_out + kw - 1
            if 0 <= w_in < W:
                B[w_in * cin:(w_in + 1) * cin,
                  w_out * cout:(w_out + 1) * cout] = wgt_kdkh[kw]
    return B


def _pack_conv(wgt, W):
    """(3,3,3,cin,cout) -> (W*cin, 9*128): tap t=kd*3+kh at lane offset 128*t."""
    cin, cout = wgt.shape[3], wgt.shape[4]
    assert W * cout <= 128
    out = np.zeros((W * cin, 9 * 128), np.float32)
    for kd in range(3):
        for kh in range(3):
            t = kd * 3 + kh
            out[:, t * 128:t * 128 + W * cout] = _band_w(wgt[kd, kh], W, cin, cout)
    return out


def _mask_pack(D, H):
    """(9, D*H, 1) 0/1 validity of the (kd, kh)-shifted source row."""
    m = np.zeros((9, D * H, 1), np.float32)
    for kd in range(3):
        for kh in range(3):
            t = kd * 3 + kh
            for d in range(D):
                for h in range(H):
                    if 0 <= d + kd - 1 < D and 0 <= h + kh - 1 < H:
                        m[t, d * H + h, 0] = 1.0
    return m


def _pool_sel(D, H, W, C):
    Dp, Hp, Wp = D // 2, H // 2, W // 2
    sel_l = np.zeros((Dp * Hp, D * H), np.float32)        # keep even (d, h) rows
    for dp in range(Dp):
        for hp in range(Hp):
            sel_l[dp * Hp + hp, (2 * dp) * H + 2 * hp] = 1.0
    sel_r = np.zeros((W * C, Wp * C), np.float32)         # keep even-w lane blocks
    for wp in range(Wp):
        for c in range(C):
            sel_r[(2 * wp) * C + c, wp * C + c] = 1.0
    return sel_l, sel_r


def _convT_pack(wT, Dp, Hp, Wp):
    """wT: (cin, 2, 2, 2, cout) on a (Dp,Hp,Wp) grid -> lane / row expansion mats."""
    cin, cout = wT.shape[0], wT.shape[-1]
    n_out = 2 * Wp * cout
    M = np.zeros((Wp * cin, 4 * n_out), np.float32)
    U = np.zeros((4, (2 * Dp) * (2 * Hp), Dp * Hp), np.float32)
    for a in range(2):
        for bq in range(2):
            ab = a * 2 + bq
            for wp in range(Wp):
                for c in range(2):
                    wo = 2 * wp + c
                    M[wp * cin:(wp + 1) * cin,
                      ab * n_out + wo * cout:ab * n_out + (wo + 1) * cout] = wT[:, a, bq, c, :]
            for dp in range(Dp):
                for hp in range(Hp):
                    U[ab, (2 * dp + a) * (2 * Hp) + (2 * hp + bq), dp * Hp + hp] = 1.0
    return M, U


def _bias_pack(entries):
    bp = np.zeros((8, 128), np.float32)
    for i, (b, rep) in enumerate(entries):
        v = np.tile(b, rep)
        assert v.shape[0] <= 128
        bp[i, :v.shape[0]] = v
    return bp


def init_params(key, D=8, H=8, W=8):
    assert D % 2 == 0 and H % 2 == 0 and W % 2 == 0
    assert W * 16 <= 128 and (W // 2) * 32 <= 128          # lane budget of the packing
    ks = jax.random.split(key, 7)
    e1w, e1b = _init_conv(ks[0], 1, 8, 3)
    e2w, e2b = _init_conv(ks[1], 8, 16, 3)
    e3w, e3b = _init_conv(ks[2], 16, 32, 3)
    e4w, e4b = _init_conv(ks[3], 32, 32, 3)
    d1w, d1b = _init_convT(ks[4], 32, 16, 2)
    d2w, d2b = _init_conv(ks[5], 16, 8, 3)
    d3w, d3b = _init_conv(ks[6], 8, 1, 3)

    Dp, Hp, Wp = D // 2, H // 2, W // 2
    bf = jnp.bfloat16
    sel_l, sel_r = _pool_sel(D, H, W, 16)
    m_d1, u_d1 = _convT_pack(d1w, Dp, Hp, Wp)

    packed = {
        "m_full": jnp.asarray(_mask_pack(D, H), jnp.float32),
        "m_pool": jnp.asarray(_mask_pack(Dp, Hp), jnp.float32),
        "w_e1": jnp.asarray(_pack_conv(e1w, W), bf),
        "w_e2": jnp.asarray(_pack_conv(e2w, W), bf),
        "w_e3": jnp.asarray(_pack_conv(e3w, Wp), bf),
        "w_e4": jnp.asarray(_pack_conv(e4w, Wp), bf),
        "w_d1m": jnp.asarray(m_d1, bf),
        "w_d1u": jnp.asarray(u_d1, bf),
        "w_d2": jnp.asarray(_pack_conv(d2w, W), bf),
        "w_d3": jnp.asarray(_pack_conv(d3w, W), bf),
        "sel_l": jnp.asarray(sel_l, bf),
        "sel_r": jnp.asarray(sel_r, bf),
        "bias": jnp.asarray(_bias_pack(
            [(e1b, W), (e2b, W), (e3b, Wp), (e4b, Wp),
             (d1b, W), (d2b, W), (d3b, W)]), jnp.float32),
    }
    raw = {"e1_w": e1w, "e1_b": e1b, "e2_w": e2w, "e2_b": e2b,
           "e3_w": e3w, "e3_b": e3b, "e4_w": e4w, "e4_b": e4b,
           "d1_w": d1w, "d1_b": d1b, "d2_w": d2w, "d2_b": d2b,
           "d3_w": d3w, "d3_b": d3b}
    return packed, raw


# ----------------------------------------------------------------------------
# Pure-XLA reference (f32) for a correctness cross-check
# ----------------------------------------------------------------------------
def _reference_forward(x_ncdhw, raw):
    dn = ("NDHWC", "DHWIO", "NDHWC")

    def conv(h, w, b, act):
        y = jax.lax.conv_general_dilated(h, jnp.asarray(w), (1, 1, 1), "SAME",
                                         dimension_numbers=dn)
        y = y + jnp.asarray(b)
        return jnp.maximum(y, 0.0) if act == "relu" else jnp.tanh(y)

    h = jnp.transpose(x_ncdhw, (0, 2, 3, 4, 1)).astype(jnp.float32)
    h = conv(h, raw["e1_w"], raw["e1_b"], "relu")
    h = conv(h, raw["e2_w"], raw["e2_b"], "relu")
    h = jax.lax.reduce_window(h, -jnp.inf, jax.lax.max,
                              (1, 2, 2, 2, 1), (1, 2, 2, 2, 1), "VALID")
    h = conv(h, raw["e3_w"], raw["e3_b"], "relu")
    h = conv(h, raw["e4_w"], raw["e4_b"], "relu")
    y = jnp.einsum("ndhwi,iabco->ndahbwco", h, jnp.asarray(raw["d1_w"]))
    N, Dp, _, Hp, _, Wp, _, Co = y.shape
    h = y.reshape(N, 2 * Dp, 2 * Hp, 2 * Wp, Co) + jnp.asarray(raw["d1_b"])
    h = jnp.maximum(h, 0.0)
    h = conv(h, raw["d2_w"], raw["d2_b"], "relu")
    h = conv(h, raw["d3_w"], raw["d3_b"], "tanh")
    return jnp.transpose(h, (0, 4, 1, 2, 3))


if __name__ == "__main__":
    N, D, H, W = 2, 8, 8, 8
    x = jax.random.normal(jax.random.PRNGKey(0), (N, 1, D, H, W), dtype=jnp.float32)
    packed, raw = init_params(jax.random.PRNGKey(42), D, H, W)

    out = aecv3d_forward(x, packed)
    out = jax.block_until_ready(out)

    assert out.shape == (N, 1, D, H, W), out.shape
    assert bool(jnp.all(jnp.isfinite(out)))
    assert bool(jnp.all(jnp.abs(out) <= 1.0 + 1e-6))       # final Tanh bound

    ref = jax.block_until_ready(_reference_forward(x, raw))
    err = float(jnp.max(jnp.abs(out - ref)))
    assert err < 3e-2, f"max abs err vs XLA reference: {err}"

    print("KERNEL_OK")
</pallas_src>

<mosaic_0001>
module attributes {stable_mosaic.version = 11 : i64} {
  func.func @_aecv3d_kernel(%arg0: i32, %arg1: memref<64x8xf32, #tpu.memory_space<vmem>>, %arg2: memref<9x64x1xf32, #tpu.memory_space<vmem>>, %arg3: memref<9x16x1xf32, #tpu.memory_space<vmem>>, %arg4: memref<8x1152xbf16, #tpu.memory_space<vmem>>, %arg5: memref<64x1152xbf16, #tpu.memory_space<vmem>>, %arg6: memref<64x1152xbf16, #tpu.memory_space<vmem>>, %arg7: memref<128x1152xbf16, #tpu.memory_space<vmem>>, %arg8: memref<128x512xbf16, #tpu.memory_space<vmem>>, %arg9: memref<4x64x16xbf16, #tpu.memory_space<vmem>>, %arg10: memref<128x1152xbf16, #tpu.memory_space<vmem>>, %arg11: memref<64x1152xbf16, #tpu.memory_space<vmem>>, %arg12: memref<16x64xbf16, #tpu.memory_space<vmem>>, %arg13: memref<128x64xbf16, #tpu.memory_space<vmem>>, %arg14: memref<8x128xf32, #tpu.memory_space<vmem>>, %arg15: memref<64x8xf32, #tpu.memory_space<vmem>>) attributes {dimension_semantics = [#tpu.dimension_semantics<parallel>], iteration_bounds = array<i64: 2>, scalar_prefetch = 0 : i64, scratch_operands = 0 : i64, tpu.core_type = #tpu.core_type<tc>, window_params = [{transform_indices = @transform_0, window_bounds = array<i64: 64, 8>}, {pipeline_mode = #tpu.pipeline_mode<synchronous>, transform_indices = @transform_1, window_bounds = array<i64: 9, 64, 1>}, {pipeline_mode = #tpu.pipeline_mode<synchronous>, transform_indices = @transform_2, window_bounds = array<i64: 9, 16, 1>}, {pipeline_mode = #tpu.pipeline_mode<synchronous>, transform_indices = @transform_3, window_bounds = array<i64: 8, 1152>}, {pipeline_mode = #tpu.pipeline_mode<synchronous>, transform_indices = @transform_4, window_bounds = array<i64: 64, 1152>}, {pipeline_mode = #tpu.pipeline_mode<synchronous>, transform_indices = @transform_5, window_bounds = array<i64: 64, 1152>}, {pipeline_mode = #tpu.pipeline_mode<synchronous>, transform_indices = @transform_6, window_bounds = array<i64: 128, 1152>}, {pipeline_mode = #tpu.pipeline_mode<synchronous>, transform_indices = @transform_7, window_bounds = array<i64: 128, 512>}, {pipeline_mode = #tpu.pipeline_mode<synchronous>, transform_indices = @transform_8, window_bounds = array<i64: 4, 64, 16>}, {pipeline_mode = #tpu.pipeline_mode<synchronous>, transform_indices = @transform_9, window_bounds = array<i64: 128, 1152>}, {pipeline_mode = #tpu.pipeline_mode<synchronous>, transform_indices = @transform_10, window_bounds = array<i64: 64, 1152>}, {pipeline_mode = #tpu.pipeline_mode<synchronous>, transform_indices = @transform_11, window_bounds = array<i64: 16, 64>}, {pipeline_mode = #tpu.pipeline_mode<synchronous>, transform_indices = @transform_12, window_bounds = array<i64: 128, 64>}, {pipeline_mode = #tpu.pipeline_mode<synchronous>, transform_indices = @transform_13, window_bounds = array<i64: 8, 128>}, {transform_indices = @transform_14, window_bounds = array<i64: 64, 8>}]} {
    %c0 = arith.constant 0 : index
    %c0_0 = arith.constant 0 : index
    %0 = vector.load %arg1[%c0, %c0_0] : memref<64x8xf32, #tpu.memory_space<vmem>>, vector<64x8xf32>
    %c0_1 = arith.constant 0 : index
    %c0_2 = arith.constant 0 : index
    %1 = vector.load %arg14[%c0_1, %c0_2] : memref<8x128xf32, #tpu.memory_space<vmem>>, vector<1x64xf32>
    %2 = arith.truncf %0 : vector<64x8xf32> to vector<64x8xbf16>
    %c0_3 = arith.constant 0 : index
    %c0_4 = arith.constant 0 : index
    %3 = vector.load %arg4[%c0_3, %c0_4] : memref<8x1152xbf16, #tpu.memory_space<vmem>>, vector<8x1152xbf16>
    %cst = arith.constant dense<0.000000e+00> : vector<64x1152xf32>
    %4 = tpu.matmul %2, %3, %cst {dimension_numbers = #tpu.dot_dimension_numbers<[1], [0], [0], [1], [0, 0, 1, 1], [], []>} : vector<64x8xbf16>, vector<8x1152xbf16>, vector<64x1152xf32> -> vector<64x1152xf32>
    %5 = vector.extract_strided_slice %4 {offsets = [0, 0], sizes = [64, 128], strides = [1, 1]} : vector<64x1152xf32> to vector<64x128xf32>
    %c9_i32 = arith.constant 9 : i32
    %6 = tpu.dynamic_rotate %5 by %c9_i32 dim 0 : vector<64x128xf32>, i32 -> vector<64x128xf32>
    %c0_5 = arith.constant 0 : index
    %c0_6 = arith.constant 0 : index
    %c0_7 = arith.constant 0 : index
    %7 = vector.load %arg2[%c0_5, %c0_6, %c0_7] : memref<9x64x1xf32, #tpu.memory_space<vmem>>, vector<1x64x1xf32>
    %8 = vector.shape_cast %7 : vector<1x64x1xf32> to vector<64x1xf32>
    %9 = vector.broadcast %8 : vector<64x1xf32> to vector<64x128xf32>
    %10 = arith.mulf %6, %9 : vector<64x128xf32>
    %11 = vector.extract_strided_slice %4 {offsets = [0, 128], sizes = [64, 128], strides = [1, 1]} : vector<64x1152xf32> to vector<64x128xf32>
    %c8_i32 = arith.constant 8 : i32
    %12 = tpu.dynamic_rotate %11 by %c8_i32 dim 0 : vector<64x128xf32>, i32 -> vector<64x128xf32>
    %c1 = arith.constant 1 : index
    %c0_8 = arith.constant 0 : index
    %c0_9 = arith.constant 0 : index
    %13 = vector.load %arg2[%c1, %c0_8, %c0_9] : memref<9x64x1xf32, #tpu.memory_space<vmem>>, vector<1x64x1xf32>
    %14 = vector.shape_cast %13 : vector<1x64x1xf32> to vector<64x1xf32>
    %15 = vector.broadcast %14 : vector<64x1xf32> to vector<64x128xf32>
    %16 = arith.mulf %12, %15 : vector<64x128xf32>
    %17 = arith.addf %10, %16 : vector<64x128xf32>
    %18 = vector.extract_strided_slice %4 {offsets = [0, 256], sizes = [64, 128], strides = [1, 1]} : vector<64x1152xf32> to vector<64x128xf32>
    %c7_i32 = arith.constant 7 : i32
    %19 = tpu.dynamic_rotate %18 by %c7_i32 dim 0 : vector<64x128xf32>, i32 -> vector<64x128xf32>
    %c2 = arith.constant 2 : index
    %c0_10 = arith.constant 0 : index
    %c0_11 = arith.constant 0 : index
    %20 = vector.load %arg2[%c2, %c0_10, %c0_11] : memref<9x64x1xf32, #tpu.memory_space<vmem>>, vector<1x64x1xf32>
    %21 = vector.shape_cast %20 : vector<1x64x1xf32> to vector<64x1xf32>
    %22 = vector.broadcast %21 : vector<64x1xf32> to vector<64x128xf32>
    %23 = arith.mulf %19, %22 : vector<64x128xf32>
    %24 = arith.addf %17, %23 : vector<64x128xf32>
    %25 = vector.extract_strided_slice %4 {offsets = [0, 384], sizes = [64, 128], strides = [1, 1]} : vector<64x1152xf32> to vector<64x128xf32>
    %c1_i32 = arith.constant 1 : i32
    %26 = tpu.dynamic_rotate %25 by %c1_i32 dim 0 : vector<64x128xf32>, i32 -> vector<64x128xf32>
    %c3 = arith.constant 3 : index
    %c0_12 = arith.constant 0 : index
    %c0_13 = arith.constant 0 : index
    %27 = vector.load %arg2[%c3, %c0_12, %c0_13] : memref<9x64x1xf32, #tpu.memory_space<vmem>>, vector<1x64x1xf32>
    %28 = vector.shape_cast %27 : vector<1x64x1xf32> to vector<64x1xf32>
    %29 = vector.broadcast %28 : vector<64x1xf32> to vector<64x128xf32>
    %30 = arith.mulf %26, %29 : vector<64x128xf32>
    %31 = arith.addf %24, %30 : vector<64x128xf32>
    %32 = vector.extract_strided_slice %4 {offsets = [0, 512], sizes = [64, 128], strides = [1, 1]} : vector<64x1152xf32> to vector<64x128xf32>
    %33 = arith.addf %31, %32 : vector<64x128xf32>
    %34 = vector.extract_strided_slice %4 {offsets = [0, 640], sizes = [64, 128], strides = [1, 1]} : vector<64x1152xf32> to vector<64x128xf32>
    %c63_i32 = arith.constant 63 : i32
    %35 = tpu.dynamic_rotate %34 by %c63_i32 dim 0 : vector<64x128xf32>, i32 -> vector<64x128xf32>
    %c5 = arith.constant 5 : index
    %c0_14 = arith.constant 0 : index
    %c0_15 = arith.constant 0 : index
    %36 = vector.load %arg2[%c5, %c0_14, %c0_15] : memref<9x64x1xf32, #tpu.memory_space<vmem>>, vector<1x64x1xf32>
    %37 = vector.shape_cast %36 : vector<1x64x1xf32> to vector<64x1xf32>
    %38 = vector.broadcast %37 : vector<64x1xf32> to vector<64x128xf32>
    %39 = arith.mulf %35, %38 : vector<64x128xf32>
    %40 = arith.addf %33, %39 : vector<64x128xf32>
    %41 = vector.extract_strided_slice %4 {offsets = [0, 768], sizes = [64, 128], strides = [1, 1]} : vector<64x1152xf32> to vector<64x128xf32>
    %c57_i32 = arith.constant 57 : i32
    %42 = tpu.dynamic_rotate %41 by %c57_i32 dim 0 : vector<64x128xf32>, i32 -> vector<64x128xf32>
    %c6 = arith.constant 6 : index
    %c0_16 = arith.constant 0 : index
    %c0_17 = arith.constant 0 : index
    %43 = vector.load %arg2[%c6, %c0_16, %c0_17] : memref<9x64x1xf32, #tpu.memory_space<vmem>>, vector<1x64x1xf32>
    %44 = vector.shape_cast %43 : vector<1x64x1xf32> to vector<64x1xf32>
    %45 = vector.broadcast %44 : vector<64x1xf32> to vector<64x128xf32>
    %46 = arith.mulf %42, %45 : vector<64x128xf32>
    %47 = arith.addf %40, %46 : vector<64x128xf32>
    %48 = vector.extract_strided_slice %4 {offsets = [0, 896], sizes = [64, 128], strides = [1, 1]} : vector<64x1152xf32> to vector<64x128xf32>
    %c56_i32 = arith.constant 56 : i32
    %49 = tpu.dynamic_rotate %48 by %c56_i32 dim 0 : vector<64x128xf32>, i32 -> vector<64x128xf32>
    %c7 = arith.constant 7 : index
    %c0_18 = arith.constant 0 : index
    %c0_19 = arith.constant 0 : index
    %50 = vector.load %arg2[%c7, %c0_18, %c0_19] : memref<9x64x1xf32, #tpu.memory_space<vmem>>, vector<1x64x1xf32>
    %51 = vector.shape_cast %50 : vector<1x64x1xf32> to vector<64x1xf32>
    %52 = vector.broadcast %51 : vector<64x1xf32> to vector<64x128xf32>
    %53 = arith.mulf %49, %52 : vector<64x128xf32>
    %54 = arith.addf %47, %53 : vector<64x128xf32>
    %55 = vector.extract_strided_slice %4 {offsets = [0, 1024], sizes = [64, 128], strides = [1, 1]} : vector<64x1152xf32> to vector<64x128xf32>
    %c55_i32 = arith.constant 55 : i32
    %56 = tpu.dynamic_rotate %55 by %c55_i32 dim 0 : vector<64x128xf32>, i32 -> vector<64x128xf32>
    %c8 = arith.constant 8 : index
    %c0_20 = arith.constant 0 : index
    %c0_21 = arith.constant 0 : index
    %57 = vector.load %arg2[%c8, %c0_20, %c0_21] : memref<9x64x1xf32, #tpu.memory_space<vmem>>, vector<1x64x1xf32>
    %58 = vector.shape_cast %57 : vector<1x64x1xf32> to vector<64x1xf32>
    %59 = vector.broadcast %58 : vector<64x1xf32> to vector<64x128xf32>
    %60 = arith.mulf %56, %59 : vector<64x128xf32>
    %61 = arith.addf %54, %60 : vector<64x128xf32>
    %62 = vector.extract_strided_slice %61 {offsets = [0, 0], sizes = [64, 64], strides = [1, 1]} : vector<64x128xf32> to vector<64x64xf32>
    %63 = vector.broadcast %1 : vector<1x64xf32> to vector<64x64xf32>
    %64 = arith.addf %62, %63 : vector<64x64xf32>
    %cst_22 = arith.constant 0.000000e+00 : f32
    %65 = vector.broadcast %cst_22 : f32 to vector<64x64xf32>
    %66 = arith.maximumf %64, %65 : vector<64x64xf32>
    %c1_23 = arith.constant 1 : index
    %c0_24 = arith.constant 0 : index
    %67 = vector.load %arg14[%c1_23, %c0_24] : memref<8x128xf32, #tpu.memory_space<vmem>>, vector<1x128xf32>
    %68 = arith.truncf %66 : vector<64x64xf32> to vector<64x64xbf16>
    %c0_25 = arith.constant 0 : index
    %c0_26 = arith.constant 0 : index
    %69 = vector.load %arg5[%c0_25, %c0_26] : memref<64x1152xbf16, #tpu.memory_space<vmem>>, vector<64x1152xbf16>
    %cst_27 = arith.constant dense<0.000000e+00> : vector<64x1152xf32>
    %70 = tpu.matmul %68, %69, %cst_27 {dimension_numbers = #tpu.dot_dimension_numbers<[1], [0], [0], [1], [0, 0, 1, 1], [], []>} : vector<64x64xbf16>, vector<64x1152xbf16>, vector<64x1152xf32> -> vector<64x1152xf32>
    %71 = vector.extract_strided_slice %70 {offsets = [0, 0], sizes = [64, 128], strides = [1, 1]} : vector<64x1152xf32> to vector<64x128xf32>
    %c9_i32_28 = arith.constant 9 : i32
    %72 = tpu.dynamic_rotate %71 by %c9_i32_28 dim 0 : vector<64x128xf32>, i32 -> vector<64x128xf32>
    %c0_29 = arith.constant 0 : index
    %c0_30 = arith.constant 0 : index
    %c0_31 = arith.constant 0 : index
    %73 = vector.load %arg2[%c0_29, %c0_30, %c0_31] : memref<9x64x1xf32, #tpu.memory_space<vmem>>, vector<1x64x1xf32>
    %74 = vector.shape_cast %73 : vector<1x64x1xf32> to vector<64x1xf32>
    %75 = vector.broadcast %74 : vector<64x1xf32> to vector<64x128xf32>
    %76 = arith.mulf %72, %75 : vector<64x128xf32>
    %77 = vector.extract_strided_slice %70 {offsets = [0, 128], sizes = [64, 128], strides = [1, 1]} : vector<64x1152xf32> to vector<64x128xf32>
    %c8_i32_32 = arith.constant 8 : i32
    %78 = tpu.dynamic_rotate %77 by %c8_i32_32 dim 0 : vector<64x128xf32>, i32 -> vector<64x128xf32>
    %c1_33 = arith.constant 1 : index
    %c0_34 = arith.constant 0 : index
    %c0_35 = arith.constant 0 : index
    %79 = vector.load %arg2[%c1_33, %c0_34, %c0_35] : memref<9x64x1xf32, #tpu.memory_space<vmem>>, vector<1x64x1xf32>
    %80 = vector.shape_cast %79 : vector<1x64x1xf32> to vector<64x1xf32>
    %81 = vector.broadcast %80 : vector<64x1xf32> to vector<64x128xf32>
    %82 = arith.mulf %78, %81 : vector<64x128xf32>
    %83 = arith.addf %76, %82 : vector<64x128xf32>
    %84 = vector.extract_strided_slice %70 {offsets = [0, 256], sizes = [64, 128], strides = [1, 1]} : vector<64x1152xf32> to vector<64x128xf32>
    %c7_i32_36 = arith.constant 7 : i32
    %85 = tpu.dynamic_rotate %84 by %c7_i32_36 dim 0 : vector<64x128xf32>, i32 -> vector<64x128xf32>
    %c2_37 = arith.constant 2 : index
    %c0_38 = arith.constant 0 : index
    %c0_39 = arith.constant 0 : index
    %86 = vector.load %arg2[%c2_37, %c0_38, %c0_39] : memref<9x64x1xf32, #tpu.memory_space<vmem>>, vector<1x64x1xf32>
    %87 = vector.shape_cast %86 : vector<1x64x1xf32> to vector<64x1xf32>
    %88 = vector.broadcast %87 : vector<64x1xf32> to vector<64x128xf32>
    %89 = arith.mulf %85, %88 : vector<64x128xf32>
    %90 = arith.addf %83, %89 : vector<64x128xf32>
    %91 = vector.extract_strided_slice %70 {offsets = [0, 384], sizes = [64, 128], strides = [1, 1]} : vector<64x1152xf32> to vector<64x128xf32>
    %c1_i32_40 = arith.constant 1 : i32
    %92 = tpu.dynamic_rotate %91 by %c1_i32_40 dim 0 : vector<64x128xf32>, i32 -> vector<64x128xf32>
    %c3_41 = arith.constant 3 : index
    %c0_42 = arith.constant 0 : index
    %c0_43 = arith.constant 0 : index
    %93 = vector.load %arg2[%c3_41, %c0_42, %c0_43] : memref<9x64x1xf32, #tpu.memory_space<vmem>>, vector<1x64x1xf32>
    %94 = vector.shape_cast %93 : vector<1x64x1xf32> to vector<64x1xf32>
    %95 = vector.broadcast %94 : vector<64x1xf32> to vector<64x128xf32>
    %96 = arith.mulf %92, %95 : vector<64x128xf32>
    %97 = arith.addf %90, %96 : vector<64x128xf32>
    %98 = vector.extract_strided_slice %70 {offsets = [0, 512], sizes = [64, 128], strides = [1, 1]} : vector<64x1152xf32> to vector<64x128xf32>
    %99 = arith.addf %97, %98 : vector<64x128xf32>
    %100 = vector.extract_strided_slice %70 {offsets = [0, 640], sizes = [64, 128], strides = [1, 1]} : vector<64x1152xf32> to vector<64x128xf32>
    %c63_i32_44 = arith.constant 63 : i32
    %101 = tpu.dynamic_rotate %100 by %c63_i32_44 dim 0 : vector<64x128xf32>, i32 -> vector<64x128xf32>
    %c5_45 = arith.constant 5 : index
    %c0_46 = arith.constant 0 : index
    %c0_47 = arith.constant 0 : index
    %102 = vector.load %arg2[%c5_45, %c0_46, %c0_47] : memref<9x64x1xf32, #tpu.memory_space<vmem>>, vector<1x64x1xf32>
    %103 = vector.shape_cast %102 : vector<1x64x1xf32> to vector<64x1xf32>
    %104 = vector.broadcast %103 : vector<64x1xf32> to vector<64x128xf32>
    %105 = arith.mulf %101, %104 : vector<64x128xf32>
    %106 = arith.addf %99, %105 : vector<64x128xf32>
    %107 = vector.extract_strided_slice %70 {offsets = [0, 768], sizes = [64, 128], strides = [1, 1]} : vector<64x1152xf32> to vector<64x128xf32>
    %c57_i32_48 = arith.constant 57 : i32
    %108 = tpu.dynamic_rotate %107 by %c57_i32_48 dim 0 : vector<64x128xf32>, i32 -> vector<64x128xf32>
    %c6_49 = arith.constant 6 : index
    %c0_50 = arith.constant 0 : index
    %c0_51 = arith.constant 0 : index
    %109 = vector.load %arg2[%c6_49, %c0_50, %c0_51] : memref<9x64x1xf32, #tpu.memory_space<vmem>>, vector<1x64x1xf32>
    %110 = vector.shape_cast %109 : vector<1x64x1xf32> to vector<64x1xf32>
    %111 = vector.broadcast %110 : vector<64x1xf32> to vector<64x128xf32>
    %112 = arith.mulf %108, %111 : vector<64x128xf32>
    %113 = arith.addf %106, %112 : vector<64x128xf32>
    %114 = vector.extract_strided_slice %70 {offsets = [0, 896], sizes = [64, 128], strides = [1, 1]} : vector<64x1152xf32> to vector<64x128xf32>
    %c56_i32_52 = arith.constant 56 : i32
    %115 = tpu.dynamic_rotate %114 by %c56_i32_52 dim 0 : vector<64x128xf32>, i32 -> vector<64x128xf32>
    %c7_53 = arith.constant 7 : index
    %c0_54 = arith.constant 0 : index
    %c0_55 = arith.constant 0 : index
    %116 = vector.load %arg2[%c7_53, %c0_54, %c0_55] : memref<9x64x1xf32, #tpu.memory_space<vmem>>, vector<1x64x1xf32>
    %117 = vector.shape_cast %116 : vector<1x64x1xf32> to vector<64x1xf32>
    %118 = vector.broadcast %117 : vector<64x1xf32> to vector<64x128xf32>
    %119 = arith.mulf %115, %118 : vector<64x128xf32>
    %120 = arith.addf %113, %119 : vector<64x128xf32>
    %121 = vector.extract_strided_slice %70 {offsets = [0, 1024], sizes = [64, 128], strides = [1, 1]} : vector<64x1152xf32> to vector<64x128xf32>
    %c55_i32_56 = arith.constant 55 : i32
    %122 = tpu.dynamic_rotate %121 by %c55_i32_56 dim 0 : vector<64x128xf32>, i32 -> vector<64x128xf32>
    %c8_57 = arith.constant 8 : index
    %c0_58 = arith.constant 0 : index
    %c0_59 = arith.constant 0 : index
    %123 = vector.load %arg2[%c8_57, %c0_58, %c0_59] : memref<9x64x1xf32, #tpu.memory_space<vmem>>, vector<1x64x1xf32>
    %124 = vector.shape_cast %123 : vector<1x64x1xf32> to vector<64x1xf32>
    %125 = vector.broadcast %124 : vector<64x1xf32> to vector<64x128xf32>
    %126 = arith.mulf %122, %125 : vector<64x128xf32>
    %127 = arith.addf %120, %126 : vector<64x128xf32>
    %128 = vector.broadcast %67 : vector<1x128xf32> to vector<64x128xf32>
    %129 = arith.addf %127, %128 : vector<64x128xf32>
    %cst_60 = arith.constant 0.000000e+00 : f32
    %130 = vector.broadcast %cst_60 : f32 to vector<64x128xf32>
    %131 = arith.maximumf %129, %130 : vector<64x128xf32>
    %c112_i32 = arith.constant 112 : i32
    %132 = tpu.dynamic_rotate %131 by %c112_i32 dim 1 : vector<64x128xf32>, i32 -> vector<64x128xf32>
    %133 = arith.maximumf %131, %132 : vector<64x128xf32>
    %c63_i32_61 = arith.constant 63 : i32
    %134 = tpu.dynamic_rotate %133 by %c63_i32_61 dim 0 : vector<64x128xf32>, i32 -> vector<64x128xf32>
    %135 = arith.maximumf %133, %134 : vector<64x128xf32>
    %c56_i32_62 = arith.constant 56 : i32
    %136 = tpu.dynamic_rotate %135 by %c56_i32_62 dim 0 : vector<64x128xf32>, i32 -> vector<64x128xf32>
    %137 = arith.maximumf %135, %136 : vector<64x128xf32>
    %c0_63 = arith.constant 0 : index
    %c0_64 = arith.constant 0 : index
    %138 = vector.load %arg12[%c0_63, %c0_64] : memref<16x64xbf16, #tpu.memory_space<vmem>>, vector<16x64xbf16>
    %139 = arith.truncf %137 : vector<64x128xf32> to vector<64x128xbf16>
    %cst_65 = arith.constant dense<0.000000e+00> : vector<16x128xf32>
    %140 = tpu.matmul %138, %139, %cst_65 {dimension_numbers = #tpu.dot_dimension_numbers<[1], [0], [0], [1], [0, 0, 1, 1], [], []>} : vector<16x64xbf16>, vector<64x128xbf16>, vector<16x128xf32> -> vector<16x128xf32>
    %141 = arith.truncf %140 : vector<16x128xf32> to vector<16x128xbf16>
    %c0_66 = arith.constant 0 : index
    %c0_67 = arith.constant 0 : index
    %142 = vector.load %arg13[%c0_66, %c0_67] : memref<128x64xbf16, #tpu.memory_space<vmem>>, vector<128x64xbf16>
    %cst_68 = arith.constant dense<0.000000e+00> : vector<16x64xf32>
    %143 = tpu.matmul %141, %142, %cst_68 {dimension_numbers = #tpu.dot_dimension_numbers<[1], [0], [0], [1], [0, 0, 1, 1], [], []>} : vector<16x128xbf16>, vector<128x64xbf16>, vector<16x64xf32> -> vector<16x64xf32>
    %c2_69 = arith.constant 2 : index
    %c0_70 = arith.constant 0 : index
    %144 = vector.load %arg14[%c2_69, %c0_70] : memref<8x128xf32, #tpu.memory_space<vmem>>, vector<1x128xf32>
    %145 = arith.truncf %143 : vector<16x64xf32> to vector<16x64xbf16>
    %c0_71 = arith.constant 0 : index
    %c0_72 = arith.constant 0 : index
    %146 = vector.load %arg6[%c0_71, %c0_72] : memref<64x1152xbf16, #tpu.memory_space<vmem>>, vector<64x1152xbf16>
    %cst_73 = arith.constant dense<0.000000e+00> : vector<16x1152xf32>
    %147 = tpu.matmul %145, %146, %cst_73 {dimension_numbers = #tpu.dot_dimension_numbers<[1], [0], [0], [1], [0, 0, 1, 1], [], []>} : vector<16x64xbf16>, vector<64x1152xbf16>, vector<16x1152xf32> -> vector<16x1152xf32>
    %148 = vector.extract_strided_slice %147 {offsets = [0, 0], sizes = [16, 128], strides = [1, 1]} : vector<16x1152xf32> to vector<16x128xf32>
    %c5_i32 = arith.constant 5 : i32
    %149 = tpu.dynamic_rotate %148 by %c5_i32 dim 0 : vector<16x128xf32>, i32 -> vector<16x128xf32>
    %c0_74 = arith.constant 0 : index
    %c0_75 = arith.constant 0 : index
    %c0_76 = arith.constant 0 : index
    %150 = vector.load %arg3[%c0_74, %c0_75, %c0_76] : memref<9x16x1xf32, #tpu.memory_space<vmem>>, vector<1x16x1xf32>
    %151 = vector.shape_cast %150 : vector<1x16x1xf32> to vector<16x1xf32>
    %152 = vector.broadcast %151 : vector<16x1xf32> to vector<16x128xf32>
    %153 = arith.mulf %149, %152 : vector<16x128xf32>
    %154 = vector.extract_strided_slice %147 {offsets = [0, 128], sizes = [16, 128], strides = [1, 1]} : vector<16x1152xf32> to vector<16x128xf32>
    %c4_i32 = arith.constant 4 : i32
    %155 = tpu.dynamic_rotate %154 by %c4_i32 dim 0 : vector<16x128xf32>, i32 -> vector<16x128xf32>
    %c1_77 = arith.constant 1 : index
    %c0_78 = arith.constant 0 : index
    %c0_79 = arith.constant 0 : index
    %156 = vector.load %arg3[%c1_77, %c0_78, %c0_79] : memref<9x16x1xf32, #tpu.memory_space<vmem>>, vector<1x16x1xf32>
    %157 = vector.shape_cast %156 : vector<1x16x1xf32> to vector<16x1xf32>
    %158 = vector.broadcast %157 : vector<16x1xf32> to vector<16x128xf32>
    %159 = arith.mulf %155, %158 : vector<16x128xf32>
    %160 = arith.addf %153, %159 : vector<16x128xf32>
    %161 = vector.extract_strided_slice %147 {offsets = [0, 256], sizes = [16, 128], strides = [1, 1]} : vector<16x1152xf32> to vector<16x128xf32>
    %c3_i32 = arith.constant 3 : i32
    %162 = tpu.dynamic_rotate %161 by %c3_i32 dim 0 : vector<16x128xf32>, i32 -> vector<16x128xf32>
    %c2_80 = arith.constant 2 : index
    %c0_81 = arith.constant 0 : index
    %c0_82 = arith.constant 0 : index
    %163 = vector.load %arg3[%c2_80, %c0_81, %c0_82] : memref<9x16x1xf32, #tpu.memory_space<vmem>>, vector<1x16x1xf32>
    %164 = vector.shape_cast %163 : vector<1x16x1xf32> to vector<16x1xf32>
    %165 = vector.broadcast %164 : vector<16x1xf32> to vector<16x128xf32>
    %166 = arith.mulf %162, %165 : vector<16x128xf32>
    %167 = arith.addf %160, %166 : vector<16x128xf32>
    %168 = vector.extract_strided_slice %147 {offsets = [0, 384], sizes = [16, 128], strides = [1, 1]} : vector<16x1152xf32> to vector<16x128xf32>
    %c1_i32_83 = arith.constant 1 : i32
    %169 = tpu.dynamic_rotate %168 by %c1_i32_83 dim 0 : vector<16x128xf32>, i32 -> vector<16x128xf32>
    %c3_84 = arith.constant 3 : index
    %c0_85 = arith.constant 0 : index
    %c0_86 = arith.constant 0 : index
    %170 = vector.load %arg3[%c3_84, %c0_85, %c0_86] : memref<9x16x1xf32, #tpu.memory_space<vmem>>, vector<1x16x1xf32>
    %171 = vector.shape_cast %170 : vector<1x16x1xf32> to vector<16x1xf32>
    %172 = vector.broadcast %171 : vector<16x1xf32> to vector<16x128xf32>
    %173 = arith.mulf %169, %172 : vector<16x128xf32>
    %174 = arith.addf %167, %173 : vector<16x128xf32>
    %175 = vector.extract_strided_slice %147 {offsets = [0, 512], sizes = [16, 128], strides = [1, 1]} : vector<16x1152xf32> to vector<16x128xf32>
    %176 = arith.addf %174, %175 : vector<16x128xf32>
    %177 = vector.extract_strided_slice %147 {offsets = [0, 640], sizes = [16, 128], strides = [1, 1]} : vector<16x1152xf32> to vector<16x128xf32>
    %c15_i32 = arith.constant 15 : i32
    %178 = tpu.dynamic_rotate %177 by %c15_i32 dim 0 : vector<16x128xf32>, i32 -> vector<16x128xf32>
    %c5_87 = arith.constant 5 : index
    %c0_88 = arith.constant 0 : index
    %c0_89 = arith.constant 0 : index
    %179 = vector.load %arg3[%c5_87, %c0_88, %c0_89] : memref<9x16x1xf32, #tpu.memory_space<vmem>>, vector<1x16x1xf32>
    %180 = vector.shape_cast %179 : vector<1x16x1xf32> to vector<16x1xf32>
    %181 = vector.broadcast %180 : vector<16x1xf32> to vector<16x128xf32>
    %182 = arith.mulf %178, %181 : vector<16x128xf32>
    %183 = arith.addf %176, %182 : vector<16x128xf32>
    %184 = vector.extract_strided_slice %147 {offsets = [0, 768], sizes = [16, 128], strides = [1, 1]} : vector<16x1152xf32> to vector<16x128xf32>
    %c13_i32 = arith.constant 13 : i32
    %185 = tpu.dynamic_rotate %184 by %c13_i32 dim 0 : vector<16x128xf32>, i32 -> vector<16x128xf32>
    %c6_90 = arith.constant 6 : index
    %c0_91 = arith.constant 0 : index
    %c0_92 = arith.constant 0 : index
    %186 = vector.load %arg3[%c6_90, %c0_91, %c0_92] : memref<9x16x1xf32, #tpu.memory_space<vmem>>, vector<1x16x1xf32>
    %187 = vector.shape_cast %186 : vector<1x16x1xf32> to vector<16x1xf32>
    %188 = vector.broadcast %187 : vector<16x1xf32> to vector<16x128xf32>
    %189 = arith.mulf %185, %188 : vector<16x128xf32>
    %190 = arith.addf %183, %189 : vector<16x128xf32>
    %191 = vector.extract_strided_slice %147 {offsets = [0, 896], sizes = [16, 128], strides = [1, 1]} : vector<16x1152xf32> to vector<16x128xf32>
    %c12_i32 = arith.constant 12 : i32
    %192 = tpu.dynamic_rotate %191 by %c12_i32 dim 0 : vector<16x128xf32>, i32 -> vector<16x128xf32>
    %c7_93 = arith.constant 7 : index
    %c0_94 = arith.constant 0 : index
    %c0_95 = arith.constant 0 : index
    %193 = vector.load %arg3[%c7_93, %c0_94, %c0_95] : memref<9x16x1xf32, #tpu.memory_space<vmem>>, vector<1x16x1xf32>
    %194 = vector.shape_cast %193 : vector<1x16x1xf32> to vector<16x1xf32>
    %195 = vector.broadcast %194 : vector<16x1xf32> to vector<16x128xf32>
    %196 = arith.mulf %192, %195 : vector<16x128xf32>
    %197 = arith.addf %190, %196 : vector<16x128xf32>
    %198 = vector.extract_strided_slice %147 {offsets = [0, 1024], sizes = [16, 128], strides = [1, 1]} : vector<16x1152xf32> to vector<16x128xf32>
    %c11_i32 = arith.constant 11 : i32
    %199 = tpu.dynamic_rotate %198 by %c11_i32 dim 0 : vector<16x128xf32>, i32 -> vector<16x128xf32>
    %c8_96 = arith.constant 8 : index
    %c0_97 = arith.constant 0 : index
    %c0_98 = arith.constant 0 : index
    %200 = vector.load %arg3[%c8_96, %c0_97, %c0_98] : memref<9x16x1xf32, #tpu.memory_space<vmem>>, vector<1x16x1xf32>
    %201 = vector.shape_cast %200 : vector<1x16x1xf32> to vector<16x1xf32>
    %202 = vector.broadcast %201 : vector<16x1xf32> to vector<16x128xf32>
    %203 = arith.mulf %199, %202 : vector<16x128xf32>
    %204 = arith.addf %197, %203 : vector<16x128xf32>
    %205 = vector.broadcast %144 : vector<1x128xf32> to vector<16x128xf32>
    %206 = arith.addf %204, %205 : vector<16x128xf32>
    %cst_99 = arith.constant 0.000000e+00 : f32
    %207 = vector.broadcast %cst_99 : f32 to vector<16x128xf32>
    %208 = arith.maximumf %206, %207 : vector<16x128xf32>
    %c3_100 = arith.constant 3 : index
    %c0_101 = arith.constant 0 : index
    %209 = vector.load %arg14[%c3_100, %c0_101] : memref<8x128xf32, #tpu.memory_space<vmem>>, vector<1x128xf32>
    %210 = arith.truncf %208 : vector<16x128xf32> to vector<16x128xbf16>
    %c0_102 = arith.constant 0 : index
    %c0_103 = arith.constant 0 : index
    %211 = vector.load %arg7[%c0_102, %c0_103] : memref<128x1152xbf16, #tpu.memory_space<vmem>>, vector<128x1152xbf16>
    %cst_104 = arith.constant dense<0.000000e+00> : vector<16x1152xf32>
    %212 = tpu.matmul %210, %211, %cst_104 {dimension_numbers = #tpu.dot_dimension_numbers<[1], [0], [0], [1], [0, 0, 1, 1], [], []>} : vector<16x128xbf16>, vector<128x1152xbf16>, vector<16x1152xf32> -> vector<16x1152xf32>
    %213 = vector.extract_strided_slice %212 {offsets = [0, 0], sizes = [16, 128], strides = [1, 1]} : vector<16x1152xf32> to vector<16x128xf32>
    %c5_i32_105 = arith.constant 5 : i32
    %214 = tpu.dynamic_rotate %213 by %c5_i32_105 dim 0 : vector<16x128xf32>, i32 -> vector<16x128xf32>
    %c0_106 = arith.constant 0 : index
    %c0_107 = arith.constant 0 : index
    %c0_108 = arith.constant 0 : index
    %215 = vector.load %arg3[%c0_106, %c0_107, %c0_108] : memref<9x16x1xf32, #tpu.memory_space<vmem>>, vector<1x16x1xf32>
    %216 = vector.shape_cast %215 : vector<1x16x1xf32> to vector<16x1xf32>
    %217 = vector.broadcast %216 : vector<16x1xf32> to vector<16x128xf32>
    %218 = arith.mulf %214, %217 : vector<16x128xf32>
    %219 = vector.extract_strided_slice %212 {offsets = [0, 128], sizes = [16, 128], strides = [1, 1]} : vector<16x1152xf32> to vector<16x128xf32>
    %c4_i32_109 = arith.constant 4 : i32
    %220 = tpu.dynamic_rotate %219 by %c4_i32_109 dim 0 : vector<16x128xf32>, i32 -> vector<16x128xf32>
    %c1_110 = arith.constant 1 : index
    %c0_111 = arith.constant 0 : index
    %c0_112 = arith.constant 0 : index
    %221 = vector.load %arg3[%c1_110, %c0_111, %c0_112] : memref<9x16x1xf32, #tpu.memory_space<vmem>>, vector<1x16x1xf32>
    %222 = vector.shape_cast %221 : vector<1x16x1xf32> to vector<16x1xf32>
    %223 = vector.broadcast %222 : vector<16x1xf32> to vector<16x128xf32>
    %224 = arith.mulf %220, %223 : vector<16x128xf32>
    %225 = arith.addf %218, %224 : vector<16x128xf32>
    %226 = vector.extract_strided_slice %212 {offsets = [0, 256], sizes = [16, 128], strides = [1, 1]} : vector<16x1152xf32> to vector<16x128xf32>
    %c3_i32_113 = arith.constant 3 : i32
    %227 = tpu.dynamic_rotate %226 by %c3_i32_113 dim 0 : vector<16x128xf32>, i32 -> vector<16x128xf32>
    %c2_114 = arith.constant 2 : index
    %c0_115 = arith.constant 0 : index
    %c0_116 = arith.constant 0 : index
    %228 = vector.load %arg3[%c2_114, %c0_115, %c0_116] : memref<9x16x1xf32, #tpu.memory_space<vmem>>, vector<1x16x1xf32>
    %229 = vector.shape_cast %228 : vector<1x16x1xf32> to vector<16x1xf32>
    %230 = vector.broadcast %229 : vector<16x1xf32> to vector<16x128xf32>
    %231 = arith.mulf %227, %230 : vector<16x128xf32>
    %232 = arith.addf %225, %231 : vector<16x128xf32>
    %233 = vector.extract_strided_slice %212 {offsets = [0, 384], sizes = [16, 128], strides = [1, 1]} : vector<16x1152xf32> to vector<16x128xf32>
    %c1_i32_117 = arith.constant 1 : i32
    %234 = tpu.dynamic_rotate %233 by %c1_i32_117 dim 0 : vector<16x128xf32>, i32 -> vector<16x128xf32>
    %c3_118 = arith.constant 3 : index
    %c0_119 = arith.constant 0 : index
    %c0_120 = arith.constant 0 : index
    %235 = vector.load %arg3[%c3_118, %c0_119, %c0_120] : memref<9x16x1xf32, #tpu.memory_space<vmem>>, vector<1x16x1xf32>
    %236 = vector.shape_cast %235 : vector<1x16x1xf32> to vector<16x1xf32>
    %237 = vector.broadcast %236 : vector<16x1xf32> to vector<16x128xf32>
    %238 = arith.mulf %234, %237 : vector<16x128xf32>
    %239 = arith.addf %232, %238 : vector<16x128xf32>
    %240 = vector.extract_strided_slice %212 {offsets = [0, 512], sizes = [16, 128], strides = [1, 1]} : vector<16x1152xf32> to vector<16x128xf32>
    %241 = arith.addf %239, %240 : vector<16x128xf32>
    %242 = vector.extract_strided_slice %212 {offsets = [0, 640], sizes = [16, 128], strides = [1, 1]} : vector<16x1152xf32> to vector<16x128xf32>
    %c15_i32_121 = arith.constant 15 : i32
    %243 = tpu.dynamic_rotate %242 by %c15_i32_121 dim 0 : vector<16x128xf32>, i32 -> vector<16x128xf32>
    %c5_122 = arith.constant 5 : index
    %c0_123 = arith.constant 0 : index
    %c0_124 = arith.constant 0 : index
    %244 = vector.load %arg3[%c5_122, %c0_123, %c0_124] : memref<9x16x1xf32, #tpu.memory_space<vmem>>, vector<1x16x1xf32>
    %245 = vector.shape_cast %244 : vector<1x16x1xf32> to vector<16x1xf32>
    %246 = vector.broadcast %245 : vector<16x1xf32> to vector<16x128xf32>
    %247 = arith.mulf %243, %246 : vector<16x128xf32>
    %248 = arith.addf %241, %247 : vector<16x128xf32>
    %249 = vector.extract_strided_slice %212 {offsets = [0, 768], sizes = [16, 128], strides = [1, 1]} : vector<16x1152xf32> to vector<16x128xf32>
    %c13_i32_125 = arith.constant 13 : i32
    %250 = tpu.dynamic_rotate %249 by %c13_i32_125 dim 0 : vector<16x128xf32>, i32 -> vector<16x128xf32>
    %c6_126 = arith.constant 6 : index
    %c0_127 = arith.constant 0 : index
    %c0_128 = arith.constant 0 : index
    %251 = vector.load %arg3[%c6_126, %c0_127, %c0_128] : memref<9x16x1xf32, #tpu.memory_space<vmem>>, vector<1x16x1xf32>
    %252 = vector.shape_cast %251 : vector<1x16x1xf32> to vector<16x1xf32>
    %253 = vector.broadcast %252 : vector<16x1xf32> to vector<16x128xf32>
    %254 = arith.mulf %250, %253 : vector<16x128xf32>
    %255 = arith.addf %248, %254 : vector<16x128xf32>
    %256 = vector.extract_strided_slice %212 {offsets = [0, 896], sizes = [16, 128], strides = [1, 1]} : vector<16x1152xf32> to vector<16x128xf32>
    %c12_i32_129 = arith.constant 12 : i32
    %257 = tpu.dynamic_rotate %256 by %c12_i32_129 dim 0 : vector<16x128xf32>, i32 -> vector<16x128xf32>
    %c7_130 = arith.constant 7 : index
    %c0_131 = arith.constant 0 : index
    %c0_132 = arith.constant 0 : index
    %258 = vector.load %arg3[%c7_130, %c0_131, %c0_132] : memref<9x16x1xf32, #tpu.memory_space<vmem>>, vector<1x16x1xf32>
    %259 = vector.shape_cast %258 : vector<1x16x1xf32> to vector<16x1xf32>
    %260 = vector.broadcast %259 : vector<16x1xf32> to vector<16x128xf32>
    %261 = arith.mulf %257, %260 : vector<16x128xf32>
    %262 = arith.addf %255, %261 : vector<16x128xf32>
    %263 = vector.extract_strided_slice %212 {offsets = [0, 1024], sizes = [16, 128], strides = [1, 1]} : vector<16x1152xf32> to vector<16x128xf32>
    %c11_i32_133 = arith.constant 11 : i32
    %264 = tpu.dynamic_rotate %263 by %c11_i32_133 dim 0 : vector<16x128xf32>, i32 -> vector<16x128xf32>
    %c8_134 = arith.constant 8 : index
    %c0_135 = arith.constant 0 : index
    %c0_136 = arith.constant 0 : index
    %265 = vector.load %arg3[%c8_134, %c0_135, %c0_136] : memref<9x16x1xf32, #tpu.memory_space<vmem>>, vector<1x16x1xf32>
    %266 = vector.shape_cast %265 : vector<1x16x1xf32> to vector<16x1xf32>
    %267 = vector.broadcast %266 : vector<16x1xf32> to vector<16x128xf32>
    %268 = arith.mulf %264, %267 : vector<16x128xf32>
    %269 = arith.addf %262, %268 : vector<16x128xf32>
    %270 = vector.broadcast %209 : vector<1x128xf32> to vector<16x128xf32>
    %271 = arith.addf %269, %270 : vector<16x128xf32>
    %cst_137 = arith.constant 0.000000e+00 : f32
    %272 = vector.broadcast %cst_137 : f32 to vector<16x128xf32>
    %273 = arith.maximumf %271, %272 : vector<16x128xf32>
    %c4 = arith.constant 4 : index
    %c0_138 = arith.constant 0 : index
    %274 = vector.load %arg14[%c4, %c0_138] : memref<8x128xf32, #tpu.memory_space<vmem>>, vector<1x128xf32>
    %275 = arith.truncf %273 : vector<16x128xf32> to vector<16x128xbf16>
    %c0_139 = arith.constant 0 : index
    %c0_140 = arith.constant 0 : index
    %276 = vector.load %arg8[%c0_139, %c0_140] : memref<128x512xbf16, #tpu.memory_space<vmem>>, vector<128x512xbf16>
    %cst_141 = arith.constant dense<0.000000e+00> : vector<16x512xf32>
    %277 = tpu.matmul %275, %276, %cst_141 {dimension_numbers = #tpu.dot_dimension_numbers<[1], [0], [0], [1], [0, 0, 1, 1], [], []>} : vector<16x128xbf16>, vector<128x512xbf16>, vector<16x512xf32> -> vector<16x512xf32>
    %278 = vector.extract_strided_slice %277 {offsets = [0, 0], sizes = [16, 128], strides = [1, 1]} : vector<16x512xf32> to vector<16x128xf32>
    %279 = arith.truncf %278 : vector<16x128xf32> to vector<16x128xbf16>
    %c0_142 = arith.constant 0 : index
    %c0_143 = arith.constant 0 : index
    %c0_144 = arith.constant 0 : index
    %280 = vector.load %arg9[%c0_142, %c0_143, %c0_144] : memref<4x64x16xbf16, #tpu.memory_space<vmem>>, vector<1x64x16xbf16>
    %281 = vector.shape_cast %280 : vector<1x64x16xbf16> to vector<64x16xbf16>
    %cst_145 = arith.constant dense<0.000000e+00> : vector<64x128xf32>
    %282 = tpu.matmul %281, %279, %cst_145 {dimension_numbers = #tpu.dot_dimension_numbers<[1], [0], [0], [1], [0, 0, 1, 1], [], []>} : vector<64x16xbf16>, vector<16x128xbf16>, vector<64x128xf32> -> vector<64x128xf32>
    %283 = vector.extract_strided_slice %277 {offsets = [0, 128], sizes = [16, 128], strides = [1, 1]} : vector<16x512xf32> to vector<16x128xf32>
    %284 = arith.truncf %283 : vector<16x128xf32> to vector<16x128xbf16>
    %c1_146 = arith.constant 1 : index
    %c0_147 = arith.constant 0 : index
    %c0_148 = arith.constant 0 : index
    %285 = vector.load %arg9[%c1_146, %c0_147, %c0_148] : memref<4x64x16xbf16, #tpu.memory_space<vmem>>, vector<1x64x16xbf16>
    %286 = vector.shape_cast %285 : vector<1x64x16xbf16> to vector<64x16xbf16>
    %cst_149 = arith.constant dense<0.000000e+00> : vector<64x128xf32>
    %287 = tpu.matmul %286, %284, %cst_149 {dimension_numbers = #tpu.dot_dimension_numbers<[1], [0], [0], [1], [0, 0, 1, 1], [], []>} : vector<64x16xbf16>, vector<16x128xbf16>, vector<64x128xf32> -> vector<64x128xf32>
    %288 = arith.addf %282, %287 : vector<64x128xf32>
    %289 = vector.extract_strided_slice %277 {offsets = [0, 256], sizes = [16, 128], strides = [1, 1]} : vector<16x512xf32> to vector<16x128xf32>
    %290 = arith.truncf %289 : vector<16x128xf32> to vector<16x128xbf16>
    %c2_150 = arith.constant 2 : index
    %c0_151 = arith.constant 0 : index
    %c0_152 = arith.constant 0 : index
    %291 = vector.load %arg9[%c2_150, %c0_151, %c0_152] : memref<4x64x16xbf16, #tpu.memory_space<vmem>>, vector<1x64x16xbf16>
    %292 = vector.shape_cast %291 : vector<1x64x16xbf16> to vector<64x16xbf16>
    %cst_153 = arith.constant dense<0.000000e+00> : vector<64x128xf32>
    %293 = tpu.matmul %292, %290, %cst_153 {dimension_numbers = #tpu.dot_dimension_numbers<[1], [0], [0], [1], [0, 0, 1, 1], [], []>} : vector<64x16xbf16>, vector<16x128xbf16>, vector<64x128xf32> -> vector<64x128xf32>
    %294 = arith.addf %288, %293 : vector<64x128xf32>
    %295 = vector.extract_strided_slice %277 {offsets = [0, 384], sizes = [16, 128], strides = [1, 1]} : vector<16x512xf32> to vector<16x128xf32>
    %296 = arith.truncf %295 : vector<16x128xf32> to vector<16x128xbf16>
    %c3_154 = arith.constant 3 : index
    %c0_155 = arith.constant 0 : index
    %c0_156 = arith.constant 0 : index
    %297 = vector.load %arg9[%c3_154, %c0_155, %c0_156] : memref<4x64x16xbf16, #tpu.memory_space<vmem>>, vector<1x64x16xbf16>
    %298 = vector.shape_cast %297 : vector<1x64x16xbf16> to vector<64x16xbf16>
    %cst_157 = arith.constant dense<0.000000e+00> : vector<64x128xf32>
    %299 = tpu.matmul %298, %296, %cst_157 {dimension_numbers = #tpu.dot_dimension_numbers<[1], [0], [0], [1], [0, 0, 1, 1], [], []>} : vector<64x16xbf16>, vector<16x128xbf16>, vector<64x128xf32> -> vector<64x128xf32>
    %300 = arith.addf %294, %299 : vector<64x128xf32>
    %301 = vector.broadcast %274 : vector<1x128xf32> to vector<64x128xf32>
    %302 = arith.addf %300, %301 : vector<64x128xf32>
    %cst_158 = arith.constant 0.000000e+00 : f32
    %303 = vector.broadcast %cst_158 : f32 to vector<64x128xf32>
    %304 = arith.maximumf %302, %303 : vector<64x128xf32>
    %c5_159 = arith.constant 5 : index
    %c0_160 = arith.constant 0 : index
    %305 = vector.load %arg14[%c5_159, %c0_160] : memref<8x128xf32, #tpu.memory_space<vmem>>, vector<1x64xf32>
    %306 = arith.truncf %304 : vector<64x128xf32> to vector<64x128xbf16>
    %c0_161 = arith.constant 0 : index
    %c0_162 = arith.constant 0 : index
    %307 = vector.load %arg10[%c0_161, %c0_162] : memref<128x1152xbf16, #tpu.memory_space<vmem>>, vector<128x1152xbf16>
    %cst_163 = arith.constant dense<0.000000e+00> : vector<64x1152xf32>
    %308 = tpu.matmul %306, %307, %cst_163 {dimension_numbers = #tpu.dot_dimension_numbers<[1], [0], [0], [1], [0, 0, 1, 1], [], []>} : vector<64x128xbf16>, vector<128x1152xbf16>, vector<64x1152xf32> -> vector<64x1152xf32>
    %309 = vector.extract_strided_slice %308 {offsets = [0, 0], sizes = [64, 128], strides = [1, 1]} : vector<64x1152xf32> to vector<64x128xf32>
    %c9_i32_164 = arith.constant 9 : i32
    %310 = tpu.dynamic_rotate %309 by %c9_i32_164 dim 0 : vector<64x128xf32>, i32 -> vector<64x128xf32>
    %c0_165 = arith.constant 0 : index
    %c0_166 = arith.constant 0 : index
    %c0_167 = arith.constant 0 : index
    %311 = vector.load %arg2[%c0_165, %c0_166, %c0_167] : memref<9x64x1xf32, #tpu.memory_space<vmem>>, vector<1x64x1xf32>
    %312 = vector.shape_cast %311 : vector<1x64x1xf32> to vector<64x1xf32>
    %313 = vector.broadcast %312 : vector<64x1xf32> to vector<64x128xf32>
    %314 = arith.mulf %310, %313 : vector<64x128xf32>
    %315 = vector.extract_strided_slice %308 {offsets = [0, 128], sizes = [64, 128], strides = [1, 1]} : vector<64x1152xf32> to vector<64x128xf32>
    %c8_i32_168 = arith.constant 8 : i32
    %316 = tpu.dynamic_rotate %315 by %c8_i32_168 dim 0 : vector<64x128xf32>, i32 -> vector<64x128xf32>
    %c1_169 = arith.constant 1 : index
    %c0_170 = arith.constant 0 : index
    %c0_171 = arith.constant 0 : index
    %317 = vector.load %arg2[%c1_169, %c0_170, %c0_171] : memref<9x64x1xf32, #tpu.memory_space<vmem>>, vector<1x64x1xf32>
    %318 = vector.shape_cast %317 : vector<1x64x1xf32> to vector<64x1xf32>
    %319 = vector.broadcast %318 : vector<64x1xf32> to vector<64x128xf32>
    %320 = arith.mulf %316, %319 : vector<64x128xf32>
    %321 = arith.addf %314, %320 : vector<64x128xf32>
    %322 = vector.extract_strided_slice %308 {offsets = [0, 256], sizes = [64, 128], strides = [1, 1]} : vector<64x1152xf32> to vector<64x128xf32>
    %c7_i32_172 = arith.constant 7 : i32
    %323 = tpu.dynamic_rotate %322 by %c7_i32_172 dim 0 : vector<64x128xf32>, i32 -> vector<64x128xf32>
    %c2_173 = arith.constant 2 : index
    %c0_174 = arith.constant 0 : index
    %c0_175 = arith.constant 0 : index
    %324 = vector.load %arg2[%c2_173, %c0_174, %c0_175] : memref<9x64x1xf32, #tpu.memory_space<vmem>>, vector<1x64x1xf32>
    %325 = vector.shape_cast %324 : vector<1x64x1xf32> to vector<64x1xf32>
    %326 = vector.broadcast %325 : vector<64x1xf32> to vector<64x128xf32>
    %327 = arith.mulf %323, %326 : vector<64x128xf32>
    %328 = arith.addf %321, %327 : vector<64x128xf32>
    %329 = vector.extract_strided_slice %308 {offsets = [0, 384], sizes = [64, 128], strides = [1, 1]} : vector<64x1152xf32> to vector<64x128xf32>
    %c1_i32_176 = arith.constant 1 : i32
    %330 = tpu.dynamic_rotate %329 by %c1_i32_176 dim 0 : vector<64x128xf32>, i32 -> vector<64x128xf32>
    %c3_177 = arith.constant 3 : index
    %c0_178 = arith.constant 0 : index
    %c0_179 = arith.constant 0 : index
    %331 = vector.load %arg2[%c3_177, %c0_178, %c0_179] : memref<9x64x1xf32, #tpu.memory_space<vmem>>, vector<1x64x1xf32>
    %332 = vector.shape_cast %331 : vector<1x64x1xf32> to vector<64x1xf32>
    %333 = vector.broadcast %332 : vector<64x1xf32> to vector<64x128xf32>
    %334 = arith.mulf %330, %333 : vector<64x128xf32>
    %335 = arith.addf %328, %334 : vector<64x128xf32>
    %336 = vector.extract_strided_slice %308 {offsets = [0, 512], sizes = [64, 128], strides = [1, 1]} : vector<64x1152xf32> to vector<64x128xf32>
    %337 = arith.addf %335, %336 : vector<64x128xf32>
    %338 = vector.extract_strided_slice %308 {offsets = [0, 640], sizes = [64, 128], strides = [1, 1]} : vector<64x1152xf32> to vector<64x128xf32>
    %c63_i32_180 = arith.constant 63 : i32
    %339 = tpu.dynamic_rotate %338 by %c63_i32_180 dim 0 : vector<64x128xf32>, i32 -> vector<64x128xf32>
    %c5_181 = arith.constant 5 : index
    %c0_182 = arith.constant 0 : index
    %c0_183 = arith.constant 0 : index
    %340 = vector.load %arg2[%c5_181, %c0_182, %c0_183] : memref<9x64x1xf32, #tpu.memory_space<vmem>>, vector<1x64x1xf32>
    %341 = vector.shape_cast %340 : vector<1x64x1xf32> to vector<64x1xf32>
    %342 = vector.broadcast %341 : vector<64x1xf32> to vector<64x128xf32>
    %343 = arith.mulf %339, %342 : vector<64x128xf32>
    %344 = arith.addf %337, %343 : vector<64x128xf32>
    %345 = vector.extract_strided_slice %308 {offsets = [0, 768], sizes = [64, 128], strides = [1, 1]} : vector<64x1152xf32> to vector<64x128xf32>
    %c57_i32_184 = arith.constant 57 : i32
    %346 = tpu.dynamic_rotate %345 by %c57_i32_184 dim 0 : vector<64x128xf32>, i32 -> vector<64x128xf32>
    %c6_185 = arith.constant 6 : index
    %c0_186 = arith.constant 0 : index
    %c0_187 = arith.constant 0 : index
    %347 = vector.load %arg2[%c6_185, %c0_186, %c0_187] : memref<9x64x1xf32, #tpu.memory_space<vmem>>, vector<1x64x1xf32>
    %348 = vector.shape_cast %347 : vector<1x64x1xf32> to vector<64x1xf32>
    %349 = vector.broadcast %348 : vector<64x1xf32> to vector<64x128xf32>
    %350 = arith.mulf %346, %349 : vector<64x128xf32>
    %351 = arith.addf %344, %350 : vector<64x128xf32>
    %352 = vector.extract_strided_slice %308 {offsets = [0, 896], sizes = [64, 128], strides = [1, 1]} : vector<64x1152xf32> to vector<64x128xf32>
    %c56_i32_188 = arith.constant 56 : i32
    %353 = tpu.dynamic_rotate %352 by %c56_i32_188 dim 0 : vector<64x128xf32>, i32 -> vector<64x128xf32>
    %c7_189 = arith.constant 7 : index
    %c0_190 = arith.constant 0 : index
    %c0_191 = arith.constant 0 : index
    %354 = vector.load %arg2[%c7_189, %c0_190, %c0_191] : memref<9x64x1xf32, #tpu.memory_space<vmem>>, vector<1x64x1xf32>
    %355 = vector.shape_cast %354 : vector<1x64x1xf32> to vector<64x1xf32>
    %356 = vector.broadcast %355 : vector<64x1xf32> to vector<64x128xf32>
    %357 = arith.mulf %353, %356 : vector<64x128xf32>
    %358 = arith.addf %351, %357 : vector<64x128xf32>
    %359 = vector.extract_strided_slice %308 {offsets = [0, 1024], sizes = [64, 128], strides = [1, 1]} : vector<64x1152xf32> to vector<64x128xf32>
    %c55_i32_192 = arith.constant 55 : i32
    %360 = tpu.dynamic_rotate %359 by %c55_i32_192 dim 0 : vector<64x128xf32>, i32 -> vector<64x128xf32>
    %c8_193 = arith.constant 8 : index
    %c0_194 = arith.constant 0 : index
    %c0_195 = arith.constant 0 : index
    %361 = vector.load %arg2[%c8_193, %c0_194, %c0_195] : memref<9x64x1xf32, #tpu.memory_space<vmem>>, vector<1x64x1xf32>
    %362 = vector.shape_cast %361 : vector<1x64x1xf32> to vector<64x1xf32>
    %363 = vector.broadcast %362 : vector<64x1xf32> to vector<64x128xf32>
    %364 = arith.mulf %360, %363 : vector<64x128xf32>
    %365 = arith.addf %358, %364 : vector<64x128xf32>
    %366 = vector.extract_strided_slice %365 {offsets = [0, 0], sizes = [64, 64], strides = [1, 1]} : vector<64x128xf32> to vector<64x64xf32>
    %367 = vector.broadcast %305 : vector<1x64xf32> to vector<64x64xf32>
    %368 = arith.addf %366, %367 : vector<64x64xf32>
    %cst_196 = arith.constant 0.000000e+00 : f32
    %369 = vector.broadcast %cst_196 : f32 to vector<64x64xf32>
    %370 = arith.maximumf %368, %369 : vector<64x64xf32>
    %c6_197 = arith.constant 6 : index
    %c0_198 = arith.constant 0 : index
    %371 = vector.load %arg14[%c6_197, %c0_198] : memref<8x128xf32, #tpu.memory_space<vmem>>, vector<1x8xf32>
    %372 = arith.truncf %370 : vector<64x64xf32> to vector<64x64xbf16>
    %c0_199 = arith.constant 0 : index
    %c0_200 = arith.constant 0 : index
    %373 = vector.load %arg11[%c0_199, %c0_200] : memref<64x1152xbf16, #tpu.memory_space<vmem>>, vector<64x1152xbf16>
    %cst_201 = arith.constant dense<0.000000e+00> : vector<64x1152xf32>
    %374 = tpu.matmul %372, %373, %cst_201 {dimension_numbers = #tpu.dot_dimension_numbers<[1], [0], [0], [1], [0, 0, 1, 1], [], []>} : vector<64x64xbf16>, vector<64x1152xbf16>, vector<64x1152xf32> -> vector<64x1152xf32>
    %375 = vector.extract_strided_slice %374 {offsets = [0, 0], sizes = [64, 128], strides = [1, 1]} : vector<64x1152xf32> to vector<64x128xf32>
    %c9_i32_202 = arith.constant 9 : i32
    %376 = tpu.dynamic_rotate %375 by %c9_i32_202 dim 0 : vector<64x128xf32>, i32 -> vector<64x128xf32>
    %c0_203 = arith.constant 0 : index
    %c0_204 = arith.constant 0 : index
    %c0_205 = arith.constant 0 : index
    %377 = vector.load %arg2[%c0_203, %c0_204, %c0_205] : memref<9x64x1xf32, #tpu.memory_space<vmem>>, vector<1x64x1xf32>
    %378 = vector.shape_cast %377 : vector<1x64x1xf32> to vector<64x1xf32>
    %379 = vector.broadcast %378 : vector<64x1xf32> to vector<64x128xf32>
    %380 = arith.mulf %376, %379 : vector<64x128xf32>
    %381 = vector.extract_strided_slice %374 {offsets = [0, 128], sizes = [64, 128], strides = [1, 1]} : vector<64x1152xf32> to vector<64x128xf32>
    %c8_i32_206 = arith.constant 8 : i32
    %382 = tpu.dynamic_rotate %381 by %c8_i32_206 dim 0 : vector<64x128xf32>, i32 -> vector<64x128xf32>
    %c1_207 = arith.constant 1 : index
    %c0_208 = arith.constant 0 : index
    %c0_209 = arith.constant 0 : index
    %383 = vector.load %arg2[%c1_207, %c0_208, %c0_209] : memref<9x64x1xf32, #tpu.memory_space<vmem>>, vector<1x64x1xf32>
    %384 = vector.shape_cast %383 : vector<1x64x1xf32> to vector<64x1xf32>
    %385 = vector.broadcast %384 : vector<64x1xf32> to vector<64x128xf32>
    %386 = arith.mulf %382, %385 : vector<64x128xf32>
    %387 = arith.addf %380, %386 : vector<64x128xf32>
    %388 = vector.extract_strided_slice %374 {offsets = [0, 256], sizes = [64, 128], strides = [1, 1]} : vector<64x1152xf32> to vector<64x128xf32>
    %c7_i32_210 = arith.constant 7 : i32
    %389 = tpu.dynamic_rotate %388 by %c7_i32_210 dim 0 : vector<64x128xf32>, i32 -> vector<64x128xf32>
    %c2_211 = arith.constant 2 : index
    %c0_212 = arith.constant 0 : index
    %c0_213 = arith.constant 0 : index
    %390 = vector.load %arg2[%c2_211, %c0_212, %c0_213] : memref<9x64x1xf32, #tpu.memory_space<vmem>>, vector<1x64x1xf32>
    %391 = vector.shape_cast %390 : vector<1x64x1xf32> to vector<64x1xf32>
    %392 = vector.broadcast %391 : vector<64x1xf32> to vector<64x128xf32>
    %393 = arith.mulf %389, %392 : vector<64x128xf32>
    %394 = arith.addf %387, %393 : vector<64x128xf32>
    %395 = vector.extract_strided_slice %374 {offsets = [0, 384], sizes = [64, 128], strides = [1, 1]} : vector<64x1152xf32> to vector<64x128xf32>
    %c1_i32_214 = arith.constant 1 : i32
    %396 = tpu.dynamic_rotate %395 by %c1_i32_214 dim 0 : vector<64x128xf32>, i32 -> vector<64x128xf32>
    %c3_215 = arith.constant 3 : index
    %c0_216 = arith.constant 0 : index
    %c0_217 = arith.constant 0 : index
    %397 = vector.load %arg2[%c3_215, %c0_216, %c0_217] : memref<9x64x1xf32, #tpu.memory_space<vmem>>, vector<1x64x1xf32>
    %398 = vector.shape_cast %397 : vector<1x64x1xf32> to vector<64x1xf32>
    %399 = vector.broadcast %398 : vector<64x1xf32> to vector<64x128xf32>
    %400 = arith.mulf %396, %399 : vector<64x128xf32>
    %401 = arith.addf %394, %400 : vector<64x128xf32>
    %402 = vector.extract_strided_slice %374 {offsets = [0, 512], sizes = [64, 128], strides = [1, 1]} : vector<64x1152xf32> to vector<64x128xf32>
    %403 = arith.addf %401, %402 : vector<64x128xf32>
    %404 = vector.extract_strided_slice %374 {offsets = [0, 640], sizes = [64, 128], strides = [1, 1]} : vector<64x1152xf32> to vector<64x128xf32>
    %c63_i32_218 = arith.constant 63 : i32
    %405 = tpu.dynamic_rotate %404 by %c63_i32_218 dim 0 : vector<64x128xf32>, i32 -> vector<64x128xf32>
    %c5_219 = arith.constant 5 : index
    %c0_220 = arith.constant 0 : index
    %c0_221 = arith.constant 0 : index
    %406 = vector.load %arg2[%c5_219, %c0_220, %c0_221] : memref<9x64x1xf32, #tpu.memory_space<vmem>>, vector<1x64x1xf32>
    %407 = vector.shape_cast %406 : vector<1x64x1xf32> to vector<64x1xf32>
    %408 = vector.broadcast %407 : vector<64x1xf32> to vector<64x128xf32>
    %409 = arith.mulf %405, %408 : vector<64x128xf32>
    %410 = arith.addf %403, %409 : vector<64x128xf32>
    %411 = vector.extract_strided_slice %374 {offsets = [0, 768], sizes = [64, 128], strides = [1, 1]} : vector<64x1152xf32> to vector<64x128xf32>
    %c57_i32_222 = arith.constant 57 : i32
    %412 = tpu.dynamic_rotate %411 by %c57_i32_222 dim 0 : vector<64x128xf32>, i32 -> vector<64x128xf32>
    %c6_223 = arith.constant 6 : index
    %c0_224 = arith.constant 0 : index
    %c0_225 = arith.constant 0 : index
    %413 = vector.load %arg2[%c6_223, %c0_224, %c0_225] : memref<9x64x1xf32, #tpu.memory_space<vmem>>, vector<1x64x1xf32>
    %414 = vector.shape_cast %413 : vector<1x64x1xf32> to vector<64x1xf32>
    %415 = vector.broadcast %414 : vector<64x1xf32> to vector<64x128xf32>
    %416 = arith.mulf %412, %415 : vector<64x128xf32>
    %417 = arith.addf %410, %416 : vector<64x128xf32>
    %418 = vector.extract_strided_slice %374 {offsets = [0, 896], sizes = [64, 128], strides = [1, 1]} : vector<64x1152xf32> to vector<64x128xf32>
    %c56_i32_226 = arith.constant 56 : i32
    %419 = tpu.dynamic_rotate %418 by %c56_i32_226 dim 0 : vector<64x128xf32>, i32 -> vector<64x128xf32>
    %c7_227 = arith.constant 7 : index
    %c0_228 = arith.constant 0 : index
    %c0_229 = arith.constant 0 : index
    %420 = vector.load %arg2[%c7_227, %c0_228, %c0_229] : memref<9x64x1xf32, #tpu.memory_space<vmem>>, vector<1x64x1xf32>
    %421 = vector.shape_cast %420 : vector<1x64x1xf32> to vector<64x1xf32>
    %422 = vector.broadcast %421 : vector<64x1xf32> to vector<64x128xf32>
    %423 = arith.mulf %419, %422 : vector<64x128xf32>
    %424 = arith.addf %417, %423 : vector<64x128xf32>
    %425 = vector.extract_strided_slice %374 {offsets = [0, 1024], sizes = [64, 128], strides = [1, 1]} : vector<64x1152xf32> to vector<64x128xf32>
    %c55_i32_230 = arith.constant 55 : i32
    %426 = tpu.dynamic_rotate %425 by %c55_i32_230 dim 0 : vector<64x128xf32>, i32 -> vector<64x128xf32>
    %c8_231 = arith.constant 8 : index
    %c0_232 = arith.constant 0 : index
    %c0_233 = arith.constant 0 : index
    %427 = vector.load %arg2[%c8_231, %c0_232, %c0_233] : memref<9x64x1xf32, #tpu.memory_space<vmem>>, vector<1x64x1xf32>
    %428 = vector.shape_cast %427 : vector<1x64x1xf32> to vector<64x1xf32>
    %429 = vector.broadcast %428 : vector<64x1xf32> to vector<64x128xf32>
    %430 = arith.mulf %426, %429 : vector<64x128xf32>
    %431 = arith.addf %424, %430 : vector<64x128xf32>
    %432 = vector.extract_strided_slice %431 {offsets = [0, 0], sizes = [64, 8], strides = [1, 1]} : vector<64x128xf32> to vector<64x8xf32>
    %433 = vector.broadcast %371 : vector<1x8xf32> to vector<64x8xf32>
    %434 = arith.addf %432, %433 : vector<64x8xf32>
    %435 = math.tanh %434 : vector<64x8xf32>
    %c0_234 = arith.constant 0 : index
    %c0_235 = arith.constant 0 : index
    %436 = vector.load %arg15[%c0_234, %c0_235] : memref<64x8xf32, #tpu.memory_space<vmem>>, vector<64x8xf32>
    tpu.vector_store %arg15[%c0_234, %c0_235], %435 {strides = array<i32>} : memref<64x8xf32, #tpu.memory_space<vmem>>, vector<64x8xf32>,
    return
  }
  func.func @transform_0(%arg0: i32) -> (i32, i32) {
    %c0_i32 = arith.constant 0 : i32
    %c0_i32_0 = arith.constant 0 : i32
    return %arg0, %c0_i32 : i32, i32
  }
  func.func @transform_1(%arg0: i32) -> (i32, i32, i32) {
    %c0_i32 = arith.constant 0 : i32
    %c0_i32_0 = arith.constant 0 : i32
    %c0_i32_1 = arith.constant 0 : i32
    %c0_i32_2 = arith.constant 0 : i32
    return %c0_i32, %c0_i32_0, %c0_i32_1 : i32, i32, i32
  }
  func.func @transform_2(%arg0: i32) -> (i32, i32, i32) {
    %c0_i32 = arith.constant 0 : i32
    %c0_i32_0 = arith.constant 0 : i32
    %c0_i32_1 = arith.constant 0 : i32
    %c0_i32_2 = arith.constant 0 : i32
    return %c0_i32, %c0_i32_0, %c0_i32_1 : i32, i32, i32
  }
  func.func @transform_3(%arg0: i32) -> (i32, i32) {
    %c0_i32 = arith.constant 0 : i32
    %c0_i32_0 = arith.constant 0 : i32
    %c0_i32_1 = arith.constant 0 : i32
    return %c0_i32, %c0_i32_0 : i32, i32
  }
  func.func @transform_4(%arg0: i32) -> (i32, i32) {
    %c0_i32 = arith.constant 0 : i32
    %c0_i32_0 = arith.constant 0 : i32
    %c0_i32_1 = arith.constant 0 : i32
    return %c0_i32, %c0_i32_0 : i32, i32
  }
  func.func @transform_5(%arg0: i32) -> (i32, i32) {
    %c0_i32 = arith.constant 0 : i32
    %c0_i32_0 = arith.constant 0 : i32
    %c0_i32_1 = arith.constant 0 : i32
    return %c0_i32, %c0_i32_0 : i32, i32
  }
  func.func @transform_6(%arg0: i32) -> (i32, i32) {
    %c0_i32 = arith.constant 0 : i32
    %c0_i32_0 = arith.constant 0 : i32
    %c0_i32_1 = arith.constant 0 : i32
    return %c0_i32, %c0_i32_0 : i32, i32
  }
  func.func @transform_7(%arg0: i32) -> (i32, i32) {
    %c0_i32 = arith.constant 0 : i32
    %c0_i32_0 = arith.constant 0 : i32
    %c0_i32_1 = arith.constant 0 : i32
    return %c0_i32, %c0_i32_0 : i32, i32
  }
  func.func @transform_8(%arg0: i32) -> (i32, i32, i32) {
    %c0_i32 = arith.constant 0 : i32
    %c0_i32_0 = arith.constant 0 : i32
    %c0_i32_1 = arith.constant 0 : i32
    %c0_i32_2 = arith.constant 0 : i32
    return %c0_i32, %c0_i32_0, %c0_i32_1 : i32, i32, i32
  }
  func.func @transform_9(%arg0: i32) -> (i32, i32) {
    %c0_i32 = arith.constant 0 : i32
    %c0_i32_0 = arith.constant 0 : i32
    %c0_i32_1 = arith.constant 0 : i32
    return %c0_i32, %c0_i32_0 : i32, i32
  }
  func.func @transform_10(%arg0: i32) -> (i32, i32) {
    %c0_i32 = arith.constant 0 : i32
    %c0_i32_0 = arith.constant 0 : i32
    %c0_i32_1 = arith.constant 0 : i32
    return %c0_i32, %c0_i32_0 : i32, i32
  }
  func.func @transform_11(%arg0: i32) -> (i32, i32) {
    %c0_i32 = arith.constant 0 : i32
    %c0_i32_0 = arith.constant 0 : i32
    %c0_i32_1 = arith.constant 0 : i32
    return %c0_i32, %c0_i32_0 : i32, i32
  }
  func.func @transform_12(%arg0: i32) -> (i32, i32) {
    %c0_i32 = arith.constant 0 : i32
    %c0_i32_0 = arith.constant 0 : i32
    %c0_i32_1 = arith.constant 0 : i32
    return %c0_i32, %c0_i32_0 : i32, i32
  }
  func.func @transform_13(%arg0: i32) -> (i32, i32) {
    %c0_i32 = arith.constant 0 : i32
    %c0_i32_0 = arith.constant 0 : i32
    %c0_i32_1 = arith.constant 0 : i32
    return %c0_i32, %c0_i32_0 : i32, i32
  }
  func.func @transform_14(%arg0: i32) -> (i32, i32) {
    %c0_i32 = arith.constant 0 : i32
    %c0_i32_0 = arith.constant 0 : i32
    return %arg0, %c0_i32 : i32, i32
  }
}

</mosaic_0001>

<llo_original>
// kernel: aecv3d_forward.1
$region0: #{aecv3d_forward.1}
  #allocation0 [shape = 'u32[]', space=smem, size = 0x4, offset = 0x4, fixed_abs, tag = 'smem constant byte address 0x4 - core index']
  #allocation1 [shape = 'u32[144,128]{1,0:T(1,128)}', space=vmem, size = 0x12000, scoped, tag = 'internal scratch']
  %s0 = inlined_call_operand.vmem [shape: f32[128,8], index: 0, kind: input, shape index: {}]
  %s1 = inlined_call_operand.vmem [shape: f32[9,64,1], index: 1, kind: input, shape index: {}]
  %s2 = inlined_call_operand.vmem [shape: f32[9,16,1], index: 2, kind: input, shape index: {}]
  %s3 = inlined_call_operand.vmem [shape: bf16[8,1152], index: 3, kind: input, shape index: {}]
  %s4 = inlined_call_operand.vmem [shape: bf16[64,1152], index: 4, kind: input, shape index: {}]
  %s5 = inlined_call_operand.hbm [shape: bf16[64,1152], index: 5, kind: input, shape index: {}]
  %s6 = inlined_call_operand.vmem [shape: bf16[128,1152], index: 6, kind: input, shape index: {}]
  %s7 = inlined_call_operand.hbm [shape: bf16[128,512], index: 7, kind: input, shape index: {}]
  %s8 = inlined_call_operand.vmem [shape: bf16[4,64,16], index: 8, kind: input, shape index: {}]
  %s9 = inlined_call_operand.hbm [shape: bf16[128,1152], index: 9, kind: input, shape index: {}]
  %s10 = inlined_call_operand.hbm [shape: bf16[64,1152], index: 10, kind: input, shape index: {}]
  %s11 = inlined_call_operand.vmem [shape: bf16[16,64], index: 11, kind: input, shape index: {}]
  %s12 = inlined_call_operand.vmem [shape: bf16[128,64], index: 12, kind: input, shape index: {}]
  %s13 = inlined_call_operand.vmem [shape: f32[8,128], index: 13, kind: input, shape index: {}]
  %s14 = inlined_call_operand.hbm [shape: f32[128,8], index: 14, kind: output, shape index: {}]
  %s15 = sld [smem:[#allocation0]]
  $region105: #{aecv3d_forward.1} parent=0
    _
  %s17 = ssub.s32 1, %s15
  %s18 = scalar_select 0, %s17, %s15
  $region1: #{aecv3d_forward.1} parent=0
    #allocation2 [shape = 'u8[147456]{0}', space=vmem, size = 0x24000, scoped, tag = 'input window, operand 5, single buffered']
    #allocation3 [shape = 's32[2]{0}', space=sflag, size = 0x8, scoped, tag = 'scoped memory for aecv3d_forward.1']
    #allocation4 [shape = 's32[2]{0}', space=sflag, size = 0x8, scoped, tag = 'scoped memory for aecv3d_forward.1']
    #allocation5 [shape = 'u8[131072]{0}', space=vmem, size = 0x20000, scoped, tag = 'input window, operand 7, single buffered']
    #allocation6 [shape = 's32[1]{0}', space=sflag, size = 0x4, scoped, tag = 'scoped memory for aecv3d_forward.1']
    #allocation7 [shape = 'u8[294912]{0}', space=vmem, size = 0x48000, scoped, tag = 'input window, operand 9, single buffered']
    #allocation8 [shape = 'u8[147456]{0}', space=vmem, size = 0x24000, scoped, tag = 'input window, operand 10, single buffered']
    #allocation9 [shape = 's32[1]{0}', space=sflag, size = 0x4, scoped, tag = 'scoped memory for aecv3d_forward.1']
    #allocation10 [shape = 'u8[65536]{0}', space=vmem, size = 0x10000, scoped, tag = 'output window, operand 0']
    %19 = vsyncpa [#allocation3], 0
    %20 = vsyncpa [#allocation6], 0
    %21 = vsyncpa [#allocation9], 0
    %22 = vsyncpa [#allocation4], 0
    %s23 = scalar_lea.sflag [#allocation4], 1
    %24 = vsyncpa %s23, 0
    loop: start=0, step=1, limit=4
    $region2: #{aecv3d_forward.1} parent=1 // loop_pre_header
      _
    $region3: #{aecv3d_forward.1} parent=1 // loop_header
      %s26 = sphi 0, %s30
      %p27 = scmp.ge.s32.totalorder %s26, 4
      %s36 = sphi 0, %s38
      %s39 = sphi 0, %s36
      %s40 = sphi 0, %s39
      %s56 = sphi 0, %s40
      %s60 = sphi 0, %s60
      %s62 = sphi 0, %s60
      %s63 = sphi 0, %s62
      %s77 = sphi 0, %s63
      %s81 = sphi 0, %s81
      %s83 = sphi 0, %s81
      %s84 = sphi 0, %s83
      %s98 = sphi 0, %s84
      %s102 = sphi 0, %s102
      %s104 = sphi 0, %s102
      %s105 = sphi 0, %s104
      %s119 = sphi 0, %s105
      %s123 = sphi 0, %s123
      %s125 = sphi 0, %s123
      %s126 = sphi 0, %s125
      %s140 = sphi 0, %s126
      %s144 = sphi 0, %s144
      %s146 = sphi 0, %s144
      %s147 = sphi 0, %s146
      %s161 = sphi 0, %s147
      %s165 = sphi 0, %s165
      %s167 = sphi 0, %s165
      %s168 = sphi 0, %s167
      %s182 = sphi 0, %s168
      %s186 = sphi 0, %s186
      %s188 = sphi 0, %s186
      %s189 = sphi 0, %s188
      %s203 = sphi 0, %s189
      %s207 = sphi 0, %s207
      %s209 = sphi 0, %s207
      %s210 = sphi 0, %s209
      %s224 = sphi 0, %s210
      %s228 = sphi 0, %s228
      %s230 = sphi 0, %s228
      %s231 = sphi 0, %s230
      %s245 = sphi 0, %s231
      %s249 = sphi 0, %s249
      %s251 = sphi 0, %s249
      %s252 = sphi 0, %s251
      %s266 = sphi 0, %s252
      %s270 = sphi 0, %s270
      %s272 = sphi 0, %s270
      %s273 = sphi 0, %s272
      %s287 = sphi 0, %s273
      %s291 = sphi 0, %s291
      %s293 = sphi 0, %s291
      %s294 = sphi 0, %s293
      %s308 = sphi 0, %s294
      %s312 = sphi 0, %s312
      %s314 = sphi 0, %s312
      %s315 = sphi 0, %s314
      %s329 = sphi 0, %s315
      %s335 = sphi 0, %s337
      %s338 = sphi 0, %s335
      %s339 = sphi 0, %s338
      %s355 = sphi 0, %s339
    $region4: #{aecv3d_forward.1} parent=1 // loop_header_branch
      %29 = sbr.rel (%p27) target = $region8
    $region5: #{aecv3d_forward.1} parent=1 // loop_body
      %s31 = ssub.s32 %s26, 1
      %s32 = ssub.s32 %s26, 2
      %s33 = sadd.s32 %s26, 1
      %s34 = ssub.s32 %s26, %s33
      %p35 = scmp.eq.s32.totalorder %s34, 0
      %s37 = sadd.s32 %s36, 1
      %s38 = scalar_select %p35, %s36, %s37
      %p41 = pneg %p35
      %p42 = scmp.eq.s32.totalorder %s26, 1
      %p43 = por %p41, %p42
      %p44 = scmp.ne.s32.totalorder %s36, %s39
      %p45 = scmp.eq.s32.totalorder %s26, 0
      %p46 = por %p44, %p45
      %p47 = scmp.ne.s32.totalorder %s36, %s39
      %p48 = scmp.eq.s32.totalorder %s31, 1
      %p49 = por %p47, %p48
      %p50 = scmp.ne.s32.totalorder %s39, %s40
      %p51 = scmp.eq.s32.totalorder %s31, 0
      %p52 = por %p50, %p51
      %p53 = scmp.ne.s32.totalorder %s39, %s40
      %p54 = scmp.eq.s32.totalorder %s32, 1
      %p55 = por %p53, %p54
      %p57 = scmp.ne.s32.totalorder %s40, %s56
      %p58 = scmp.eq.s32.totalorder %s32, 0
      %p59 = por %p57, %p58
      %s61 = sadd.s32 %s60, 1
      %p64 = scmp.eq.s32.totalorder %s26, 1
      %p65 = scmp.ne.s32.totalorder %s60, %s62
      %p66 = scmp.eq.s32.totalorder %s26, 0
      %p67 = por %p65, %p66
      %p68 = scmp.ne.s32.totalorder %s60, %s62
      %p69 = scmp.eq.s32.totalorder %s31, 1
      %p70 = por %p68, %p69
      %p71 = scmp.ne.s32.totalorder %s62, %s63
      %p72 = scmp.eq.s32.totalorder %s31, 0
      %p73 = por %p71, %p72
      %p74 = scmp.ne.s32.totalorder %s62, %s63
      %p75 = scmp.eq.s32.totalorder %s32, 1
      %p76 = por %p74, %p75
      %p78 = scmp.ne.s32.totalorder %s63, %s77
      %p79 = scmp.eq.s32.totalorder %s32, 0
      %p80 = por %p78, %p79
      %s82 = sadd.s32 %s81, 1
      %p85 = scmp.eq.s32.totalorder %s26, 1
      %p86 = scmp.ne.s32.totalorder %s81, %s83
      %p87 = scmp.eq.s32.totalorder %s26, 0
      %p88 = por %p86, %p87
      %p89 = scmp.ne.s32.totalorder %s81, %s83
      %p90 = scmp.eq.s32.totalorder %s31, 1
      %p91 = por %p89, %p90
      %p92 = scmp.ne.s32.totalorder %s83, %s84
      %p93 = scmp.eq.s32.totalorder %s31, 0
      %p94 = por %p92, %p93
      %p95 = scmp.ne.s32.totalorder %s83, %s84
      %p96 = scmp.eq.s32.totalorder %s32, 1
      %p97 = por %p95, %p96
      %p99 = scmp.ne.s32.totalorder %s84, %s98
      %p100 = scmp.eq.s32.totalorder %s32, 0
      %p101 = por %p99, %p100
      %s103 = sadd.s32 %s102, 1
      %p106 = scmp.eq.s32.totalorder %s26, 1
      %p107 = scmp.ne.s32.totalorder %s102, %s104
      %p108 = scmp.eq.s32.totalorder %s26, 0
      %p109 = por %p107, %p108
      %p110 = scmp.ne.s32.totalorder %s102, %s104
      %p111 = scmp.eq.s32.totalorder %s31, 1
      %p112 = por %p110, %p111
      %p113 = scmp.ne.s32.totalorder %s104, %s105
      %p114 = scmp.eq.s32.totalorder %s31, 0
      %p115 = por %p113, %p114
      %p116 = scmp.ne.s32.totalorder %s104, %s105
      %p117 = scmp.eq.s32.totalorder %s32, 1
      %p118 = por %p116, %p117
      %p120 = scmp.ne.s32.totalorder %s105, %s119
      %p121 = scmp.eq.s32.totalorder %s32, 0
      %p122 = por %p120, %p121
      %s124 = sadd.s32 %s123, 1
      %p127 = scmp.eq.s32.totalorder %s26, 1
      %p128 = scmp.ne.s32.totalorder %s123, %s125
      %p129 = scmp.eq.s32.totalorder %s26, 0
      %p130 = por %p128, %p129
      %p131 = scmp.ne.s32.totalorder %s123, %s125
      %p132 = scmp.eq.s32.totalorder %s31, 1
      %p133 = por %p131, %p132
      %p134 = scmp.ne.s32.totalorder %s125, %s126
      %p135 = scmp.eq.s32.totalorder %s31, 0
      %p136 = por %p134, %p135
      %p137 = scmp.ne.s32.totalorder %s125, %s126
      %p138 = scmp.eq.s32.totalorder %s32, 1
      %p139 = por %p137, %p138
      %p141 = scmp.ne.s32.totalorder %s126, %s140
      %p142 = scmp.eq.s32.totalorder %s32, 0
      %p143 = por %p141, %p142
      %s145 = sadd.s32 %s144, 1
      %p148 = scmp.eq.s32.totalorder %s26, 1
      %p149 = scmp.ne.s32.totalorder %s144, %s146
      %p150 = scmp.eq.s32.totalorder %s26, 0
      %p151 = por %p149, %p150
      %p152 = scmp.ne.s32.totalorder %s144, %s146
      %p153 = scmp.eq.s32.totalorder %s31, 1
      %p154 = por %p152, %p153
      %p155 = scmp.ne.s32.totalorder %s146, %s147
      %p156 = scmp.eq.s32.totalorder %s31, 0
      %p157 = por %p155, %p156
      %p158 = scmp.ne.s32.totalorder %s146, %s147
      %p159 = scmp.eq.s32.totalorder %s32, 1
      %p160 = por %p158, %p159
      %p162 = scmp.ne.s32.totalorder %s147, %s161
      %p163 = scmp.eq.s32.totalorder %s32, 0
      %p164 = por %p162, %p163
      %s166 = sadd.s32 %s165, 1
      %p169 = scmp.eq.s32.totalorder %s26, 1
      %p170 = scmp.ne.s32.totalorder %s165, %s167
      %p171 = scmp.eq.s32.totalorder %s26, 0
      %p172 = por %p170, %p171
      %p173 = scmp.ne.s32.totalorder %s165, %s167
      %p174 = scmp.eq.s32.totalorder %s31, 1
      %p175 = por %p173, %p174
      %p176 = scmp.ne.s32.totalorder %s167, %s168
      %p177 = scmp.eq.s32.totalorder %s31, 0
      %p178 = por %p176, %p177
      %p179 = scmp.ne.s32.totalorder %s167, %s168
      %p180 = scmp.eq.s32.totalorder %s32, 1
      %p181 = por %p179, %p180
      %p183 = scmp.ne.s32.totalorder %s168, %s182
      %p184 = scmp.eq.s32.totalorder %s32, 0
      %p185 = por %p183, %p184
      %s187 = sadd.s32 %s186, 1
      %p190 = scmp.eq.s32.totalorder %s26, 1
      %p191 = scmp.ne.s32.totalorder %s186, %s188
      %p192 = scmp.eq.s32.totalorder %s26, 0
      %p193 = por %p191, %p192
      %p194 = scmp.ne.s32.totalorder %s186, %s188
      %p195 = scmp.eq.s32.totalorder %s31, 1
      %p196 = por %p194, %p195
      %p197 = scmp.ne.s32.totalorder %s188, %s189
      %p198 = scmp.eq.s32.totalorder %s31, 0
      %p199 = por %p197, %p198
      %p200 = scmp.ne.s32.totalorder %s188, %s189
      %p201 = scmp.eq.s32.totalorder %s32, 1
      %p202 = por %p200, %p201
      %p204 = scmp.ne.s32.totalorder %s189, %s203
      %p205 = scmp.eq.s32.totalorder %s32, 0
      %p206 = por %p204, %p205
      %s208 = sadd.s32 %s207, 1
      %p211 = scmp.eq.s32.totalorder %s26, 1
      %p212 = scmp.ne.s32.totalorder %s207, %s209
      %p213 = scmp.eq.s32.totalorder %s26, 0
      %p214 = por %p212, %p213
      %p215 = scmp.ne.s32.totalorder %s207, %s209
      %p216 = scmp.eq.s32.totalorder %s31, 1
      %p217 = por %p215, %p216
      %p218 = scmp.ne.s32.totalorder %s209, %s210
      %p219 = scmp.eq.s32.totalorder %s31, 0
      %p220 = por %p218, %p219
      %p221 = scmp.ne.s32.totalorder %s209, %s210
      %p222 = scmp.eq.s32.totalorder %s32, 1
      %p223 = por %p221, %p222
      %p225 = scmp.ne.s32.totalorder %s210, %s224
      %p226 = scmp.eq.s32.totalorder %s32, 0
      %p227 = por %p225, %p226
      %s229 = sadd.s32 %s228, 1
      %p232 = scmp.eq.s32.totalorder %s26, 1
      %p233 = scmp.ne.s32.totalorder %s228, %s230
      %p234 = scmp.eq.s32.totalorder %s26, 0
      %p235 = por %p233, %p234
      %p236 = scmp.ne.s32.totalorder %s228, %s230
      %p237 = scmp.eq.s32.totalorder %s31, 1
      %p238 = por %p236, %p237
      %p239 = scmp.ne.s32.totalorder %s230, %s231
      %p240 = scmp.eq.s32.totalorder %s31, 0
      %p241 = por %p239, %p240
      %p242 = scmp.ne.s32.totalorder %s230, %s231
      %p243 = scmp.eq.s32.totalorder %s32, 1
      %p244 = por %p242, %p243
      %p246 = scmp.ne.s32.totalorder %s231, %s245
      %p247 = scmp.eq.s32.totalorder %s32, 0
      %p248 = por %p246, %p247
      %s250 = sadd.s32 %s249, 1
      %p253 = scmp.eq.s32.totalorder %s26, 1
      %p254 = scmp.ne.s32.totalorder %s249, %s251
      %p255 = scmp.eq.s32.totalorder %s26, 0
      %p256 = por %p254, %p255
      %p257 = scmp.ne.s32.totalorder %s249, %s251
      %p258 = scmp.eq.s32.totalorder %s31, 1
      %p259 = por %p257, %p258
      %p260 = scmp.ne.s32.totalorder %s251, %s252
      %p261 = scmp.eq.s32.totalorder %s31, 0
      %p262 = por %p260, %p261
      %p263 = scmp.ne.s32.totalorder %s251, %s252
      %p264 = scmp.eq.s32.totalorder %s32, 1
      %p265 = por %p263, %p264
      %p267 = scmp.ne.s32.totalorder %s252, %s266
      %p268 = scmp.eq.s32.totalorder %s32, 0
      %p269 = por %p267, %p268
      %s271 = sadd.s32 %s270, 1
      %p274 = scmp.eq.s32.totalorder %s26, 1
      %p275 = scmp.ne.s32.totalorder %s270, %s272
      %p276 = scmp.eq.s32.totalorder %s26, 0
      %p277 = por %p275, %p276
      %p278 = scmp.ne.s32.totalorder %s270, %s272
      %p279 = scmp.eq.s32.totalorder %s31, 1
      %p280 = por %p278, %p279
      %p281 = scmp.ne.s32.totalorder %s272, %s273
      %p282 = scmp.eq.s32.totalorder %s31, 0
      %p283 = por %p281, %p282
      %p284 = scmp.ne.s32.totalorder %s272, %s273
      %p285 = scmp.eq.s32.totalorder %s32, 1
      %p286 = por %p284, %p285
      %p288 = scmp.ne.s32.totalorder %s273, %s287
      %p289 = scmp.eq.s32.totalorder %s32, 0
      %p290 = por %p288, %p289
      %s292 = sadd.s32 %s291, 1
      %p295 = scmp.eq.s32.totalorder %s26, 1
      %p296 = scmp.ne.s32.totalorder %s291, %s293
      %p297 = scmp.eq.s32.totalorder %s26, 0
      %p298 = por %p296, %p297
      %p299 = scmp.ne.s32.totalorder %s291, %s293
      %p300 = scmp.eq.s32.totalorder %s31, 1
      %p301 = por %p299, %p300
      %p302 = scmp.ne.s32.totalorder %s293, %s294
      %p303 = scmp.eq.s32.totalorder %s31, 0
      %p304 = por %p302, %p303
      %p305 = scmp.ne.s32.totalorder %s293, %s294
      %p306 = scmp.eq.s32.totalorder %s32, 1
      %p307 = por %p305, %p306
      %p309 = scmp.ne.s32.totalorder %s294, %s308
      %p310 = scmp.eq.s32.totalorder %s32, 0
      %p311 = por %p309, %p310
      %s313 = sadd.s32 %s312, 1
      %p316 = scmp.eq.s32.totalorder %s26, 1
      %p317 = scmp.ne.s32.totalorder %s312, %s314
      %p318 = scmp.eq.s32.totalorder %s26, 0
      %p319 = por %p317, %p318
      %p320 = scmp.ne.s32.totalorder %s312, %s314
      %p321 = scmp.eq.s32.totalorder %s31, 1
      %p322 = por %p320, %p321
      %p323 = scmp.ne.s32.totalorder %s314, %s315
      %p324 = scmp.eq.s32.totalorder %s31, 0
      %p325 = por %p323, %p324
      %p326 = scmp.ne.s32.totalorder %s314, %s315
      %p327 = scmp.eq.s32.totalorder %s32, 1
      %p328 = por %p326, %p327
      %p330 = scmp.ne.s32.totalorder %s315, %s329
      %p331 = scmp.eq.s32.totalorder %s32, 0
      %p332 = por %p330, %p331
      %s333 = ssub.s32 %s26, %s33
      %p334 = scmp.eq.s32.totalorder %s333, 0
      %s336 = sadd.s32 %s335, 1
      %s337 = scalar_select %p334, %s335, %s336
      %p340 = pneg %p334
      %p341 = scmp.eq.s32.totalorder %s26, 1
      %p342 = por %p340, %p341
      %p343 = scmp.ne.s32.totalorder %s335, %s338
      %p344 = scmp.eq.s32.totalorder %s26, 0
      %p345 = por %p343, %p344
      %p346 = scmp.ne.s32.totalorder %s335, %s338
      %p347 = scmp.eq.s32.totalorder %s31, 1
      %p348 = por %p346, %p347
      %p349 = scmp.ne.s32.totalorder %s338, %s339
      %p350 = scmp.eq.s32.totalorder %s31, 0
      %p351 = por %p349, %p350
      %p352 = scmp.ne.s32.totalorder %s338, %s339
      %p353 = scmp.eq.s32.totalorder %s32, 1
      %p354 = por %p352, %p353
      %p356 = scmp.ne.s32.totalorder %s339, %s355
      %p357 = scmp.eq.s32.totalorder %s32, 0
      %p358 = por %p356, %p357
      %p359 = scmp.le.s32.totalorder 1, %s26
      %p360 = scmp.lt.s32.totalorder %s26, 3
      %p361 = pnand %p359, %p360
      %p362 = pneg %p361
      // Predicated region
      $region9: #{aecv3d_forward.1} parent=5 // pred_check
        _
      $region10: #{aecv3d_forward.1} parent=5 // pred_check_branch
        %364 = sbr.rel (%p361) target = $region12
      $region11: #{aecv3d_forward.1} parent=5 // pred_region
        %s365 = ssub.s32 %s26, 1
        // Predicated region
        $region13: #{aecv3d_forward.1} parent=11 // pred_check
          %p366 = pneg %p73
        $region14: #{aecv3d_forward.1} parent=11 // pred_check_branch
          %368 = sbr.rel (%p366) target = $region16
        $region15: #{aecv3d_forward.1} parent=11 // pred_region
          _
        $region16: #{aecv3d_forward.1} parent=11 // pred_fallthru
          _
        // Predicated region
        $region17: #{aecv3d_forward.1} parent=11 // pred_check
          %p369 = pneg %p94
        $region18: #{aecv3d_forward.1} parent=11 // pred_check_branch
          %371 = sbr.rel (%p369) target = $region20
        $region19: #{aecv3d_forward.1} parent=11 // pred_region
          _
        $region20: #{aecv3d_forward.1} parent=11 // pred_fallthru
          _
        // Predicated region
        $region21: #{aecv3d_forward.1} parent=11 // pred_check
          %p372 = pneg %p115
        $region22: #{aecv3d_forward.1} parent=11 // pred_check_branch
          %374 = sbr.rel (%p372) target = $region24
        $region23: #{aecv3d_forward.1} parent=11 // pred_region
          _
        $region24: #{aecv3d_forward.1} parent=11 // pred_fallthru
          _
        // Predicated region
        $region25: #{aecv3d_forward.1} parent=11 // pred_check
          %p375 = pneg %p136
        $region26: #{aecv3d_forward.1} parent=11 // pred_check_branch
          %377 = sbr.rel (%p375) target = $region28
        $region27: #{aecv3d_forward.1} parent=11 // pred_region
          _
        $region28: #{aecv3d_forward.1} parent=11 // pred_fallthru
          _
        // Predicated region
        $region29: #{aecv3d_forward.1} parent=11 // pred_check
          %p378 = pneg %p157
        $region30: #{aecv3d_forward.1} parent=11 // pred_check_branch
          %380 = sbr.rel (%p378) target = $region32
        $region31: #{aecv3d_forward.1} parent=11 // pred_region
          %s382 = ssub.s32 4608, 4608
          %383 = vsyncadd [#allocation3], %s382
          %s384 = sshll.u32 [#allocation2], 4
          %s385 = int_to_ptr.vmem [resolvable:$true] %s384
          %390 = dma.hbm_to_vmem [thread:$0]  %s5, 4608, %s385, [#allocation3], 576, 576, 36
        $region32: #{aecv3d_forward.1} parent=11 // pred_fallthru
          _
        // Predicated region
        $region33: #{aecv3d_forward.1} parent=11 // pred_check
          %p391 = pneg %p178
        $region34: #{aecv3d_forward.1} parent=11 // pred_check_branch
          %393 = sbr.rel (%p391) target = $region36
        $region35: #{aecv3d_forward.1} parent=11 // pred_region
          _
        $region36: #{aecv3d_forward.1} parent=11 // pred_fallthru
          _
        // Predicated region
        $region37: #{aecv3d_forward.1} parent=11 // pred_check
          %p394 = pneg %p199
        $region38: #{aecv3d_forward.1} parent=11 // pred_check_branch
          %396 = sbr.rel (%p394) target = $region40
        $region39: #{aecv3d_forward.1} parent=11 // pred_region
          %s398 = ssub.s32 4096, 4096
          %399 = vsyncadd [#allocation6], %s398
          %s400 = sshll.u32 [#allocation5], 4
          %s401 = int_to_ptr.vmem [resolvable:$true] %s400
          %406 = dma.hbm_to_vmem [thread:$0]  %s7, 4096, %s401, [#allocation6], 256, 256, 16
        $region40: #{aecv3d_forward.1} parent=11 // pred_fallthru
          _
        // Predicated region
        $region41: #{aecv3d_forward.1} parent=11 // pred_check
          %p407 = pneg %p220
        $region42: #{aecv3d_forward.1} parent=11 // pred_check_branch
          %409 = sbr.rel (%p407) target = $region44
        $region43: #{aecv3d_forward.1} parent=11 // pred_region
          _
        $region44: #{aecv3d_forward.1} parent=11 // pred_fallthru
          _
        // Predicated region
        $region45: #{aecv3d_forward.1} parent=11 // pred_check
          %p410 = pneg %p241
        $region46: #{aecv3d_forward.1} parent=11 // pred_check_branch
          %412 = sbr.rel (%p410) target = $region48
        $region47: #{aecv3d_forward.1} parent=11 // pred_region
          %s414 = ssub.s32 9216, 9216
          %415 = vsyncadd [#allocation6], %s414
          %s416 = sshll.u32 [#allocation7], 4
          %s417 = int_to_ptr.vmem [resolvable:$true] %s416
          %422 = dma.hbm_to_vmem [thread:$0]  %s9, 9216, %s417, [#allocation6], 576, 576, 36
        $region48: #{aecv3d_forward.1} parent=11 // pred_fallthru
          _
        // Predicated region
        $region49: #{aecv3d_forward.1} parent=11 // pred_check
          %p423 = pneg %p262
        $region50: #{aecv3d_forward.1} parent=11 // pred_check_branch
          %425 = sbr.rel (%p423) target = $region52
        $region51: #{aecv3d_forward.1} parent=11 // pred_region
          %s427 = ssub.s32 4608, 4608
          %428 = vsyncadd [#allocation9], %s427
          %s429 = sshll.u32 [#allocation8], 4
          %s430 = int_to_ptr.vmem [resolvable:$true] %s429
          %435 = dma.hbm_to_vmem [thread:$0]  %s10, 4608, %s430, [#allocation9], 576, 576, 36
        $region52: #{aecv3d_forward.1} parent=11 // pred_fallthru
          _
        // Predicated region
        $region53: #{aecv3d_forward.1} parent=11 // pred_check
          %p436 = pneg %p283
        $region54: #{aecv3d_forward.1} parent=11 // pred_check_branch
          %438 = sbr.rel (%p436) target = $region56
        $region55: #{aecv3d_forward.1} parent=11 // pred_region
          _
        $region56: #{aecv3d_forward.1} parent=11 // pred_fallthru
          _
        // Predicated region
        $region57: #{aecv3d_forward.1} parent=11 // pred_check
          %p439 = pneg %p304
        $region58: #{aecv3d_forward.1} parent=11 // pred_check_branch
          %441 = sbr.rel (%p439) target = $region60
        $region59: #{aecv3d_forward.1} parent=11 // pred_region
          _
        $region60: #{aecv3d_forward.1} parent=11 // pred_fallthru
          _
        // Predicated region
        $region61: #{aecv3d_forward.1} parent=11 // pred_check
          %p442 = pneg %p325
        $region62: #{aecv3d_forward.1} parent=11 // pred_check_branch
          %444 = sbr.rel (%p442) target = $region64
        $region63: #{aecv3d_forward.1} parent=11 // pred_region
          _
        $region64: #{aecv3d_forward.1} parent=11 // pred_fallthru
          _
      $region12: #{aecv3d_forward.1} parent=5 // pred_fallthru
        _
      %p445 = scmp.lt.s32.totalorder %s26, 2
      // Predicated region
      $region65: #{aecv3d_forward.1} parent=5 // pred_check
        %p446 = pneg %p445
      $region66: #{aecv3d_forward.1} parent=5 // pred_check_branch
        %448 = sbr.rel (%p446) target = $region68
      $region67: #{aecv3d_forward.1} parent=5 // pred_region
        // Predicated region
        $region69: #{aecv3d_forward.1} parent=67 // pred_check
          %p449 = pneg %p46
        $region70: #{aecv3d_forward.1} parent=67 // pred_check_branch
          %451 = sbr.rel (%p449) target = $region72
        $region71: #{aecv3d_forward.1} parent=67 // pred_region
          %s452 = smul.u32 8, %s26
          %p453 = scmp.lt.s32.totalorder %s452, 15
          %s454 = scalar_select %p453, %s452, 15
          %s455 = smul.addr %s454, 8
          %s456 = scalar_lea.vmem %s0, %s455
          %s457 = smul.u32 8, %s26
        $region72: #{aecv3d_forward.1} parent=67 // pred_fallthru
          _
      $region68: #{aecv3d_forward.1} parent=5 // pred_fallthru
        _
      %p458 = scmp.le.s32.totalorder 1, %s26
      %p459 = scmp.lt.s32.totalorder %s26, 3
      %p460 = pnand %p458, %p459
      %p461 = pneg %p460
      // Predicated region
      $region73: #{aecv3d_forward.1} parent=5 // pred_check
        _
      $region74: #{aecv3d_forward.1} parent=5 // pred_check_branch
        %463 = sbr.rel (%p460) target = $region76
      $region75: #{aecv3d_forward.1} parent=5 // pred_region
        %s464 = ssub.s32 %s26, 1
        // Predicated region
        $region77: #{aecv3d_forward.1} parent=75 // pred_check
          %p465 = pneg %p157
        $region78: #{aecv3d_forward.1} parent=75 // pred_check_branch
          %467 = sbr.rel (%p465) target = $region80
        $region79: #{aecv3d_forward.1} parent=75 // pred_region
          %468 = dma.done [#allocation3], 4608
        $region80: #{aecv3d_forward.1} parent=75 // pred_fallthru
          _
        // Predicated region
        $region81: #{aecv3d_forward.1} parent=75 // pred_check
          %p469 = pneg %p199
        $region82: #{aecv3d_forward.1} parent=75 // pred_check_branch
          %471 = sbr.rel (%p469) target = $region84
        $region83: #{aecv3d_forward.1} parent=75 // pred_region
          %472 = dma.done [#allocation6], 4096
        $region84: #{aecv3d_forward.1} parent=75 // pred_fallthru
          _
        // Predicated region
        $region85: #{aecv3d_forward.1} parent=75 // pred_check
          %p473 = pneg %p241
        $region86: #{aecv3d_forward.1} parent=75 // pred_check_branch
          %475 = sbr.rel (%p473) target = $region88
        $region87: #{aecv3d_forward.1} parent=75 // pred_region
          %476 = dma.done [#allocation6], 9216
        $region88: #{aecv3d_forward.1} parent=75 // pred_fallthru
          _
        // Predicated region
        $region89: #{aecv3d_forward.1} parent=75 // pred_check
          %p477 = pneg %p262
        $region90: #{aecv3d_forward.1} parent=75 // pred_check_branch
          %479 = sbr.rel (%p477) target = $region92
        $region91: #{aecv3d_forward.1} parent=75 // pred_region
          %480 = dma.done [#allocation9], 4608
        $region92: #{aecv3d_forward.1} parent=75 // pred_fallthru
          _
        %s481 = smul.u32 8, %s31
        %p482 = scmp.lt.s32.totalorder %s481, 15
        %s483 = scalar_select %p482, %s481, 15
        %s484 = smul.addr %s483, 8
        %s485 = scalar_lea.vmem %s0, %s484
        %p486 = pneg %p52
        %p487 = pneg %p49
        %p488 = pneg %p73
        %p489 = pneg %p70
        %p490 = pneg %p94
        %p491 = pneg %p91
        %p492 = pneg %p115
        %p493 = pneg %p112
        %p494 = pneg %p136
        %p495 = pneg %p133
        %p496 = pneg %p157
        %p497 = pneg %p154
        %p498 = pneg %p178
        %p499 = pneg %p175
        %p500 = pneg %p199
        %p501 = pneg %p196
        %p502 = pneg %p220
        %p503 = pneg %p217
        %p504 = pneg %p241
        %p505 = pneg %p238
        %p506 = pneg %p262
        %p507 = pneg %p259
        %p508 = pneg %p283
        %p509 = pneg %p280
        %p510 = pneg %p304
        %p511 = pneg %p301
        %p512 = pneg %p325
        %p513 = pneg %p322
        %p514 = pneg %p351
        %p515 = pneg %p348
        %s516 = sand.u32 %s338, 1
        %s517 = scalar_lea.sflag [#allocation4], %s516
        %s518 = sand.u32 %s338, 1
        %s519 = smul.addr %s518, 64
        %s520 = scalar_lea.vmem [#allocation10], %s519
        %s521 = smul.u32 8, %s31
        %p522 = scmp.lt.s32.totalorder %s521, 15
        %s523 = scalar_select %p522, %s521, 15
        %s524 = smul.addr %s523, 8
        %s525 = scalar_lea.vmem %s0, %s524
        %s526 = smul.u32 8, %s31
        %s527 = smul.u32 8, %s31
        %v529 = vld [vmem:[%s525] sm:$0xff]
        %v530 = vld [vmem:[%s525 + $0x8] sm:$0xff]
        %v531 = vld [vmem:[%s525 + $0x10] sm:$0xff]
        %v532 = vld [vmem:[%s525 + $0x18] sm:$0xff]
        %v533 = vld [vmem:[%s525 + $0x20] sm:$0xff]
        %v534 = vld [vmem:[%s525 + $0x28] sm:$0xff]
        %v535 = vld [vmem:[%s525 + $0x30] sm:$0xff]
        %v536 = vld [vmem:[%s525 + $0x38] sm:$0xff]
        %v537 = vld [vmem:[%s13] sm:$0x1]
        %v538 = vpack.c.bf16 %v530, %v529
        %v539 = vpack.c.bf16 %v532, %v531
        %v540 = vpack.c.bf16 %v534, %v533
        %v541 = vpack.c.bf16 %v536, %v535
        %v542 = vld [vmem:[%s3] sm:$0xff]
        %v543 = vld [vmem:[%s3 + $0x8] sm:$0xff]
        %v544 = vld [vmem:[%s3 + $0x10] sm:$0xff]
        %v545 = vld [vmem:[%s3 + $0x18] sm:$0xff]
        %v546 = vld [vmem:[%s3 + $0x20] sm:$0xf]
        %v552 = vunpack.c.l.b16 %v542
        %v553 = vunpack.c.h.b16 %v542
        %v554 = vunpack.c.l.b16 %v543
        %v555 = vunpack.c.h.b16 %v543
        %v556 = vunpack.c.l.b16 %v544
        %v557 = vunpack.c.h.b16 %v544
        %v558 = vunpack.c.l.b16 %v545
        %v559 = vunpack.c.h.b16 %v545
        %v560 = vunpack.c.l.b16 %v546
        %v561 = vpack.c.b16 %v552, %v552
        %v562 = vpack.c.b16 %v553, %v553
        %v563 = vpack.c.b16 %v554, %v554
        %v564 = vpack.c.b16 %v555, %v555
        %v565 = vpack.c.b16 %v556, %v556
        %v566 = vpack.c.b16 %v557, %v557
        %v567 = vpack.c.b16 %v558, %v558
        %v568 = vpack.c.b16 %v559, %v559
        %v569 = vpack.c.b16 %v560, %v560
        %vm570 = vcmask 64512
        %v572 = vsel %vm570, %v538, 0
        %v575 = vsel %vm570, %v539, 0
        %v578 = vsel %vm570, %v540, 0
        %v581 = vsel %vm570, %v541, 0
        %vm583 = vcmask 1043456
        %v585 = vsel %vm583, %v561, 0
        %v588 = vsel %vm583, %v562, 0
        %v591 = vsel %vm583, %v563, 0
        %v594 = vsel %vm583, %v564, 0
        %v597 = vsel %vm583, %v565, 0
        %v600 = vsel %vm583, %v566, 0
        %v603 = vsel %vm583, %v567, 0
        %v606 = vsel %vm583, %v568, 0
        %v609 = vsel %vm583, %v569, 0
        %611 = vmatprep.subr.bf16.mxu0 %v588
        %612 = vmatpush1.bf16.msra.mxu0 %v585
        %613 = vmatprep.subr.bf16.mxu0 0
        %614 = vmatpush1.bf16.msra.mxu0 0
        %615 = vmatprep.subr.bf16.mxu0 0
        %616 = vmatpush1.bf16.msra.mxu0 0
        %617 = vmatprep.subr.bf16.mxu0 0
        %618 = vmatpush1.bf16.msra.mxu0 0
        %619 = vmatprep.subr.bf16.mxu0 0
        %620 = vmatpush1.bf16.msra.mxu0 0
        %621 = vmatprep.subr.bf16.mxu0 0
        %622 = vmatpush1.bf16.msra.mxu0 0
        %623 = vmatprep.subr.bf16.mxu0 0
        %624 = vmatpush1.bf16.msra.mxu0 0
        %625 = vmatprep.subr.bf16.mxu0 0
        %626 = vmatpush1.bf16.msra.mxu0 0
        %627 = vmatprep.subr.bf16.mxu0 0
        %628 = vmatpush1.bf16.msra.mxu0 0
        %629 = vmatprep.subr.bf16.mxu0 0
        %630 = vmatpush1.bf16.msra.mxu0 0
        %631 = vmatprep.subr.bf16.mxu0 0
        %632 = vmatpush1.bf16.msra.mxu0 0
        %633 = vmatprep.subr.bf16.mxu0 0
        %634 = vmatpush1.bf16.msra.mxu0 0
        %635 = vmatprep.subr.bf16.mxu0 0
        %636 = vmatpush1.bf16.msra.mxu0 0
        %637 = vmatprep.subr.bf16.mxu0 0
        %638 = vmatpush1.bf16.msra.mxu0 0
        %639 = vmatprep.subr.bf16.mxu0 0
        %640 = vmatpush1.bf16.msra.mxu0 0
        %641 = vmatprep.subr.bf16.mxu0 0
        %642 = vmatpush1.bf16.msra.mxu0 0
        %643 = vmatprep.mubr.bf16.mxu0 0
        %644 = vmatmul.mubr.bf16.gmra.mrb[0].mxu0 %v572
        %v645 = vpop.f32.mrb[0].mxu0
        %v646 = vadd.f32 0.0, %v645
        %v647 = vpop.f32.mrb[0].mxu0
        %v648 = vadd.f32 0.0, %v647
        %v649 = vpop.f32.mrb[0].mxu0
        %v650 = vadd.f32 0.0, %v649
        %v651 = vpop.f32.mrb[0].mxu0
        %v652 = vadd.f32 0.0, %v651
        %653 = vmatprep.mubr.bf16.mxu0 0
        %654 = vmatmul.mubr.bf16.gmra.mrb[0].mxu0 %v575
        %v655 = vpop.f32.mrb[0].mxu0
        %v656 = vadd.f32 0.0, %v655
        %v657 = vpop.f32.mrb[0].mxu0
        %v658 = vadd.f32 0.0, %v657
        %v659 = vpop.f32.mrb[0].mxu0
        %v660 = vadd.f32 0.0, %v659
        %v661 = vpop.f32.mrb[0].mxu0
        %v662 = vadd.f32 0.0, %v661
        %663 = vmatprep.mubr.bf16.mxu0 0
        %664 = vmatmul.mubr.bf16.gmra.mrb[0].mxu0 %v578
        %v665 = vpop.f32.mrb[0].mxu0
        %v666 = vadd.f32 0.0, %v665
        %v667 = vpop.f32.mrb[0].mxu0
        %v668 = vadd.f32 0.0, %v667
        %v669 = vpop.f32.mrb[0].mxu0
        %v670 = vadd.f32 0.0, %v669
        %v671 = vpop.f32.mrb[0].mxu0
        %v672 = vadd.f32 0.0, %v671
        %673 = vmatprep.mubr.bf16.mxu0 0
        %674 = vmatmul.mubr.bf16.gmra.mrb[0].mxu0 %v581
        %v675 = vpop.f32.mrb[0].mxu0
        %v676 = vadd.f32 0.0, %v675
        %v677 = vpop.f32.mrb[0].mxu0
        %v678 = vadd.f32 0.0, %v677
        %v679 = vpop.f32.mrb[0].mxu0
        %v680 = vadd.f32 0.0, %v679
        %v681 = vpop.f32.mrb[0].mxu0
        %v682 = vadd.f32 0.0, %v681
        %683 = vdwg.mxu0
        %684 = vmatprep.subr.bf16.mxu0 %v594
        %685 = vmatpush1.bf16.msra.mxu0 %v591
        %686 = vmatprep.subr.bf16.mxu0 0
        %687 = vmatpush1.bf16.msra.mxu0 0
        %688 = vmatprep.subr.bf16.mxu0 0
        %689 = vmatpush1.bf16.msra.mxu0 0
        %690 = vmatprep.subr.bf16.mxu0 0
        %691 = vmatpush1.bf16.msra.mxu0 0
        %692 = vmatprep.subr.bf16.mxu0 0
        %693 = vmatpush1.bf16.msra.mxu0 0
        %694 = vmatprep.subr.bf16.mxu0 0
        %695 = vmatpush1.bf16.msra.mxu0 0
        %696 = vmatprep.subr.bf16.mxu0 0
        %697 = vmatpush1.bf16.msra.mxu0 0
        %698 = vmatprep.subr.bf16.mxu0 0
        %699 = vmatpush1.bf16.msra.mxu0 0
        %700 = vmatprep.subr.bf16.mxu0 0
        %701 = vmatpush1.bf16.msra.mxu0 0
        %702 = vmatprep.subr.bf16.mxu0 0
        %703 = vmatpush1.bf16.msra.mxu0 0
        %704 = vmatprep.subr.bf16.mxu0 0
        %705 = vmatpush1.bf16.msra.mxu0 0
        %706 = vmatprep.subr.bf16.mxu0 0
        %707 = vmatpush1.bf16.msra.mxu0 0
        %708 = vmatprep.subr.bf16.mxu0 0
        %709 = vmatpush1.bf16.msra.mxu0 0
        %710 = vmatprep.subr.bf16.mxu0 0
        %711 = vmatpush1.bf16.msra.mxu0 0
        %712 = vmatprep.subr.bf16.mxu0 0
        %713 = vmatpush1.bf16.msra.mxu0 0
        %714 = vmatprep.subr.bf16.mxu0 0
        %715 = vmatpush1.bf16.msra.mxu0 0
        %716 = vmatprep.mubr.bf16.mxu0 0
        %717 = vmatmul.mubr.bf16.gmra.mrb[0].mxu0 %v572
        %v718 = vpop.f32.mrb[0].mxu0
        %v719 = vadd.f32 0.0, %v718
        %v720 = vpop.f32.mrb[0].mxu0
        %v721 = vadd.f32 0.0, %v720
        %v722 = vpop.f32.mrb[0].mxu0
        %v723 = vadd.f32 0.0, %v722
        %v724 = vpop.f32.mrb[0].mxu0
        %v725 = vadd.f32 0.0, %v724
        %726 = vmatprep.mubr.bf16.mxu0 0
        %727 = vmatmul.mubr.bf16.gmra.mrb[0].mxu0 %v575
        %v728 = vpop.f32.mrb[0].mxu0
        %v729 = vadd.f32 0.0, %v728
        %v730 = vpop.f32.mrb[0].mxu0
        %v731 = vadd.f32 0.0, %v730
        %v732 = vpop.f32.mrb[0].mxu0
        %v733 = vadd.f32 0.0, %v732
        %v734 = vpop.f32.mrb[0].mxu0
        %v735 = vadd.f32 0.0, %v734
        %736 = vmatprep.mubr.bf16.mxu0 0
        %737 = vmatmul.mubr.bf16.gmra.mrb[0].mxu0 %v578
        %v738 = vpop.f32.mrb[0].mxu0
        %v739 = vadd.f32 0.0, %v738
        %v740 = vpop.f32.mrb[0].mxu0
        %v741 = vadd.f32 0.0, %v740
        %v742 = vpop.f32.mrb[0].mxu0
        %v743 = vadd.f32 0.0, %v742
        %v744 = vpop.f32.mrb[0].mxu0
        %v745 = vadd.f32 0.0, %v744
        %746 = vmatprep.mubr.bf16.mxu0 0
        %747 = vmatmul.mubr.bf16.gmra.mrb[0].mxu0 %v581
        %v748 = vpop.f32.mrb[0].mxu0
        %v749 = vadd.f32 0.0, %v748
        %v750 = vpop.f32.mrb[0].mxu0
        %v751 = vadd.f32 0.0, %v750
        %v752 = vpop.f32.mrb[0].mxu0
        %v753 = vadd.f32 0.0, %v752
        %v754 = vpop.f32.mrb[0].mxu0
        %v755 = vadd.f32 0.0, %v754
        %756 = vdwg.mxu0
        %757 = vmatprep.subr.bf16.mxu0 %v600
        %758 = vmatpush1.bf16.msra.mxu0 %v597
        %759 = vmatprep.subr.bf16.mxu0 0
        %760 = vmatpush1.bf16.msra.mxu0 0
        %761 = vmatprep.subr.bf16.mxu0 0
        %762 = vmatpush1.bf16.msra.mxu0 0
        %763 = vmatprep.subr.bf16.mxu0 0
        %764 = vmatpush1.bf16.msra.mxu0 0
        %765 = vmatprep.subr.bf16.mxu0 0
        %766 = vmatpush1.bf16.msra.mxu0 0
        %767 = vmatprep.subr.bf16.mxu0 0
        %768 = vmatpush1.bf16.msra.mxu0 0
        %769 = vmatprep.subr.bf16.mxu0 0
        %770 = vmatpush1.bf16.msra.mxu0 0
        %771 = vmatprep.subr.bf16.mxu0 0
        %772 = vmatpush1.bf16.msra.mxu0 0
        %773 = vmatprep.subr.bf16.mxu0 0
        %774 = vmatpush1.bf16.msra.mxu0 0
        %775 = vmatprep.subr.bf16.mxu0 0
        %776 = vmatpush1.bf16.msra.mxu0 0
        %777 = vmatprep.subr.bf16.mxu0 0
        %778 = vmatpush1.bf16.msra.mxu0 0
        %779 = vmatprep.subr.bf16.mxu0 0
        %780 = vmatpush1.bf16.msra.mxu0 0
        %781 = vmatprep.subr.bf16.mxu0 0
        %782 = vmatpush1.bf16.msra.mxu0 0
        %783 = vmatprep.subr.bf16.mxu0 0
        %784 = vmatpush1.bf16.msra.mxu0 0
        %785 = vmatprep.subr.bf16.mxu0 0
        %786 = vmatpush1.bf16.msra.mxu0 0
        %787 = vmatprep.subr.bf16.mxu0 0
        %788 = vmatpush1.bf16.msra.mxu0 0
        %789 = vmatprep.mubr.bf16.mxu0 0
        %790 = vmatmul.mubr.bf16.gmra.mrb[0].mxu0 %v572
        %v791 = vpop.f32.mrb[0].mxu0
        %v792 = vadd.f32 0.0, %v791
        %v793 = vpop.f32.mrb[0].mxu0
        %v794 = vadd.f32 0.0, %v793
        %v795 = vpop.f32.mrb[0].mxu0
        %v796 = vadd.f32 0.0, %v795
        %v797 = vpop.f32.mrb[0].mxu0
        %v798 = vadd.f32 0.0, %v797
        %799 = vmatprep.mubr.bf16.mxu0 0
        %800 = vmatmul.mubr.bf16.gmra.mrb[0].mxu0 %v575
        %v801 = vpop.f32.mrb[0].mxu0
        %v802 = vadd.f32 0.0, %v801
        %v803 = vpop.f32.mrb[0].mxu0
        %v804 = vadd.f32 0.0, %v803
        %v805 = vpop.f32.mrb[0].mxu0
        %v806 = vadd.f32 0.0, %v805
        %v807 = vpop.f32.mrb[0].mxu0
        %v808 = vadd.f32 0.0, %v807
        %809 = vmatprep.mubr.bf16.mxu0 0
        %810 = vmatmul.mubr.bf16.gmra.mrb[0].mxu0 %v578
        %v811 = vpop.f32.mrb[0].mxu0
        %v812 = vadd.f32 0.0, %v811
        %v813 = vpop.f32.mrb[0].mxu0
        %v814 = vadd.f32 0.0, %v813
        %v815 = vpop.f32.mrb[0].mxu0
        %v816 = vadd.f32 0.0, %v815
        %v817 = vpop.f32.mrb[0].mxu0
        %v818 = vadd.f32 0.0, %v817
        %819 = vmatprep.mubr.bf16.mxu0 0
        %820 = vmatmul.mubr.bf16.gmra.mrb[0].mxu0 %v581
        %v821 = vpop.f32.mrb[0].mxu0
        %v822 = vadd.f32 0.0, %v821
        %v823 = vpop.f32.mrb[0].mxu0
        %v824 = vadd.f32 0.0, %v823
        %v825 = vpop.f32.mrb[0].mxu0
        %v826 = vadd.f32 0.0, %v825
        %v827 = vpop.f32.mrb[0].mxu0
        %v828 = vadd.f32 0.0, %v827
        %829 = vdwg.mxu0
        %830 = vmatprep.subr.bf16.mxu0 %v606
        %831 = vmatpush1.bf16.msra.mxu0 %v603
        %832 = vmatprep.subr.bf16.mxu0 0
        %833 = vmatpush1.bf16.msra.mxu0 0
        %834 = vmatprep.subr.bf16.mxu0 0
        %835 = vmatpush1.bf16.msra.mxu0 0
        %836 = vmatprep.subr.bf16.mxu0 0
        %837 = vmatpush1.bf16.msra.mxu0 0
        %838 = vmatprep.subr.bf16.mxu0 0
        %839 = vmatpush1.bf16.msra.mxu0 0
        %840 = vmatprep.subr.bf16.mxu0 0
        %841 = vmatpush1.bf16.msra.mxu0 0
        %842 = vmatprep.subr.bf16.mxu0 0
        %843 = vmatpush1.bf16.msra.mxu0 0
        %844 = vmatprep.subr.bf16.mxu0 0
        %845 = vmatpush1.bf16.msra.mxu0 0
        %846 = vmatprep.subr.bf16.mxu0 0
        %847 = vmatpush1.bf16.msra.mxu0 0
        %848 = vmatprep.subr.bf16.mxu0 0
        %849 = vmatpush1.bf16.msra.mxu0 0
        %850 = vmatprep.subr.bf16.mxu0 0
        %851 = vmatpush1.bf16.msra.mxu0 0
        %852 = vmatprep.subr.bf16.mxu0 0
        %853 = vmatpush1.bf16.msra.mxu0 0
        %854 = vmatprep.subr.bf16.mxu0 0
        %855 = vmatpush1.bf16.msra.mxu0 0
        %856 = vmatprep.subr.bf16.mxu0 0
        %857 = vmatpush1.bf16.msra.mxu0 0
        %858 = vmatprep.subr.bf16.mxu0 0
        %859 = vmatpush1.bf16.msra.mxu0 0
        %860 = vmatprep.subr.bf16.mxu0 0
        %861 = vmatpush1.bf16.msra.mxu0 0
        %862 = vmatprep.mubr.bf16.mxu0 0
        %863 = vmatmul.mubr.bf16.gmra.mrb[0].mxu0 %v572
        %v864 = vpop.f32.mrb[0].mxu0
        %v865 = vadd.f32 0.0, %v864
        %v866 = vpop.f32.mrb[0].mxu0
        %v867 = vadd.f32 0.0, %v866
        %v868 = vpop.f32.mrb[0].mxu0
        %v869 = vadd.f32 0.0, %v868
        %v870 = vpop.f32.mrb[0].mxu0
        %v871 = vadd.f32 0.0, %v870
        %872 = vmatprep.mubr.bf16.mxu0 0
        %873 = vmatmul.mubr.bf16.gmra.mrb[0].mxu0 %v575
        %v874 = vpop.f32.mrb[0].mxu0
        %v875 = vadd.f32 0.0, %v874
        %v876 = vpop.f32.mrb[0].mxu0
        %v877 = vadd.f32 0.0, %v876
        %v878 = vpop.f32.mrb[0].mxu0
        %v879 = vadd.f32 0.0, %v878
        %v880 = vpop.f32.mrb[0].mxu0
        %v881 = vadd.f32 0.0, %v880
        %882 = vmatprep.mubr.bf16.mxu0 0
        %883 = vmatmul.mubr.bf16.gmra.mrb[0].mxu0 %v578
        %v884 = vpop.f32.mrb[0].mxu0
        %v885 = vadd.f32 0.0, %v884
        %v886 = vpop.f32.mrb[0].mxu0
        %v887 = vadd.f32 0.0, %v886
        %v888 = vpop.f32.mrb[0].mxu0
        %v889 = vadd.f32 0.0, %v888
        %v890 = vpop.f32.mrb[0].mxu0
        %v891 = vadd.f32 0.0, %v890
        %892 = vmatprep.mubr.bf16.mxu0 0
        %893 = vmatmul.mubr.bf16.gmra.mrb[0].mxu0 %v581
        %v894 = vpop.f32.mrb[0].mxu0
        %v895 = vadd.f32 0.0, %v894
        %v896 = vpop.f32.mrb[0].mxu0
        %v897 = vadd.f32 0.0, %v896
        %v898 = vpop.f32.mrb[0].mxu0
        %v899 = vadd.f32 0.0, %v898
        %v900 = vpop.f32.mrb[0].mxu0
        %v901 = vadd.f32 0.0, %v900
        %902 = vdwg.mxu0
        %903 = vmatprep.subr.bf16.mxu0 0
        %904 = vmatpush1.bf16.msra.mxu0 %v609
        %905 = vmatprep.subr.bf16.mxu0 0
        %906 = vmatpush1.bf16.msra.mxu0 0
        %907 = vmatprep.subr.bf16.mxu0 0
        %908 = vmatpush1.bf16.msra.mxu0 0
        %909 = vmatprep.subr.bf16.mxu0 0
        %910 = vmatpush1.bf16.msra.mxu0 0
        %911 = vmatprep.subr.bf16.mxu0 0
        %912 = vmatpush1.bf16.msra.mxu0 0
        %913 = vmatprep.subr.bf16.mxu0 0
        %914 = vmatpush1.bf16.msra.mxu0 0
        %915 = vmatprep.subr.bf16.mxu0 0
        %916 = vmatpush1.bf16.msra.mxu0 0
        %917 = vmatprep.subr.bf16.mxu0 0
        %918 = vmatpush1.bf16.msra.mxu0 0
        %919 = vmatprep.subr.bf16.mxu0 0
        %920 = vmatpush1.bf16.msra.mxu0 0
        %921 = vmatprep.subr.bf16.mxu0 0
        %922 = vmatpush1.bf16.msra.mxu0 0
        %923 = vmatprep.subr.bf16.mxu0 0
        %924 = vmatpush1.bf16.msra.mxu0 0
        %925 = vmatprep.subr.bf16.mxu0 0
        %926 = vmatpush1.bf16.msra.mxu0 0
        %927 = vmatprep.subr.bf16.mxu0 0
        %928 = vmatpush1.bf16.msra.mxu0 0
        %929 = vmatprep.subr.bf16.mxu0 0
        %930 = vmatpush1.bf16.msra.mxu0 0
        %931 = vmatprep.subr.bf16.mxu0 0
        %932 = vmatpush1.bf16.msra.mxu0 0
        %933 = vmatprep.subr.bf16.mxu0 0
        %934 = vmatpush1.bf16.msra.mxu0 0
        %935 = vmatprep.mubr.bf16.mxu0 0
        %936 = vmatmul.mubr.bf16.gmra.mrb[0].mxu0 %v572
        %v937 = vpop.f32.mrb[0].mxu0
        %v938 = vadd.f32 0.0, %v937
        %v939 = vpop.f32.mrb[0].mxu0
        %v940 = vpop.f32.mrb[0].mxu0
        %v941 = vadd.f32 0.0, %v940
        %v942 = vpop.f32.mrb[0].mxu0
        %943 = vmatprep.mubr.bf16.mxu0 0
        %944 = vmatmul.mubr.bf16.gmra.mrb[0].mxu0 %v575
        %v945 = vpop.f32.mrb[0].mxu0
        %v946 = vadd.f32 0.0, %v945
        %v947 = vpop.f32.mrb[0].mxu0
        %v948 = vpop.f32.mrb[0].mxu0
        %v949 = vadd.f32 0.0, %v948
        %v950 = vpop.f32.mrb[0].mxu0
        %951 = vmatprep.mubr.bf16.mxu0 0
        %952 = vmatmul.mubr.bf16.gmra.mrb[0].mxu0 %v578
        %v953 = vpop.f32.mrb[0].mxu0
        %v954 = vadd.f32 0.0, %v953
        %v955 = vpop.f32.mrb[0].mxu0
        %v956 = vpop.f32.mrb[0].mxu0
        %v957 = vadd.f32 0.0, %v956
        %v958 = vpop.f32.mrb[0].mxu0
        %959 = vmatprep.mubr.bf16.mxu0 0
        %960 = vmatmul.mubr.bf16.gmra.mrb[0].mxu0 %v581
        %v961 = vpop.f32.mrb[0].mxu0
        %v962 = vadd.f32 0.0, %v961
        %v963 = vpop.f32.mrb[0].mxu0
        %v964 = vpop.f32.mrb[0].mxu0
        %v965 = vadd.f32 0.0, %v964
        %v966 = vpop.f32.mrb[0].mxu0
        %967 = vdwg.mxu0
        %v968 = vrot.slane %v646, 7
        %v969 = vrot.slane %v650, 7
        %v970 = vrot.slane %v656, 7
        %v971 = vrot.slane %v660, 7
        %v972 = vrot.slane %v666, 7
        %v973 = vrot.slane %v670, 7
        %v974 = vrot.slane %v676, 7
        %v975 = vrot.slane %v680, 7
        %v976 = vlaneseq
        %v977 = vshrl.u32 %v976, 7
        %vm978 = vcmp.lt.s32.totalorder %v977, 1
        %v979 = vsel %vm978, %v974, %v975
        %v980 = vsel %vm978, %v973, %v974
        %v981 = vsel %vm978, %v972, %v973
        %v982 = vsel %vm978, %v971, %v972
        %v983 = vsel %vm978, %v970, %v971
        %v984 = vsel %vm978, %v969, %v970
        %v985 = vsel %vm978, %v968, %v969
        %v986 = vsel %vm978, %v975, %v968
        %v987 = vld [vmem:[%s1] sm:$0xff]
        %v988 = vld [vmem:[%s1 + $0x8] sm:$0xff]
        %v989 = vld [vmem:[%s1 + $0x10] sm:$0xff]
        %v990 = vld [vmem:[%s1 + $0x18] sm:$0xff]
        %v991 = vld [vmem:[%s1 + $0x20] sm:$0xff]
        %v992 = vld [vmem:[%s1 + $0x28] sm:$0xff]
        %v993 = vld [vmem:[%s1 + $0x30] sm:$0xff]
        %v994 = vld [vmem:[%s1 + $0x38] sm:$0xff]
        %996 = vset.pattern.permute.xlu0 0
        %997 = vperm.xlu0 %996, %v987
        %v998 = vpop.permute.xlu0 %997
        %1001 = vset.pattern.permute.xlu0 0
        %1002 = vperm.xlu0 %1001, %v988
        %v1003 = vpop.permute.xlu0 %1002
        %1006 = vset.pattern.permute.xlu0 0
        %1007 = vperm.xlu0 %1006, %v989
        %v1008 = vpop.permute.xlu0 %1007
        %1011 = vset.pattern.permute.xlu0 0
        %1012 = vperm.xlu0 %1011, %v990
        %v1013 = vpop.permute.xlu0 %1012
        %1016 = vset.pattern.permute.xlu0 0
        %1017 = vperm.xlu0 %1016, %v991
        %v1018 = vpop.permute.xlu0 %1017
        %1021 = vset.pattern.permute.xlu0 0
        %1022 = vperm.xlu0 %1021, %v992
        %v1023 = vpop.permute.xlu0 %1022
        %1026 = vset.pattern.permute.xlu0 0
        %1027 = vperm.xlu0 %1026, %v993
        %v1028 = vpop.permute.xlu0 %1027
        %1031 = vset.pattern.permute.xlu0 0
        %1032 = vperm.xlu0 %1031, %v994
        %v1033 = vpop.permute.xlu0 %1032
        %v1035 = vmul.f32 %v979, %v998
        %v1036 = vmul.f32 %v986, %v1003
        %v1037 = vmul.f32 %v985, %v1008
        %v1038 = vmul.f32 %v984, %v1013
        %v1039 = vmul.f32 %v983, %v1018
        %v1040 = vmul.f32 %v982, %v1023
        %v1041 = vmul.f32 %v981, %v1028
        %v1042 = vmul.f32 %v980, %v1033
        %s1043 = scalar_lea.vmem %s1, 64
        %v1044 = vld [vmem:[%s1043] sm:$0xff]
        %v1045 = vld [vmem:[%s1043 + $0x8] sm:$0xff]
        %v1046 = vld [vmem:[%s1043 + $0x10] sm:$0xff]
        %v1047 = vld [vmem:[%s1043 + $0x18] sm:$0xff]
        %v1048 = vld [vmem:[%s1043 + $0x20] sm:$0xff]
        %v1049 = vld [vmem:[%s1043 + $0x28] sm:$0xff]
        %v1050 = vld [vmem:[%s1043 + $0x30] sm:$0xff]
        %v1051 = vld [vmem:[%s1043 + $0x38] sm:$0xff]
        %1053 = vset.pattern.permute.xlu0 0
        %1054 = vperm.xlu0 %1053, %v1044
        %v1055 = vpop.permute.xlu0 %1054
        %1058 = vset.pattern.permute.xlu0 0
        %1059 = vperm.xlu0 %1058, %v1045
        %v1060 = vpop.permute.xlu0 %1059
        %1063 = vset.pattern.permute.xlu0 0
        %1064 = vperm.xlu0 %1063, %v1046
        %v1065 = vpop.permute.xlu0 %1064
        %1068 = vset.pattern.permute.xlu0 0
        %1069 = vperm.xlu0 %1068, %v1047
        %v1070 = vpop.permute.xlu0 %1069
        %1073 = vset.pattern.permute.xlu0 0
        %1074 = vperm.xlu0 %1073, %v1048
        %v1075 = vpop.permute.xlu0 %1074
        %1078 = vset.pattern.permute.xlu0 0
        %1079 = vperm.xlu0 %1078, %v1049
        %v1080 = vpop.permute.xlu0 %1079
        %1083 = vset.pattern.permute.xlu0 0
        %1084 = vperm.xlu0 %1083, %v1050
        %v1085 = vpop.permute.xlu0 %1084
        %1088 = vset.pattern.permute.xlu0 0
        %1089 = vperm.xlu0 %1088, %v1051
        %v1090 = vpop.permute.xlu0 %1089
        %v1092 = vmul.f32 %v682, %v1055
        %v1093 = vmul.f32 %v648, %v1060
        %v1094 = vmul.f32 %v652, %v1065
        %v1095 = vmul.f32 %v658, %v1070
        %v1096 = vmul.f32 %v662, %v1075
        %v1097 = vmul.f32 %v668, %v1080
        %v1098 = vmul.f32 %v672, %v1085
        %v1099 = vmul.f32 %v678, %v1090
        %v1100 = vadd.f32 %v1035, %v1092
        %v1101 = vadd.f32 %v1036, %v1093
        %v1102 = vadd.f32 %v1037, %v1094
        %v1103 = vadd.f32 %v1038, %v1095
        %v1104 = vadd.f32 %v1039, %v1096
        %v1105 = vadd.f32 %v1040, %v1097
        %v1106 = vadd.f32 %v1041, %v1098
        %v1107 = vadd.f32 %v1042, %v1099
        %v1108 = vrot.slane %v719, 1
        %v1109 = vrot.slane %v723, 1
        %v1110 = vrot.slane %v729, 1
        %v1111 = vrot.slane %v733, 1
        %v1112 = vrot.slane %v739, 1
        %v1113 = vrot.slane %v743, 1
        %v1114 = vrot.slane %v749, 1
        %v1115 = vrot.slane %v753, 1
        %vm1116 = vcmp.lt.s32.totalorder %v977, 7
        %v1117 = vsel %vm1116, %v1114, %v1115
        %v1118 = vsel %vm1116, %v1113, %v1114
        %v1119 = vsel %vm1116, %v1112, %v1113
        %v1120 = vsel %vm1116, %v1111, %v1112
        %v1121 = vsel %vm1116, %v1110, %v1111
        %v1122 = vsel %vm1116, %v1109, %v1110
        %v1123 = vsel %vm1116, %v1108, %v1109
        %v1124 = vsel %vm1116, %v1115, %v1108
        %s1125 = scalar_lea.vmem %s1, 128
        %v1126 = vld [vmem:[%s1125] sm:$0xff]
        %v1127 = vld [vmem:[%s1125 + $0x8] sm:$0xff]
        %v1128 = vld [vmem:[%s1125 + $0x10] sm:$0xff]
        %v1129 = vld [vmem:[%s1125 + $0x18] sm:$0xff]
        %v1130 = vld [vmem:[%s1125 + $0x20] sm:$0xff]
        %v1131 = vld [vmem:[%s1125 + $0x28] sm:$0xff]
        %v1132 = vld [vmem:[%s1125 + $0x30] sm:$0xff]
        %v1133 = vld [vmem:[%s1125 + $0x38] sm:$0xff]
        %1135 = vset.pattern.permute.xlu0 0
        %1136 = vperm.xlu0 %1135, %v1126
        %v1137 = vpop.permute.xlu0 %1136
        %1140 = vset.pattern.permute.xlu0 0
        %1141 = vperm.xlu0 %1140, %v1127
        %v1142 = vpop.permute.xlu0 %1141
        %1145 = vset.pattern.permute.xlu0 0
        %1146 = vperm.xlu0 %1145, %v1128
        %v1147 = vpop.permute.xlu0 %1146
        %1150 = vset.pattern.permute.xlu0 0
        %1151 = vperm.xlu0 %1150, %v1129
        %v1152 = vpop.permute.xlu0 %1151
        %1155 = vset.pattern.permute.xlu0 0
        %1156 = vperm.xlu0 %1155, %v1130
        %v1157 = vpop.permute.xlu0 %1156
        %1160 = vset.pattern.permute.xlu0 0
        %1161 = vperm.xlu0 %1160, %v1131
        %v1162 = vpop.permute.xlu0 %1161
        %1165 = vset.pattern.permute.xlu0 0
        %1166 = vperm.xlu0 %1165, %v1132
        %v1167 = vpop.permute.xlu0 %1166
        %1170 = vset.pattern.permute.xlu0 0
        %1171 = vperm.xlu0 %1170, %v1133
        %v1172 = vpop.permute.xlu0 %1171
        %v1174 = vmul.f32 %v1124, %v1137
        %v1175 = vmul.f32 %v1123, %v1142
        %v1176 = vmul.f32 %v1122, %v1147
        %v1177 = vmul.f32 %v1121, %v1152
        %v1178 = vmul.f32 %v1120, %v1157
        %v1179 = vmul.f32 %v1119, %v1162
        %v1180 = vmul.f32 %v1118, %v1167
        %v1181 = vmul.f32 %v1117, %v1172
        %v1182 = vadd.f32 %v1100, %v1174
        %v1183 = vadd.f32 %v1101, %v1175
        %v1184 = vadd.f32 %v1102, %v1176
        %v1185 = vadd.f32 %v1103, %v1177
        %v1186 = vadd.f32 %v1104, %v1178
        %v1187 = vadd.f32 %v1105, %v1179
        %v1188 = vadd.f32 %v1106, %v1180
        %v1189 = vadd.f32 %v1107, %v1181
        %v1190 = vrot.slane %v721, 7
        %v1191 = vrot.slane %v725, 7
        %v1192 = vrot.slane %v731, 7
        %v1193 = vrot.slane %v735, 7
        %v1194 = vrot.slane %v741, 7
        %v1195 = vrot.slane %v745, 7
        %v1196 = vrot.slane %v751, 7
        %v1197 = vrot.slane %v755, 7
        %v1198 = vsel %vm978, %v1196, %v1197
        %v1199 = vsel %vm978, %v1195, %v1196
        %v1200 = vsel %vm978, %v1194, %v1195
        %v1201 = vsel %vm978, %v1193, %v1194
        %v1202 = vsel %vm978, %v1192, %v1193
        %v1203 = vsel %vm978, %v1191, %v1192
        %v1204 = vsel %vm978, %v1190, %v1191
        %v1205 = vsel %vm978, %v1197, %v1190
        %s1206 = scalar_lea.vmem %s1, 192
        %v1207 = vld [vmem:[%s1206] sm:$0xff]
        %v1208 = vld [vmem:[%s1206 + $0x8] sm:$0xff]
        %v1209 = vld [vmem:[%s1206 + $0x10] sm:$0xff]
        %v1210 = vld [vmem:[%s1206 + $0x18] sm:$0xff]
        %v1211 = vld [vmem:[%s1206 + $0x20] sm:$0xff]
        %v1212 = vld [vmem:[%s1206 + $0x28] sm:$0xff]
        %v1213 = vld [vmem:[%s1206 + $0x30] sm:$0xff]
        %v1214 = vld [vmem:[%s1206 + $0x38] sm:$0xff]
        %1216 = vset.pattern.permute.xlu0 0
        %1217 = vperm.xlu0 %1216, %v1207
        %v1218 = vpop.permute.xlu0 %1217
        %1221 = vset.pattern.permute.xlu0 0
        %1222 = vperm.xlu0 %1221, %v1208
        %v1223 = vpop.permute.xlu0 %1222
        %1226 = vset.pattern.permute.xlu0 0
        %1227 = vperm.xlu0 %1226, %v1209
        %v1228 = vpop.permute.xlu0 %1227
        %1231 = vset.pattern.permute.xlu0 0
        %1232 = vperm.xlu0 %1231, %v1210
        %v1233 = vpop.permute.xlu0 %1232
        %1236 = vset.pattern.permute.xlu0 0
        %1237 = vperm.xlu0 %1236, %v1211
        %v1238 = vpop.permute.xlu0 %1237
        %1241 = vset.pattern.permute.xlu0 0
        %1242 = vperm.xlu0 %1241, %v1212
        %v1243 = vpop.permute.xlu0 %1242
        %1246 = vset.pattern.permute.xlu0 0
        %1247 = vperm.xlu0 %1246, %v1213
        %v1248 = vpop.permute.xlu0 %1247
        %1251 = vset.pattern.permute.xlu0 0
        %1252 = vperm.xlu0 %1251, %v1214
        %v1253 = vpop.permute.xlu0 %1252
        %v1255 = vmul.f32 %v1205, %v1218
        %v1256 = vmul.f32 %v1204, %v1223
        %v1257 = vmul.f32 %v1203, %v1228
        %v1258 = vmul.f32 %v1202, %v1233
        %v1259 = vmul.f32 %v1201, %v1238
        %v1260 = vmul.f32 %v1200, %v1243
        %v1261 = vmul.f32 %v1199, %v1248
        %v1262 = vmul.f32 %v1198, %v1253
        %v1263 = vadd.f32 %v1182, %v1255
        %v1264 = vadd.f32 %v1183, %v1256
        %v1265 = vadd.f32 %v1184, %v1257
        %v1266 = vadd.f32 %v1185, %v1258
        %v1267 = vadd.f32 %v1186, %v1259
        %v1268 = vadd.f32 %v1187, %v1260
        %v1269 = vadd.f32 %v1188, %v1261
        %v1270 = vadd.f32 %v1189, %v1262
        %v1271 = vadd.f32 %v1263, %v792
        %v1272 = vadd.f32 %v1264, %v796
        %v1273 = vadd.f32 %v1265, %v802
        %v1274 = vadd.f32 %v1266, %v806
        %v1275 = vadd.f32 %v1267, %v812
        %v1276 = vadd.f32 %v1268, %v816
        %v1277 = vadd.f32 %v1269, %v822
        %v1278 = vadd.f32 %v1270, %v826
        %v1279 = vrot.slane %v794, 1
        %v1280 = vrot.slane %v798, 1
        %v1281 = vrot.slane %v804, 1
        %v1282 = vrot.slane %v808, 1
        %v1283 = vrot.slane %v814, 1
        %v1284 = vrot.slane %v818, 1
        %v1285 = vrot.slane %v824, 1
        %v1286 = vrot.slane %v828, 1
        %v1287 = vsel %vm1116, %v1285, %v1286
        %v1288 = vsel %vm1116, %v1284, %v1285
        %v1289 = vsel %vm1116, %v1283, %v1284
        %v1290 = vsel %vm1116, %v1282, %v1283
        %v1291 = vsel %vm1116, %v1281, %v1282
        %v1292 = vsel %vm1116, %v1280, %v1281
        %v1293 = vsel %vm1116, %v1279, %v1280
        %v1294 = vsel %vm1116, %v1286, %v1279
        %s1295 = scalar_lea.vmem %s1, 320
        %v1296 = vld [vmem:[%s1295] sm:$0xff]
        %v1297 = vld [vmem:[%s1295 + $0x8] sm:$0xff]
        %v1298 = vld [vmem:[%s1295 + $0x10] sm:$0xff]
        %v1299 = vld [vmem:[%s1295 + $0x18] sm:$0xff]
        %v1300 = vld [vmem:[%s1295 + $0x20] sm:$0xff]
        %v1301 = vld [vmem:[%s1295 + $0x28] sm:$0xff]
        %v1302 = vld [vmem:[%s1295 + $0x30] sm:$0xff]
        %v1303 = vld [vmem:[%s1295 + $0x38] sm:$0xff]
        %1305 = vset.pattern.permute.xlu0 0
        %1306 = vperm.xlu0 %1305, %v1296
        %v1307 = vpop.permute.xlu0 %1306
        %1310 = vset.pattern.permute.xlu0 0
        %1311 = vperm.xlu0 %1310, %v1297
        %v1312 = vpop.permute.xlu0 %1311
        %1315 = vset.pattern.permute.xlu0 0
        %1316 = vperm.xlu0 %1315, %v1298
        %v1317 = vpop.permute.xlu0 %1316
        %1320 = vset.pattern.permute.xlu0 0
        %1321 = vperm.xlu0 %1320, %v1299
        %v1322 = vpop.permute.xlu0 %1321
        %1325 = vset.pattern.permute.xlu0 0
        %1326 = vperm.xlu0 %1325, %v1300
        %v1327 = vpop.permute.xlu0 %1326
        %1330 = vset.pattern.permute.xlu0 0
        %1331 = vperm.xlu0 %1330, %v1301
        %v1332 = vpop.permute.xlu0 %1331
        %1335 = vset.pattern.permute.xlu0 0
        %1336 = vperm.xlu0 %1335, %v1302
        %v1337 = vpop.permute.xlu0 %1336
        %1340 = vset.pattern.permute.xlu0 0
        %1341 = vperm.xlu0 %1340, %v1303
        %v1342 = vpop.permute.xlu0 %1341
        %v1344 = vmul.f32 %v1293, %v1307
        %v1345 = vmul.f32 %v1292, %v1312
        %v1346 = vmul.f32 %v1291, %v1317
        %v1347 = vmul.f32 %v1290, %v1322
        %v1348 = vmul.f32 %v1289, %v1327
        %v1349 = vmul.f32 %v1288, %v1332
        %v1350 = vmul.f32 %v1287, %v1337
        %v1351 = vmul.f32 %v1294, %v1342
        %v1352 = vadd.f32 %v1271, %v1344
        %v1353 = vadd.f32 %v1272, %v1345
        %v1354 = vadd.f32 %v1273, %v1346
        %v1355 = vadd.f32 %v1274, %v1347
        %v1356 = vadd.f32 %v1275, %v1348
        %v1357 = vadd.f32 %v1276, %v1349
        %v1358 = vadd.f32 %v1277, %v1350
        %v1359 = vadd.f32 %v1278, %v1351
        %v1360 = vrot.slane %v865, 7
        %v1361 = vrot.slane %v869, 7
        %v1362 = vrot.slane %v875, 7
        %v1363 = vrot.slane %v879, 7
        %v1364 = vrot.slane %v885, 7
        %v1365 = vrot.slane %v889, 7
        %v1366 = vrot.slane %v895, 7
        %v1367 = vrot.slane %v899, 7
        %v1368 = vsel %vm978, %v1366, %v1367
        %v1369 = vsel %vm978, %v1365, %v1366
        %v1370 = vsel %vm978, %v1364, %v1365
        %v1371 = vsel %vm978, %v1363, %v1364
        %v1372 = vsel %vm978, %v1362, %v1363
        %v1373 = vsel %vm978, %v1361, %v1362
        %v1374 = vsel %vm978, %v1360, %v1361
        %v1375 = vsel %vm978, %v1367, %v1360
        %s1376 = scalar_lea.vmem %s1, 384
        %v1377 = vld [vmem:[%s1376] sm:$0xff]
        %v1378 = vld [vmem:[%s1376 + $0x8] sm:$0xff]
        %v1379 = vld [vmem:[%s1376 + $0x10] sm:$0xff]
        %v1380 = vld [vmem:[%s1376 + $0x18] sm:$0xff]
        %v1381 = vld [vmem:[%s1376 + $0x20] sm:$0xff]
        %v1382 = vld [vmem:[%s1376 + $0x28] sm:$0xff]
        %v1383 = vld [vmem:[%s1376 + $0x30] sm:$0xff]
        %v1384 = vld [vmem:[%s1376 + $0x38] sm:$0xff]
        %1386 = vset.pattern.permute.xlu0 0
        %1387 = vperm.xlu0 %1386, %v1377
        %v1388 = vpop.permute.xlu0 %1387
        %1391 = vset.pattern.permute.xlu0 0
        %1392 = vperm.xlu0 %1391, %v1378
        %v1393 = vpop.permute.xlu0 %1392
        %1396 = vset.pattern.permute.xlu0 0
        %1397 = vperm.xlu0 %1396, %v1379
        %v1398 = vpop.permute.xlu0 %1397
        %1401 = vset.pattern.permute.xlu0 0
        %1402 = vperm.xlu0 %1401, %v1380
        %v1403 = vpop.permute.xlu0 %1402
        %1406 = vset.pattern.permute.xlu0 0
        %1407 = vperm.xlu0 %1406, %v1381
        %v1408 = vpop.permute.xlu0 %1407
        %1411 = vset.pattern.permute.xlu0 0
        %1412 = vperm.xlu0 %1411, %v1382
        %v1413 = vpop.permute.xlu0 %1412
        %1416 = vset.pattern.permute.xlu0 0
        %1417 = vperm.xlu0 %1416, %v1383
        %v1418 = vpop.permute.xlu0 %1417
        %1421 = vset.pattern.permute.xlu0 0
        %1422 = vperm.xlu0 %1421, %v1384
        %v1423 = vpop.permute.xlu0 %1422
        %v1425 = vmul.f32 %v1374, %v1388
        %v1426 = vmul.f32 %v1373, %v1393
        %v1427 = vmul.f32 %v1372, %v1398
        %v1428 = vmul.f32 %v1371, %v1403
        %v1429 = vmul.f32 %v1370, %v1408
        %v1430 = vmul.f32 %v1369, %v1413
        %v1431 = vmul.f32 %v1368, %v1418
        %v1432 = vmul.f32 %v1375, %v1423
        %v1433 = vadd.f32 %v1352, %v1425
        %v1434 = vadd.f32 %v1353, %v1426
        %v1435 = vadd.f32 %v1354, %v1427
        %v1436 = vadd.f32 %v1355, %v1428
        %v1437 = vadd.f32 %v1356, %v1429
        %v1438 = vadd.f32 %v1357, %v1430
        %v1439 = vadd.f32 %v1358, %v1431
        %v1440 = vadd.f32 %v1359, %v1432
        %s1441 = scalar_lea.vmem %s1, 448
        %v1442 = vld [vmem:[%s1441] sm:$0xff]
        %v1443 = vld [vmem:[%s1441 + $0x8] sm:$0xff]
        %v1444 = vld [vmem:[%s1441 + $0x10] sm:$0xff]
        %v1445 = vld [vmem:[%s1441 + $0x18] sm:$0xff]
        %v1446 = vld [vmem:[%s1441 + $0x20] sm:$0xff]
        %v1447 = vld [vmem:[%s1441 + $0x28] sm:$0xff]
        %v1448 = vld [vmem:[%s1441 + $0x30] sm:$0xff]
        %v1449 = vld [vmem:[%s1441 + $0x38] sm:$0xff]
        %1451 = vset.pattern.permute.xlu0 0
        %1452 = vperm.xlu0 %1451, %v1442
        %v1453 = vpop.permute.xlu0 %1452
        %1456 = vset.pattern.permute.xlu0 0
        %1457 = vperm.xlu0 %1456, %v1443
        %v1458 = vpop.permute.xlu0 %1457
        %1461 = vset.pattern.permute.xlu0 0
        %1462 = vperm.xlu0 %1461, %v1444
        %v1463 = vpop.permute.xlu0 %1462
        %1466 = vset.pattern.permute.xlu0 0
        %1467 = vperm.xlu0 %1466, %v1445
        %v1468 = vpop.permute.xlu0 %1467
        %1471 = vset.pattern.permute.xlu0 0
        %1472 = vperm.xlu0 %1471, %v1446
        %v1473 = vpop.permute.xlu0 %1472
        %1476 = vset.pattern.permute.xlu0 0
        %1477 = vperm.xlu0 %1476, %v1447
        %v1478 = vpop.permute.xlu0 %1477
        %1481 = vset.pattern.permute.xlu0 0
        %1482 = vperm.xlu0 %1481, %v1448
        %v1483 = vpop.permute.xlu0 %1482
        %1486 = vset.pattern.permute.xlu0 0
        %1487 = vperm.xlu0 %1486, %v1449
        %v1488 = vpop.permute.xlu0 %1487
        %v1490 = vmul.f32 %v871, %v1453
        %v1491 = vmul.f32 %v877, %v1458
        %v1492 = vmul.f32 %v881, %v1463
        %v1493 = vmul.f32 %v887, %v1468
        %v1494 = vmul.f32 %v891, %v1473
        %v1495 = vmul.f32 %v897, %v1478
        %v1496 = vmul.f32 %v901, %v1483
        %v1497 = vmul.f32 %v867, %v1488
        %v1498 = vadd.f32 %v1433, %v1490
        %v1499 = vadd.f32 %v1434, %v1491
        %v1500 = vadd.f32 %v1435, %v1492
        %v1501 = vadd.f32 %v1436, %v1493
        %v1502 = vadd.f32 %v1437, %v1494
        %v1503 = vadd.f32 %v1438, %v1495
        %v1504 = vadd.f32 %v1439, %v1496
        %v1505 = vadd.f32 %v1440, %v1497
        %v1506 = vrot.slane %v938, 1
        %v1507 = vrot.slane %v941, 1
        %v1508 = vrot.slane %v946, 1
        %v1509 = vrot.slane %v949, 1
        %v1510 = vrot.slane %v954, 1
        %v1511 = vrot.slane %v957, 1
        %v1512 = vrot.slane %v962, 1
        %v1513 = vrot.slane %v965, 1
        %v1514 = vsel %vm1116, %v1512, %v1513
        %v1515 = vsel %vm1116, %v1511, %v1512
        %v1516 = vsel %vm1116, %v1510, %v1511
        %v1517 = vsel %vm1116, %v1509, %v1510
        %v1518 = vsel %vm1116, %v1508, %v1509
        %v1519 = vsel %vm1116, %v1507, %v1508
        %v1520 = vsel %vm1116, %v1506, %v1507
        %v1521 = vsel %vm1116, %v1513, %v1506
        %s1522 = scalar_lea.vmem %s1, 512
        %v1523 = vld [vmem:[%s1522] sm:$0xff]
        %v1524 = vld [vmem:[%s1522 + $0x8] sm:$0xff]
        %v1525 = vld [vmem:[%s1522 + $0x10] sm:$0xff]
        %v1526 = vld [vmem:[%s1522 + $0x18] sm:$0xff]
        %v1527 = vld [vmem:[%s1522 + $0x20] sm:$0xff]
        %v1528 = vld [vmem:[%s1522 + $0x28] sm:$0xff]
        %v1529 = vld [vmem:[%s1522 + $0x30] sm:$0xff]
        %v1530 = vld [vmem:[%s1522 + $0x38] sm:$0xff]
        %1532 = vset.pattern.permute.xlu0 0
        %1533 = vperm.xlu0 %1532, %v1523
        %v1534 = vpop.permute.xlu0 %1533
        %1537 = vset.pattern.permute.xlu0 0
        %1538 = vperm.xlu0 %1537, %v1524
        %v1539 = vpop.permute.xlu0 %1538
        %1542 = vset.pattern.permute.xlu0 0
        %1543 = vperm.xlu0 %1542, %v1525
        %v1544 = vpop.permute.xlu0 %1543
        %1547 = vset.pattern.permute.xlu0 0
        %1548 = vperm.xlu0 %1547, %v1526
        %v1549 = vpop.permute.xlu0 %1548
        %1552 = vset.pattern.permute.xlu0 0
        %1553 = vperm.xlu0 %1552, %v1527
        %v1554 = vpop.permute.xlu0 %1553
        %1557 = vset.pattern.permute.xlu0 0
        %1558 = vperm.xlu0 %1557, %v1528
        %v1559 = vpop.permute.xlu0 %1558
        %1562 = vset.pattern.permute.xlu0 0
        %1563 = vperm.xlu0 %1562, %v1529
        %v1564 = vpop.permute.xlu0 %1563
        %1567 = vset.pattern.permute.xlu0 0
        %1568 = vperm.xlu0 %1567, %v1530
        %v1569 = vpop.permute.xlu0 %1568
        %v1571 = vmul.f32 %v1519, %v1534
        %v1572 = vmul.f32 %v1518, %v1539
        %v1573 = vmul.f32 %v1517, %v1544
        %v1574 = vmul.f32 %v1516, %v1549
        %v1575 = vmul.f32 %v1515, %v1554
        %v1576 = vmul.f32 %v1514, %v1559
        %v1577 = vmul.f32 %v1521, %v1564
        %v1578 = vmul.f32 %v1520, %v1569
        %v1579 = vadd.f32 %v1498, %v1571
        %v1580 = vadd.f32 %v1499, %v1572
        %v1581 = vadd.f32 %v1500, %v1573
        %v1582 = vadd.f32 %v1501, %v1574
        %v1583 = vadd.f32 %v1502, %v1575
        %v1584 = vadd.f32 %v1503, %v1576
        %v1585 = vadd.f32 %v1504, %v1577
        %v1586 = vadd.f32 %v1505, %v1578
        %v1587 = vlaneseq
        %v1588 = vshrl.u32 %v1587, 7
        %v1589 = vsub.s32 0, %v1588
        %v1590 = vrot.slane %v537, %v1589
        %v1591 = vadd.f32 %v1579, %v1590
        %v1592 = vadd.f32 %v1580, %v1590
        %v1593 = vadd.f32 %v1581, %v1590
        %v1594 = vadd.f32 %v1582, %v1590
        %v1595 = vadd.f32 %v1583, %v1590
        %v1596 = vadd.f32 %v1584, %v1590
        %v1597 = vadd.f32 %v1585, %v1590
        %v1598 = vadd.f32 %v1586, %v1590
        %v1599 = vmax.f32 %v1591, 0.0
        %v1600 = vmax.f32 %v1592, 0.0
        %v1601 = vmax.f32 %v1593, 0.0
        %v1602 = vmax.f32 %v1594, 0.0
        %v1603 = vmax.f32 %v1595, 0.0
        %v1604 = vmax.f32 %v1596, 0.0
        %v1605 = vmax.f32 %v1597, 0.0
        %v1606 = vmax.f32 %v1598, 0.0
        %v1607 = vld [vmem:[%s13 + $0x1] sm:$0x1]
        %v1608 = vpack.c.bf16 %v1600, %v1599
        %v1609 = vpack.c.bf16 %v1602, %v1601
        %v1610 = vpack.c.bf16 %v1604, %v1603
        %v1611 = vpack.c.bf16 %v1606, %v1605
        %v1612 = vld [vmem:[%s4] sm:$0xff]
        %v1613 = vld [vmem:[%s4 + $0x8] sm:$0xff]
        %v1614 = vld [vmem:[%s4 + $0x10] sm:$0xff]
        %v1615 = vld [vmem:[%s4 + $0x18] sm:$0xff]
        %v1616 = vld [vmem:[%s4 + $0x20] sm:$0xf]
        %v1617 = vld [vmem:[%s4 + $0x24] sm:$0xff]
        %v1618 = vld [vmem:[%s4 + $0x2c] sm:$0xff]
        %v1619 = vld [vmem:[%s4 + $0x34] sm:$0xff]
        %v1620 = vld [vmem:[%s4 + $0x3c] sm:$0xff]
        %v1621 = vld [vmem:[%s4 + $0x44] sm:$0xf]
        %v1622 = vld [vmem:[%s4 + $0x48] sm:$0xff]
        %v1623 = vld [vmem:[%s4 + $0x50] sm:$0xff]
        %v1624 = vld [vmem:[%s4 + $0x58] sm:$0xff]
        %v1625 = vld [vmem:[%s4 + $0x60] sm:$0xff]
        %v1626 = vld [vmem:[%s4 + $0x68] sm:$0xf]
        %v1627 = vld [vmem:[%s4 + $0x6c] sm:$0xff]
        %v1628 = vld [vmem:[%s4 + $0x74] sm:$0xff]
        %v1629 = vld [vmem:[%s4 + $0x7c] sm:$0xff]
        %v1630 = vld [vmem:[%s4 + $0x84] sm:$0xff]
        %v1631 = vld [vmem:[%s4 + $0x8c] sm:$0xf]
        %v1632 = vld [vmem:[%s4 + $0x90] sm:$0xff]
        %v1633 = vld [vmem:[%s4 + $0x98] sm:$0xff]
        %v1634 = vld [vmem:[%s4 + $0xa0] sm:$0xff]
        %v1635 = vld [vmem:[%s4 + $0xa8] sm:$0xff]
        %v1636 = vld [vmem:[%s4 + $0xb0] sm:$0xf]
        %v1637 = vld [vmem:[%s4 + $0xb4] sm:$0xff]
        %v1638 = vld [vmem:[%s4 + $0xbc] sm:$0xff]
        %v1639 = vld [vmem:[%s4 + $0xc4] sm:$0xff]
        %v1640 = vld [vmem:[%s4 + $0xcc] sm:$0xff]
        %v1641 = vld [vmem:[%s4 + $0xd4] sm:$0xf]
        %v1642 = vld [vmem:[%s4 + $0xd8] sm:$0xff]
        %v1643 = vld [vmem:[%s4 + $0xe0] sm:$0xff]
        %v1644 = vld [vmem:[%s4 + $0xe8] sm:$0xff]
        %v1645 = vld [vmem:[%s4 + $0xf0] sm:$0xff]
        %v1646 = vld [vmem:[%s4 + $0xf8] sm:$0xf]
        %v1647 = vld [vmem:[%s4 + $0xfc] sm:$0xff]
        %v1648 = vld [vmem:[%s4 + $0x104] sm:$0xff]
        %v1649 = vld [vmem:[%s4 + $0x10c] sm:$0xff]
        %v1650 = vld [vmem:[%s4 + $0x114] sm:$0xff]
        %v1651 = vld [vmem:[%s4 + $0x11c] sm:$0xf]
        %v1692 = vunpack.c.l.b16 %v1612
        %v1693 = vunpack.c.h.b16 %v1612
        %v1694 = vunpack.c.l.b16 %v1613
        %v1695 = vunpack.c.h.b16 %v1613
        %v1696 = vunpack.c.l.b16 %v1614
        %v1697 = vunpack.c.h.b16 %v1614
        %v1698 = vunpack.c.l.b16 %v1615
        %v1699 = vunpack.c.h.b16 %v1615
        %v1700 = vunpack.c.l.b16 %v1616
        %v1701 = vunpack.c.l.b16 %v1617
        %v1702 = vunpack.c.h.b16 %v1617
        %v1703 = vunpack.c.l.b16 %v1618
        %v1704 = vunpack.c.h.b16 %v1618
        %v1705 = vunpack.c.l.b16 %v1619
        %v1706 = vunpack.c.h.b16 %v1619
        %v1707 = vunpack.c.l.b16 %v1620
        %v1708 = vunpack.c.h.b16 %v1620
        %v1709 = vunpack.c.l.b16 %v1621
        %v1710 = vunpack.c.l.b16 %v1622
        %v1711 = vunpack.c.h.b16 %v1622
        %v1712 = vunpack.c.l.b16 %v1623
        %v1713 = vunpack.c.h.b16 %v1623
        %v1714 = vunpack.c.l.b16 %v1624
        %v1715 = vunpack.c.h.b16 %v1624
        %v1716 = vunpack.c.l.b16 %v1625
        %v1717 = vunpack.c.h.b16 %v1625
        %v1718 = vunpack.c.l.b16 %v1626
        %v1719 = vunpack.c.l.b16 %v1627
        %v1720 = vunpack.c.h.b16 %v1627
        %v1721 = vunpack.c.l.b16 %v1628
        %v1722 = vunpack.c.h.b16 %v1628
        %v1723 = vunpack.c.l.b16 %v1629
        %v1724 = vunpack.c.h.b16 %v1629
        %v1725 = vunpack.c.l.b16 %v1630
        %v1726 = vunpack.c.h.b16 %v1630
        %v1727 = vunpack.c.l.b16 %v1631
        %v1728 = vunpack.c.l.b16 %v1632
        %v1729 = vunpack.c.h.b16 %v1632
        %v1730 = vunpack.c.l.b16 %v1633
        %v1731 = vunpack.c.h.b16 %v1633
        %v1732 = vunpack.c.l.b16 %v1634
        %v1733 = vunpack.c.h.b16 %v1634
        %v1734 = vunpack.c.l.b16 %v1635
        %v1735 = vunpack.c.h.b16 %v1635
        %v1736 = vunpack.c.l.b16 %v1636
        %v1737 = vunpack.c.l.b16 %v1637
        %v1738 = vunpack.c.h.b16 %v1637
        %v1739 = vunpack.c.l.b16 %v1638
        %v1740 = vunpack.c.h.b16 %v1638
        %v1741 = vunpack.c.l.b16 %v1639
        %v1742 = vunpack.c.h.b16 %v1639
        %v1743 = vunpack.c.l.b16 %v1640
        %v1744 = vunpack.c.h.b16 %v1640
        %v1745 = vunpack.c.l.b16 %v1641
        %v1746 = vunpack.c.l.b16 %v1642
        %v1747 = vunpack.c.h.b16 %v1642
        %v1748 = vunpack.c.l.b16 %v1643
        %v1749 = vunpack.c.h.b16 %v1643
        %v1750 = vunpack.c.l.b16 %v1644
        %v1751 = vunpack.c.h.b16 %v1644
        %v1752 = vunpack.c.l.b16 %v1645
        %v1753 = vunpack.c.h.b16 %v1645
        %v1754 = vunpack.c.l.b16 %v1646
        %v1755 = vunpack.c.l.b16 %v1647
        %v1756 = vunpack.c.h.b16 %v1647
        %v1757 = vunpack.c.l.b16 %v1648
        %v1758 = vunpack.c.h.b16 %v1648
        %v1759 = vunpack.c.l.b16 %v1649
        %v1760 = vunpack.c.h.b16 %v1649
        %v1761 = vunpack.c.l.b16 %v1650
        %v1762 = vunpack.c.h.b16 %v1650
        %v1763 = vunpack.c.l.b16 %v1651
        %v1764 = vpack.c.b16 %v1701, %v1692
        %v1765 = vpack.c.b16 %v1702, %v1693
        %v1766 = vpack.c.b16 %v1703, %v1694
        %v1767 = vpack.c.b16 %v1704, %v1695
        %v1768 = vpack.c.b16 %v1705, %v1696
        %v1769 = vpack.c.b16 %v1706, %v1697
        %v1770 = vpack.c.b16 %v1707, %v1698
        %v1771 = vpack.c.b16 %v1708, %v1699
        %v1772 = vpack.c.b16 %v1709, %v1700
        %v1773 = vpack.c.b16 %v1719, %v1710
        %v1774 = vpack.c.b16 %v1720, %v1711
        %v1775 = vpack.c.b16 %v1721, %v1712
        %v1776 = vpack.c.b16 %v1722, %v1713
        %v1777 = vpack.c.b16 %v1723, %v1714
        %v1778 = vpack.c.b16 %v1724, %v1715
        %v1779 = vpack.c.b16 %v1725, %v1716
        %v1780 = vpack.c.b16 %v1726, %v1717
        %v1781 = vpack.c.b16 %v1727, %v1718
        %v1782 = vpack.c.b16 %v1737, %v1728
        %v1783 = vpack.c.b16 %v1738, %v1729
        %v1784 = vpack.c.b16 %v1739, %v1730
        %v1785 = vpack.c.b16 %v1740, %v1731
        %v1786 = vpack.c.b16 %v1741, %v1732
        %v1787 = vpack.c.b16 %v1742, %v1733
        %v1788 = vpack.c.b16 %v1743, %v1734
        %v1789 = vpack.c.b16 %v1744, %v1735
        %v1790 = vpack.c.b16 %v1745, %v1736
        %v1791 = vpack.c.b16 %v1755, %v1746
        %v1792 = vpack.c.b16 %v1756, %v1747
        %v1793 = vpack.c.b16 %v1757, %v1748
        %v1794 = vpack.c.b16 %v1758, %v1749
        %v1795 = vpack.c.b16 %v1759, %v1750
        %v1796 = vpack.c.b16 %v1760, %v1751
        %v1797 = vpack.c.b16 %v1761, %v1752
        %v1798 = vpack.c.b16 %v1762, %v1753
        %v1799 = vpack.c.b16 %v1763, %v1754
        %vm1836 = vcmask 523264
        %v1838 = vsel %vm1836, %v1608, 0
        %v1841 = vsel %vm1836, %v1609, 0
        %v1844 = vsel %vm1836, %v1610, 0
        %v1847 = vsel %vm1836, %v1611, 0
        %1849 = vmatprep.subr.bf16.mxu0 %v1765
        %1850 = vmatpush1.bf16.msra.mxu0 %v1764
        %1851 = vmatprep.subr.bf16.mxu0 %v1774
        %1852 = vmatpush1.bf16.msra.mxu0 %v1773
        %1853 = vmatprep.subr.bf16.mxu0 %v1783
        %1854 = vmatpush1.bf16.msra.mxu0 %v1782
        %1855 = vmatprep.subr.bf16.mxu0 %v1792
        %1856 = vmatpush1.bf16.msra.mxu0 %v1791
        %1857 = vmatprep.subr.bf16.mxu0 0
        %1858 = vmatpush1.bf16.msra.mxu0 0
        %1859 = vmatprep.subr.bf16.mxu0 0
        %1860 = vmatpush1.bf16.msra.mxu0 0
        %1861 = vmatprep.subr.bf16.mxu0 0
        %1862 = vmatpush1.bf16.msra.mxu0 0
        %1863 = vmatprep.subr.bf16.mxu0 0
        %1864 = vmatpush1.bf16.msra.mxu0 0
        %1865 = vmatprep.subr.bf16.mxu0 0
        %1866 = vmatpush1.bf16.msra.mxu0 0
        %1867 = vmatprep.subr.bf16.mxu0 0
        %1868 = vmatpush1.bf16.msra.mxu0 0
        %1869 = vmatprep.subr.bf16.mxu0 0
        %1870 = vmatpush1.bf16.msra.mxu0 0
        %1871 = vmatprep.subr.bf16.mxu0 0
        %1872 = vmatpush1.bf16.msra.mxu0 0
        %1873 = vmatprep.subr.bf16.mxu0 0
        %1874 = vmatpush1.bf16.msra.mxu0 0
        %1875 = vmatprep.subr.bf16.mxu0 0
        %1876 = vmatpush1.bf16.msra.mxu0 0
        %1877 = vmatprep.subr.bf16.mxu0 0
        %1878 = vmatpush1.bf16.msra.mxu0 0
        %1879 = vmatprep.subr.bf16.mxu0 0
        %1880 = vmatpush1.bf16.msra.mxu0 0
        %1881 = vmatprep.mubr.bf16.mxu0 0
        %1882 = vmatmul.mubr.bf16.gmra.mrb[0].mxu0 %v1838
        %v1883 = vpop.f32.mrb[0].mxu0
        %v1884 = vadd.f32 0.0, %v1883
        %v1885 = vpop.f32.mrb[0].mxu0
        %v1886 = vadd.f32 0.0, %v1885
        %v1887 = vpop.f32.mrb[0].mxu0
        %v1888 = vadd.f32 0.0, %v1887
        %v1889 = vpop.f32.mrb[0].mxu0
        %v1890 = vadd.f32 0.0, %v1889
        %1891 = vmatprep.mubr.bf16.mxu0 0
        %1892 = vmatmul.mubr.bf16.gmra.mrb[0].mxu0 %v1841
        %v1893 = vpop.f32.mrb[0].mxu0
        %v1894 = vadd.f32 0.0, %v1893
        %v1895 = vpop.f32.mrb[0].mxu0
        %v1896 = vadd.f32 0.0, %v1895
        %v1897 = vpop.f32.mrb[0].mxu0
        %v1898 = vadd.f32 0.0, %v1897
        %v1899 = vpop.f32.mrb[0].mxu0
        %v1900 = vadd.f32 0.0, %v1899
        %1901 = vmatprep.mubr.bf16.mxu0 0
        %1902 = vmatmul.mubr.bf16.gmra.mrb[0].mxu0 %v1844
        %v1903 = vpop.f32.mrb[0].mxu0
        %v1904 = vadd.f32 0.0, %v1903
        %v1905 = vpop.f32.mrb[0].mxu0
        %v1906 = vadd.f32 0.0, %v1905
        %v1907 = vpop.f32.mrb[0].mxu0
        %v1908 = vadd.f32 0.0, %v1907
        %v1909 = vpop.f32.mrb[0].mxu0
        %v1910 = vadd.f32 0.0, %v1909
        %1911 = vmatprep.mubr.bf16.mxu0 0
        %1912 = vmatmul.mubr.bf16.gmra.mrb[0].mxu0 %v1847
        %v1913 = vpop.f32.mrb[0].mxu0
        %v1914 = vadd.f32 0.0, %v1913
        %v1915 = vpop.f32.mrb[0].mxu0
        %v1916 = vadd.f32 0.0, %v1915
        %v1917 = vpop.f32.mrb[0].mxu0
        %v1918 = vadd.f32 0.0, %v1917
        %v1919 = vpop.f32.mrb[0].mxu0
        %v1920 = vadd.f32 0.0, %v1919
        %1921 = vdwg.mxu0
        %1922 = vmatprep.subr.bf16.mxu0 %v1767
        %1923 = vmatpush1.bf16.msra.mxu0 %v1766
        %1924 = vmatprep.subr.bf16.mxu0 %v1776
        %1925 = vmatpush1.bf16.msra.mxu0 %v1775
        %1926 = vmatprep.subr.bf16.mxu0 %v1785
        %1927 = vmatpush1.bf16.msra.mxu0 %v1784
        %1928 = vmatprep.subr.bf16.mxu0 %v1794
        %1929 = vmatpush1.bf16.msra.mxu0 %v1793
        %1930 = vmatprep.subr.bf16.mxu0 0
        %1931 = vmatpush1.bf16.msra.mxu0 0
        %1932 = vmatprep.subr.bf16.mxu0 0
        %1933 = vmatpush1.bf16.msra.mxu0 0
        %1934 = vmatprep.subr.bf16.mxu0 0
        %1935 = vmatpush1.bf16.msra.mxu0 0
        %1936 = vmatprep.subr.bf16.mxu0 0
        %1937 = vmatpush1.bf16.msra.mxu0 0
        %1938 = vmatprep.subr.bf16.mxu0 0
        %1939 = vmatpush1.bf16.msra.mxu0 0
        %1940 = vmatprep.subr.bf16.mxu0 0
        %1941 = vmatpush1.bf16.msra.mxu0 0
        %1942 = vmatprep.subr.bf16.mxu0 0
        %1943 = vmatpush1.bf16.msra.mxu0 0
        %1944 = vmatprep.subr.bf16.mxu0 0
        %1945 = vmatpush1.bf16.msra.mxu0 0
        %1946 = vmatprep.subr.bf16.mxu0 0
        %1947 = vmatpush1.bf16.msra.mxu0 0
        %1948 = vmatprep.subr.bf16.mxu0 0
        %1949 = vmatpush1.bf16.msra.mxu0 0
        %1950 = vmatprep.subr.bf16.mxu0 0
        %1951 = vmatpush1.bf16.msra.mxu0 0
        %1952 = vmatprep.subr.bf16.mxu0 0
        %1953 = vmatpush1.bf16.msra.mxu0 0
        %1954 = vmatprep.mubr.bf16.mxu0 0
        %1955 = vmatmul.mubr.bf16.gmra.mrb[0].mxu0 %v1838
        %v1956 = vpop.f32.mrb[0].mxu0
        %v1957 = vadd.f32 0.0, %v1956
        %v1958 = vpop.f32.mrb[0].mxu0
        %v1959 = vadd.f32 0.0, %v1958
        %v1960 = vpop.f32.mrb[0].mxu0
        %v1961 = vadd.f32 0.0, %v1960
        %v1962 = vpop.f32.mrb[0].mxu0
        %v1963 = vadd.f32 0.0, %v1962
        %1964 = vmatprep.mubr.bf16.mxu0 0
        %1965 = vmatmul.mubr.bf16.gmra.mrb[0].mxu0 %v1841
        %v1966 = vpop.f32.mrb[0].mxu0
        %v1967 = vadd.f32 0.0, %v1966
        %v1968 = vpop.f32.mrb[0].mxu0
        %v1969 = vadd.f32 0.0, %v1968
        %v1970 = vpop.f32.mrb[0].mxu0
        %v1971 = vadd.f32 0.0, %v1970
        %v1972 = vpop.f32.mrb[0].mxu0
        %v1973 = vadd.f32 0.0, %v1972
        %1974 = vmatprep.mubr.bf16.mxu0 0
        %1975 = vmatmul.mubr.bf16.gmra.mrb[0].mxu0 %v1844
        %v1976 = vpop.f32.mrb[0].mxu0
        %v1977 = vadd.f32 0.0, %v1976
        %v1978 = vpop.f32.mrb[0].mxu0
        %v1979 = vadd.f32 0.0, %v1978
        %v1980 = vpop.f32.mrb[0].mxu0
        %v1981 = vadd.f32 0.0, %v1980
        %v1982 = vpop.f32.mrb[0].mxu0
        %v1983 = vadd.f32 0.0, %v1982
        %1984 = vmatprep.mubr.bf16.mxu0 0
        %1985 = vmatmul.mubr.bf16.gmra.mrb[0].mxu0 %v1847
        %v1986 = vpop.f32.mrb[0].mxu0
        %v1987 = vadd.f32 0.0, %v1986
        %v1988 = vpop.f32.mrb[0].mxu0
        %v1989 = vadd.f32 0.0, %v1988
        %v1990 = vpop.f32.mrb[0].mxu0
        %v1991 = vadd.f32 0.0, %v1990
        %v1992 = vpop.f32.mrb[0].mxu0
        %v1993 = vadd.f32 0.0, %v1992
        %1994 = vdwg.mxu0
        %1995 = vmatprep.subr.bf16.mxu0 %v1769
        %1996 = vmatpush1.bf16.msra.mxu0 %v1768
        %1997 = vmatprep.subr.bf16.mxu0 %v1778
        %1998 = vmatpush1.bf16.msra.mxu0 %v1777
        %1999 = vmatprep.subr.bf16.mxu0 %v1787
        %2000 = vmatpush1.bf16.msra.mxu0 %v1786
        %2001 = vmatprep.subr.bf16.mxu0 %v1796
        %2002 = vmatpush1.bf16.msra.mxu0 %v1795
        %2003 = vmatprep.subr.bf16.mxu0 0
        %2004 = vmatpush1.bf16.msra.mxu0 0
        %2005 = vmatprep.subr.bf16.mxu0 0
        %2006 = vmatpush1.bf16.msra.mxu0 0
        %2007 = vmatprep.subr.bf16.mxu0 0
        %2008 = vmatpush1.bf16.msra.mxu0 0
        %2009 = vmatprep.subr.bf16.mxu0 0
        %2010 = vmatpush1.bf16.msra.mxu0 0
        %2011 = vmatprep.subr.bf16.mxu0 0
        %2012 = vmatpush1.bf16.msra.mxu0 0
        %2013 = vmatprep.subr.bf16.mxu0 0
        %2014 = vmatpush1.bf16.msra.mxu0 0
        %2015 = vmatprep.subr.bf16.mxu0 0
        %2016 = vmatpush1.bf16.msra.mxu0 0
        %2017 = vmatprep.subr.bf16.mxu0 0
        %2018 = vmatpush1.bf16.msra.mxu0 0
        %2019 = vmatprep.subr.bf16.mxu0 0
        %2020 = vmatpush1.bf16.msra.mxu0 0
        %2021 = vmatprep.subr.bf16.mxu0 0
        %2022 = vmatpush1.bf16.msra.mxu0 0
        %2023 = vmatprep.subr.bf16.mxu0 0
        %2024 = vmatpush1.bf16.msra.mxu0 0
        %2025 = vmatprep.subr.bf16.mxu0 0
        %2026 = vmatpush1.bf16.msra.mxu0 0
        %2027 = vmatprep.mubr.bf16.mxu0 0
        %2028 = vmatmul.mubr.bf16.gmra.mrb[0].mxu0 %v1838
        %v2029 = vpop.f32.mrb[0].mxu0
        %v2030 = vadd.f32 0.0, %v2029
        %v2031 = vpop.f32.mrb[0].mxu0
        %v2032 = vadd.f32 0.0, %v2031
        %v2033 = vpop.f32.mrb[0].mxu0
        %v2034 = vadd.f32 0.0, %v2033
        %v2035 = vpop.f32.mrb[0].mxu0
        %v2036 = vadd.f32 0.0, %v2035
        %2037 = vmatprep.mubr.bf16.mxu0 0
        %2038 = vmatmul.mubr.bf16.gmra.mrb[0].mxu0 %v1841
        %v2039 = vpop.f32.mrb[0].mxu0
        %v2040 = vadd.f32 0.0, %v2039
        %v2041 = vpop.f32.mrb[0].mxu0
        %v2042 = vadd.f32 0.0, %v2041
        %v2043 = vpop.f32.mrb[0].mxu0
        %v2044 = vadd.f32 0.0, %v2043
        %v2045 = vpop.f32.mrb[0].mxu0
        %v2046 = vadd.f32 0.0, %v2045
        %2047 = vmatprep.mubr.bf16.mxu0 0
        %2048 = vmatmul.mubr.bf16.gmra.mrb[0].mxu0 %v1844
        %v2049 = vpop.f32.mrb[0].mxu0
        %v2050 = vadd.f32 0.0, %v2049
        %v2051 = vpop.f32.mrb[0].mxu0
        %v2052 = vadd.f32 0.0, %v2051
        %v2053 = vpop.f32.mrb[0].mxu0
        %v2054 = vadd.f32 0.0, %v2053
        %v2055 = vpop.f32.mrb[0].mxu0
        %v2056 = vadd.f32 0.0, %v2055
        %2057 = vmatprep.mubr.bf16.mxu0 0
        %2058 = vmatmul.mubr.bf16.gmra.mrb[0].mxu0 %v1847
        %v2059 = vpop.f32.mrb[0].mxu0
        %v2060 = vadd.f32 0.0, %v2059
        %v2061 = vpop.f32.mrb[0].mxu0
        %v2062 = vadd.f32 0.0, %v2061
        %v2063 = vpop.f32.mrb[0].mxu0
        %v2064 = vadd.f32 0.0, %v2063
        %v2065 = vpop.f32.mrb[0].mxu0
        %v2066 = vadd.f32 0.0, %v2065
        %2067 = vdwg.mxu0
        %2068 = vmatprep.subr.bf16.mxu0 %v1771
        %2069 = vmatpush1.bf16.msra.mxu0 %v1770
        %2070 = vmatprep.subr.bf16.mxu0 %v1780
        %2071 = vmatpush1.bf16.msra.mxu0 %v1779
        %2072 = vmatprep.subr.bf16.mxu0 %v1789
        %2073 = vmatpush1.bf16.msra.mxu0 %v1788
        %2074 = vmatprep.subr.bf16.mxu0 %v1798
        %2075 = vmatpush1.bf16.msra.mxu0 %v1797
        %2076 = vmatprep.subr.bf16.mxu0 0
        %2077 = vmatpush1.bf16.msra.mxu0 0
        %2078 = vmatprep.subr.bf16.mxu0 0
        %2079 = vmatpush1.bf16.msra.mxu0 0
        %2080 = vmatprep.subr.bf16.mxu0 0
        %2081 = vmatpush1.bf16.msra.mxu0 0
        %2082 = vmatprep.subr.bf16.mxu0 0
        %2083 = vmatpush1.bf16.msra.mxu0 0
        %2084 = vmatprep.subr.bf16.mxu0 0
        %2085 = vmatpush1.bf16.msra.mxu0 0
        %2086 = vmatprep.subr.bf16.mxu0 0
        %2087 = vmatpush1.bf16.msra.mxu0 0
        %2088 = vmatprep.subr.bf16.mxu0 0
        %2089 = vmatpush1.bf16.msra.mxu0 0
        %2090 = vmatprep.subr.bf16.mxu0 0
        %2091 = vmatpush1.bf16.msra.mxu0 0
        %2092 = vmatprep.subr.bf16.mxu0 0
        %2093 = vmatpush1.bf16.msra.mxu0 0
        %2094 = vmatprep.subr.bf16.mxu0 0
        %2095 = vmatpush1.bf16.msra.mxu0 0
        %2096 = vmatprep.subr.bf16.mxu0 0
        %2097 = vmatpush1.bf16.msra.mxu0 0
        %2098 = vmatprep.subr.bf16.mxu0 0
        %2099 = vmatpush1.bf16.msra.mxu0 0
        %2100 = vmatprep.mubr.bf16.mxu0 0
        %2101 = vmatmul.mubr.bf16.gmra.mrb[0].mxu0 %v1838
        %v2102 = vpop.f32.mrb[0].mxu0
        %v2103 = vadd.f32 0.0, %v2102
        %v2104 = vpop.f32.mrb[0].mxu0
        %v2105 = vadd.f32 0.0, %v2104
        %v2106 = vpop.f32.mrb[0].mxu0
        %v2107 = vadd.f32 0.0, %v2106
        %v2108 = vpop.f32.mrb[0].mxu0
        %v2109 = vadd.f32 0.0, %v2108
        %2110 = vmatprep.mubr.bf16.mxu0 0
        %2111 = vmatmul.mubr.bf16.gmra.mrb[0].mxu0 %v1841
        %v2112 = vpop.f32.mrb[0].mxu0
        %v2113 = vadd.f32 0.0, %v2112
        %v2114 = vpop.f32.mrb[0].mxu0
        %v2115 = vadd.f32 0.0, %v2114
        %v2116 = vpop.f32.mrb[0].mxu0
        %v2117 = vadd.f32 0.0, %v2116
        %v2118 = vpop.f32.mrb[0].mxu0
        %v2119 = vadd.f32 0.0, %v2118
        %2120 = vmatprep.mubr.bf16.mxu0 0
        %2121 = vmatmul.mubr.bf16.gmra.mrb[0].mxu0 %v1844
        %v2122 = vpop.f32.mrb[0].mxu0
        %v2123 = vadd.f32 0.0, %v2122
        %v2124 = vpop.f32.mrb[0].mxu0
        %v2125 = vadd.f32 0.0, %v2124
        %v2126 = vpop.f32.mrb[0].mxu0
        %v2127 = vadd.f32 0.0, %v2126
        %v2128 = vpop.f32.mrb[0].mxu0
        %v2129 = vadd.f32 0.0, %v2128
        %2130 = vmatprep.mubr.bf16.mxu0 0
        %2131 = vmatmul.mubr.bf16.gmra.mrb[0].mxu0 %v1847
        %v2132 = vpop.f32.mrb[0].mxu0
        %v2133 = vadd.f32 0.0, %v2132
        %v2134 = vpop.f32.mrb[0].mxu0
        %v2135 = vadd.f32 0.0, %v2134
        %v2136 = vpop.f32.mrb[0].mxu0
        %v2137 = vadd.f32 0.0, %v2136
        %v2138 = vpop.f32.mrb[0].mxu0
        %v2139 = vadd.f32 0.0, %v2138
        %2140 = vdwg.mxu0
        %2141 = vmatprep.subr.bf16.mxu0 0
        %2142 = vmatpush1.bf16.msra.mxu0 %v1772
        %2143 = vmatprep.subr.bf16.mxu0 0
        %2144 = vmatpush1.bf16.msra.mxu0 %v1781
        %2145 = vmatprep.subr.bf16.mxu0 0
        %2146 = vmatpush1.bf16.msra.mxu0 %v1790
        %2147 = vmatprep.subr.bf16.mxu0 0
        %2148 = vmatpush1.bf16.msra.mxu0 %v1799
        %2149 = vmatprep.subr.bf16.mxu0 0
        %2150 = vmatpush1.bf16.msra.mxu0 0
        %2151 = vmatprep.subr.bf16.mxu0 0
        %2152 = vmatpush1.bf16.msra.mxu0 0
        %2153 = vmatprep.subr.bf16.mxu0 0
        %2154 = vmatpush1.bf16.msra.mxu0 0
        %2155 = vmatprep.subr.bf16.mxu0 0
        %2156 = vmatpush1.bf16.msra.mxu0 0
        %2157 = vmatprep.subr.bf16.mxu0 0
        %2158 = vmatpush1.bf16.msra.mxu0 0
        %2159 = vmatprep.subr.bf16.mxu0 0
        %2160 = vmatpush1.bf16.msra.mxu0 0
        %2161 = vmatprep.subr.bf16.mxu0 0
        %2162 = vmatpush1.bf16.msra.mxu0 0
        %2163 = vmatprep.subr.bf16.mxu0 0
        %2164 = vmatpush1.bf16.msra.mxu0 0
        %2165 = vmatprep.subr.bf16.mxu0 0
        %2166 = vmatpush1.bf16.msra.mxu0 0
        %2167 = vmatprep.subr.bf16.mxu0 0
        %2168 = vmatpush1.bf16.msra.mxu0 0
        %2169 = vmatprep.subr.bf16.mxu0 0
        %2170 = vmatpush1.bf16.msra.mxu0 0
        %2171 = vmatprep.subr.bf16.mxu0 0
        %2172 = vmatpush1.bf16.msra.mxu0 0
        %2173 = vmatprep.mubr.bf16.mxu0 0
        %2174 = vmatmul.mubr.bf16.gmra.mrb[0].mxu0 %v1838
        %v2175 = vpop.f32.mrb[0].mxu0
        %v2176 = vadd.f32 0.0, %v2175
        %v2177 = vpop.f32.mrb[0].mxu0
        %v2178 = vpop.f32.mrb[0].mxu0
        %v2179 = vadd.f32 0.0, %v2178
        %v2180 = vpop.f32.mrb[0].mxu0
        %2181 = vmatprep.mubr.bf16.mxu0 0
        %2182 = vmatmul.mubr.bf16.gmra.mrb[0].mxu0 %v1841
        %v2183 = vpop.f32.mrb[0].mxu0
        %v2184 = vadd.f32 0.0, %v2183
        %v2185 = vpop.f32.mrb[0].mxu0
        %v2186 = vpop.f32.mrb[0].mxu0
        %v2187 = vadd.f32 0.0, %v2186
        %v2188 = vpop.f32.mrb[0].mxu0
        %2189 = vmatprep.mubr.bf16.mxu0 0
        %2190 = vmatmul.mubr.bf16.gmra.mrb[0].mxu0 %v1844
        %v2191 = vpop.f32.mrb[0].mxu0
        %v2192 = vadd.f32 0.0, %v2191
        %v2193 = vpop.f32.mrb[0].mxu0
        %v2194 = vpop.f32.mrb[0].mxu0
        %v2195 = vadd.f32 0.0, %v2194
        %v2196 = vpop.f32.mrb[0].mxu0
        %2197 = vmatprep.mubr.bf16.mxu0 0
        %2198 = vmatmul.mubr.bf16.gmra.mrb[0].mxu0 %v1847
        %v2199 = vpop.f32.mrb[0].mxu0
        %v2200 = vadd.f32 0.0, %v2199
        %v2201 = vpop.f32.mrb[0].mxu0
        %v2202 = vpop.f32.mrb[0].mxu0
        %v2203 = vadd.f32 0.0, %v2202
        %v2204 = vpop.f32.mrb[0].mxu0
        %2205 = vdwg.mxu0
        %v2206 = vrot.slane %v1884, 7
        %v2207 = vrot.slane %v1888, 7
        %v2208 = vrot.slane %v1894, 7
        %v2209 = vrot.slane %v1898, 7
        %v2210 = vrot.slane %v1904, 7
        %v2211 = vrot.slane %v1908, 7
        %v2212 = vrot.slane %v1914, 7
        %v2213 = vrot.slane %v1918, 7
        %v2214 = vsel %vm978, %v2212, %v2213
        %v2215 = vsel %vm978, %v2211, %v2212
        %v2216 = vsel %vm978, %v2210, %v2211
        %v2217 = vsel %vm978, %v2209, %v2210
        %v2218 = vsel %vm978, %v2208, %v2209
        %v2219 = vsel %vm978, %v2207, %v2208
        %v2220 = vsel %vm978, %v2206, %v2207
        %v2221 = vsel %vm978, %v2213, %v2206
        %v2222 = vmul.f32 %v2214, %v998
        %v2223 = vmul.f32 %v2221, %v1003
        %v2224 = vmul.f32 %v2220, %v1008
        %v2225 = vmul.f32 %v2219, %v1013
        %v2226 = vmul.f32 %v2218, %v1018
        %v2227 = vmul.f32 %v2217, %v1023
        %v2228 = vmul.f32 %v2216, %v1028
        %v2229 = vmul.f32 %v2215, %v1033
        %v2230 = vmul.f32 %v1920, %v1055
        %v2231 = vmul.f32 %v1886, %v1060
        %v2232 = vmul.f32 %v1890, %v1065
        %v2233 = vmul.f32 %v1896, %v1070
        %v2234 = vmul.f32 %v1900, %v1075
        %v2235 = vmul.f32 %v1906, %v1080
        %v2236 = vmul.f32 %v1910, %v1085
        %v2237 = vmul.f32 %v1916, %v1090
        %v2238 = vadd.f32 %v2222, %v2230
        %v2239 = vadd.f32 %v2223, %v2231
        %v2240 = vadd.f32 %v2224, %v2232
        %v2241 = vadd.f32 %v2225, %v2233
        %v2242 = vadd.f32 %v2226, %v2234
        %v2243 = vadd.f32 %v2227, %v2235
        %v2244 = vadd.f32 %v2228, %v2236
        %v2245 = vadd.f32 %v2229, %v2237
        %v2246 = vrot.slane %v1957, 1
        %v2247 = vrot.slane %v1961, 1
        %v2248 = vrot.slane %v1967, 1
        %v2249 = vrot.slane %v1971, 1
        %v2250 = vrot.slane %v1977, 1
        %v2251 = vrot.slane %v1981, 1
        %v2252 = vrot.slane %v1987, 1
        %v2253 = vrot.slane %v1991, 1
        %v2254 = vsel %vm1116, %v2252, %v2253
        %v2255 = vsel %vm1116, %v2251, %v2252
        %v2256 = vsel %vm1116, %v2250, %v2251
        %v2257 = vsel %vm1116, %v2249, %v2250
        %v2258 = vsel %vm1116, %v2248, %v2249
        %v2259 = vsel %vm1116, %v2247, %v2248
        %v2260 = vsel %vm1116, %v2246, %v2247
        %v2261 = vsel %vm1116, %v2253, %v2246
        %v2262 = vmul.f32 %v2261, %v1137
        %v2263 = vmul.f32 %v2260, %v1142
        %v2264 = vmul.f32 %v2259, %v1147
        %v2265 = vmul.f32 %v2258, %v1152
        %v2266 = vmul.f32 %v2257, %v1157
        %v2267 = vmul.f32 %v2256, %v1162
        %v2268 = vmul.f32 %v2255, %v1167
        %v2269 = vmul.f32 %v2254, %v1172
        %v2270 = vadd.f32 %v2238, %v2262
        %v2271 = vadd.f32 %v2239, %v2263
        %v2272 = vadd.f32 %v2240, %v2264
        %v2273 = vadd.f32 %v2241, %v2265
        %v2274 = vadd.f32 %v2242, %v2266
        %v2275 = vadd.f32 %v2243, %v2267
        %v2276 = vadd.f32 %v2244, %v2268
        %v2277 = vadd.f32 %v2245, %v2269
        %v2278 = vrot.slane %v1959, 7
        %v2279 = vrot.slane %v1963, 7
        %v2280 = vrot.slane %v1969, 7
        %v2281 = vrot.slane %v1973, 7
        %v2282 = vrot.slane %v1979, 7
        %v2283 = vrot.slane %v1983, 7
        %v2284 = vrot.slane %v1989, 7
        %v2285 = vrot.slane %v1993, 7
        %v2286 = vsel %vm978, %v2284, %v2285
        %v2287 = vsel %vm978, %v2283, %v2284
        %v2288 = vsel %vm978, %v2282, %v2283
        %v2289 = vsel %vm978, %v2281, %v2282
        %v2290 = vsel %vm978, %v2280, %v2281
        %v2291 = vsel %vm978, %v2279, %v2280
        %v2292 = vsel %vm978, %v2278, %v2279
        %v2293 = vsel %vm978, %v2285, %v2278
        %v2294 = vmul.f32 %v2293, %v1218
        %v2295 = vmul.f32 %v2292, %v1223
        %v2296 = vmul.f32 %v2291, %v1228
        %v2297 = vmul.f32 %v2290, %v1233
        %v2298 = vmul.f32 %v2289, %v1238
        %v2299 = vmul.f32 %v2288, %v1243
        %v2300 = vmul.f32 %v2287, %v1248
        %v2301 = vmul.f32 %v2286, %v1253
        %v2302 = vadd.f32 %v2270, %v2294
        %v2303 = vadd.f32 %v2271, %v2295
        %v2304 = vadd.f32 %v2272, %v2296
        %v2305 = vadd.f32 %v2273, %v2297
        %v2306 = vadd.f32 %v2274, %v2298
        %v2307 = vadd.f32 %v2275, %v2299
        %v2308 = vadd.f32 %v2276, %v2300
        %v2309 = vadd.f32 %v2277, %v2301
        %v2310 = vadd.f32 %v2302, %v2030
        %v2311 = vadd.f32 %v2303, %v2034
        %v2312 = vadd.f32 %v2304, %v2040
        %v2313 = vadd.f32 %v2305, %v2044
        %v2314 = vadd.f32 %v2306, %v2050
        %v2315 = vadd.f32 %v2307, %v2054
        %v2316 = vadd.f32 %v2308, %v2060
        %v2317 = vadd.f32 %v2309, %v2064
        %v2318 = vrot.slane %v2032, 1
        %v2319 = vrot.slane %v2036, 1
        %v2320 = vrot.slane %v2042, 1
        %v2321 = vrot.slane %v2046, 1
        %v2322 = vrot.slane %v2052, 1
        %v2323 = vrot.slane %v2056, 1
        %v2324 = vrot.slane %v2062, 1
        %v2325 = vrot.slane %v2066, 1
        %v2326 = vsel %vm1116, %v2324, %v2325
        %v2327 = vsel %vm1116, %v2323, %v2324
        %v2328 = vsel %vm1116, %v2322, %v2323
        %v2329 = vsel %vm1116, %v2321, %v2322
        %v2330 = vsel %vm1116, %v2320, %v2321
        %v2331 = vsel %vm1116, %v2319, %v2320
        %v2332 = vsel %vm1116, %v2318, %v2319
        %v2333 = vsel %vm1116, %v2325, %v2318
        %v2334 = vmul.f32 %v2332, %v1307
        %v2335 = vmul.f32 %v2331, %v1312
        %v2336 = vmul.f32 %v2330, %v1317
        %v2337 = vmul.f32 %v2329, %v1322
        %v2338 = vmul.f32 %v2328, %v1327
        %v2339 = vmul.f32 %v2327, %v1332
        %v2340 = vmul.f32 %v2326, %v1337
        %v2341 = vmul.f32 %v2333, %v1342
        %v2342 = vadd.f32 %v2310, %v2334
        %v2343 = vadd.f32 %v2311, %v2335
        %v2344 = vadd.f32 %v2312, %v2336
        %v2345 = vadd.f32 %v2313, %v2337
        %v2346 = vadd.f32 %v2314, %v2338
        %v2347 = vadd.f32 %v2315, %v2339
        %v2348 = vadd.f32 %v2316, %v2340
        %v2349 = vadd.f32 %v2317, %v2341
        %v2350 = vrot.slane %v2103, 7
        %v2351 = vrot.slane %v2107, 7
        %v2352 = vrot.slane %v2113, 7
        %v2353 = vrot.slane %v2117, 7
        %v2354 = vrot.slane %v2123, 7
        %v2355 = vrot.slane %v2127, 7
        %v2356 = vrot.slane %v2133, 7
        %v2357 = vrot.slane %v2137, 7
        %v2358 = vsel %vm978, %v2356, %v2357
        %v2359 = vsel %vm978, %v2355, %v2356
        %v2360 = vsel %vm978, %v2354, %v2355
        %v2361 = vsel %vm978, %v2353, %v2354
        %v2362 = vsel %vm978, %v2352, %v2353
        %v2363 = vsel %vm978, %v2351, %v2352
        %v2364 = vsel %vm978, %v2350, %v2351
        %v2365 = vsel %vm978, %v2357, %v2350
        %v2366 = vmul.f32 %v2364, %v1388
        %v2367 = vmul.f32 %v2363, %v1393
        %v2368 = vmul.f32 %v2362, %v1398
        %v2369 = vmul.f32 %v2361, %v1403
        %v2370 = vmul.f32 %v2360, %v1408
        %v2371 = vmul.f32 %v2359, %v1413
        %v2372 = vmul.f32 %v2358, %v1418
        %v2373 = vmul.f32 %v2365, %v1423
        %v2374 = vadd.f32 %v2342, %v2366
        %v2375 = vadd.f32 %v2343, %v2367
        %v2376 = vadd.f32 %v2344, %v2368
        %v2377 = vadd.f32 %v2345, %v2369
        %v2378 = vadd.f32 %v2346, %v2370
        %v2379 = vadd.f32 %v2347, %v2371
        %v2380 = vadd.f32 %v2348, %v2372
        %v2381 = vadd.f32 %v2349, %v2373
        %v2382 = vmul.f32 %v2109, %v1453
        %v2383 = vmul.f32 %v2115, %v1458
        %v2384 = vmul.f32 %v2119, %v1463
        %v2385 = vmul.f32 %v2125, %v1468
        %v2386 = vmul.f32 %v2129, %v1473
        %v2387 = vmul.f32 %v2135, %v1478
        %v2388 = vmul.f32 %v2139, %v1483
        %v2389 = vmul.f32 %v2105, %v1488
        %v2390 = vadd.f32 %v2374, %v2382
        %v2391 = vadd.f32 %v2375, %v2383
        %v2392 = vadd.f32 %v2376, %v2384
        %v2393 = vadd.f32 %v2377, %v2385
        %v2394 = vadd.f32 %v2378, %v2386
        %v2395 = vadd.f32 %v2379, %v2387
        %v2396 = vadd.f32 %v2380, %v2388
        %v2397 = vadd.f32 %v2381, %v2389
        %v2398 = vrot.slane %v2176, 1
        %v2399 = vrot.slane %v2179, 1
        %v2400 = vrot.slane %v2184, 1
        %v2401 = vrot.slane %v2187, 1
        %v2402 = vrot.slane %v2192, 1
        %v2403 = vrot.slane %v2195, 1
        %v2404 = vrot.slane %v2200, 1
        %v2405 = vrot.slane %v2203, 1
        %v2406 = vsel %vm1116, %v2404, %v2405
        %v2407 = vsel %vm1116, %v2403, %v2404
        %v2408 = vsel %vm1116, %v2402, %v2403
        %v2409 = vsel %vm1116, %v2401, %v2402
        %v2410 = vsel %vm1116, %v2400, %v2401
        %v2411 = vsel %vm1116, %v2399, %v2400
        %v2412 = vsel %vm1116, %v2398, %v2399
        %v2413 = vsel %vm1116, %v2405, %v2398
        %v2414 = vmul.f32 %v2411, %v1534
        %v2415 = vmul.f32 %v2410, %v1539
        %v2416 = vmul.f32 %v2409, %v1544
        %v2417 = vmul.f32 %v2408, %v1549
        %v2418 = vmul.f32 %v2407, %v1554
        %v2419 = vmul.f32 %v2406, %v1559
        %v2420 = vmul.f32 %v2413, %v1564
        %v2421 = vmul.f32 %v2412, %v1569
        %v2422 = vadd.f32 %v2390, %v2414
        %v2423 = vadd.f32 %v2391, %v2415
        %v2424 = vadd.f32 %v2392, %v2416
        %v2425 = vadd.f32 %v2393, %v2417
        %v2426 = vadd.f32 %v2394, %v2418
        %v2427 = vadd.f32 %v2395, %v2419
        %v2428 = vadd.f32 %v2396, %v2420
        %v2429 = vadd.f32 %v2397, %v2421
        %v2430 = vlaneseq
        %v2431 = vshrl.u32 %v2430, 7
        %v2432 = vsub.s32 0, %v2431
        %v2433 = vrot.slane %v1607, %v2432
        %v2434 = vadd.f32 %v2422, %v2433
        %v2435 = vadd.f32 %v2423, %v2433
        %v2436 = vadd.f32 %v2424, %v2433
        %v2437 = vadd.f32 %v2425, %v2433
        %v2438 = vadd.f32 %v2426, %v2433
        %v2439 = vadd.f32 %v2427, %v2433
        %v2440 = vadd.f32 %v2428, %v2433
        %v2441 = vadd.f32 %v2429, %v2433
        %v2442 = vmax.f32 %v2434, 0.0
        %v2443 = vmax.f32 %v2435, 0.0
        %v2444 = vmax.f32 %v2436, 0.0
        %v2445 = vmax.f32 %v2437, 0.0
        %v2446 = vmax.f32 %v2438, 0.0
        %v2447 = vmax.f32 %v2439, 0.0
        %v2448 = vmax.f32 %v2440, 0.0
        %v2449 = vmax.f32 %v2441, 0.0
        %2450 = vrot.lane.b32.xlu0 %v2442, 112
        %v2451 = vpop.permute.xlu0 %2450
        %2452 = vrot.lane.b32.xlu0 %v2443, 112
        %v2453 = vpop.permute.xlu0 %2452
        %2454 = vrot.lane.b32.xlu0 %v2444, 112
        %v2455 = vpop.permute.xlu0 %2454
        %2456 = vrot.lane.b32.xlu0 %v2445, 112
        %v2457 = vpop.permute.xlu0 %2456
        %2458 = vrot.lane.b32.xlu0 %v2446, 112
        %v2459 = vpop.permute.xlu0 %2458
        %2460 = vrot.lane.b32.xlu0 %v2447, 112
        %v2461 = vpop.permute.xlu0 %2460
        %2462 = vrot.lane.b32.xlu0 %v2448, 112
        %v2463 = vpop.permute.xlu0 %2462
        %2464 = vrot.lane.b32.xlu0 %v2449, 112
        %v2465 = vpop.permute.xlu0 %2464
        %v2466 = vmax.f32 %v2442, %v2451
        %v2467 = vmax.f32 %v2443, %v2453
        %v2468 = vmax.f32 %v2444, %v2455
        %v2469 = vmax.f32 %v2445, %v2457
        %v2470 = vmax.f32 %v2446, %v2459
        %v2471 = vmax.f32 %v2447, %v2461
        %v2472 = vmax.f32 %v2448, %v2463
        %v2473 = vmax.f32 %v2449, %v2465
        %v2474 = vrot.slane %v2466, 1
        %v2475 = vrot.slane %v2467, 1
        %v2476 = vrot.slane %v2468, 1
        %v2477 = vrot.slane %v2469, 1
        %v2478 = vrot.slane %v2470, 1
        %v2479 = vrot.slane %v2471, 1
        %v2480 = vrot.slane %v2472, 1
        %v2481 = vrot.slane %v2473, 1
        %v2482 = vsel %vm1116, %v2480, %v2481
        %v2483 = vsel %vm1116, %v2479, %v2480
        %v2484 = vsel %vm1116, %v2478, %v2479
        %v2485 = vsel %vm1116, %v2477, %v2478
        %v2486 = vsel %vm1116, %v2476, %v2477
        %v2487 = vsel %vm1116, %v2475, %v2476
        %v2488 = vsel %vm1116, %v2474, %v2475
        %v2489 = vsel %vm1116, %v2481, %v2474
        %v2490 = vmax.f32 %v2466, %v2488
        %v2491 = vmax.f32 %v2467, %v2487
        %v2492 = vmax.f32 %v2468, %v2486
        %v2493 = vmax.f32 %v2469, %v2485
        %v2494 = vmax.f32 %v2470, %v2484
        %v2495 = vmax.f32 %v2471, %v2483
        %v2496 = vmax.f32 %v2472, %v2482
        %v2497 = vmax.f32 %v2473, %v2489
        %v2498 = vmax.f32 %v2490, %v2491
        %v2499 = vmax.f32 %v2491, %v2492
        %v2500 = vmax.f32 %v2492, %v2493
        %v2501 = vmax.f32 %v2493, %v2494
        %v2502 = vmax.f32 %v2494, %v2495
        %v2503 = vmax.f32 %v2495, %v2496
        %v2504 = vmax.f32 %v2496, %v2497
        %v2505 = vmax.f32 %v2497, %v2490
        %v2506 = vld [vmem:[%s11] sm:$0xf]
        %v2507 = vld [vmem:[%s11 + $0x4] sm:$0xf]
        %v2508 = vpack.c.bf16 %v2499, %v2498
        %v2509 = vpack.c.bf16 %v2501, %v2500
        %v2510 = vpack.c.bf16 %v2503, %v2502
        %v2511 = vpack.c.bf16 %v2505, %v2504
        %v2514 = vunpack.c.l.b16 %v2506
        %v2515 = vunpack.c.l.b16 %v2507
        %v2516 = vpack.c.b16 %v2515, %v2514
        %v2518 = vsel %vm1836, %v2516, 0
        %2520 = vmatprep.subr.bf16.mxu0 0
        %2521 = vmatpush1.bf16.msra.mxu0 %v2508
        %2522 = vmatprep.subr.bf16.mxu0 0
        %2523 = vmatpush1.bf16.msra.mxu0 %v2509
        %2524 = vmatprep.subr.bf16.mxu0 0
        %2525 = vmatpush1.bf16.msra.mxu0 %v2510
        %2526 = vmatprep.subr.bf16.mxu0 0
        %2527 = vmatpush1.bf16.msra.mxu0 %v2511
        %2528 = vmatprep.subr.bf16.mxu0 0
        %2529 = vmatpush1.bf16.msra.mxu0 0
        %2530 = vmatprep.subr.bf16.mxu0 0
        %2531 = vmatpush1.bf16.msra.mxu0 0
        %2532 = vmatprep.subr.bf16.mxu0 0
        %2533 = vmatpush1.bf16.msra.mxu0 0
        %2534 = vmatprep.subr.bf16.mxu0 0
        %2535 = vmatpush1.bf16.msra.mxu0 0
        %2536 = vmatprep.subr.bf16.mxu0 0
        %2537 = vmatpush1.bf16.msra.mxu0 0
        %2538 = vmatprep.subr.bf16.mxu0 0
        %2539 = vmatpush1.bf16.msra.mxu0 0
        %2540 = vmatprep.subr.bf16.mxu0 0
        %2541 = vmatpush1.bf16.msra.mxu0 0
        %2542 = vmatprep.subr.bf16.mxu0 0
        %2543 = vmatpush1.bf16.msra.mxu0 0
        %2544 = vmatprep.subr.bf16.mxu0 0
        %2545 = vmatpush1.bf16.msra.mxu0 0
        %2546 = vmatprep.subr.bf16.mxu0 0
        %2547 = vmatpush1.bf16.msra.mxu0 0
        %2548 = vmatprep.subr.bf16.mxu0 0
        %2549 = vmatpush1.bf16.msra.mxu0 0
        %2550 = vmatprep.subr.bf16.mxu0 0
        %2551 = vmatpush1.bf16.msra.mxu0 0
        %2552 = vmatprep.mubr.bf16.mxu0 0
        %2553 = vmatmul.mubr.bf16.gmra.mrb[0].mxu0 %v2518
        %v2554 = vpop.f32.mrb[0].mxu0
        %v2555 = vadd.f32 0.0, %v2554
        %v2556 = vpop.f32.mrb[0].mxu0
        %v2557 = vpop.f32.mrb[0].mxu0
        %v2558 = vadd.f32 0.0, %v2557
        %v2559 = vpop.f32.mrb[0].mxu0
        %2560 = vdwg.mxu0
        %v2561 = vpack.c.bf16 %v2558, %v2555
        %v2562 = vld [vmem:[%s12] sm:$0xf]
        %v2563 = vld [vmem:[%s12 + $0x4] sm:$0xf]
        %v2564 = vld [vmem:[%s12 + $0x8] sm:$0xf]
        %v2565 = vld [vmem:[%s12 + $0xc] sm:$0xf]
        %v2566 = vld [vmem:[%s12 + $0x10] sm:$0xf]
        %v2567 = vld [vmem:[%s12 + $0x14] sm:$0xf]
        %v2568 = vld [vmem:[%s12 + $0x18] sm:$0xf]
        %v2569 = vld [vmem:[%s12 + $0x1c] sm:$0xf]
        %v2570 = vld [vmem:[%s12 + $0x20] sm:$0xf]
        %v2571 = vld [vmem:[%s12 + $0x24] sm:$0xf]
        %v2572 = vld [vmem:[%s12 + $0x28] sm:$0xf]
        %v2573 = vld [vmem:[%s12 + $0x2c] sm:$0xf]
        %v2574 = vld [vmem:[%s12 + $0x30] sm:$0xf]
        %v2575 = vld [vmem:[%s12 + $0x34] sm:$0xf]
        %v2576 = vld [vmem:[%s12 + $0x38] sm:$0xf]
        %v2577 = vld [vmem:[%s12 + $0x3c] sm:$0xf]
        %v2594 = vunpack.c.l.b16 %v2562
        %v2595 = vunpack.c.l.b16 %v2563
        %v2596 = vunpack.c.l.b16 %v2564
        %v2597 = vunpack.c.l.b16 %v2565
        %v2598 = vunpack.c.l.b16 %v2566
        %v2599 = vunpack.c.l.b16 %v2567
        %v2600 = vunpack.c.l.b16 %v2568
        %v2601 = vunpack.c.l.b16 %v2569
        %v2602 = vunpack.c.l.b16 %v2570
        %v2603 = vunpack.c.l.b16 %v2571
        %v2604 = vunpack.c.l.b16 %v2572
        %v2605 = vunpack.c.l.b16 %v2573
        %v2606 = vunpack.c.l.b16 %v2574
        %v2607 = vunpack.c.l.b16 %v2575
        %v2608 = vunpack.c.l.b16 %v2576
        %v2609 = vunpack.c.l.b16 %v2577
        %v2610 = vpack.c.b16 %v2595, %v2594
        %v2611 = vpack.c.b16 %v2597, %v2596
        %v2612 = vpack.c.b16 %v2599, %v2598
        %v2613 = vpack.c.b16 %v2601, %v2600
        %v2614 = vpack.c.b16 %v2603, %v2602
        %v2615 = vpack.c.b16 %v2605, %v2604
        %v2616 = vpack.c.b16 %v2607, %v2606
        %v2617 = vpack.c.b16 %v2609, %v2608
        %2626 = vmatprep.subr.bf16.mxu0 0
        %2627 = vmatpush1.bf16.msra.mxu0 %v2610
        %2628 = vmatprep.subr.bf16.mxu0 0
        %2629 = vmatpush1.bf16.msra.mxu0 %v2611
        %2630 = vmatprep.subr.bf16.mxu0 0
        %2631 = vmatpush1.bf16.msra.mxu0 %v2612
        %2632 = vmatprep.subr.bf16.mxu0 0
        %2633 = vmatpush1.bf16.msra.mxu0 %v2613
        %2634 = vmatprep.subr.bf16.mxu0 0
        %2635 = vmatpush1.bf16.msra.mxu0 %v2614
        %2636 = vmatprep.subr.bf16.mxu0 0
        %2637 = vmatpush1.bf16.msra.mxu0 %v2615
        %2638 = vmatprep.subr.bf16.mxu0 0
        %2639 = vmatpush1.bf16.msra.mxu0 %v2616
        %2640 = vmatprep.subr.bf16.mxu0 0
        %2641 = vmatpush1.bf16.msra.mxu0 %v2617
        %2642 = vmatprep.subr.bf16.mxu0 0
        %2643 = vmatpush1.bf16.msra.mxu0 0
        %2644 = vmatprep.subr.bf16.mxu0 0
        %2645 = vmatpush1.bf16.msra.mxu0 0
        %2646 = vmatprep.subr.bf16.mxu0 0
        %2647 = vmatpush1.bf16.msra.mxu0 0
        %2648 = vmatprep.subr.bf16.mxu0 0
        %2649 = vmatpush1.bf16.msra.mxu0 0
        %2650 = vmatprep.subr.bf16.mxu0 0
        %2651 = vmatpush1.bf16.msra.mxu0 0
        %2652 = vmatprep.subr.bf16.mxu0 0
        %2653 = vmatpush1.bf16.msra.mxu0 0
        %2654 = vmatprep.subr.bf16.mxu0 0
        %2655 = vmatpush1.bf16.msra.mxu0 0
        %2656 = vmatprep.subr.bf16.mxu0 0
        %2657 = vmatpush1.bf16.msra.mxu0 0
        %2658 = vmatprep.mubr.bf16.mxu0 0
        %2659 = vmatmul.mubr.bf16.gmra.mrb[0].mxu0 %v2561
        %v2660 = vpop.f32.mrb[0].mxu0
        %v2661 = vadd.f32 0.0, %v2660
        %v2662 = vpop.f32.mrb[0].mxu0
        %v2663 = vpop.f32.mrb[0].mxu0
        %v2664 = vadd.f32 0.0, %v2663
        %v2665 = vpop.f32.mrb[0].mxu0
        %2666 = vdwg.mxu0
        %v2667 = vld [vmem:[%s13 + $0x2] sm:$0x1]
        %v2668 = vpack.c.bf16 %v2664, %v2661
        %v2669 = vld [vmem:[#allocation2] sm:$0xff]
        %v2670 = vld [vmem:[#allocation2 + $0x8] sm:$0xff]
        %v2671 = vld [vmem:[#allocation2 + $0x10] sm:$0xff]
        %v2672 = vld [vmem:[#allocation2 + $0x18] sm:$0xff]
        %v2673 = vld [vmem:[#allocation2 + $0x20] sm:$0xf]
        %v2674 = vld [vmem:[#allocation2 + $0x24] sm:$0xff]
        %v2675 = vld [vmem:[#allocation2 + $0x2c] sm:$0xff]
        %v2676 = vld [vmem:[#allocation2 + $0x34] sm:$0xff]
        %v2677 = vld [vmem:[#allocation2 + $0x3c] sm:$0xff]
        %v2678 = vld [vmem:[#allocation2 + $0x44] sm:$0xf]
        %v2679 = vld [vmem:[#allocation2 + $0x48] sm:$0xff]
        %v2680 = vld [vmem:[#allocation2 + $0x50] sm:$0xff]
        %v2681 = vld [vmem:[#allocation2 + $0x58] sm:$0xff]
        %v2682 = vld [vmem:[#allocation2 + $0x60] sm:$0xff]
        %v2683 = vld [vmem:[#allocation2 + $0x68] sm:$0xf]
        %v2684 = vld [vmem:[#allocation2 + $0x6c] sm:$0xff]
        %v2685 = vld [vmem:[#allocation2 + $0x74] sm:$0xff]
        %v2686 = vld [vmem:[#allocation2 + $0x7c] sm:$0xff]
        %v2687 = vld [vmem:[#allocation2 + $0x84] sm:$0xff]
        %v2688 = vld [vmem:[#allocation2 + $0x8c] sm:$0xf]
        %v2689 = vld [vmem:[#allocation2 + $0x90] sm:$0xff]
        %v2690 = vld [vmem:[#allocation2 + $0x98] sm:$0xff]
        %v2691 = vld [vmem:[#allocation2 + $0xa0] sm:$0xff]
        %v2692 = vld [vmem:[#allocation2 + $0xa8] sm:$0xff]
        %v2693 = vld [vmem:[#allocation2 + $0xb0] sm:$0xf]
        %v2694 = vld [vmem:[#allocation2 + $0xb4] sm:$0xff]
        %v2695 = vld [vmem:[#allocation2 + $0xbc] sm:$0xff]
        %v2696 = vld [vmem:[#allocation2 + $0xc4] sm:$0xff]
        %v2697 = vld [vmem:[#allocation2 + $0xcc] sm:$0xff]
        %v2698 = vld [vmem:[#allocation2 + $0xd4] sm:$0xf]
        %v2699 = vld [vmem:[#allocation2 + $0xd8] sm:$0xff]
        %v2700 = vld [vmem:[#allocation2 + $0xe0] sm:$0xff]
        %v2701 = vld [vmem:[#allocation2 + $0xe8] sm:$0xff]
        %v2702 = vld [vmem:[#allocation2 + $0xf0] sm:$0xff]
        %v2703 = vld [vmem:[#allocation2 + $0xf8] sm:$0xf]
        %v2704 = vld [vmem:[#allocation2 + $0xfc] sm:$0xff]
        %v2705 = vld [vmem:[#allocation2 + $0x104] sm:$0xff]
        %v2706 = vld [vmem:[#allocation2 + $0x10c] sm:$0xff]
        %v2707 = vld [vmem:[#allocation2 + $0x114] sm:$0xff]
        %v2708 = vld [vmem:[#allocation2 + $0x11c] sm:$0xf]
        %v2749 = vunpack.c.l.b16 %v2669
        %v2750 = vunpack.c.h.b16 %v2669
        %v2751 = vunpack.c.l.b16 %v2670
        %v2752 = vunpack.c.h.b16 %v2670
        %v2753 = vunpack.c.l.b16 %v2671
        %v2754 = vunpack.c.h.b16 %v2671
        %v2755 = vunpack.c.l.b16 %v2672
        %v2756 = vunpack.c.h.b16 %v2672
        %v2757 = vunpack.c.l.b16 %v2673
        %v2758 = vunpack.c.l.b16 %v2674
        %v2759 = vunpack.c.h.b16 %v2674
        %v2760 = vunpack.c.l.b16 %v2675
        %v2761 = vunpack.c.h.b16 %v2675
        %v2762 = vunpack.c.l.b16 %v2676
        %v2763 = vunpack.c.h.b16 %v2676
        %v2764 = vunpack.c.l.b16 %v2677
        %v2765 = vunpack.c.h.b16 %v2677
        %v2766 = vunpack.c.l.b16 %v2678
        %v2767 = vunpack.c.l.b16 %v2679
        %v2768 = vunpack.c.h.b16 %v2679
        %v2769 = vunpack.c.l.b16 %v2680
        %v2770 = vunpack.c.h.b16 %v2680
        %v2771 = vunpack.c.l.b16 %v2681
        %v2772 = vunpack.c.h.b16 %v2681
        %v2773 = vunpack.c.l.b16 %v2682
        %v2774 = vunpack.c.h.b16 %v2682
        %v2775 = vunpack.c.l.b16 %v2683
        %v2776 = vunpack.c.l.b16 %v2684
        %v2777 = vunpack.c.h.b16 %v2684
        %v2778 = vunpack.c.l.b16 %v2685
        %v2779 = vunpack.c.h.b16 %v2685
        %v2780 = vunpack.c.l.b16 %v2686
        %v2781 = vunpack.c.h.b16 %v2686
        %v2782 = vunpack.c.l.b16 %v2687
        %v2783 = vunpack.c.h.b16 %v2687
        %v2784 = vunpack.c.l.b16 %v2688
        %v2785 = vunpack.c.l.b16 %v2689
        %v2786 = vunpack.c.h.b16 %v2689
        %v2787 = vunpack.c.l.b16 %v2690
        %v2788 = vunpack.c.h.b16 %v2690
        %v2789 = vunpack.c.l.b16 %v2691
        %v2790 = vunpack.c.h.b16 %v2691
        %v2791 = vunpack.c.l.b16 %v2692
        %v2792 = vunpack.c.h.b16 %v2692
        %v2793 = vunpack.c.l.b16 %v2693
        %v2794 = vunpack.c.l.b16 %v2694
        %v2795 = vunpack.c.h.b16 %v2694
        %v2796 = vunpack.c.l.b16 %v2695
        %v2797 = vunpack.c.h.b16 %v2695
        %v2798 = vunpack.c.l.b16 %v2696
        %v2799 = vunpack.c.h.b16 %v2696
        %v2800 = vunpack.c.l.b16 %v2697
        %v2801 = vunpack.c.h.b16 %v2697
        %v2802 = vunpack.c.l.b16 %v2698
        %v2803 = vunpack.c.l.b16 %v2699
        %v2804 = vunpack.c.h.b16 %v2699
        %v2805 = vunpack.c.l.b16 %v2700
        %v2806 = vunpack.c.h.b16 %v2700
        %v2807 = vunpack.c.l.b16 %v2701
        %v2808 = vunpack.c.h.b16 %v2701
        %v2809 = vunpack.c.l.b16 %v2702
        %v2810 = vunpack.c.h.b16 %v2702
        %v2811 = vunpack.c.l.b16 %v2703
        %v2812 = vunpack.c.l.b16 %v2704
        %v2813 = vunpack.c.h.b16 %v2704
        %v2814 = vunpack.c.l.b16 %v2705
        %v2815 = vunpack.c.h.b16 %v2705
        %v2816 = vunpack.c.l.b16 %v2706
        %v2817 = vunpack.c.h.b16 %v2706
        %v2818 = vunpack.c.l.b16 %v2707
        %v2819 = vunpack.c.h.b16 %v2707
        %v2820 = vunpack.c.l.b16 %v2708
        %v2821 = vpack.c.b16 %v2758, %v2749
        %v2822 = vpack.c.b16 %v2759, %v2750
        %v2823 = vpack.c.b16 %v2760, %v2751
        %v2824 = vpack.c.b16 %v2761, %v2752
        %v2825 = vpack.c.b16 %v2762, %v2753
        %v2826 = vpack.c.b16 %v2763, %v2754
        %v2827 = vpack.c.b16 %v2764, %v2755
        %v2828 = vpack.c.b16 %v2765, %v2756
        %v2829 = vpack.c.b16 %v2766, %v2757
        %v2830 = vpack.c.b16 %v2776, %v2767
        %v2831 = vpack.c.b16 %v2777, %v2768
        %v2832 = vpack.c.b16 %v2778, %v2769
        %v2833 = vpack.c.b16 %v2779, %v2770
        %v2834 = vpack.c.b16 %v2780, %v2771
        %v2835 = vpack.c.b16 %v2781, %v2772
        %v2836 = vpack.c.b16 %v2782, %v2773
        %v2837 = vpack.c.b16 %v2783, %v2774
        %v2838 = vpack.c.b16 %v2784, %v2775
        %v2839 = vpack.c.b16 %v2794, %v2785
        %v2840 = vpack.c.b16 %v2795, %v2786
        %v2841 = vpack.c.b16 %v2796, %v2787
        %v2842 = vpack.c.b16 %v2797, %v2788
        %v2843 = vpack.c.b16 %v2798, %v2789
        %v2844 = vpack.c.b16 %v2799, %v2790
        %v2845 = vpack.c.b16 %v2800, %v2791
        %v2846 = vpack.c.b16 %v2801, %v2792
        %v2847 = vpack.c.b16 %v2802, %v2793
        %v2848 = vpack.c.b16 %v2812, %v2803
        %v2849 = vpack.c.b16 %v2813, %v2804
        %v2850 = vpack.c.b16 %v2814, %v2805
        %v2851 = vpack.c.b16 %v2815, %v2806
        %v2852 = vpack.c.b16 %v2816, %v2807
        %v2853 = vpack.c.b16 %v2817, %v2808
        %v2854 = vpack.c.b16 %v2818, %v2809
        %v2855 = vpack.c.b16 %v2819, %v2810
        %v2856 = vpack.c.b16 %v2820, %v2811
        %v2894 = vsel %vm1836, %v2668, 0
        %2896 = vmatprep.subr.bf16.mxu0 %v2822
        %2897 = vmatpush1.bf16.msra.mxu0 %v2821
        %2898 = vmatprep.subr.bf16.mxu0 %v2831
        %2899 = vmatpush1.bf16.msra.mxu0 %v2830
        %2900 = vmatprep.subr.bf16.mxu0 %v2840
        %2901 = vmatpush1.bf16.msra.mxu0 %v2839
        %2902 = vmatprep.subr.bf16.mxu0 %v2849
        %2903 = vmatpush1.bf16.msra.mxu0 %v2848
        %2904 = vmatprep.subr.bf16.mxu0 0
        %2905 = vmatpush1.bf16.msra.mxu0 0
        %2906 = vmatprep.subr.bf16.mxu0 0
        %2907 = vmatpush1.bf16.msra.mxu0 0
        %2908 = vmatprep.subr.bf16.mxu0 0
        %2909 = vmatpush1.bf16.msra.mxu0 0
        %2910 = vmatprep.subr.bf16.mxu0 0
        %2911 = vmatpush1.bf16.msra.mxu0 0
        %2912 = vmatprep.subr.bf16.mxu0 0
        %2913 = vmatpush1.bf16.msra.mxu0 0
        %2914 = vmatprep.subr.bf16.mxu0 0
        %2915 = vmatpush1.bf16.msra.mxu0 0
        %2916 = vmatprep.subr.bf16.mxu0 0
        %2917 = vmatpush1.bf16.msra.mxu0 0
        %2918 = vmatprep.subr.bf16.mxu0 0
        %2919 = vmatpush1.bf16.msra.mxu0 0
        %2920 = vmatprep.subr.bf16.mxu0 0
        %2921 = vmatpush1.bf16.msra.mxu0 0
        %2922 = vmatprep.subr.bf16.mxu0 0
        %2923 = vmatpush1.bf16.msra.mxu0 0
        %2924 = vmatprep.subr.bf16.mxu0 0
        %2925 = vmatpush1.bf16.msra.mxu0 0
        %2926 = vmatprep.subr.bf16.mxu0 0
        %2927 = vmatpush1.bf16.msra.mxu0 0
        %2928 = vmatprep.mubr.bf16.mxu0 0
        %2929 = vmatmul.mubr.bf16.gmra.mrb[0].mxu0 %v2894
        %v2930 = vpop.f32.mrb[0].mxu0
        %v2931 = vadd.f32 0.0, %v2930
        %v2932 = vpop.f32.mrb[0].mxu0
        %v2933 = vadd.f32 0.0, %v2932
        %v2934 = vpop.f32.mrb[0].mxu0
        %v2935 = vadd.f32 0.0, %v2934
        %v2936 = vpop.f32.mrb[0].mxu0
        %v2937 = vadd.f32 0.0, %v2936
        %2938 = vdwg.mxu0
        %2939 = vmatprep.subr.bf16.mxu0 %v2824
        %2940 = vmatpush1.bf16.msra.mxu0 %v2823
        %2941 = vmatprep.subr.bf16.mxu0 %v2833
        %2942 = vmatpush1.bf16.msra.mxu0 %v2832
        %2943 = vmatprep.subr.bf16.mxu0 %v2842
        %2944 = vmatpush1.bf16.msra.mxu0 %v2841
        %2945 = vmatprep.subr.bf16.mxu0 %v2851
        %2946 = vmatpush1.bf16.msra.mxu0 %v2850
        %2947 = vmatprep.subr.bf16.mxu0 0
        %2948 = vmatpush1.bf16.msra.mxu0 0
        %2949 = vmatprep.subr.bf16.mxu0 0
        %2950 = vmatpush1.bf16.msra.mxu0 0
        %2951 = vmatprep.subr.bf16.mxu0 0
        %2952 = vmatpush1.bf16.msra.mxu0 0
        %2953 = vmatprep.subr.bf16.mxu0 0
        %2954 = vmatpush1.bf16.msra.mxu0 0
        %2955 = vmatprep.subr.bf16.mxu0 0
        %2956 = vmatpush1.bf16.msra.mxu0 0
        %2957 = vmatprep.subr.bf16.mxu0 0
        %2958 = vmatpush1.bf16.msra.mxu0 0
        %2959 = vmatprep.subr.bf16.mxu0 0
        %2960 = vmatpush1.bf16.msra.mxu0 0
        %2961 = vmatprep.subr.bf16.mxu0 0
        %2962 = vmatpush1.bf16.msra.mxu0 0
        %2963 = vmatprep.subr.bf16.mxu0 0
        %2964 = vmatpush1.bf16.msra.mxu0 0
        %2965 = vmatprep.subr.bf16.mxu0 0
        %2966 = vmatpush1.bf16.msra.mxu0 0
        %2967 = vmatprep.subr.bf16.mxu0 0
        %2968 = vmatpush1.bf16.msra.mxu0 0
        %2969 = vmatprep.subr.bf16.mxu0 0
        %2970 = vmatpush1.bf16.msra.mxu0 0
        %2971 = vmatprep.mubr.bf16.mxu0 0
        %2972 = vmatmul.mubr.bf16.gmra.mrb[0].mxu0 %v2894
        %v2973 = vpop.f32.mrb[0].mxu0
        %v2974 = vadd.f32 0.0, %v2973
        %v2975 = vpop.f32.mrb[0].mxu0
        %v2976 = vadd.f32 0.0, %v2975
        %v2977 = vpop.f32.mrb[0].mxu0
        %v2978 = vadd.f32 0.0, %v2977
        %v2979 = vpop.f32.mrb[0].mxu0
        %v2980 = vadd.f32 0.0, %v2979
        %2981 = vdwg.mxu0
        %2982 = vmatprep.subr.bf16.mxu0 %v2826
        %2983 = vmatpush1.bf16.msra.mxu0 %v2825
        %2984 = vmatprep.subr.bf16.mxu0 %v2835
        %2985 = vmatpush1.bf16.msra.mxu0 %v2834
        %2986 = vmatprep.subr.bf16.mxu0 %v2844
        %2987 = vmatpush1.bf16.msra.mxu0 %v2843
        %2988 = vmatprep.subr.bf16.mxu0 %v2853
        %2989 = vmatpush1.bf16.msra.mxu0 %v2852
        %2990 = vmatprep.subr.bf16.mxu0 0
        %2991 = vmatpush1.bf16.msra.mxu0 0
        %2992 = vmatprep.subr.bf16.mxu0 0
        %2993 = vmatpush1.bf16.msra.mxu0 0
        %2994 = vmatprep.subr.bf16.mxu0 0
        %2995 = vmatpush1.bf16.msra.mxu0 0
        %2996 = vmatprep.subr.bf16.mxu0 0
        %2997 = vmatpush1.bf16.msra.mxu0 0
        %2998 = vmatprep.subr.bf16.mxu0 0
        %2999 = vmatpush1.bf16.msra.mxu0 0
        %3000 = vmatprep.subr.bf16.mxu0 0
        %3001 = vmatpush1.bf16.msra.mxu0 0
        %3002 = vmatprep.subr.bf16.mxu0 0
        %3003 = vmatpush1.bf16.msra.mxu0 0
        %3004 = vmatprep.subr.bf16.mxu0 0
        %3005 = vmatpush1.bf16.msra.mxu0 0
        %3006 = vmatprep.subr.bf16.mxu0 0
        %3007 = vmatpush1.bf16.msra.mxu0 0
        %3008 = vmatprep.subr.bf16.mxu0 0
        %3009 = vmatpush1.bf16.msra.mxu0 0
        %3010 = vmatprep.subr.bf16.mxu0 0
        %3011 = vmatpush1.bf16.msra.mxu0 0
        %3012 = vmatprep.subr.bf16.mxu0 0
        %3013 = vmatpush1.bf16.msra.mxu0 0
        %3014 = vmatprep.mubr.bf16.mxu0 0
        %3015 = vmatmul.mubr.bf16.gmra.mrb[0].mxu0 %v2894
        %v3016 = vpop.f32.mrb[0].mxu0
        %v3017 = vadd.f32 0.0, %v3016
        %v3018 = vpop.f32.mrb[0].mxu0
        %v3019 = vadd.f32 0.0, %v3018
        %v3020 = vpop.f32.mrb[0].mxu0
        %v3021 = vadd.f32 0.0, %v3020
        %v3022 = vpop.f32.mrb[0].mxu0
        %v3023 = vadd.f32 0.0, %v3022
        %3024 = vdwg.mxu0
        %3025 = vmatprep.subr.bf16.mxu0 %v2828
        %3026 = vmatpush1.bf16.msra.mxu0 %v2827
        %3027 = vmatprep.subr.bf16.mxu0 %v2837
        %3028 = vmatpush1.bf16.msra.mxu0 %v2836
        %3029 = vmatprep.subr.bf16.mxu0 %v2846
        %3030 = vmatpush1.bf16.msra.mxu0 %v2845
        %3031 = vmatprep.subr.bf16.mxu0 %v2855
        %3032 = vmatpush1.bf16.msra.mxu0 %v2854
        %3033 = vmatprep.subr.bf16.mxu0 0
        %3034 = vmatpush1.bf16.msra.mxu0 0
        %3035 = vmatprep.subr.bf16.mxu0 0
        %3036 = vmatpush1.bf16.msra.mxu0 0
        %3037 = vmatprep.subr.bf16.mxu0 0
        %3038 = vmatpush1.bf16.msra.mxu0 0
        %3039 = vmatprep.subr.bf16.mxu0 0
        %3040 = vmatpush1.bf16.msra.mxu0 0
        %3041 = vmatprep.subr.bf16.mxu0 0
        %3042 = vmatpush1.bf16.msra.mxu0 0
        %3043 = vmatprep.subr.bf16.mxu0 0
        %3044 = vmatpush1.bf16.msra.mxu0 0
        %3045 = vmatprep.subr.bf16.mxu0 0
        %3046 = vmatpush1.bf16.msra.mxu0 0
        %3047 = vmatprep.subr.bf16.mxu0 0
        %3048 = vmatpush1.bf16.msra.mxu0 0
        %3049 = vmatprep.subr.bf16.mxu0 0
        %3050 = vmatpush1.bf16.msra.mxu0 0
        %3051 = vmatprep.subr.bf16.mxu0 0
        %3052 = vmatpush1.bf16.msra.mxu0 0
        %3053 = vmatprep.subr.bf16.mxu0 0
        %3054 = vmatpush1.bf16.msra.mxu0 0
        %3055 = vmatprep.subr.bf16.mxu0 0
        %3056 = vmatpush1.bf16.msra.mxu0 0
        %3057 = vmatprep.mubr.bf16.mxu0 0
        %3058 = vmatmul.mubr.bf16.gmra.mrb[0].mxu0 %v2894
        %v3059 = vpop.f32.mrb[0].mxu0
        %v3060 = vadd.f32 0.0, %v3059
        %v3061 = vpop.f32.mrb[0].mxu0
        %v3062 = vadd.f32 0.0, %v3061
        %v3063 = vpop.f32.mrb[0].mxu0
        %v3064 = vadd.f32 0.0, %v3063
        %v3065 = vpop.f32.mrb[0].mxu0
        %v3066 = vadd.f32 0.0, %v3065
        %3067 = vdwg.mxu0
        %3068 = vmatprep.subr.bf16.mxu0 0
        %3069 = vmatpush1.bf16.msra.mxu0 %v2829
        %3070 = vmatprep.subr.bf16.mxu0 0
        %3071 = vmatpush1.bf16.msra.mxu0 %v2838
        %3072 = vmatprep.subr.bf16.mxu0 0
        %3073 = vmatpush1.bf16.msra.mxu0 %v2847
        %3074 = vmatprep.subr.bf16.mxu0 0
        %3075 = vmatpush1.bf16.msra.mxu0 %v2856
        %3076 = vmatprep.subr.bf16.mxu0 0
        %3077 = vmatpush1.bf16.msra.mxu0 0
        %3078 = vmatprep.subr.bf16.mxu0 0
        %3079 = vmatpush1.bf16.msra.mxu0 0
        %3080 = vmatprep.subr.bf16.mxu0 0
        %3081 = vmatpush1.bf16.msra.mxu0 0
        %3082 = vmatprep.subr.bf16.mxu0 0
        %3083 = vmatpush1.bf16.msra.mxu0 0
        %3084 = vmatprep.subr.bf16.mxu0 0
        %3085 = vmatpush1.bf16.msra.mxu0 0
        %3086 = vmatprep.subr.bf16.mxu0 0
        %3087 = vmatpush1.bf16.msra.mxu0 0
        %3088 = vmatprep.subr.bf16.mxu0 0
        %3089 = vmatpush1.bf16.msra.mxu0 0
        %3090 = vmatprep.subr.bf16.mxu0 0
        %3091 = vmatpush1.bf16.msra.mxu0 0
        %3092 = vmatprep.subr.bf16.mxu0 0
        %3093 = vmatpush1.bf16.msra.mxu0 0
        %3094 = vmatprep.subr.bf16.mxu0 0
        %3095 = vmatpush1.bf16.msra.mxu0 0
        %3096 = vmatprep.subr.bf16.mxu0 0
        %3097 = vmatpush1.bf16.msra.mxu0 0
        %3098 = vmatprep.subr.bf16.mxu0 0
        %3099 = vmatpush1.bf16.msra.mxu0 0
        %3100 = vmatprep.mubr.bf16.mxu0 0
        %3101 = vmatmul.mubr.bf16.gmra.mrb[0].mxu0 %v2894
        %v3102 = vpop.f32.mrb[0].mxu0
        %v3103 = vadd.f32 0.0, %v3102
        %v3104 = vpop.f32.mrb[0].mxu0
        %v3105 = vpop.f32.mrb[0].mxu0
        %v3106 = vadd.f32 0.0, %v3105
        %v3107 = vpop.f32.mrb[0].mxu0
        %3108 = vdwg.mxu0
        %v3109 = vrot.slane %v2931, 3
        %v3110 = vrot.slane %v2935, 3
        %vm3111 = vcmp.lt.s32.totalorder %v977, 5
        %v3112 = vsel %vm3111, %v3109, %v3110
        %v3113 = vsel %vm3111, %v3110, %v3109
        %v3114 = vld [vmem:[%s2] sm:$0xff]
        %v3115 = vld [vmem:[%s2 + $0x8] sm:$0xff]
        %3117 = vset.pattern.permute.xlu0 0
        %3118 = vperm.xlu0 %3117, %v3114
        %v3119 = vpop.permute.xlu0 %3118
        %3122 = vset.pattern.permute.xlu0 0
        %3123 = vperm.xlu0 %3122, %v3115
        %v3124 = vpop.permute.xlu0 %3123
        %v3126 = vmul.f32 %v3113, %v3119
        %v3127 = vmul.f32 %v3112, %v3124
        %v3128 = vrot.slane %v2933, 4
        %v3129 = vrot.slane %v2937, 4
        %vm3130 = vcmp.lt.s32.totalorder %v977, 4
        %v3131 = vsel %vm3130, %v3128, %v3129
        %v3132 = vsel %vm3130, %v3129, %v3128
        %s3133 = scalar_lea.vmem %s2, 16
        %v3134 = vld [vmem:[%s3133] sm:$0xff]
        %v3135 = vld [vmem:[%s3133 + $0x8] sm:$0xff]
        %3137 = vset.pattern.permute.xlu0 0
        %3138 = vperm.xlu0 %3137, %v3134
        %v3139 = vpop.permute.xlu0 %3138
        %3142 = vset.pattern.permute.xlu0 0
        %3143 = vperm.xlu0 %3142, %v3135
        %v3144 = vpop.permute.xlu0 %3143
        %v3146 = vmul.f32 %v3132, %v3139
        %v3147 = vmul.f32 %v3131, %v3144
        %v3148 = vadd.f32 %v3126, %v3146
        %v3149 = vadd.f32 %v3127, %v3147
        %v3150 = vrot.slane %v2974, 5
        %v3151 = vrot.slane %v2978, 5
        %vm3152 = vcmp.lt.s32.totalorder %v977, 3
        %v3153 = vsel %vm3152, %v3150, %v3151
        %v3154 = vsel %vm3152, %v3151, %v3150
        %s3155 = scalar_lea.vmem %s2, 32
        %v3156 = vld [vmem:[%s3155] sm:$0xff]
        %v3157 = vld [vmem:[%s3155 + $0x8] sm:$0xff]
        %3159 = vset.pattern.permute.xlu0 0
        %3160 = vperm.xlu0 %3159, %v3156
        %v3161 = vpop.permute.xlu0 %3160
        %3164 = vset.pattern.permute.xlu0 0
        %3165 = vperm.xlu0 %3164, %v3157
        %v3166 = vpop.permute.xlu0 %3165
        %v3168 = vmul.f32 %v3154, %v3161
        %v3169 = vmul.f32 %v3153, %v3166
        %v3170 = vadd.f32 %v3148, %v3168
        %v3171 = vadd.f32 %v3149, %v3169
        %v3172 = vrot.slane %v2976, 7
        %v3173 = vrot.slane %v2980, 7
        %v3174 = vsel %vm978, %v3172, %v3173
        %v3175 = vsel %vm978, %v3173, %v3172
        %s3176 = scalar_lea.vmem %s2, 48
        %v3177 = vld [vmem:[%s3176] sm:$0xff]
        %v3178 = vld [vmem:[%s3176 + $0x8] sm:$0xff]
        %3180 = vset.pattern.permute.xlu0 0
        %3181 = vperm.xlu0 %3180, %v3177
        %v3182 = vpop.permute.xlu0 %3181
        %3185 = vset.pattern.permute.xlu0 0
        %3186 = vperm.xlu0 %3185, %v3178
        %v3187 = vpop.permute.xlu0 %3186
        %v3189 = vmul.f32 %v3175, %v3182
        %v3190 = vmul.f32 %v3174, %v3187
        %v3191 = vadd.f32 %v3170, %v3189
        %v3192 = vadd.f32 %v3171, %v3190
        %v3193 = vadd.f32 %v3191, %v3017
        %v3194 = vadd.f32 %v3192, %v3021
        %v3195 = vrot.slane %v3019, 1
        %v3196 = vrot.slane %v3023, 1
        %v3197 = vsel %vm1116, %v3195, %v3196
        %v3198 = vsel %vm1116, %v3196, %v3195
        %s3199 = scalar_lea.vmem %s2, 80
        %v3200 = vld [vmem:[%s3199] sm:$0xff]
        %v3201 = vld [vmem:[%s3199 + $0x8] sm:$0xff]
        %3203 = vset.pattern.permute.xlu0 0
        %3204 = vperm.xlu0 %3203, %v3200
        %v3205 = vpop.permute.xlu0 %3204
        %3208 = vset.pattern.permute.xlu0 0
        %3209 = vperm.xlu0 %3208, %v3201
        %v3210 = vpop.permute.xlu0 %3209
        %v3212 = vmul.f32 %v3197, %v3205
        %v3213 = vmul.f32 %v3198, %v3210
        %v3214 = vadd.f32 %v3193, %v3212
        %v3215 = vadd.f32 %v3194, %v3213
        %v3216 = vrot.slane %v3060, 3
        %v3217 = vrot.slane %v3064, 3
        %v3218 = vsel %vm3111, %v3216, %v3217
        %v3219 = vsel %vm3111, %v3217, %v3216
        %s3220 = scalar_lea.vmem %s2, 96
        %v3221 = vld [vmem:[%s3220] sm:$0xff]
        %v3222 = vld [vmem:[%s3220 + $0x8] sm:$0xff]
        %3224 = vset.pattern.permute.xlu0 0
        %3225 = vperm.xlu0 %3224, %v3221
        %v3226 = vpop.permute.xlu0 %3225
        %3229 = vset.pattern.permute.xlu0 0
        %3230 = vperm.xlu0 %3229, %v3222
        %v3231 = vpop.permute.xlu0 %3230
        %v3233 = vmul.f32 %v3218, %v3226
        %v3234 = vmul.f32 %v3219, %v3231
        %v3235 = vadd.f32 %v3214, %v3233
        %v3236 = vadd.f32 %v3215, %v3234
        %v3237 = vrot.slane %v3062, 4
        %v3238 = vrot.slane %v3066, 4
        %v3239 = vsel %vm3130, %v3237, %v3238
        %v3240 = vsel %vm3130, %v3238, %v3237
        %s3241 = scalar_lea.vmem %s2, 112
        %v3242 = vld [vmem:[%s3241] sm:$0xff]
        %v3243 = vld [vmem:[%s3241 + $0x8] sm:$0xff]
        %3245 = vset.pattern.permute.xlu0 0
        %3246 = vperm.xlu0 %3245, %v3242
        %v3247 = vpop.permute.xlu0 %3246
        %3250 = vset.pattern.permute.xlu0 0
        %3251 = vperm.xlu0 %3250, %v3243
        %v3252 = vpop.permute.xlu0 %3251
        %v3254 = vmul.f32 %v3239, %v3247
        %v3255 = vmul.f32 %v3240, %v3252
        %v3256 = vadd.f32 %v3235, %v3254
        %v3257 = vadd.f32 %v3236, %v3255
        %v3258 = vrot.slane %v3103, 5
        %v3259 = vrot.slane %v3106, 5
        %v3260 = vsel %vm3152, %v3258, %v3259
        %v3261 = vsel %vm3152, %v3259, %v3258
        %s3262 = scalar_lea.vmem %s2, 128
        %v3263 = vld [vmem:[%s3262] sm:$0xff]
        %v3264 = vld [vmem:[%s3262 + $0x8] sm:$0xff]
        %3266 = vset.pattern.permute.xlu0 0
        %3267 = vperm.xlu0 %3266, %v3263
        %v3268 = vpop.permute.xlu0 %3267
        %3271 = vset.pattern.permute.xlu0 0
        %3272 = vperm.xlu0 %3271, %v3264
        %v3273 = vpop.permute.xlu0 %3272
        %v3275 = vmul.f32 %v3260, %v3268
        %v3276 = vmul.f32 %v3261, %v3273
        %v3277 = vadd.f32 %v3256, %v3275
        %v3278 = vadd.f32 %v3257, %v3276
        %v3279 = vlaneseq
        %v3280 = vshrl.u32 %v3279, 7
        %v3281 = vsub.s32 0, %v3280
        %v3282 = vrot.slane %v2667, %v3281
        %v3283 = vadd.f32 %v3277, %v3282
        %v3284 = vadd.f32 %v3278, %v3282
        %v3285 = vmax.f32 %v3283, 0.0
        %v3286 = vmax.f32 %v3284, 0.0
        %v3287 = vld [vmem:[%s13 + $0x3] sm:$0x1]
        %v3288 = vpack.c.bf16 %v3286, %v3285
        %v3289 = vld [vmem:[%s6] sm:$0xff]
        %v3290 = vld [vmem:[%s6 + $0x8] sm:$0xff]
        %v3291 = vld [vmem:[%s6 + $0x10] sm:$0xff]
        %v3292 = vld [vmem:[%s6 + $0x18] sm:$0xff]
        %v3293 = vld [vmem:[%s6 + $0x20] sm:$0xf]
        %v3294 = vld [vmem:[%s6 + $0x24] sm:$0xff]
        %v3295 = vld [vmem:[%s6 + $0x2c] sm:$0xff]
        %v3296 = vld [vmem:[%s6 + $0x34] sm:$0xff]
        %v3297 = vld [vmem:[%s6 + $0x3c] sm:$0xff]
        %v3298 = vld [vmem:[%s6 + $0x44] sm:$0xf]
        %v3299 = vld [vmem:[%s6 + $0x48] sm:$0xff]
        %v3300 = vld [vmem:[%s6 + $0x50] sm:$0xff]
        %v3301 = vld [vmem:[%s6 + $0x58] sm:$0xff]
        %v3302 = vld [vmem:[%s6 + $0x60] sm:$0xff]
        %v3303 = vld [vmem:[%s6 + $0x68] sm:$0xf]
        %v3304 = vld [vmem:[%s6 + $0x6c] sm:$0xff]
        %v3305 = vld [vmem:[%s6 + $0x74] sm:$0xff]
        %v3306 = vld [vmem:[%s6 + $0x7c] sm:$0xff]
        %v3307 = vld [vmem:[%s6 + $0x84] sm:$0xff]
        %v3308 = vld [vmem:[%s6 + $0x8c] sm:$0xf]
        %v3309 = vld [vmem:[%s6 + $0x90] sm:$0xff]
        %v3310 = vld [vmem:[%s6 + $0x98] sm:$0xff]
        %v3311 = vld [vmem:[%s6 + $0xa0] sm:$0xff]
        %v3312 = vld [vmem:[%s6 + $0xa8] sm:$0xff]
        %v3313 = vld [vmem:[%s6 + $0xb0] sm:$0xf]
        %v3314 = vld [vmem:[%s6 + $0xb4] sm:$0xff]
        %v3315 = vld [vmem:[%s6 + $0xbc] sm:$0xff]
        %v3316 = vld [vmem:[%s6 + $0xc4] sm:$0xff]
        %v3317 = vld [vmem:[%s6 + $0xcc] sm:$0xff]
        %v3318 = vld [vmem:[%s6 + $0xd4] sm:$0xf]
        %v3319 = vld [vmem:[%s6 + $0xd8] sm:$0xff]
        %v3320 = vld [vmem:[%s6 + $0xe0] sm:$0xff]
        %v3321 = vld [vmem:[%s6 + $0xe8] sm:$0xff]
        %v3322 = vld [vmem:[%s6 + $0xf0] sm:$0xff]
        %v3323 = vld [vmem:[%s6 + $0xf8] sm:$0xf]
        %v3324 = vld [vmem:[%s6 + $0xfc] sm:$0xff]
        %v3325 = vld [vmem:[%s6 + $0x104] sm:$0xff]
        %v3326 = vld [vmem:[%s6 + $0x10c] sm:$0xff]
        %v3327 = vld [vmem:[%s6 + $0x114] sm:$0xff]
        %v3328 = vld [vmem:[%s6 + $0x11c] sm:$0xf]
        %v3329 = vld [vmem:[%s6 + $0x120] sm:$0xff]
        %v3330 = vld [vmem:[%s6 + $0x128] sm:$0xff]
        %v3331 = vld [vmem:[%s6 + $0x130] sm:$0xff]
        %v3332 = vld [vmem:[%s6 + $0x138] sm:$0xff]
        %v3333 = vld [vmem:[%s6 + $0x140] sm:$0xf]
        %v3334 = vld [vmem:[%s6 + $0x144] sm:$0xff]
        %v3335 = vld [vmem:[%s6 + $0x14c] sm:$0xff]
        %v3336 = vld [vmem:[%s6 + $0x154] sm:$0xff]
        %v3337 = vld [vmem:[%s6 + $0x15c] sm:$0xff]
        %v3338 = vld [vmem:[%s6 + $0x164] sm:$0xf]
        %v3339 = vld [vmem:[%s6 + $0x168] sm:$0xff]
        %v3340 = vld [vmem:[%s6 + $0x170] sm:$0xff]
        %v3341 = vld [vmem:[%s6 + $0x178] sm:$0xff]
        %v3342 = vld [vmem:[%s6 + $0x180] sm:$0xff]
        %v3343 = vld [vmem:[%s6 + $0x188] sm:$0xf]
        %v3344 = vld [vmem:[%s6 + $0x18c] sm:$0xff]
        %v3345 = vld [vmem:[%s6 + $0x194] sm:$0xff]
        %v3346 = vld [vmem:[%s6 + $0x19c] sm:$0xff]
        %v3347 = vld [vmem:[%s6 + $0x1a4] sm:$0xff]
        %v3348 = vld [vmem:[%s6 + $0x1ac] sm:$0xf]
        %v3349 = vld [vmem:[%s6 + $0x1b0] sm:$0xff]
        %v3350 = vld [vmem:[%s6 + $0x1b8] sm:$0xff]
        %v3351 = vld [vmem:[%s6 + $0x1c0] sm:$0xff]
        %v3352 = vld [vmem:[%s6 + $0x1c8] sm:$0xff]
        %v3353 = vld [vmem:[%s6 + $0x1d0] sm:$0xf]
        %v3354 = vld [vmem:[%s6 + $0x1d4] sm:$0xff]
        %v3355 = vld [vmem:[%s6 + $0x1dc] sm:$0xff]
        %v3356 = vld [vmem:[%s6 + $0x1e4] sm:$0xff]
        %v3357 = vld [vmem:[%s6 + $0x1ec] sm:$0xff]
        %v3358 = vld [vmem:[%s6 + $0x1f4] sm:$0xf]
        %v3359 = vld [vmem:[%s6 + $0x1f8] sm:$0xff]
        %v3360 = vld [vmem:[%s6 + $0x200] sm:$0xff]
        %v3361 = vld [vmem:[%s6 + $0x208] sm:$0xff]
        %v3362 = vld [vmem:[%s6 + $0x210] sm:$0xff]
        %v3363 = vld [vmem:[%s6 + $0x218] sm:$0xf]
        %v3364 = vld [vmem:[%s6 + $0x21c] sm:$0xff]
        %v3365 = vld [vmem:[%s6 + $0x224] sm:$0xff]
        %v3366 = vld [vmem:[%s6 + $0x22c] sm:$0xff]
        %v3367 = vld [vmem:[%s6 + $0x234] sm:$0xff]
        %v3368 = vld [vmem:[%s6 + $0x23c] sm:$0xf]
        %v3449 = vunpack.c.l.b16 %v3289
        %v3450 = vunpack.c.h.b16 %v3289
        %v3451 = vunpack.c.l.b16 %v3290
        %v3452 = vunpack.c.h.b16 %v3290
        %v3453 = vunpack.c.l.b16 %v3291
        %v3454 = vunpack.c.h.b16 %v3291
        %v3455 = vunpack.c.l.b16 %v3292
        %v3456 = vunpack.c.h.b16 %v3292
        %v3457 = vunpack.c.l.b16 %v3293
        %v3458 = vunpack.c.l.b16 %v3294
        %v3459 = vunpack.c.h.b16 %v3294
        %v3460 = vunpack.c.l.b16 %v3295
        %v3461 = vunpack.c.h.b16 %v3295
        %v3462 = vunpack.c.l.b16 %v3296
        %v3463 = vunpack.c.h.b16 %v3296
        %v3464 = vunpack.c.l.b16 %v3297
        %v3465 = vunpack.c.h.b16 %v3297
        %v3466 = vunpack.c.l.b16 %v3298
        %v3467 = vunpack.c.l.b16 %v3299
        %v3468 = vunpack.c.h.b16 %v3299
        %v3469 = vunpack.c.l.b16 %v3300
        %v3470 = vunpack.c.h.b16 %v3300
        %v3471 = vunpack.c.l.b16 %v3301
        %v3472 = vunpack.c.h.b16 %v3301
        %v3473 = vunpack.c.l.b16 %v3302
        %v3474 = vunpack.c.h.b16 %v3302
        %v3475 = vunpack.c.l.b16 %v3303
        %v3476 = vunpack.c.l.b16 %v3304
        %v3477 = vunpack.c.h.b16 %v3304
        %v3478 = vunpack.c.l.b16 %v3305
        %v3479 = vunpack.c.h.b16 %v3305
        %v3480 = vunpack.c.l.b16 %v3306
        %v3481 = vunpack.c.h.b16 %v3306
        %v3482 = vunpack.c.l.b16 %v3307
        %v3483 = vunpack.c.h.b16 %v3307
        %v3484 = vunpack.c.l.b16 %v3308
        %v3485 = vunpack.c.l.b16 %v3309
        %v3486 = vunpack.c.h.b16 %v3309
        %v3487 = vunpack.c.l.b16 %v3310
        %v3488 = vunpack.c.h.b16 %v3310
        %v3489 = vunpack.c.l.b16 %v3311
        %v3490 = vunpack.c.h.b16 %v3311
        %v3491 = vunpack.c.l.b16 %v3312
        %v3492 = vunpack.c.h.b16 %v3312
        %v3493 = vunpack.c.l.b16 %v3313
        %v3494 = vunpack.c.l.b16 %v3314
        %v3495 = vunpack.c.h.b16 %v3314
        %v3496 = vunpack.c.l.b16 %v3315
        %v3497 = vunpack.c.h.b16 %v3315
        %v3498 = vunpack.c.l.b16 %v3316
        %v3499 = vunpack.c.h.b16 %v3316
        %v3500 = vunpack.c.l.b16 %v3317
        %v3501 = vunpack.c.h.b16 %v3317
        %v3502 = vunpack.c.l.b16 %v3318
        %v3503 = vunpack.c.l.b16 %v3319
        %v3504 = vunpack.c.h.b16 %v3319
        %v3505 = vunpack.c.l.b16 %v3320
        %v3506 = vunpack.c.h.b16 %v3320
        %v3507 = vunpack.c.l.b16 %v3321
        %v3508 = vunpack.c.h.b16 %v3321
        %v3509 = vunpack.c.l.b16 %v3322
        %v3510 = vunpack.c.h.b16 %v3322
        %v3511 = vunpack.c.l.b16 %v3323
        %v3512 = vunpack.c.l.b16 %v3324
        %v3513 = vunpack.c.h.b16 %v3324
        %v3514 = vunpack.c.l.b16 %v3325
        %v3515 = vunpack.c.h.b16 %v3325
        %v3516 = vunpack.c.l.b16 %v3326
        %v3517 = vunpack.c.h.b16 %v3326
        %v3518 = vunpack.c.l.b16 %v3327
        %v3519 = vunpack.c.h.b16 %v3327
        %v3520 = vunpack.c.l.b16 %v3328
        %v3521 = vunpack.c.l.b16 %v3329
        %v3522 = vunpack.c.h.b16 %v3329
        %v3523 = vunpack.c.l.b16 %v3330
        %v3524 = vunpack.c.h.b16 %v3330
        %v3525 = vunpack.c.l.b16 %v3331
        %v3526 = vunpack.c.h.b16 %v3331
        %v3527 = vunpack.c.l.b16 %v3332
        %v3528 = vunpack.c.h.b16 %v3332
        %v3529 = vunpack.c.l.b16 %v3333
        %v3530 = vunpack.c.l.b16 %v3334
        %v3531 = vunpack.c.h.b16 %v3334
        %v3532 = vunpack.c.l.b16 %v3335
        %v3533 = vunpack.c.h.b16 %v3335
        %v3534 = vunpack.c.l.b16 %v3336
        %v3535 = vunpack.c.h.b16 %v3336
        %v3536 = vunpack.c.l.b16 %v3337
        %v3537 = vunpack.c.h.b16 %v3337
        %v3538 = vunpack.c.l.b16 %v3338
        %v3539 = vunpack.c.l.b16 %v3339
        %v3540 = vunpack.c.h.b16 %v3339
        %v3541 = vunpack.c.l.b16 %v3340
        %v3542 = vunpack.c.h.b16 %v3340
        %v3543 = vunpack.c.l.b16 %v3341
        %v3544 = vunpack.c.h.b16 %v3341
        %v3545 = vunpack.c.l.b16 %v3342
        %v3546 = vunpack.c.h.b16 %v3342
        %v3547 = vunpack.c.l.b16 %v3343
        %v3548 = vunpack.c.l.b16 %v3344
        %v3549 = vunpack.c.h.b16 %v3344
        %v3550 = vunpack.c.l.b16 %v3345
        %v3551 = vunpack.c.h.b16 %v3345
        %v3552 = vunpack.c.l.b16 %v3346
        %v3553 = vunpack.c.h.b16 %v3346
        %v3554 = vunpack.c.l.b16 %v3347
        %v3555 = vunpack.c.h.b16 %v3347
        %v3556 = vunpack.c.l.b16 %v3348
        %v3557 = vunpack.c.l.b16 %v3349
        %v3558 = vunpack.c.h.b16 %v3349
        %v3559 = vunpack.c.l.b16 %v3350
        %v3560 = vunpack.c.h.b16 %v3350
        %v3561 = vunpack.c.l.b16 %v3351
        %v3562 = vunpack.c.h.b16 %v3351
        %v3563 = vunpack.c.l.b16 %v3352
        %v3564 = vunpack.c.h.b16 %v3352
        %v3565 = vunpack.c.l.b16 %v3353
        %v3566 = vunpack.c.l.b16 %v3354
        %v3567 = vunpack.c.h.b16 %v3354
        %v3568 = vunpack.c.l.b16 %v3355
        %v3569 = vunpack.c.h.b16 %v3355
        %v3570 = vunpack.c.l.b16 %v3356
        %v3571 = vunpack.c.h.b16 %v3356
        %v3572 = vunpack.c.l.b16 %v3357
        %v3573 = vunpack.c.h.b16 %v3357
        %v3574 = vunpack.c.l.b16 %v3358
        %v3575 = vunpack.c.l.b16 %v3359
        %v3576 = vunpack.c.h.b16 %v3359
        %v3577 = vunpack.c.l.b16 %v3360
        %v3578 = vunpack.c.h.b16 %v3360
        %v3579 = vunpack.c.l.b16 %v3361
        %v3580 = vunpack.c.h.b16 %v3361
        %v3581 = vunpack.c.l.b16 %v3362
        %v3582 = vunpack.c.h.b16 %v3362
        %v3583 = vunpack.c.l.b16 %v3363
        %v3584 = vunpack.c.l.b16 %v3364
        %v3585 = vunpack.c.h.b16 %v3364
        %v3586 = vunpack.c.l.b16 %v3365
        %v3587 = vunpack.c.h.b16 %v3365
        %v3588 = vunpack.c.l.b16 %v3366
        %v3589 = vunpack.c.h.b16 %v3366
        %v3590 = vunpack.c.l.b16 %v3367
        %v3591 = vunpack.c.h.b16 %v3367
        %v3592 = vunpack.c.l.b16 %v3368
        %v3593 = vpack.c.b16 %v3458, %v3449
        %v3594 = vpack.c.b16 %v3459, %v3450
        %v3595 = vpack.c.b16 %v3460, %v3451
        %v3596 = vpack.c.b16 %v3461, %v3452
        %v3597 = vpack.c.b16 %v3462, %v3453
        %v3598 = vpack.c.b16 %v3463, %v3454
        %v3599 = vpack.c.b16 %v3464, %v3455
        %v3600 = vpack.c.b16 %v3465, %v3456
        %v3601 = vpack.c.b16 %v3466, %v3457
        %v3602 = vpack.c.b16 %v3476, %v3467
        %v3603 = vpack.c.b16 %v3477, %v3468
        %v3604 = vpack.c.b16 %v3478, %v3469
        %v3605 = vpack.c.b16 %v3479, %v3470
        %v3606 = vpack.c.b16 %v3480, %v3471
        %v3607 = vpack.c.b16 %v3481, %v3472
        %v3608 = vpack.c.b16 %v3482, %v3473
        %v3609 = vpack.c.b16 %v3483, %v3474
        %v3610 = vpack.c.b16 %v3484, %v3475
        %v3611 = vpack.c.b16 %v3494, %v3485
        %v3612 = vpack.c.b16 %v3495, %v3486
        %v3613 = vpack.c.b16 %v3496, %v3487
        %v3614 = vpack.c.b16 %v3497, %v3488
        %v3615 = vpack.c.b16 %v3498, %v3489
        %v3616 = vpack.c.b16 %v3499, %v3490
        %v3617 = vpack.c.b16 %v3500, %v3491
        %v3618 = vpack.c.b16 %v3501, %v3492
        %v3619 = vpack.c.b16 %v3502, %v3493
        %v3620 = vpack.c.b16 %v3512, %v3503
        %v3621 = vpack.c.b16 %v3513, %v3504
        %v3622 = vpack.c.b16 %v3514, %v3505
        %v3623 = vpack.c.b16 %v3515, %v3506
        %v3624 = vpack.c.b16 %v3516, %v3507
        %v3625 = vpack.c.b16 %v3517, %v3508
        %v3626 = vpack.c.b16 %v3518, %v3509
        %v3627 = vpack.c.b16 %v3519, %v3510
        %v3628 = vpack.c.b16 %v3520, %v3511
        %v3629 = vpack.c.b16 %v3530, %v3521
        %v3630 = vpack.c.b16 %v3531, %v3522
        %v3631 = vpack.c.b16 %v3532, %v3523
        %v3632 = vpack.c.b16 %v3533, %v3524
        %v3633 = vpack.c.b16 %v3534, %v3525
        %v3634 = vpack.c.b16 %v3535, %v3526
        %v3635 = vpack.c.b16 %v3536, %v3527
        %v3636 = vpack.c.b16 %v3537, %v3528
        %v3637 = vpack.c.b16 %v3538, %v3529
        %v3638 = vpack.c.b16 %v3548, %v3539
        %v3639 = vpack.c.b16 %v3549, %v3540
        %v3640 = vpack.c.b16 %v3550, %v3541
        %v3641 = vpack.c.b16 %v3551, %v3542
        %v3642 = vpack.c.b16 %v3552, %v3543
        %v3643 = vpack.c.b16 %v3553, %v3544
        %v3644 = vpack.c.b16 %v3554, %v3545
        %v3645 = vpack.c.b16 %v3555, %v3546
        %v3646 = vpack.c.b16 %v3556, %v3547
        %v3647 = vpack.c.b16 %v3566, %v3557
        %v3648 = vpack.c.b16 %v3567, %v3558
        %v3649 = vpack.c.b16 %v3568, %v3559
        %v3650 = vpack.c.b16 %v3569, %v3560
        %v3651 = vpack.c.b16 %v3570, %v3561
        %v3652 = vpack.c.b16 %v3571, %v3562
        %v3653 = vpack.c.b16 %v3572, %v3563
        %v3654 = vpack.c.b16 %v3573, %v3564
        %v3655 = vpack.c.b16 %v3574, %v3565
        %v3656 = vpack.c.b16 %v3584, %v3575
        %v3657 = vpack.c.b16 %v3585, %v3576
        %v3658 = vpack.c.b16 %v3586, %v3577
        %v3659 = vpack.c.b16 %v3587, %v3578
        %v3660 = vpack.c.b16 %v3588, %v3579
        %v3661 = vpack.c.b16 %v3589, %v3580
        %v3662 = vpack.c.b16 %v3590, %v3581
        %v3663 = vpack.c.b16 %v3591, %v3582
        %v3664 = vpack.c.b16 %v3592, %v3583
        %3737 = vmatprep.subr.bf16.mxu0 %v3594
        %3738 = vmatpush1.bf16.msra.mxu0 %v3593
        %3739 = vmatprep.subr.bf16.mxu0 %v3603
        %3740 = vmatpush1.bf16.msra.mxu0 %v3602
        %3741 = vmatprep.subr.bf16.mxu0 %v3612
        %3742 = vmatpush1.bf16.msra.mxu0 %v3611
        %3743 = vmatprep.subr.bf16.mxu0 %v3621
        %3744 = vmatpush1.bf16.msra.mxu0 %v3620
        %3745 = vmatprep.subr.bf16.mxu0 %v3630
        %3746 = vmatpush1.bf16.msra.mxu0 %v3629
        %3747 = vmatprep.subr.bf16.mxu0 %v3639
        %3748 = vmatpush1.bf16.msra.mxu0 %v3638
        %3749 = vmatprep.subr.bf16.mxu0 %v3648
        %3750 = vmatpush1.bf16.msra.mxu0 %v3647
        %3751 = vmatprep.subr.bf16.mxu0 %v3657
        %3752 = vmatpush1.bf16.msra.mxu0 %v3656
        %3753 = vmatprep.subr.bf16.mxu0 0
        %3754 = vmatpush1.bf16.msra.mxu0 0
        %3755 = vmatprep.subr.bf16.mxu0 0
        %3756 = vmatpush1.bf16.msra.mxu0 0
        %3757 = vmatprep.subr.bf16.mxu0 0
        %3758 = vmatpush1.bf16.msra.mxu0 0
        %3759 = vmatprep.subr.bf16.mxu0 0
        %3760 = vmatpush1.bf16.msra.mxu0 0
        %3761 = vmatprep.subr.bf16.mxu0 0
        %3762 = vmatpush1.bf16.msra.mxu0 0
        %3763 = vmatprep.subr.bf16.mxu0 0
        %3764 = vmatpush1.bf16.msra.mxu0 0
        %3765 = vmatprep.subr.bf16.mxu0 0
        %3766 = vmatpush1.bf16.msra.mxu0 0
        %3767 = vmatprep.subr.bf16.mxu0 0
        %3768 = vmatpush1.bf16.msra.mxu0 0
        %3769 = vmatprep.mubr.bf16.mxu0 0
        %3770 = vmatmul.mubr.bf16.gmra.mrb[0].mxu0 %v3288
        %v3771 = vpop.f32.mrb[0].mxu0
        %v3772 = vadd.f32 0.0, %v3771
        %v3773 = vpop.f32.mrb[0].mxu0
        %v3774 = vadd.f32 0.0, %v3773
        %v3775 = vpop.f32.mrb[0].mxu0
        %v3776 = vadd.f32 0.0, %v3775
        %v3777 = vpop.f32.mrb[0].mxu0
        %v3778 = vadd.f32 0.0, %v3777
        %3779 = vdwg.mxu0
        %3780 = vmatprep.subr.bf16.mxu0 %v3596
        %3781 = vmatpush1.bf16.msra.mxu0 %v3595
        %3782 = vmatprep.subr.bf16.mxu0 %v3605
        %3783 = vmatpush1.bf16.msra.mxu0 %v3604
        %3784 = vmatprep.subr.bf16.mxu0 %v3614
        %3785 = vmatpush1.bf16.msra.mxu0 %v3613
        %3786 = vmatprep.subr.bf16.mxu0 %v3623
        %3787 = vmatpush1.bf16.msra.mxu0 %v3622
        %3788 = vmatprep.subr.bf16.mxu0 %v3632
        %3789 = vmatpush1.bf16.msra.mxu0 %v3631
        %3790 = vmatprep.subr.bf16.mxu0 %v3641
        %3791 = vmatpush1.bf16.msra.mxu0 %v3640
        %3792 = vmatprep.subr.bf16.mxu0 %v3650
        %3793 = vmatpush1.bf16.msra.mxu0 %v3649
        %3794 = vmatprep.subr.bf16.mxu0 %v3659
        %3795 = vmatpush1.bf16.msra.mxu0 %v3658
        %3796 = vmatprep.subr.bf16.mxu0 0
        %3797 = vmatpush1.bf16.msra.mxu0 0
        %3798 = vmatprep.subr.bf16.mxu0 0
        %3799 = vmatpush1.bf16.msra.mxu0 0
        %3800 = vmatprep.subr.bf16.mxu0 0
        %3801 = vmatpush1.bf16.msra.mxu0 0
        %3802 = vmatprep.subr.bf16.mxu0 0
        %3803 = vmatpush1.bf16.msra.mxu0 0
        %3804 = vmatprep.subr.bf16.mxu0 0
        %3805 = vmatpush1.bf16.msra.mxu0 0
        %3806 = vmatprep.subr.bf16.mxu0 0
        %3807 = vmatpush1.bf16.msra.mxu0 0
        %3808 = vmatprep.subr.bf16.mxu0 0
        %3809 = vmatpush1.bf16.msra.mxu0 0
        %3810 = vmatprep.subr.bf16.mxu0 0
        %3811 = vmatpush1.bf16.msra.mxu0 0
        %3812 = vmatprep.mubr.bf16.mxu0 0
        %3813 = vmatmul.mubr.bf16.gmra.mrb[0].mxu0 %v3288
        %v3814 = vpop.f32.mrb[0].mxu0
        %v3815 = vadd.f32 0.0, %v3814
        %v3816 = vpop.f32.mrb[0].mxu0
        %v3817 = vadd.f32 0.0, %v3816
        %v3818 = vpop.f32.mrb[0].mxu0
        %v3819 = vadd.f32 0.0, %v3818
        %v3820 = vpop.f32.mrb[0].mxu0
        %v3821 = vadd.f32 0.0, %v3820
        %3822 = vdwg.mxu0
        %3823 = vmatprep.subr.bf16.mxu0 %v3598
        %3824 = vmatpush1.bf16.msra.mxu0 %v3597
        %3825 = vmatprep.subr.bf16.mxu0 %v3607
        %3826 = vmatpush1.bf16.msra.mxu0 %v3606
        %3827 = vmatprep.subr.bf16.mxu0 %v3616
        %3828 = vmatpush1.bf16.msra.mxu0 %v3615
        %3829 = vmatprep.subr.bf16.mxu0 %v3625
        %3830 = vmatpush1.bf16.msra.mxu0 %v3624
        %3831 = vmatprep.subr.bf16.mxu0 %v3634
        %3832 = vmatpush1.bf16.msra.mxu0 %v3633
        %3833 = vmatprep.subr.bf16.mxu0 %v3643
        %3834 = vmatpush1.bf16.msra.mxu0 %v3642
        %3835 = vmatprep.subr.bf16.mxu0 %v3652
        %3836 = vmatpush1.bf16.msra.mxu0 %v3651
        %3837 = vmatprep.subr.bf16.mxu0 %v3661
        %3838 = vmatpush1.bf16.msra.mxu0 %v3660
        %3839 = vmatprep.subr.bf16.mxu0 0
        %3840 = vmatpush1.bf16.msra.mxu0 0
        %3841 = vmatprep.subr.bf16.mxu0 0
        %3842 = vmatpush1.bf16.msra.mxu0 0
        %3843 = vmatprep.subr.bf16.mxu0 0
        %3844 = vmatpush1.bf16.msra.mxu0 0
        %3845 = vmatprep.subr.bf16.mxu0 0
        %3846 = vmatpush1.bf16.msra.mxu0 0
        %3847 = vmatprep.subr.bf16.mxu0 0
        %3848 = vmatpush1.bf16.msra.mxu0 0
        %3849 = vmatprep.subr.bf16.mxu0 0
        %3850 = vmatpush1.bf16.msra.mxu0 0
        %3851 = vmatprep.subr.bf16.mxu0 0
        %3852 = vmatpush1.bf16.msra.mxu0 0
        %3853 = vmatprep.subr.bf16.mxu0 0
        %3854 = vmatpush1.bf16.msra.mxu0 0
        %3855 = vmatprep.mubr.bf16.mxu0 0
        %3856 = vmatmul.mubr.bf16.gmra.mrb[0].mxu0 %v3288
        %v3857 = vpop.f32.mrb[0].mxu0
        %v3858 = vadd.f32 0.0, %v3857
        %v3859 = vpop.f32.mrb[0].mxu0
        %v3860 = vadd.f32 0.0, %v3859
        %v3861 = vpop.f32.mrb[0].mxu0
        %v3862 = vadd.f32 0.0, %v3861
        %v3863 = vpop.f32.mrb[0].mxu0
        %v3864 = vadd.f32 0.0, %v3863
        %3865 = vdwg.mxu0
        %3866 = vmatprep.subr.bf16.mxu0 %v3600
        %3867 = vmatpush1.bf16.msra.mxu0 %v3599
        %3868 = vmatprep.subr.bf16.mxu0 %v3609
        %3869 = vmatpush1.bf16.msra.mxu0 %v3608
        %3870 = vmatprep.subr.bf16.mxu0 %v3618
        %3871 = vmatpush1.bf16.msra.mxu0 %v3617
        %3872 = vmatprep.subr.bf16.mxu0 %v3627
        %3873 = vmatpush1.bf16.msra.mxu0 %v3626
        %3874 = vmatprep.subr.bf16.mxu0 %v3636
        %3875 = vmatpush1.bf16.msra.mxu0 %v3635
        %3876 = vmatprep.subr.bf16.mxu0 %v3645
        %3877 = vmatpush1.bf16.msra.mxu0 %v3644
        %3878 = vmatprep.subr.bf16.mxu0 %v3654
        %3879 = vmatpush1.bf16.msra.mxu0 %v3653
        %3880 = vmatprep.subr.bf16.mxu0 %v3663
        %3881 = vmatpush1.bf16.msra.mxu0 %v3662
        %3882 = vmatprep.subr.bf16.mxu0 0
        %3883 = vmatpush1.bf16.msra.mxu0 0
        %3884 = vmatprep.subr.bf16.mxu0 0
        %3885 = vmatpush1.bf16.msra.mxu0 0
        %3886 = vmatprep.subr.bf16.mxu0 0
        %3887 = vmatpush1.bf16.msra.mxu0 0
        %3888 = vmatprep.subr.bf16.mxu0 0
        %3889 = vmatpush1.bf16.msra.mxu0 0
        %3890 = vmatprep.subr.bf16.mxu0 0
        %3891 = vmatpush1.bf16.msra.mxu0 0
        %3892 = vmatprep.subr.bf16.mxu0 0
        %3893 = vmatpush1.bf16.msra.mxu0 0
        %3894 = vmatprep.subr.bf16.mxu0 0
        %3895 = vmatpush1.bf16.msra.mxu0 0
        %3896 = vmatprep.subr.bf16.mxu0 0
        %3897 = vmatpush1.bf16.msra.mxu0 0
        %3898 = vmatprep.mubr.bf16.mxu0 0
        %3899 = vmatmul.mubr.bf16.gmra.mrb[0].mxu0 %v3288
        %v3900 = vpop.f32.mrb[0].mxu0
        %v3901 = vadd.f32 0.0, %v3900
        %v3902 = vpop.f32.mrb[0].mxu0
        %v3903 = vadd.f32 0.0, %v3902
        %v3904 = vpop.f32.mrb[0].mxu0
        %v3905 = vadd.f32 0.0, %v3904
        %v3906 = vpop.f32.mrb[0].mxu0
        %v3907 = vadd.f32 0.0, %v3906
        %3908 = vdwg.mxu0
        %3909 = vmatprep.subr.bf16.mxu0 0
        %3910 = vmatpush1.bf16.msra.mxu0 %v3601
        %3911 = vmatprep.subr.bf16.mxu0 0
        %3912 = vmatpush1.bf16.msra.mxu0 %v3610
        %3913 = vmatprep.subr.bf16.mxu0 0
        %3914 = vmatpush1.bf16.msra.mxu0 %v3619
        %3915 = vmatprep.subr.bf16.mxu0 0
        %3916 = vmatpush1.bf16.msra.mxu0 %v3628
        %3917 = vmatprep.subr.bf16.mxu0 0
        %3918 = vmatpush1.bf16.msra.mxu0 %v3637
        %3919 = vmatprep.subr.bf16.mxu0 0
        %3920 = vmatpush1.bf16.msra.mxu0 %v3646
        %3921 = vmatprep.subr.bf16.mxu0 0
        %3922 = vmatpush1.bf16.msra.mxu0 %v3655
        %3923 = vmatprep.subr.bf16.mxu0 0
        %3924 = vmatpush1.bf16.msra.mxu0 %v3664
        %3925 = vmatprep.subr.bf16.mxu0 0
        %3926 = vmatpush1.bf16.msra.mxu0 0
        %3927 = vmatprep.subr.bf16.mxu0 0
        %3928 = vmatpush1.bf16.msra.mxu0 0
        %3929 = vmatprep.subr.bf16.mxu0 0
        %3930 = vmatpush1.bf16.msra.mxu0 0
        %3931 = vmatprep.subr.bf16.mxu0 0
        %3932 = vmatpush1.bf16.msra.mxu0 0
        %3933 = vmatprep.subr.bf16.mxu0 0
        %3934 = vmatpush1.bf16.msra.mxu0 0
        %3935 = vmatprep.subr.bf16.mxu0 0
        %3936 = vmatpush1.bf16.msra.mxu0 0
        %3937 = vmatprep.subr.bf16.mxu0 0
        %3938 = vmatpush1.bf16.msra.mxu0 0
        %3939 = vmatprep.subr.bf16.mxu0 0
        %3940 = vmatpush1.bf16.msra.mxu0 0
        %3941 = vmatprep.mubr.bf16.mxu0 0
        %3942 = vmatmul.mubr.bf16.gmra.mrb[0].mxu0 %v3288
        %v3943 = vpop.f32.mrb[0].mxu0
        %v3944 = vadd.f32 0.0, %v3943
        %v3945 = vpop.f32.mrb[0].mxu0
        %v3946 = vpop.f32.mrb[0].mxu0
        %v3947 = vadd.f32 0.0, %v3946
        %v3948 = vpop.f32.mrb[0].mxu0
        %3949 = vdwg.mxu0
        %v3950 = vrot.slane %v3772, 3
        %v3951 = vrot.slane %v3776, 3
        %v3952 = vsel %vm3111, %v3950, %v3951
        %v3953 = vsel %vm3111, %v3951, %v3950
        %v3954 = vmul.f32 %v3953, %v3119
        %v3955 = vmul.f32 %v3952, %v3124
        %v3956 = vrot.slane %v3774, 4
        %v3957 = vrot.slane %v3778, 4
        %v3958 = vsel %vm3130, %v3956, %v3957
        %v3959 = vsel %vm3130, %v3957, %v3956
        %v3960 = vmul.f32 %v3959, %v3139
        %v3961 = vmul.f32 %v3958, %v3144
        %v3962 = vadd.f32 %v3954, %v3960
        %v3963 = vadd.f32 %v3955, %v3961
        %v3964 = vrot.slane %v3815, 5
        %v3965 = vrot.slane %v3819, 5
        %v3966 = vsel %vm3152, %v3964, %v3965
        %v3967 = vsel %vm3152, %v3965, %v3964
        %v3968 = vmul.f32 %v3967, %v3161
        %v3969 = vmul.f32 %v3966, %v3166
        %v3970 = vadd.f32 %v3962, %v3968
        %v3971 = vadd.f32 %v3963, %v3969
        %v3972 = vrot.slane %v3817, 7
        %v3973 = vrot.slane %v3821, 7
        %v3974 = vsel %vm978, %v3972, %v3973
        %v3975 = vsel %vm978, %v3973, %v3972
        %v3976 = vmul.f32 %v3975, %v3182
        %v3977 = vmul.f32 %v3974, %v3187
        %v3978 = vadd.f32 %v3970, %v3976
        %v3979 = vadd.f32 %v3971, %v3977
        %v3980 = vadd.f32 %v3978, %v3858
        %v3981 = vadd.f32 %v3979, %v3862
        %v3982 = vrot.slane %v3860, 1
        %v3983 = vrot.slane %v3864, 1
        %v3984 = vsel %vm1116, %v3982, %v3983
        %v3985 = vsel %vm1116, %v3983, %v3982
        %v3986 = vmul.f32 %v3984, %v3205
        %v3987 = vmul.f32 %v3985, %v3210
        %v3988 = vadd.f32 %v3980, %v3986
        %v3989 = vadd.f32 %v3981, %v3987
        %v3990 = vrot.slane %v3901, 3
        %v3991 = vrot.slane %v3905, 3
        %v3992 = vsel %vm3111, %v3990, %v3991
        %v3993 = vsel %vm3111, %v3991, %v3990
        %v3994 = vmul.f32 %v3992, %v3226
        %v3995 = vmul.f32 %v3993, %v3231
        %v3996 = vadd.f32 %v3988, %v3994
        %v3997 = vadd.f32 %v3989, %v3995
        %v3998 = vrot.slane %v3903, 4
        %v3999 = vrot.slane %v3907, 4
        %v4000 = vsel %vm3130, %v3998, %v3999
        %v4001 = vsel %vm3130, %v3999, %v3998
        %v4002 = vmul.f32 %v4000, %v3247
        %v4003 = vmul.f32 %v4001, %v3252
        %v4004 = vadd.f32 %v3996, %v4002
        %v4005 = vadd.f32 %v3997, %v4003
        %v4006 = vrot.slane %v3944, 5
        %v4007 = vrot.slane %v3947, 5
        %v4008 = vsel %vm3152, %v4006, %v4007
        %v4009 = vsel %vm3152, %v4007, %v4006
        %v4010 = vmul.f32 %v4008, %v3268
        %v4011 = vmul.f32 %v4009, %v3273
        %v4012 = vadd.f32 %v4004, %v4010
        %v4013 = vadd.f32 %v4005, %v4011
        %v4014 = vlaneseq
        %v4015 = vshrl.u32 %v4014, 7
        %v4016 = vsub.s32 0, %v4015
        %v4017 = vrot.slane %v3287, %v4016
        %v4018 = vadd.f32 %v4012, %v4017
        %v4019 = vadd.f32 %v4013, %v4017
        %v4020 = vmax.f32 %v4018, 0.0
        %v4021 = vmax.f32 %v4019, 0.0
        %v4022 = vld [vmem:[%s13 + $0x4] sm:$0x1]
        %v4023 = vpack.c.bf16 %v4021, %v4020
        %v4024 = vld [vmem:[#allocation5] sm:$0xff]
        %v4025 = vld [vmem:[#allocation5 + $0x8] sm:$0xff]
        %v4026 = vld [vmem:[#allocation5 + $0x10] sm:$0xff]
        %v4027 = vld [vmem:[#allocation5 + $0x18] sm:$0xff]
        %v4028 = vld [vmem:[#allocation5 + $0x20] sm:$0xff]
        %v4029 = vld [vmem:[#allocation5 + $0x28] sm:$0xff]
        %v4030 = vld [vmem:[#allocation5 + $0x30] sm:$0xff]
        %v4031 = vld [vmem:[#allocation5 + $0x38] sm:$0xff]
        %v4032 = vld [vmem:[#allocation5 + $0x40] sm:$0xff]
        %v4033 = vld [vmem:[#allocation5 + $0x48] sm:$0xff]
        %v4034 = vld [vmem:[#allocation5 + $0x50] sm:$0xff]
        %v4035 = vld [vmem:[#allocation5 + $0x58] sm:$0xff]
        %v4036 = vld [vmem:[#allocation5 + $0x60] sm:$0xff]
        %v4037 = vld [vmem:[#allocation5 + $0x68] sm:$0xff]
        %v4038 = vld [vmem:[#allocation5 + $0x70] sm:$0xff]
        %v4039 = vld [vmem:[#allocation5 + $0x78] sm:$0xff]
        %v4040 = vld [vmem:[#allocation5 + $0x80] sm:$0xff]
        %v4041 = vld [vmem:[#allocation5 + $0x88] sm:$0xff]
        %v4042 = vld [vmem:[#allocation5 + $0x90] sm:$0xff]
        %v4043 = vld [vmem:[#allocation5 + $0x98] sm:$0xff]
        %v4044 = vld [vmem:[#allocation5 + $0xa0] sm:$0xff]
        %v4045 = vld [vmem:[#allocation5 + $0xa8] sm:$0xff]
        %v4046 = vld [vmem:[#allocation5 + $0xb0] sm:$0xff]
        %v4047 = vld [vmem:[#allocation5 + $0xb8] sm:$0xff]
        %v4048 = vld [vmem:[#allocation5 + $0xc0] sm:$0xff]
        %v4049 = vld [vmem:[#allocation5 + $0xc8] sm:$0xff]
        %v4050 = vld [vmem:[#allocation5 + $0xd0] sm:$0xff]
        %v4051 = vld [vmem:[#allocation5 + $0xd8] sm:$0xff]
        %v4052 = vld [vmem:[#allocation5 + $0xe0] sm:$0xff]
        %v4053 = vld [vmem:[#allocation5 + $0xe8] sm:$0xff]
        %v4054 = vld [vmem:[#allocation5 + $0xf0] sm:$0xff]
        %v4055 = vld [vmem:[#allocation5 + $0xf8] sm:$0xff]
        %v4088 = vunpack.c.l.b16 %v4024
        %v4089 = vunpack.c.h.b16 %v4024
        %v4090 = vunpack.c.l.b16 %v4025
        %v4091 = vunpack.c.h.b16 %v4025
        %v4092 = vunpack.c.l.b16 %v4026
        %v4093 = vunpack.c.h.b16 %v4026
        %v4094 = vunpack.c.l.b16 %v4027
        %v4095 = vunpack.c.h.b16 %v4027
        %v4096 = vunpack.c.l.b16 %v4028
        %v4097 = vunpack.c.h.b16 %v4028
        %v4098 = vunpack.c.l.b16 %v4029
        %v4099 = vunpack.c.h.b16 %v4029
        %v4100 = vunpack.c.l.b16 %v4030
        %v4101 = vunpack.c.h.b16 %v4030
        %v4102 = vunpack.c.l.b16 %v4031
        %v4103 = vunpack.c.h.b16 %v4031
        %v4104 = vunpack.c.l.b16 %v4032
        %v4105 = vunpack.c.h.b16 %v4032
        %v4106 = vunpack.c.l.b16 %v4033
        %v4107 = vunpack.c.h.b16 %v4033
        %v4108 = vunpack.c.l.b16 %v4034
        %v4109 = vunpack.c.h.b16 %v4034
        %v4110 = vunpack.c.l.b16 %v4035
        %v4111 = vunpack.c.h.b16 %v4035
        %v4112 = vunpack.c.l.b16 %v4036
        %v4113 = vunpack.c.h.b16 %v4036
        %v4114 = vunpack.c.l.b16 %v4037
        %v4115 = vunpack.c.h.b16 %v4037
        %v4116 = vunpack.c.l.b16 %v4038
        %v4117 = vunpack.c.h.b16 %v4038
        %v4118 = vunpack.c.l.b16 %v4039
        %v4119 = vunpack.c.h.b16 %v4039
        %v4120 = vunpack.c.l.b16 %v4040
        %v4121 = vunpack.c.h.b16 %v4040
        %v4122 = vunpack.c.l.b16 %v4041
        %v4123 = vunpack.c.h.b16 %v4041
        %v4124 = vunpack.c.l.b16 %v4042
        %v4125 = vunpack.c.h.b16 %v4042
        %v4126 = vunpack.c.l.b16 %v4043
        %v4127 = vunpack.c.h.b16 %v4043
        %v4128 = vunpack.c.l.b16 %v4044
        %v4129 = vunpack.c.h.b16 %v4044
        %v4130 = vunpack.c.l.b16 %v4045
        %v4131 = vunpack.c.h.b16 %v4045
        %v4132 = vunpack.c.l.b16 %v4046
        %v4133 = vunpack.c.h.b16 %v4046
        %v4134 = vunpack.c.l.b16 %v4047
        %v4135 = vunpack.c.h.b16 %v4047
        %v4136 = vunpack.c.l.b16 %v4048
        %v4137 = vunpack.c.h.b16 %v4048
        %v4138 = vunpack.c.l.b16 %v4049
        %v4139 = vunpack.c.h.b16 %v4049
        %v4140 = vunpack.c.l.b16 %v4050
        %v4141 = vunpack.c.h.b16 %v4050
        %v4142 = vunpack.c.l.b16 %v4051
        %v4143 = vunpack.c.h.b16 %v4051
        %v4144 = vunpack.c.l.b16 %v4052
        %v4145 = vunpack.c.h.b16 %v4052
        %v4146 = vunpack.c.l.b16 %v4053
        %v4147 = vunpack.c.h.b16 %v4053
        %v4148 = vunpack.c.l.b16 %v4054
        %v4149 = vunpack.c.h.b16 %v4054
        %v4150 = vunpack.c.l.b16 %v4055
        %v4151 = vunpack.c.h.b16 %v4055
        %v4152 = vpack.c.b16 %v4092, %v4088
        %v4153 = vpack.c.b16 %v4093, %v4089
        %v4154 = vpack.c.b16 %v4094, %v4090
        %v4155 = vpack.c.b16 %v4095, %v4091
        %v4156 = vpack.c.b16 %v4100, %v4096
        %v4157 = vpack.c.b16 %v4101, %v4097
        %v4158 = vpack.c.b16 %v4102, %v4098
        %v4159 = vpack.c.b16 %v4103, %v4099
        %v4160 = vpack.c.b16 %v4108, %v4104
        %v4161 = vpack.c.b16 %v4109, %v4105
        %v4162 = vpack.c.b16 %v4110, %v4106
        %v4163 = vpack.c.b16 %v4111, %v4107
        %v4164 = vpack.c.b16 %v4116, %v4112
        %v4165 = vpack.c.b16 %v4117, %v4113
        %v4166 = vpack.c.b16 %v4118, %v4114
        %v4167 = vpack.c.b16 %v4119, %v4115
        %v4168 = vpack.c.b16 %v4124, %v4120
        %v4169 = vpack.c.b16 %v4125, %v4121
        %v4170 = vpack.c.b16 %v4126, %v4122
        %v4171 = vpack.c.b16 %v4127, %v4123
        %v4172 = vpack.c.b16 %v4132, %v4128
        %v4173 = vpack.c.b16 %v4133, %v4129
        %v4174 = vpack.c.b16 %v4134, %v4130
        %v4175 = vpack.c.b16 %v4135, %v4131
        %v4176 = vpack.c.b16 %v4140, %v4136
        %v4177 = vpack.c.b16 %v4141, %v4137
        %v4178 = vpack.c.b16 %v4142, %v4138
        %v4179 = vpack.c.b16 %v4143, %v4139
        %v4180 = vpack.c.b16 %v4148, %v4144
        %v4181 = vpack.c.b16 %v4149, %v4145
        %v4182 = vpack.c.b16 %v4150, %v4146
        %v4183 = vpack.c.b16 %v4151, %v4147
        %4216 = vmatprep.subr.bf16.mxu0 %v4153
        %4217 = vmatpush1.bf16.msra.mxu0 %v4152
        %4218 = vmatprep.subr.bf16.mxu0 %v4157
        %4219 = vmatpush1.bf16.msra.mxu0 %v4156
        %4220 = vmatprep.subr.bf16.mxu0 %v4161
        %4221 = vmatpush1.bf16.msra.mxu0 %v4160
        %4222 = vmatprep.subr.bf16.mxu0 %v4165
        %4223 = vmatpush1.bf16.msra.mxu0 %v4164
        %4224 = vmatprep.subr.bf16.mxu0 %v4169
        %4225 = vmatpush1.bf16.msra.mxu0 %v4168
        %4226 = vmatprep.subr.bf16.mxu0 %v4173
        %4227 = vmatpush1.bf16.msra.mxu0 %v4172
        %4228 = vmatprep.subr.bf16.mxu0 %v4177
        %4229 = vmatpush1.bf16.msra.mxu0 %v4176
        %4230 = vmatprep.subr.bf16.mxu0 %v4181
        %4231 = vmatpush1.bf16.msra.mxu0 %v4180
        %4232 = vmatprep.subr.bf16.mxu0 0
        %4233 = vmatpush1.bf16.msra.mxu0 0
        %4234 = vmatprep.subr.bf16.mxu0 0
        %4235 = vmatpush1.bf16.msra.mxu0 0
        %4236 = vmatprep.subr.bf16.mxu0 0
        %4237 = vmatpush1.bf16.msra.mxu0 0
        %4238 = vmatprep.subr.bf16.mxu0 0
        %4239 = vmatpush1.bf16.msra.mxu0 0
        %4240 = vmatprep.subr.bf16.mxu0 0
        %4241 = vmatpush1.bf16.msra.mxu0 0
        %4242 = vmatprep.subr.bf16.mxu0 0
        %4243 = vmatpush1.bf16.msra.mxu0 0
        %4244 = vmatprep.subr.bf16.mxu0 0
        %4245 = vmatpush1.bf16.msra.mxu0 0
        %4246 = vmatprep.subr.bf16.mxu0 0
        %4247 = vmatpush1.bf16.msra.mxu0 0
        %4248 = vmatprep.mubr.bf16.mxu0 0
        %4249 = vmatmul.mubr.bf16.gmra.mrb[0].mxu0 %v4023
        %v4250 = vpop.f32.mrb[0].mxu0
        %v4251 = vadd.f32 0.0, %v4250
        %v4252 = vpop.f32.mrb[0].mxu0
        %v4253 = vadd.f32 0.0, %v4252
        %v4254 = vpop.f32.mrb[0].mxu0
        %v4255 = vadd.f32 0.0, %v4254
        %v4256 = vpop.f32.mrb[0].mxu0
        %v4257 = vadd.f32 0.0, %v4256
        %4258 = vdwg.mxu0
        %4259 = vmatprep.subr.bf16.mxu0 %v4155
        %4260 = vmatpush1.bf16.msra.mxu0 %v4154
        %4261 = vmatprep.subr.bf16.mxu0 %v4159
        %4262 = vmatpush1.bf16.msra.mxu0 %v4158
        %4263 = vmatprep.subr.bf16.mxu0 %v4163
        %4264 = vmatpush1.bf16.msra.mxu0 %v4162
        %4265 = vmatprep.subr.bf16.mxu0 %v4167
        %4266 = vmatpush1.bf16.msra.mxu0 %v4166
        %4267 = vmatprep.subr.bf16.mxu0 %v4171
        %4268 = vmatpush1.bf16.msra.mxu0 %v4170
        %4269 = vmatprep.subr.bf16.mxu0 %v4175
        %4270 = vmatpush1.bf16.msra.mxu0 %v4174
        %4271 = vmatprep.subr.bf16.mxu0 %v4179
        %4272 = vmatpush1.bf16.msra.mxu0 %v4178
        %4273 = vmatprep.subr.bf16.mxu0 %v4183
        %4274 = vmatpush1.bf16.msra.mxu0 %v4182
        %4275 = vmatprep.subr.bf16.mxu0 0
        %4276 = vmatpush1.bf16.msra.mxu0 0
        %4277 = vmatprep.subr.bf16.mxu0 0
        %4278 = vmatpush1.bf16.msra.mxu0 0
        %4279 = vmatprep.subr.bf16.mxu0 0
        %4280 = vmatpush1.bf16.msra.mxu0 0
        %4281 = vmatprep.subr.bf16.mxu0 0
        %4282 = vmatpush1.bf16.msra.mxu0 0
        %4283 = vmatprep.subr.bf16.mxu0 0
        %4284 = vmatpush1.bf16.msra.mxu0 0
        %4285 = vmatprep.subr.bf16.mxu0 0
        %4286 = vmatpush1.bf16.msra.mxu0 0
        %4287 = vmatprep.subr.bf16.mxu0 0
        %4288 = vmatpush1.bf16.msra.mxu0 0
        %4289 = vmatprep.subr.bf16.mxu0 0
        %4290 = vmatpush1.bf16.msra.mxu0 0
        %4291 = vmatprep.mubr.bf16.mxu0 0
        %4292 = vmatmul.mubr.bf16.gmra.mrb[0].mxu0 %v4023
        %v4293 = vpop.f32.mrb[0].mxu0
        %v4294 = vadd.f32 0.0, %v4293
        %v4295 = vpop.f32.mrb[0].mxu0
        %v4296 = vadd.f32 0.0, %v4295
        %v4297 = vpop.f32.mrb[0].mxu0
        %v4298 = vadd.f32 0.0, %v4297
        %v4299 = vpop.f32.mrb[0].mxu0
        %v4300 = vadd.f32 0.0, %v4299
        %4301 = vdwg.mxu0
        %v4302 = vpack.c.bf16 %v4255, %v4251
        %v4303 = vld [vmem:[%s8] sm:$0xf]
        %v4304 = vld [vmem:[%s8 + $0x4] sm:$0xf]
        %v4305 = vld [vmem:[%s8 + $0x8] sm:$0xf]
        %v4306 = vld [vmem:[%s8 + $0xc] sm:$0xf]
        %v4307 = vld [vmem:[%s8 + $0x10] sm:$0xf]
        %v4308 = vld [vmem:[%s8 + $0x14] sm:$0xf]
        %v4309 = vld [vmem:[%s8 + $0x18] sm:$0xf]
        %v4310 = vld [vmem:[%s8 + $0x1c] sm:$0xf]
        %v4311 = vpack.c.bf16 %v4257, %v4253
        %s4312 = scalar_lea.vmem %s8, 32
        %v4313 = vld [vmem:[%s4312] sm:$0xf]
        %v4314 = vld [vmem:[%s4312 + $0x4] sm:$0xf]
        %v4315 = vld [vmem:[%s4312 + $0x8] sm:$0xf]
        %v4316 = vld [vmem:[%s4312 + $0xc] sm:$0xf]
        %v4317 = vld [vmem:[%s4312 + $0x10] sm:$0xf]
        %v4318 = vld [vmem:[%s4312 + $0x14] sm:$0xf]
        %v4319 = vld [vmem:[%s4312 + $0x18] sm:$0xf]
        %v4320 = vld [vmem:[%s4312 + $0x1c] sm:$0xf]
        %v4329 = vunpack.c.l.b16 %v4313
        %v4330 = vunpack.c.l.b16 %v4314
        %v4331 = vunpack.c.l.b16 %v4315
        %v4332 = vunpack.c.l.b16 %v4316
        %v4333 = vunpack.c.l.b16 %v4317
        %v4334 = vunpack.c.l.b16 %v4318
        %v4335 = vunpack.c.l.b16 %v4319
        %v4336 = vunpack.c.l.b16 %v4320
        %v4337 = vpack.c.b16 %v4330, %v4329
        %v4338 = vpack.c.b16 %v4332, %v4331
        %v4339 = vpack.c.b16 %v4334, %v4333
        %v4340 = vpack.c.b16 %v4336, %v4335
        %vm4341 = vcmask 130048
        %v4343 = vsel %vm4341, %v4337, 0
        %v4346 = vsel %vm4341, %v4338, 0
        %v4349 = vsel %vm4341, %v4339, 0
        %v4352 = vsel %vm4341, %v4340, 0
        %4354 = vmatprep.subr.bf16.mxu0 0
        %4355 = vmatpush1.bf16.msra.mxu0 %v4311
        %4356 = vmatprep.subr.bf16.mxu0 0
        %4357 = vmatpush1.bf16.msra.mxu0 0
        %4358 = vmatprep.subr.bf16.mxu0 0
        %4359 = vmatpush1.bf16.msra.mxu0 0
        %4360 = vmatprep.subr.bf16.mxu0 0
        %4361 = vmatpush1.bf16.msra.mxu0 0
        %4362 = vmatprep.subr.bf16.mxu0 0
        %4363 = vmatpush1.bf16.msra.mxu0 0
        %4364 = vmatprep.subr.bf16.mxu0 0
        %4365 = vmatpush1.bf16.msra.mxu0 0
        %4366 = vmatprep.subr.bf16.mxu0 0
        %4367 = vmatpush1.bf16.msra.mxu0 0
        %4368 = vmatprep.subr.bf16.mxu0 0
        %4369 = vmatpush1.bf16.msra.mxu0 0
        %4370 = vmatprep.subr.bf16.mxu0 0
        %4371 = vmatpush1.bf16.msra.mxu0 0
        %4372 = vmatprep.subr.bf16.mxu0 0
        %4373 = vmatpush1.bf16.msra.mxu0 0
        %4374 = vmatprep.subr.bf16.mxu0 0
        %4375 = vmatpush1.bf16.msra.mxu0 0
        %4376 = vmatprep.subr.bf16.mxu0 0
        %4377 = vmatpush1.bf16.msra.mxu0 0
        %4378 = vmatprep.subr.bf16.mxu0 0
        %4379 = vmatpush1.bf16.msra.mxu0 0
        %4380 = vmatprep.subr.bf16.mxu0 0
        %4381 = vmatpush1.bf16.msra.mxu0 0
        %4382 = vmatprep.subr.bf16.mxu0 0
        %4383 = vmatpush1.bf16.msra.mxu0 0
        %4384 = vmatprep.subr.bf16.mxu0 0
        %4385 = vmatpush1.bf16.msra.mxu0 0
        %4386 = vmatprep.mubr.bf16.mxu0 0
        %4387 = vmatmul.mubr.bf16.gmra.mrb[0].mxu0 %v4343
        %v4388 = vpop.f32.mrb[0].mxu0
        %v4389 = vadd.f32 0.0, %v4388
        %v4390 = vpop.f32.mrb[0].mxu0
        %v4391 = vpop.f32.mrb[0].mxu0
        %v4392 = vadd.f32 0.0, %v4391
        %v4393 = vpop.f32.mrb[0].mxu0
        %4394 = vmatprep.mubr.bf16.mxu0 0
        %4395 = vmatmul.mubr.bf16.gmra.mrb[0].mxu0 %v4346
        %v4396 = vpop.f32.mrb[0].mxu0
        %v4397 = vadd.f32 0.0, %v4396
        %v4398 = vpop.f32.mrb[0].mxu0
        %v4399 = vpop.f32.mrb[0].mxu0
        %v4400 = vadd.f32 0.0, %v4399
        %v4401 = vpop.f32.mrb[0].mxu0
        %4402 = vmatprep.mubr.bf16.mxu0 0
        %4403 = vmatmul.mubr.bf16.gmra.mrb[0].mxu0 %v4349
        %v4404 = vpop.f32.mrb[0].mxu0
        %v4405 = vadd.f32 0.0, %v4404
        %v4406 = vpop.f32.mrb[0].mxu0
        %v4407 = vpop.f32.mrb[0].mxu0
        %v4408 = vadd.f32 0.0, %v4407
        %v4409 = vpop.f32.mrb[0].mxu0
        %4410 = vmatprep.mubr.bf16.mxu0 0
        %4411 = vmatmul.mubr.bf16.gmra.mrb[0].mxu0 %v4352
        %v4412 = vpop.f32.mrb[0].mxu0
        %v4413 = vadd.f32 0.0, %v4412
        %v4414 = vpop.f32.mrb[0].mxu0
        %v4415 = vpop.f32.mrb[0].mxu0
        %v4416 = vadd.f32 0.0, %v4415
        %v4417 = vpop.f32.mrb[0].mxu0
        %4418 = vdwg.mxu0
        %v4427 = vunpack.c.l.b16 %v4303
        %v4428 = vunpack.c.l.b16 %v4304
        %v4429 = vunpack.c.l.b16 %v4305
        %v4430 = vunpack.c.l.b16 %v4306
        %v4431 = vunpack.c.l.b16 %v4307
        %v4432 = vunpack.c.l.b16 %v4308
        %v4433 = vunpack.c.l.b16 %v4309
        %v4434 = vunpack.c.l.b16 %v4310
        %v4435 = vpack.c.b16 %v4428, %v4427
        %v4436 = vpack.c.b16 %v4430, %v4429
        %v4437 = vpack.c.b16 %v4432, %v4431
        %v4438 = vpack.c.b16 %v4434, %v4433
        %v4440 = vsel %vm4341, %v4435, 0
        %v4443 = vsel %vm4341, %v4436, 0
        %v4446 = vsel %vm4341, %v4437, 0
        %v4449 = vsel %vm4341, %v4438, 0
        %4451 = vmatprep.subr.bf16.mxu0 0
        %4452 = vmatpush1.bf16.msra.mxu0 %v4302
        %4453 = vmatprep.subr.bf16.mxu0 0
        %4454 = vmatpush1.bf16.msra.mxu0 0
        %4455 = vmatprep.subr.bf16.mxu0 0
        %4456 = vmatpush1.bf16.msra.mxu0 0
        %4457 = vmatprep.subr.bf16.mxu0 0
        %4458 = vmatpush1.bf16.msra.mxu0 0
        %4459 = vmatprep.subr.bf16.mxu0 0
        %4460 = vmatpush1.bf16.msra.mxu0 0
        %4461 = vmatprep.subr.bf16.mxu0 0
        %4462 = vmatpush1.bf16.msra.mxu0 0
        %4463 = vmatprep.subr.bf16.mxu0 0
        %4464 = vmatpush1.bf16.msra.mxu0 0
        %4465 = vmatprep.subr.bf16.mxu0 0
        %4466 = vmatpush1.bf16.msra.mxu0 0
        %4467 = vmatprep.subr.bf16.mxu0 0
        %4468 = vmatpush1.bf16.msra.mxu0 0
        %4469 = vmatprep.subr.bf16.mxu0 0
        %4470 = vmatpush1.bf16.msra.mxu0 0
        %4471 = vmatprep.subr.bf16.mxu0 0
        %4472 = vmatpush1.bf16.msra.mxu0 0
        %4473 = vmatprep.subr.bf16.mxu0 0
        %4474 = vmatpush1.bf16.msra.mxu0 0
        %4475 = vmatprep.subr.bf16.mxu0 0
        %4476 = vmatpush1.bf16.msra.mxu0 0
        %4477 = vmatprep.subr.bf16.mxu0 0
        %4478 = vmatpush1.bf16.msra.mxu0 0
        %4479 = vmatprep.subr.bf16.mxu0 0
        %4480 = vmatpush1.bf16.msra.mxu0 0
        %4481 = vmatprep.subr.bf16.mxu0 0
        %4482 = vmatpush1.bf16.msra.mxu0 0
        %4483 = vmatprep.mubr.bf16.mxu0 0
        %4484 = vmatmul.mubr.bf16.gmra.mrb[0].mxu0 %v4440
        %v4485 = vpop.f32.mrb[0].mxu0
        %v4486 = vadd.f32 %v4389, %v4485
        %v4487 = vpop.f32.mrb[0].mxu0
        %v4488 = vpop.f32.mrb[0].mxu0
        %v4489 = vadd.f32 %v4392, %v4488
        %v4490 = vpop.f32.mrb[0].mxu0
        %4491 = vmatprep.mubr.bf16.mxu0 0
        %4492 = vmatmul.mubr.bf16.gmra.mrb[0].mxu0 %v4443
        %v4493 = vpop.f32.mrb[0].mxu0
        %v4494 = vadd.f32 %v4397, %v4493
        %v4495 = vpop.f32.mrb[0].mxu0
        %v4496 = vpop.f32.mrb[0].mxu0
        %v4497 = vadd.f32 %v4400, %v4496
        %v4498 = vpop.f32.mrb[0].mxu0
        %4499 = vmatprep.mubr.bf16.mxu0 0
        %4500 = vmatmul.mubr.bf16.gmra.mrb[0].mxu0 %v4446
        %v4501 = vpop.f32.mrb[0].mxu0
        %v4502 = vadd.f32 %v4405, %v4501
        %v4503 = vpop.f32.mrb[0].mxu0
        %v4504 = vpop.f32.mrb[0].mxu0
        %v4505 = vadd.f32 %v4408, %v4504
        %v4506 = vpop.f32.mrb[0].mxu0
        %4507 = vmatprep.mubr.bf16.mxu0 0
        %4508 = vmatmul.mubr.bf16.gmra.mrb[0].mxu0 %v4449
        %v4509 = vpop.f32.mrb[0].mxu0
        %v4510 = vadd.f32 %v4413, %v4509
        %v4511 = vpop.f32.mrb[0].mxu0
        %v4512 = vpop.f32.mrb[0].mxu0
        %v4513 = vadd.f32 %v4416, %v4512
        %v4514 = vpop.f32.mrb[0].mxu0
        %4515 = vdwg.mxu0
        %v4516 = vpack.c.bf16 %v4298, %v4294
        %s4517 = scalar_lea.vmem %s8, 64
        %v4518 = vld [vmem:[%s4517] sm:$0xf]
        %v4519 = vld [vmem:[%s4517 + $0x4] sm:$0xf]
        %v4520 = vld [vmem:[%s4517 + $0x8] sm:$0xf]
        %v4521 = vld [vmem:[%s4517 + $0xc] sm:$0xf]
        %v4522 = vld [vmem:[%s4517 + $0x10] sm:$0xf]
        %v4523 = vld [vmem:[%s4517 + $0x14] sm:$0xf]
        %v4524 = vld [vmem:[%s4517 + $0x18] sm:$0xf]
        %v4525 = vld [vmem:[%s4517 + $0x1c] sm:$0xf]
        %v4534 = vunpack.c.l.b16 %v4518
        %v4535 = vunpack.c.l.b16 %v4519
        %v4536 = vunpack.c.l.b16 %v4520
        %v4537 = vunpack.c.l.b16 %v4521
        %v4538 = vunpack.c.l.b16 %v4522
        %v4539 = vunpack.c.l.b16 %v4523
        %v4540 = vunpack.c.l.b16 %v4524
        %v4541 = vunpack.c.l.b16 %v4525
        %v4542 = vpack.c.b16 %v4535, %v4534
        %v4543 = vpack.c.b16 %v4537, %v4536
        %v4544 = vpack.c.b16 %v4539, %v4538
        %v4545 = vpack.c.b16 %v4541, %v4540
        %v4547 = vsel %vm4341, %v4542, 0
        %v4550 = vsel %vm4341, %v4543, 0
        %v4553 = vsel %vm4341, %v4544, 0
        %v4556 = vsel %vm4341, %v4545, 0
        %4558 = vmatprep.subr.bf16.mxu0 0
        %4559 = vmatpush1.bf16.msra.mxu0 %v4516
        %4560 = vmatprep.subr.bf16.mxu0 0
        %4561 = vmatpush1.bf16.msra.mxu0 0
        %4562 = vmatprep.subr.bf16.mxu0 0
        %4563 = vmatpush1.bf16.msra.mxu0 0
        %4564 = vmatprep.subr.bf16.mxu0 0
        %4565 = vmatpush1.bf16.msra.mxu0 0
        %4566 = vmatprep.subr.bf16.mxu0 0
        %4567 = vmatpush1.bf16.msra.mxu0 0
        %4568 = vmatprep.subr.bf16.mxu0 0
        %4569 = vmatpush1.bf16.msra.mxu0 0
        %4570 = vmatprep.subr.bf16.mxu0 0
        %4571 = vmatpush1.bf16.msra.mxu0 0
        %4572 = vmatprep.subr.bf16.mxu0 0
        %4573 = vmatpush1.bf16.msra.mxu0 0
        %4574 = vmatprep.subr.bf16.mxu0 0
        %4575 = vmatpush1.bf16.msra.mxu0 0
        %4576 = vmatprep.subr.bf16.mxu0 0
        %4577 = vmatpush1.bf16.msra.mxu0 0
        %4578 = vmatprep.subr.bf16.mxu0 0
        %4579 = vmatpush1.bf16.msra.mxu0 0
        %4580 = vmatprep.subr.bf16.mxu0 0
        %4581 = vmatpush1.bf16.msra.mxu0 0
        %4582 = vmatprep.subr.bf16.mxu0 0
        %4583 = vmatpush1.bf16.msra.mxu0 0
        %4584 = vmatprep.subr.bf16.mxu0 0
        %4585 = vmatpush1.bf16.msra.mxu0 0
        %4586 = vmatprep.subr.bf16.mxu0 0
        %4587 = vmatpush1.bf16.msra.mxu0 0
        %4588 = vmatprep.subr.bf16.mxu0 0
        %4589 = vmatpush1.bf16.msra.mxu0 0
        %4590 = vmatprep.mubr.bf16.mxu0 0
        %4591 = vmatmul.mubr.bf16.gmra.mrb[0].mxu0 %v4547
        %v4592 = vpop.f32.mrb[0].mxu0
        %v4593 = vadd.f32 0.0, %v4592
        %v4594 = vpop.f32.mrb[0].mxu0
        %v4595 = vpop.f32.mrb[0].mxu0
        %v4596 = vadd.f32 0.0, %v4595
        %v4597 = vpop.f32.mrb[0].mxu0
        %4598 = vmatprep.mubr.bf16.mxu0 0
        %4599 = vmatmul.mubr.bf16.gmra.mrb[0].mxu0 %v4550
        %v4600 = vpop.f32.mrb[0].mxu0
        %v4601 = vadd.f32 0.0, %v4600
        %v4602 = vpop.f32.mrb[0].mxu0
        %v4603 = vpop.f32.mrb[0].mxu0
        %v4604 = vadd.f32 0.0, %v4603
        %v4605 = vpop.f32.mrb[0].mxu0
        %4606 = vmatprep.mubr.bf16.mxu0 0
        %4607 = vmatmul.mubr.bf16.gmra.mrb[0].mxu0 %v4553
        %v4608 = vpop.f32.mrb[0].mxu0
        %v4609 = vadd.f32 0.0, %v4608
        %v4610 = vpop.f32.mrb[0].mxu0
        %v4611 = vpop.f32.mrb[0].mxu0
        %v4612 = vadd.f32 0.0, %v4611
        %v4613 = vpop.f32.mrb[0].mxu0
        %4614 = vmatprep.mubr.bf16.mxu0 0
        %4615 = vmatmul.mubr.bf16.gmra.mrb[0].mxu0 %v4556
        %v4616 = vpop.f32.mrb[0].mxu0
        %v4617 = vadd.f32 0.0, %v4616
        %v4618 = vpop.f32.mrb[0].mxu0
        %v4619 = vpop.f32.mrb[0].mxu0
        %v4620 = vadd.f32 0.0, %v4619
        %v4621 = vpop.f32.mrb[0].mxu0
        %4622 = vdwg.mxu0
        %v4623 = vadd.f32 %v4486, %v4593
        %v4624 = vadd.f32 %v4489, %v4596
        %v4625 = vadd.f32 %v4494, %v4601
        %v4626 = vadd.f32 %v4497, %v4604
        %v4627 = vadd.f32 %v4502, %v4609
        %v4628 = vadd.f32 %v4505, %v4612
        %v4629 = vadd.f32 %v4510, %v4617
        %v4630 = vadd.f32 %v4513, %v4620
        %v4631 = vpack.c.bf16 %v4300, %v4296
        %s4632 = scalar_lea.vmem %s8, 96
        %v4633 = vld [vmem:[%s4632] sm:$0xf]
        %v4634 = vld [vmem:[%s4632 + $0x4] sm:$0xf]
        %v4635 = vld [vmem:[%s4632 + $0x8] sm:$0xf]
        %v4636 = vld [vmem:[%s4632 + $0xc] sm:$0xf]
        %v4637 = vld [vmem:[%s4632 + $0x10] sm:$0xf]
        %v4638 = vld [vmem:[%s4632 + $0x14] sm:$0xf]
        %v4639 = vld [vmem:[%s4632 + $0x18] sm:$0xf]
        %v4640 = vld [vmem:[%s4632 + $0x1c] sm:$0xf]
        %v4649 = vunpack.c.l.b16 %v4633
        %v4650 = vunpack.c.l.b16 %v4634
        %v4651 = vunpack.c.l.b16 %v4635
        %v4652 = vunpack.c.l.b16 %v4636
        %v4653 = vunpack.c.l.b16 %v4637
        %v4654 = vunpack.c.l.b16 %v4638
        %v4655 = vunpack.c.l.b16 %v4639
        %v4656 = vunpack.c.l.b16 %v4640
        %v4657 = vpack.c.b16 %v4650, %v4649
        %v4658 = vpack.c.b16 %v4652, %v4651
        %v4659 = vpack.c.b16 %v4654, %v4653
        %v4660 = vpack.c.b16 %v4656, %v4655
        %v4662 = vsel %vm4341, %v4657, 0
        %v4665 = vsel %vm4341, %v4658, 0
        %v4668 = vsel %vm4341, %v4659, 0
        %v4671 = vsel %vm4341, %v4660, 0
        %4673 = vmatprep.subr.bf16.mxu0 0
        %4674 = vmatpush1.bf16.msra.mxu0 %v4631
        %4675 = vmatprep.subr.bf16.mxu0 0
        %4676 = vmatpush1.bf16.msra.mxu0 0
        %4677 = vmatprep.subr.bf16.mxu0 0
        %4678 = vmatpush1.bf16.msra.mxu0 0
        %4679 = vmatprep.subr.bf16.mxu0 0
        %4680 = vmatpush1.bf16.msra.mxu0 0
        %4681 = vmatprep.subr.bf16.mxu0 0
        %4682 = vmatpush1.bf16.msra.mxu0 0
        %4683 = vmatprep.subr.bf16.mxu0 0
        %4684 = vmatpush1.bf16.msra.mxu0 0
        %4685 = vmatprep.subr.bf16.mxu0 0
        %4686 = vmatpush1.bf16.msra.mxu0 0
        %4687 = vmatprep.subr.bf16.mxu0 0
        %4688 = vmatpush1.bf16.msra.mxu0 0
        %4689 = vmatprep.subr.bf16.mxu0 0
        %4690 = vmatpush1.bf16.msra.mxu0 0
        %4691 = vmatprep.subr.bf16.mxu0 0
        %4692 = vmatpush1.bf16.msra.mxu0 0
        %4693 = vmatprep.subr.bf16.mxu0 0
        %4694 = vmatpush1.bf16.msra.mxu0 0
        %4695 = vmatprep.subr.bf16.mxu0 0
        %4696 = vmatpush1.bf16.msra.mxu0 0
        %4697 = vmatprep.subr.bf16.mxu0 0
        %4698 = vmatpush1.bf16.msra.mxu0 0
        %4699 = vmatprep.subr.bf16.mxu0 0
        %4700 = vmatpush1.bf16.msra.mxu0 0
        %4701 = vmatprep.subr.bf16.mxu0 0
        %4702 = vmatpush1.bf16.msra.mxu0 0
        %4703 = vmatprep.subr.bf16.mxu0 0
        %4704 = vmatpush1.bf16.msra.mxu0 0
        %4705 = vmatprep.mubr.bf16.mxu0 0
        %4706 = vmatmul.mubr.bf16.gmra.mrb[0].mxu0 %v4662
        %v4707 = vpop.f32.mrb[0].mxu0
        %v4708 = vadd.f32 0.0, %v4707
        %v4709 = vpop.f32.mrb[0].mxu0
        %v4710 = vpop.f32.mrb[0].mxu0
        %v4711 = vadd.f32 0.0, %v4710
        %v4712 = vpop.f32.mrb[0].mxu0
        %4713 = vmatprep.mubr.bf16.mxu0 0
        %4714 = vmatmul.mubr.bf16.gmra.mrb[0].mxu0 %v4665
        %v4715 = vpop.f32.mrb[0].mxu0
        %v4716 = vadd.f32 0.0, %v4715
        %v4717 = vpop.f32.mrb[0].mxu0
        %v4718 = vpop.f32.mrb[0].mxu0
        %v4719 = vadd.f32 0.0, %v4718
        %v4720 = vpop.f32.mrb[0].mxu0
        %4721 = vmatprep.mubr.bf16.mxu0 0
        %4722 = vmatmul.mubr.bf16.gmra.mrb[0].mxu0 %v4668
        %v4723 = vpop.f32.mrb[0].mxu0
        %v4724 = vadd.f32 0.0, %v4723
        %v4725 = vpop.f32.mrb[0].mxu0
        %v4726 = vpop.f32.mrb[0].mxu0
        %v4727 = vadd.f32 0.0, %v4726
        %v4728 = vpop.f32.mrb[0].mxu0
        %4729 = vmatprep.mubr.bf16.mxu0 0
        %4730 = vmatmul.mubr.bf16.gmra.mrb[0].mxu0 %v4671
        %v4731 = vpop.f32.mrb[0].mxu0
        %v4732 = vadd.f32 0.0, %v4731
        %v4733 = vpop.f32.mrb[0].mxu0
        %v4734 = vpop.f32.mrb[0].mxu0
        %v4735 = vadd.f32 0.0, %v4734
        %v4736 = vpop.f32.mrb[0].mxu0
        %4737 = vdwg.mxu0
        %v4738 = vadd.f32 %v4623, %v4708
        %v4739 = vadd.f32 %v4624, %v4711
        %v4740 = vadd.f32 %v4625, %v4716
        %v4741 = vadd.f32 %v4626, %v4719
        %v4742 = vadd.f32 %v4627, %v4724
        %v4743 = vadd.f32 %v4628, %v4727
        %v4744 = vadd.f32 %v4629, %v4732
        %v4745 = vadd.f32 %v4630, %v4735
        %v4746 = vlaneseq
        %v4747 = vshrl.u32 %v4746, 7
        %v4748 = vsub.s32 0, %v4747
        %v4749 = vrot.slane %v4022, %v4748
        %v4750 = vadd.f32 %v4738, %v4749
        %v4751 = vadd.f32 %v4739, %v4749
        %v4752 = vadd.f32 %v4740, %v4749
        %v4753 = vadd.f32 %v4741, %v4749
        %v4754 = vadd.f32 %v4742, %v4749
        %v4755 = vadd.f32 %v4743, %v4749
        %v4756 = vadd.f32 %v4744, %v4749
        %v4757 = vadd.f32 %v4745, %v4749
        %v4758 = vmax.f32 %v4750, 0.0
        %v4759 = vmax.f32 %v4751, 0.0
        %v4760 = vmax.f32 %v4752, 0.0
        %v4761 = vmax.f32 %v4753, 0.0
        %v4762 = vmax.f32 %v4754, 0.0
        %v4763 = vmax.f32 %v4755, 0.0
        %v4764 = vmax.f32 %v4756, 0.0
        %v4765 = vmax.f32 %v4757, 0.0
        %v4766 = vld [vmem:[%s13 + $0x5] sm:$0x1]
        %v4767 = vpack.c.bf16 %v4759, %v4758
        %v4768 = vpack.c.bf16 %v4761, %v4760
        %v4769 = vpack.c.bf16 %v4763, %v4762
        %v4770 = vpack.c.bf16 %v4765, %v4764
        %v4771 = vld [vmem:[#allocation7] sm:$0xff]
        %v4772 = vld [vmem:[#allocation7 + $0x8] sm:$0xff]
        %v4773 = vld [vmem:[#allocation7 + $0x10] sm:$0xff]
        %v4774 = vld [vmem:[#allocation7 + $0x18] sm:$0xff]
        %v4775 = vld [vmem:[#allocation7 + $0x20] sm:$0xf]
        %v4776 = vld [vmem:[#allocation7 + $0x24] sm:$0xff]
        %v4777 = vld [vmem:[#allocation7 + $0x2c] sm:$0xff]
        %v4778 = vld [vmem:[#allocation7 + $0x34] sm:$0xff]
        %v4779 = vld [vmem:[#allocation7 + $0x3c] sm:$0xff]
        %v4780 = vld [vmem:[#allocation7 + $0x44] sm:$0xf]
        %v4781 = vld [vmem:[#allocation7 + $0x48] sm:$0xff]
        %v4782 = vld [vmem:[#allocation7 + $0x50] sm:$0xff]
        %v4783 = vld [vmem:[#allocation7 + $0x58] sm:$0xff]
        %v4784 = vld [vmem:[#allocation7 + $0x60] sm:$0xff]
        %v4785 = vld [vmem:[#allocation7 + $0x68] sm:$0xf]
        %v4786 = vld [vmem:[#allocation7 + $0x6c] sm:$0xff]
        %v4787 = vld [vmem:[#allocation7 + $0x74] sm:$0xff]
        %v4788 = vld [vmem:[#allocation7 + $0x7c] sm:$0xff]
        %v4789 = vld [vmem:[#allocation7 + $0x84] sm:$0xff]
        %v4790 = vld [vmem:[#allocation7 + $0x8c] sm:$0xf]
        %v4791 = vld [vmem:[#allocation7 + $0x90] sm:$0xff]
        %v4792 = vld [vmem:[#allocation7 + $0x98] sm:$0xff]
        %v4793 = vld [vmem:[#allocation7 + $0xa0] sm:$0xff]
        %v4794 = vld [vmem:[#allocation7 + $0xa8] sm:$0xff]
        %v4795 = vld [vmem:[#allocation7 + $0xb0] sm:$0xf]
        %v4796 = vld [vmem:[#allocation7 + $0xb4] sm:$0xff]
        %v4797 = vld [vmem:[#allocation7 + $0xbc] sm:$0xff]
        %v4798 = vld [vmem:[#allocation7 + $0xc4] sm:$0xff]
        %v4799 = vld [vmem:[#allocation7 + $0xcc] sm:$0xff]
        %v4800 = vld [vmem:[#allocation7 + $0xd4] sm:$0xf]
        %v4801 = vld [vmem:[#allocation7 + $0xd8] sm:$0xff]
        %v4802 = vld [vmem:[#allocation7 + $0xe0] sm:$0xff]
        %v4803 = vld [vmem:[#allocation7 + $0xe8] sm:$0xff]
        %v4804 = vld [vmem:[#allocation7 + $0xf0] sm:$0xff]
        %v4805 = vld [vmem:[#allocation7 + $0xf8] sm:$0xf]
        %v4806 = vld [vmem:[#allocation7 + $0xfc] sm:$0xff]
        %v4807 = vld [vmem:[#allocation7 + $0x104] sm:$0xff]
        %v4808 = vld [vmem:[#allocation7 + $0x10c] sm:$0xff]
        %v4809 = vld [vmem:[#allocation7 + $0x114] sm:$0xff]
        %v4810 = vld [vmem:[#allocation7 + $0x11c] sm:$0xf]
        %v4811 = vld [vmem:[#allocation7 + $0x120] sm:$0xff]
        %v4812 = vld [vmem:[#allocation7 + $0x128] sm:$0xff]
        %v4813 = vld [vmem:[#allocation7 + $0x130] sm:$0xff]
        %v4814 = vld [vmem:[#allocation7 + $0x138] sm:$0xff]
        %v4815 = vld [vmem:[#allocation7 + $0x140] sm:$0xf]
        %v4816 = vld [vmem:[#allocation7 + $0x144] sm:$0xff]
        %v4817 = vld [vmem:[#allocation7 + $0x14c] sm:$0xff]
        %v4818 = vld [vmem:[#allocation7 + $0x154] sm:$0xff]
        %v4819 = vld [vmem:[#allocation7 + $0x15c] sm:$0xff]
        %v4820 = vld [vmem:[#allocation7 + $0x164] sm:$0xf]
        %v4821 = vld [vmem:[#allocation7 + $0x168] sm:$0xff]
        %v4822 = vld [vmem:[#allocation7 + $0x170] sm:$0xff]
        %v4823 = vld [vmem:[#allocation7 + $0x178] sm:$0xff]
        %v4824 = vld [vmem:[#allocation7 + $0x180] sm:$0xff]
        %v4825 = vld [vmem:[#allocation7 + $0x188] sm:$0xf]
        %v4826 = vld [vmem:[#allocation7 + $0x18c] sm:$0xff]
        %v4827 = vld [vmem:[#allocation7 + $0x194] sm:$0xff]
        %v4828 = vld [vmem:[#allocation7 + $0x19c] sm:$0xff]
        %v4829 = vld [vmem:[#allocation7 + $0x1a4] sm:$0xff]
        %v4830 = vld [vmem:[#allocation7 + $0x1ac] sm:$0xf]
        %v4831 = vld [vmem:[#allocation7 + $0x1b0] sm:$0xff]
        %v4832 = vld [vmem:[#allocation7 + $0x1b8] sm:$0xff]
        %v4833 = vld [vmem:[#allocation7 + $0x1c0] sm:$0xff]
        %v4834 = vld [vmem:[#allocation7 + $0x1c8] sm:$0xff]
        %v4835 = vld [vmem:[#allocation7 + $0x1d0] sm:$0xf]
        %v4836 = vld [vmem:[#allocation7 + $0x1d4] sm:$0xff]
        %v4837 = vld [vmem:[#allocation7 + $0x1dc] sm:$0xff]
        %v4838 = vld [vmem:[#allocation7 + $0x1e4] sm:$0xff]
        %v4839 = vld [vmem:[#allocation7 + $0x1ec] sm:$0xff]
        %v4840 = vld [vmem:[#allocation7 + $0x1f4] sm:$0xf]
        %v4841 = vld [vmem:[#allocation7 + $0x1f8] sm:$0xff]
        %v4842 = vld [vmem:[#allocation7 + $0x200] sm:$0xff]
        %v4843 = vld [vmem:[#allocation7 + $0x208] sm:$0xff]
        %v4844 = vld [vmem:[#allocation7 + $0x210] sm:$0xff]
        %v4845 = vld [vmem:[#allocation7 + $0x218] sm:$0xf]
        %v4846 = vld [vmem:[#allocation7 + $0x21c] sm:$0xff]
        %v4847 = vld [vmem:[#allocation7 + $0x224] sm:$0xff]
        %v4848 = vld [vmem:[#allocation7 + $0x22c] sm:$0xff]
        %v4849 = vld [vmem:[#allocation7 + $0x234] sm:$0xff]
        %v4850 = vld [vmem:[#allocation7 + $0x23c] sm:$0xf]
        %v4931 = vunpack.c.l.b16 %v4771
        %v4932 = vunpack.c.h.b16 %v4771
        %v4933 = vunpack.c.l.b16 %v4772
        %v4934 = vunpack.c.h.b16 %v4772
        %v4935 = vunpack.c.l.b16 %v4773
        %v4936 = vunpack.c.h.b16 %v4773
        %v4937 = vunpack.c.l.b16 %v4774
        %v4938 = vunpack.c.h.b16 %v4774
        %v4939 = vunpack.c.l.b16 %v4775
        %v4940 = vunpack.c.l.b16 %v4776
        %v4941 = vunpack.c.h.b16 %v4776
        %v4942 = vunpack.c.l.b16 %v4777
        %v4943 = vunpack.c.h.b16 %v4777
        %v4944 = vunpack.c.l.b16 %v4778
        %v4945 = vunpack.c.h.b16 %v4778
        %v4946 = vunpack.c.l.b16 %v4779
        %v4947 = vunpack.c.h.b16 %v4779
        %v4948 = vunpack.c.l.b16 %v4780
        %v4949 = vunpack.c.l.b16 %v4781
        %v4950 = vunpack.c.h.b16 %v4781
        %v4951 = vunpack.c.l.b16 %v4782
        %v4952 = vunpack.c.h.b16 %v4782
        %v4953 = vunpack.c.l.b16 %v4783
        %v4954 = vunpack.c.h.b16 %v4783
        %v4955 = vunpack.c.l.b16 %v4784
        %v4956 = vunpack.c.h.b16 %v4784
        %v4957 = vunpack.c.l.b16 %v4785
        %v4958 = vunpack.c.l.b16 %v4786
        %v4959 = vunpack.c.h.b16 %v4786
        %v4960 = vunpack.c.l.b16 %v4787
        %v4961 = vunpack.c.h.b16 %v4787
        %v4962 = vunpack.c.l.b16 %v4788
        %v4963 = vunpack.c.h.b16 %v4788
        %v4964 = vunpack.c.l.b16 %v4789
        %v4965 = vunpack.c.h.b16 %v4789
        %v4966 = vunpack.c.l.b16 %v4790
        %v4967 = vunpack.c.l.b16 %v4791
        %v4968 = vunpack.c.h.b16 %v4791
        %v4969 = vunpack.c.l.b16 %v4792
        %v4970 = vunpack.c.h.b16 %v4792
        %v4971 = vunpack.c.l.b16 %v4793
        %v4972 = vunpack.c.h.b16 %v4793
        %v4973 = vunpack.c.l.b16 %v4794
        %v4974 = vunpack.c.h.b16 %v4794
        %v4975 = vunpack.c.l.b16 %v4795
        %v4976 = vunpack.c.l.b16 %v4796
        %v4977 = vunpack.c.h.b16 %v4796
        %v4978 = vunpack.c.l.b16 %v4797
        %v4979 = vunpack.c.h.b16 %v4797
        %v4980 = vunpack.c.l.b16 %v4798
        %v4981 = vunpack.c.h.b16 %v4798
        %v4982 = vunpack.c.l.b16 %v4799
        %v4983 = vunpack.c.h.b16 %v4799
        %v4984 = vunpack.c.l.b16 %v4800
        %v4985 = vunpack.c.l.b16 %v4801
        %v4986 = vunpack.c.h.b16 %v4801
        %v4987 = vunpack.c.l.b16 %v4802
        %v4988 = vunpack.c.h.b16 %v4802
        %v4989 = vunpack.c.l.b16 %v4803
        %v4990 = vunpack.c.h.b16 %v4803
        %v4991 = vunpack.c.l.b16 %v4804
        %v4992 = vunpack.c.h.b16 %v4804
        %v4993 = vunpack.c.l.b16 %v4805
        %v4994 = vunpack.c.l.b16 %v4806
        %v4995 = vunpack.c.h.b16 %v4806
        %v4996 = vunpack.c.l.b16 %v4807
        %v4997 = vunpack.c.h.b16 %v4807
        %v4998 = vunpack.c.l.b16 %v4808
        %v4999 = vunpack.c.h.b16 %v4808
        %v5000 = vunpack.c.l.b16 %v4809
        %v5001 = vunpack.c.h.b16 %v4809
        %v5002 = vunpack.c.l.b16 %v4810
        %v5003 = vunpack.c.l.b16 %v4811
        %v5004 = vunpack.c.h.b16 %v4811
        %v5005 = vunpack.c.l.b16 %v4812
        %v5006 = vunpack.c.h.b16 %v4812
        %v5007 = vunpack.c.l.b16 %v4813
        %v5008 = vunpack.c.h.b16 %v4813
        %v5009 = vunpack.c.l.b16 %v4814
        %v5010 = vunpack.c.h.b16 %v4814
        %v5011 = vunpack.c.l.b16 %v4815
        %v5012 = vunpack.c.l.b16 %v4816
        %v5013 = vunpack.c.h.b16 %v4816
        %v5014 = vunpack.c.l.b16 %v4817
        %v5015 = vunpack.c.h.b16 %v4817
        %v5016 = vunpack.c.l.b16 %v4818
        %v5017 = vunpack.c.h.b16 %v4818
        %v5018 = vunpack.c.l.b16 %v4819
        %v5019 = vunpack.c.h.b16 %v4819
        %v5020 = vunpack.c.l.b16 %v4820
        %v5021 = vunpack.c.l.b16 %v4821
        %v5022 = vunpack.c.h.b16 %v4821
        %v5023 = vunpack.c.l.b16 %v4822
        %v5024 = vunpack.c.h.b16 %v4822
        %v5025 = vunpack.c.l.b16 %v4823
        %v5026 = vunpack.c.h.b16 %v4823
        %v5027 = vunpack.c.l.b16 %v4824
        %v5028 = vunpack.c.h.b16 %v4824
        %v5029 = vunpack.c.l.b16 %v4825
        %v5030 = vunpack.c.l.b16 %v4826
        %v5031 = vunpack.c.h.b16 %v4826
        %v5032 = vunpack.c.l.b16 %v4827
        %v5033 = vunpack.c.h.b16 %v4827
        %v5034 = vunpack.c.l.b16 %v4828
        %v5035 = vunpack.c.h.b16 %v4828
        %v5036 = vunpack.c.l.b16 %v4829
        %v5037 = vunpack.c.h.b16 %v4829
        %v5038 = vunpack.c.l.b16 %v4830
        %v5039 = vunpack.c.l.b16 %v4831
        %v5040 = vunpack.c.h.b16 %v4831
        %v5041 = vunpack.c.l.b16 %v4832
        %v5042 = vunpack.c.h.b16 %v4832
        %v5043 = vunpack.c.l.b16 %v4833
        %v5044 = vunpack.c.h.b16 %v4833
        %v5045 = vunpack.c.l.b16 %v4834
        %v5046 = vunpack.c.h.b16 %v4834
        %v5047 = vunpack.c.l.b16 %v4835
        %v5048 = vunpack.c.l.b16 %v4836
        %v5049 = vunpack.c.h.b16 %v4836
        %v5050 = vunpack.c.l.b16 %v4837
        %v5051 = vunpack.c.h.b16 %v4837
        %v5052 = vunpack.c.l.b16 %v4838
        %v5053 = vunpack.c.h.b16 %v4838
        %v5054 = vunpack.c.l.b16 %v4839
        %v5055 = vunpack.c.h.b16 %v4839
        %v5056 = vunpack.c.l.b16 %v4840
        %v5057 = vunpack.c.l.b16 %v4841
        %v5058 = vunpack.c.h.b16 %v4841
        %v5059 = vunpack.c.l.b16 %v4842
        %v5060 = vunpack.c.h.b16 %v4842
        %v5061 = vunpack.c.l.b16 %v4843
        %v5062 = vunpack.c.h.b16 %v4843
        %v5063 = vunpack.c.l.b16 %v4844
        %v5064 = vunpack.c.h.b16 %v4844
        %v5065 = vunpack.c.l.b16 %v4845
        %v5066 = vunpack.c.l.b16 %v4846
        %v5067 = vunpack.c.h.b16 %v4846
        %v5068 = vunpack.c.l.b16 %v4847
        %v5069 = vunpack.c.h.b16 %v4847
        %v5070 = vunpack.c.l.b16 %v4848
        %v5071 = vunpack.c.h.b16 %v4848
        %v5072 = vunpack.c.l.b16 %v4849
        %v5073 = vunpack.c.h.b16 %v4849
        %v5074 = vunpack.c.l.b16 %v4850
        %v5075 = vpack.c.b16 %v4940, %v4931
        %v5076 = vpack.c.b16 %v4941, %v4932
        %v5077 = vpack.c.b16 %v4942, %v4933
        %v5078 = vpack.c.b16 %v4943, %v4934
        %v5079 = vpack.c.b16 %v4944, %v4935
        %v5080 = vpack.c.b16 %v4945, %v4936
        %v5081 = vpack.c.b16 %v4946, %v4937
        %v5082 = vpack.c.b16 %v4947, %v4938
        %v5083 = vpack.c.b16 %v4948, %v4939
        %v5084 = vpack.c.b16 %v4958, %v4949
        %v5085 = vpack.c.b16 %v4959, %v4950
        %v5086 = vpack.c.b16 %v4960, %v4951
        %v5087 = vpack.c.b16 %v4961, %v4952
        %v5088 = vpack.c.b16 %v4962, %v4953
        %v5089 = vpack.c.b16 %v4963, %v4954
        %v5090 = vpack.c.b16 %v4964, %v4955
        %v5091 = vpack.c.b16 %v4965, %v4956
        %v5092 = vpack.c.b16 %v4966, %v4957
        %v5093 = vpack.c.b16 %v4976, %v4967
        %v5094 = vpack.c.b16 %v4977, %v4968
        %v5095 = vpack.c.b16 %v4978, %v4969
        %v5096 = vpack.c.b16 %v4979, %v4970
        %v5097 = vpack.c.b16 %v4980, %v4971
        %v5098 = vpack.c.b16 %v4981, %v4972
        %v5099 = vpack.c.b16 %v4982, %v4973
        %v5100 = vpack.c.b16 %v4983, %v4974
        %v5101 = vpack.c.b16 %v4984, %v4975
        %v5102 = vpack.c.b16 %v4994, %v4985
        %v5103 = vpack.c.b16 %v4995, %v4986
        %v5104 = vpack.c.b16 %v4996, %v4987
        %v5105 = vpack.c.b16 %v4997, %v4988
        %v5106 = vpack.c.b16 %v4998, %v4989
        %v5107 = vpack.c.b16 %v4999, %v4990
        %v5108 = vpack.c.b16 %v5000, %v4991
        %v5109 = vpack.c.b16 %v5001, %v4992
        %v5110 = vpack.c.b16 %v5002, %v4993
        %v5111 = vpack.c.b16 %v5012, %v5003
        %v5112 = vpack.c.b16 %v5013, %v5004
        %v5113 = vpack.c.b16 %v5014, %v5005
        %v5114 = vpack.c.b16 %v5015, %v5006
        %v5115 = vpack.c.b16 %v5016, %v5007
        %v5116 = vpack.c.b16 %v5017, %v5008
        %v5117 = vpack.c.b16 %v5018, %v5009
        %v5118 = vpack.c.b16 %v5019, %v5010
        %v5119 = vpack.c.b16 %v5020, %v5011
        %v5120 = vpack.c.b16 %v5030, %v5021
        %v5121 = vpack.c.b16 %v5031, %v5022
        %v5122 = vpack.c.b16 %v5032, %v5023
        %v5123 = vpack.c.b16 %v5033, %v5024
        %v5124 = vpack.c.b16 %v5034, %v5025
        %v5125 = vpack.c.b16 %v5035, %v5026
        %v5126 = vpack.c.b16 %v5036, %v5027
        %v5127 = vpack.c.b16 %v5037, %v5028
        %v5128 = vpack.c.b16 %v5038, %v5029
        %v5129 = vpack.c.b16 %v5048, %v5039
        %v5130 = vpack.c.b16 %v5049, %v5040
        %v5131 = vpack.c.b16 %v5050, %v5041
        %v5132 = vpack.c.b16 %v5051, %v5042
        %v5133 = vpack.c.b16 %v5052, %v5043
        %v5134 = vpack.c.b16 %v5053, %v5044
        %v5135 = vpack.c.b16 %v5054, %v5045
        %v5136 = vpack.c.b16 %v5055, %v5046
        %v5137 = vpack.c.b16 %v5056, %v5047
        %v5138 = vpack.c.b16 %v5066, %v5057
        %v5139 = vpack.c.b16 %v5067, %v5058
        %v5140 = vpack.c.b16 %v5068, %v5059
        %v5141 = vpack.c.b16 %v5069, %v5060
        %v5142 = vpack.c.b16 %v5070, %v5061
        %v5143 = vpack.c.b16 %v5071, %v5062
        %v5144 = vpack.c.b16 %v5072, %v5063
        %v5145 = vpack.c.b16 %v5073, %v5064
        %v5146 = vpack.c.b16 %v5074, %v5065
        %5219 = vmatprep.subr.bf16.mxu0 %v5076
        %5220 = vmatpush1.bf16.msra.mxu0 %v5075
        %5221 = vmatprep.subr.bf16.mxu0 %v5085
        %5222 = vmatpush1.bf16.msra.mxu0 %v5084
        %5223 = vmatprep.subr.bf16.mxu0 %v5094
        %5224 = vmatpush1.bf16.msra.mxu0 %v5093
        %5225 = vmatprep.subr.bf16.mxu0 %v5103
        %5226 = vmatpush1.bf16.msra.mxu0 %v5102
        %5227 = vmatprep.subr.bf16.mxu0 %v5112
        %5228 = vmatpush1.bf16.msra.mxu0 %v5111
        %5229 = vmatprep.subr.bf16.mxu0 %v5121
        %5230 = vmatpush1.bf16.msra.mxu0 %v5120
        %5231 = vmatprep.subr.bf16.mxu0 %v5130
        %5232 = vmatpush1.bf16.msra.mxu0 %v5129
        %5233 = vmatprep.subr.bf16.mxu0 %v5139
        %5234 = vmatpush1.bf16.msra.mxu0 %v5138
        %5235 = vmatprep.subr.bf16.mxu0 0
        %5236 = vmatpush1.bf16.msra.mxu0 0
        %5237 = vmatprep.subr.bf16.mxu0 0
        %5238 = vmatpush1.bf16.msra.mxu0 0
        %5239 = vmatprep.subr.bf16.mxu0 0
        %5240 = vmatpush1.bf16.msra.mxu0 0
        %5241 = vmatprep.subr.bf16.mxu0 0
        %5242 = vmatpush1.bf16.msra.mxu0 0
        %5243 = vmatprep.subr.bf16.mxu0 0
        %5244 = vmatpush1.bf16.msra.mxu0 0
        %5245 = vmatprep.subr.bf16.mxu0 0
        %5246 = vmatpush1.bf16.msra.mxu0 0
        %5247 = vmatprep.subr.bf16.mxu0 0
        %5248 = vmatpush1.bf16.msra.mxu0 0
        %5249 = vmatprep.subr.bf16.mxu0 0
        %5250 = vmatpush1.bf16.msra.mxu0 0
        %5251 = vmatprep.mubr.bf16.mxu0 0
        %5252 = vmatmul.mubr.bf16.gmra.mrb[0].mxu0 %v4767
        %v5253 = vpop.f32.mrb[0].mxu0
        %v5254 = vadd.f32 0.0, %v5253
        %v5255 = vpop.f32.mrb[0].mxu0
        %v5256 = vadd.f32 0.0, %v5255
        %v5257 = vpop.f32.mrb[0].mxu0
        %v5258 = vadd.f32 0.0, %v5257
        %v5259 = vpop.f32.mrb[0].mxu0
        %v5260 = vadd.f32 0.0, %v5259
        %5261 = vmatprep.mubr.bf16.mxu0 0
        %5262 = vmatmul.mubr.bf16.gmra.mrb[0].mxu0 %v4768
        %v5263 = vpop.f32.mrb[0].mxu0
        %v5264 = vadd.f32 0.0, %v5263
        %v5265 = vpop.f32.mrb[0].mxu0
        %v5266 = vadd.f32 0.0, %v5265
        %v5267 = vpop.f32.mrb[0].mxu0
        %v5268 = vadd.f32 0.0, %v5267
        %v5269 = vpop.f32.mrb[0].mxu0
        %v5270 = vadd.f32 0.0, %v5269
        %5271 = vmatprep.mubr.bf16.mxu0 0
        %5272 = vmatmul.mubr.bf16.gmra.mrb[0].mxu0 %v4769
        %v5273 = vpop.f32.mrb[0].mxu0
        %v5274 = vadd.f32 0.0, %v5273
        %v5275 = vpop.f32.mrb[0].mxu0
        %v5276 = vadd.f32 0.0, %v5275
        %v5277 = vpop.f32.mrb[0].mxu0
        %v5278 = vadd.f32 0.0, %v5277
        %v5279 = vpop.f32.mrb[0].mxu0
        %v5280 = vadd.f32 0.0, %v5279
        %5281 = vmatprep.mubr.bf16.mxu0 0
        %5282 = vmatmul.mubr.bf16.gmra.mrb[0].mxu0 %v4770
        %v5283 = vpop.f32.mrb[0].mxu0
        %v5284 = vadd.f32 0.0, %v5283
        %v5285 = vpop.f32.mrb[0].mxu0
        %v5286 = vadd.f32 0.0, %v5285
        %v5287 = vpop.f32.mrb[0].mxu0
        %v5288 = vadd.f32 0.0, %v5287
        %v5289 = vpop.f32.mrb[0].mxu0
        %v5290 = vadd.f32 0.0, %v5289
        %5291 = vdwg.mxu0
        %5292 = vmatprep.subr.bf16.mxu0 %v5078
        %5293 = vmatpush1.bf16.msra.mxu0 %v5077
        %5294 = vmatprep.subr.bf16.mxu0 %v5087
        %5295 = vmatpush1.bf16.msra.mxu0 %v5086
        %5296 = vmatprep.subr.bf16.mxu0 %v5096
        %5297 = vmatpush1.bf16.msra.mxu0 %v5095
        %5298 = vmatprep.subr.bf16.mxu0 %v5105
        %5299 = vmatpush1.bf16.msra.mxu0 %v5104
        %5300 = vmatprep.subr.bf16.mxu0 %v5114
        %5301 = vmatpush1.bf16.msra.mxu0 %v5113
        %5302 = vmatprep.subr.bf16.mxu0 %v5123
        %5303 = vmatpush1.bf16.msra.mxu0 %v5122
        %5304 = vmatprep.subr.bf16.mxu0 %v5132
        %5305 = vmatpush1.bf16.msra.mxu0 %v5131
        %5306 = vmatprep.subr.bf16.mxu0 %v5141
        %5307 = vmatpush1.bf16.msra.mxu0 %v5140
        %5308 = vmatprep.subr.bf16.mxu0 0
        %5309 = vmatpush1.bf16.msra.mxu0 0
        %5310 = vmatprep.subr.bf16.mxu0 0
        %5311 = vmatpush1.bf16.msra.mxu0 0
        %5312 = vmatprep.subr.bf16.mxu0 0
        %5313 = vmatpush1.bf16.msra.mxu0 0
        %5314 = vmatprep.subr.bf16.mxu0 0
        %5315 = vmatpush1.bf16.msra.mxu0 0
        %5316 = vmatprep.subr.bf16.mxu0 0
        %5317 = vmatpush1.bf16.msra.mxu0 0
        %5318 = vmatprep.subr.bf16.mxu0 0
        %5319 = vmatpush1.bf16.msra.mxu0 0
        %5320 = vmatprep.subr.bf16.mxu0 0
        %5321 = vmatpush1.bf16.msra.mxu0 0
        %5322 = vmatprep.subr.bf16.mxu0 0
        %5323 = vmatpush1.bf16.msra.mxu0 0
        %5324 = vmatprep.mubr.bf16.mxu0 0
        %5325 = vmatmul.mubr.bf16.gmra.mrb[0].mxu0 %v4767
        %v5326 = vpop.f32.mrb[0].mxu0
        %v5327 = vadd.f32 0.0, %v5326
        %v5328 = vpop.f32.mrb[0].mxu0
        %v5329 = vadd.f32 0.0, %v5328
        %v5330 = vpop.f32.mrb[0].mxu0
        %v5331 = vadd.f32 0.0, %v5330
        %v5332 = vpop.f32.mrb[0].mxu0
        %v5333 = vadd.f32 0.0, %v5332
        %5334 = vmatprep.mubr.bf16.mxu0 0
        %5335 = vmatmul.mubr.bf16.gmra.mrb[0].mxu0 %v4768
        %v5336 = vpop.f32.mrb[0].mxu0
        %v5337 = vadd.f32 0.0, %v5336
        %v5338 = vpop.f32.mrb[0].mxu0
        %v5339 = vadd.f32 0.0, %v5338
        %v5340 = vpop.f32.mrb[0].mxu0
        %v5341 = vadd.f32 0.0, %v5340
        %v5342 = vpop.f32.mrb[0].mxu0
        %v5343 = vadd.f32 0.0, %v5342
        %5344 = vmatprep.mubr.bf16.mxu0 0
        %5345 = vmatmul.mubr.bf16.gmra.mrb[0].mxu0 %v4769
        %v5346 = vpop.f32.mrb[0].mxu0
        %v5347 = vadd.f32 0.0, %v5346
        %v5348 = vpop.f32.mrb[0].mxu0
        %v5349 = vadd.f32 0.0, %v5348
        %v5350 = vpop.f32.mrb[0].mxu0
        %v5351 = vadd.f32 0.0, %v5350
        %v5352 = vpop.f32.mrb[0].mxu0
        %v5353 = vadd.f32 0.0, %v5352
        %5354 = vmatprep.mubr.bf16.mxu0 0
        %5355 = vmatmul.mubr.bf16.gmra.mrb[0].mxu0 %v4770
        %v5356 = vpop.f32.mrb[0].mxu0
        %v5357 = vadd.f32 0.0, %v5356
        %v5358 = vpop.f32.mrb[0].mxu0
        %v5359 = vadd.f32 0.0, %v5358
        %v5360 = vpop.f32.mrb[0].mxu0
        %v5361 = vadd.f32 0.0, %v5360
        %v5362 = vpop.f32.mrb[0].mxu0
        %v5363 = vadd.f32 0.0, %v5362
        %5364 = vdwg.mxu0
        %5365 = vmatprep.subr.bf16.mxu0 %v5080
        %5366 = vmatpush1.bf16.msra.mxu0 %v5079
        %5367 = vmatprep.subr.bf16.mxu0 %v5089
        %5368 = vmatpush1.bf16.msra.mxu0 %v5088
        %5369 = vmatprep.subr.bf16.mxu0 %v5098
        %5370 = vmatpush1.bf16.msra.mxu0 %v5097
        %5371 = vmatprep.subr.bf16.mxu0 %v5107
        %5372 = vmatpush1.bf16.msra.mxu0 %v5106
        %5373 = vmatprep.subr.bf16.mxu0 %v5116
        %5374 = vmatpush1.bf16.msra.mxu0 %v5115
        %5375 = vmatprep.subr.bf16.mxu0 %v5125
        %5376 = vmatpush1.bf16.msra.mxu0 %v5124
        %5377 = vmatprep.subr.bf16.mxu0 %v5134
        %5378 = vmatpush1.bf16.msra.mxu0 %v5133
        %5379 = vmatprep.subr.bf16.mxu0 %v5143
        %5380 = vmatpush1.bf16.msra.mxu0 %v5142
        %5381 = vmatprep.subr.bf16.mxu0 0
        %5382 = vmatpush1.bf16.msra.mxu0 0
        %5383 = vmatprep.subr.bf16.mxu0 0
        %5384 = vmatpush1.bf16.msra.mxu0 0
        %5385 = vmatprep.subr.bf16.mxu0 0
        %5386 = vmatpush1.bf16.msra.mxu0 0
        %5387 = vmatprep.subr.bf16.mxu0 0
        %5388 = vmatpush1.bf16.msra.mxu0 0
        %5389 = vmatprep.subr.bf16.mxu0 0
        %5390 = vmatpush1.bf16.msra.mxu0 0
        %5391 = vmatprep.subr.bf16.mxu0 0
        %5392 = vmatpush1.bf16.msra.mxu0 0
        %5393 = vmatprep.subr.bf16.mxu0 0
        %5394 = vmatpush1.bf16.msra.mxu0 0
        %5395 = vmatprep.subr.bf16.mxu0 0
        %5396 = vmatpush1.bf16.msra.mxu0 0
        %5397 = vmatprep.mubr.bf16.mxu0 0
        %5398 = vmatmul.mubr.bf16.gmra.mrb[0].mxu0 %v4767
        %v5399 = vpop.f32.mrb[0].mxu0
        %v5400 = vadd.f32 0.0, %v5399
        %v5401 = vpop.f32.mrb[0].mxu0
        %v5402 = vadd.f32 0.0, %v5401
        %v5403 = vpop.f32.mrb[0].mxu0
        %v5404 = vadd.f32 0.0, %v5403
        %v5405 = vpop.f32.mrb[0].mxu0
        %v5406 = vadd.f32 0.0, %v5405
        %5407 = vmatprep.mubr.bf16.mxu0 0
        %5408 = vmatmul.mubr.bf16.gmra.mrb[0].mxu0 %v4768
        %v5409 = vpop.f32.mrb[0].mxu0
        %v5410 = vadd.f32 0.0, %v5409
        %v5411 = vpop.f32.mrb[0].mxu0
        %v5412 = vadd.f32 0.0, %v5411
        %v5413 = vpop.f32.mrb[0].mxu0
        %v5414 = vadd.f32 0.0, %v5413
        %v5415 = vpop.f32.mrb[0].mxu0
        %v5416 = vadd.f32 0.0, %v5415
        %5417 = vmatprep.mubr.bf16.mxu0 0
        %5418 = vmatmul.mubr.bf16.gmra.mrb[0].mxu0 %v4769
        %v5419 = vpop.f32.mrb[0].mxu0
        %v5420 = vadd.f32 0.0, %v5419
        %v5421 = vpop.f32.mrb[0].mxu0
        %v5422 = vadd.f32 0.0, %v5421
        %v5423 = vpop.f32.mrb[0].mxu0
        %v5424 = vadd.f32 0.0, %v5423
        %v5425 = vpop.f32.mrb[0].mxu0
        %v5426 = vadd.f32 0.0, %v5425
        %5427 = vmatprep.mubr.bf16.mxu0 0
        %5428 = vmatmul.mubr.bf16.gmra.mrb[0].mxu0 %v4770
        %v5429 = vpop.f32.mrb[0].mxu0
        %v5430 = vadd.f32 0.0, %v5429
        %v5431 = vpop.f32.mrb[0].mxu0
        %v5432 = vadd.f32 0.0, %v5431
        %v5433 = vpop.f32.mrb[0].mxu0
        %v5434 = vadd.f32 0.0, %v5433
        %v5435 = vpop.f32.mrb[0].mxu0
        %v5436 = vadd.f32 0.0, %v5435
        %5437 = vdwg.mxu0
        %5438 = vmatprep.subr.bf16.mxu0 %v5082
        %5439 = vmatpush1.bf16.msra.mxu0 %v5081
        %5440 = vmatprep.subr.bf16.mxu0 %v5091
        %5441 = vmatpush1.bf16.msra.mxu0 %v5090
        %5442 = vmatprep.subr.bf16.mxu0 %v5100
        %5443 = vmatpush1.bf16.msra.mxu0 %v5099
        %5444 = vmatprep.subr.bf16.mxu0 %v5109
        %5445 = vmatpush1.bf16.msra.mxu0 %v5108
        %5446 = vmatprep.subr.bf16.mxu0 %v5118
        %5447 = vmatpush1.bf16.msra.mxu0 %v5117
        %5448 = vmatprep.subr.bf16.mxu0 %v5127
        %5449 = vmatpush1.bf16.msra.mxu0 %v5126
        %5450 = vmatprep.subr.bf16.mxu0 %v5136
        %5451 = vmatpush1.bf16.msra.mxu0 %v5135
        %5452 = vmatprep.subr.bf16.mxu0 %v5145
        %5453 = vmatpush1.bf16.msra.mxu0 %v5144
        %5454 = vmatprep.subr.bf16.mxu0 0
        %5455 = vmatpush1.bf16.msra.mxu0 0
        %5456 = vmatprep.subr.bf16.mxu0 0
        %5457 = vmatpush1.bf16.msra.mxu0 0
        %5458 = vmatprep.subr.bf16.mxu0 0
        %5459 = vmatpush1.bf16.msra.mxu0 0
        %5460 = vmatprep.subr.bf16.mxu0 0
        %5461 = vmatpush1.bf16.msra.mxu0 0
        %5462 = vmatprep.subr.bf16.mxu0 0
        %5463 = vmatpush1.bf16.msra.mxu0 0
        %5464 = vmatprep.subr.bf16.mxu0 0
        %5465 = vmatpush1.bf16.msra.mxu0 0
        %5466 = vmatprep.subr.bf16.mxu0 0
        %5467 = vmatpush1.bf16.msra.mxu0 0
        %5468 = vmatprep.subr.bf16.mxu0 0
        %5469 = vmatpush1.bf16.msra.mxu0 0
        %5470 = vmatprep.mubr.bf16.mxu0 0
        %5471 = vmatmul.mubr.bf16.gmra.mrb[0].mxu0 %v4767
        %v5472 = vpop.f32.mrb[0].mxu0
        %v5473 = vadd.f32 0.0, %v5472
        %v5474 = vpop.f32.mrb[0].mxu0
        %v5475 = vadd.f32 0.0, %v5474
        %v5476 = vpop.f32.mrb[0].mxu0
        %v5477 = vadd.f32 0.0, %v5476
        %v5478 = vpop.f32.mrb[0].mxu0
        %v5479 = vadd.f32 0.0, %v5478
        %5480 = vmatprep.mubr.bf16.mxu0 0
        %5481 = vmatmul.mubr.bf16.gmra.mrb[0].mxu0 %v4768
        %v5482 = vpop.f32.mrb[0].mxu0
        %v5483 = vadd.f32 0.0, %v5482
        %v5484 = vpop.f32.mrb[0].mxu0
        %v5485 = vadd.f32 0.0, %v5484
        %v5486 = vpop.f32.mrb[0].mxu0
        %v5487 = vadd.f32 0.0, %v5486
        %v5488 = vpop.f32.mrb[0].mxu0
        %v5489 = vadd.f32 0.0, %v5488
        %5490 = vmatprep.mubr.bf16.mxu0 0
        %5491 = vmatmul.mubr.bf16.gmra.mrb[0].mxu0 %v4769
        %v5492 = vpop.f32.mrb[0].mxu0
        %v5493 = vadd.f32 0.0, %v5492
        %v5494 = vpop.f32.mrb[0].mxu0
        %v5495 = vadd.f32 0.0, %v5494
        %v5496 = vpop.f32.mrb[0].mxu0
        %v5497 = vadd.f32 0.0, %v5496
        %v5498 = vpop.f32.mrb[0].mxu0
        %v5499 = vadd.f32 0.0, %v5498
        %5500 = vmatprep.mubr.bf16.mxu0 0
        %5501 = vmatmul.mubr.bf16.gmra.mrb[0].mxu0 %v4770
        %v5502 = vpop.f32.mrb[0].mxu0
        %v5503 = vadd.f32 0.0, %v5502
        %v5504 = vpop.f32.mrb[0].mxu0
        %v5505 = vadd.f32 0.0, %v5504
        %v5506 = vpop.f32.mrb[0].mxu0
        %v5507 = vadd.f32 0.0, %v5506
        %v5508 = vpop.f32.mrb[0].mxu0
        %v5509 = vadd.f32 0.0, %v5508
        %5510 = vdwg.mxu0
        %5511 = vmatprep.subr.bf16.mxu0 0
        %5512 = vmatpush1.bf16.msra.mxu0 %v5083
        %5513 = vmatprep.subr.bf16.mxu0 0
        %5514 = vmatpush1.bf16.msra.mxu0 %v5092
        %5515 = vmatprep.subr.bf16.mxu0 0
        %5516 = vmatpush1.bf16.msra.mxu0 %v5101
        %5517 = vmatprep.subr.bf16.mxu0 0
        %5518 = vmatpush1.bf16.msra.mxu0 %v5110
        %5519 = vmatprep.subr.bf16.mxu0 0
        %5520 = vmatpush1.bf16.msra.mxu0 %v5119
        %5521 = vmatprep.subr.bf16.mxu0 0
        %5522 = vmatpush1.bf16.msra.mxu0 %v5128
        %5523 = vmatprep.subr.bf16.mxu0 0
        %5524 = vmatpush1.bf16.msra.mxu0 %v5137
        %5525 = vmatprep.subr.bf16.mxu0 0
        %5526 = vmatpush1.bf16.msra.mxu0 %v5146
        %5527 = vmatprep.subr.bf16.mxu0 0
        %5528 = vmatpush1.bf16.msra.mxu0 0
        %5529 = vmatprep.subr.bf16.mxu0 0
        %5530 = vmatpush1.bf16.msra.mxu0 0
        %5531 = vmatprep.subr.bf16.mxu0 0
        %5532 = vmatpush1.bf16.msra.mxu0 0
        %5533 = vmatprep.subr.bf16.mxu0 0
        %5534 = vmatpush1.bf16.msra.mxu0 0
        %5535 = vmatprep.subr.bf16.mxu0 0
        %5536 = vmatpush1.bf16.msra.mxu0 0
        %5537 = vmatprep.subr.bf16.mxu0 0
        %5538 = vmatpush1.bf16.msra.mxu0 0
        %5539 = vmatprep.subr.bf16.mxu0 0
        %5540 = vmatpush1.bf16.msra.mxu0 0
        %5541 = vmatprep.subr.bf16.mxu0 0
        %5542 = vmatpush1.bf16.msra.mxu0 0
        %5543 = vmatprep.mubr.bf16.mxu0 0
        %5544 = vmatmul.mubr.bf16.gmra.mrb[0].mxu0 %v4767
        %v5545 = vpop.f32.mrb[0].mxu0
        %v5546 = vadd.f32 0.0, %v5545
        %v5547 = vpop.f32.mrb[0].mxu0
        %v5548 = vpop.f32.mrb[0].mxu0
        %v5549 = vadd.f32 0.0, %v5548
        %v5550 = vpop.f32.mrb[0].mxu0
        %5551 = vmatprep.mubr.bf16.mxu0 0
        %5552 = vmatmul.mubr.bf16.gmra.mrb[0].mxu0 %v4768
        %v5553 = vpop.f32.mrb[0].mxu0
        %v5554 = vadd.f32 0.0, %v5553
        %v5555 = vpop.f32.mrb[0].mxu0
        %v5556 = vpop.f32.mrb[0].mxu0
        %v5557 = vadd.f32 0.0, %v5556
        %v5558 = vpop.f32.mrb[0].mxu0
        %5559 = vmatprep.mubr.bf16.mxu0 0
        %5560 = vmatmul.mubr.bf16.gmra.mrb[0].mxu0 %v4769
        %v5561 = vpop.f32.mrb[0].mxu0
        %v5562 = vadd.f32 0.0, %v5561
        %v5563 = vpop.f32.mrb[0].mxu0
        %v5564 = vpop.f32.mrb[0].mxu0
        %v5565 = vadd.f32 0.0, %v5564
        %v5566 = vpop.f32.mrb[0].mxu0
        %5567 = vmatprep.mubr.bf16.mxu0 0
        %5568 = vmatmul.mubr.bf16.gmra.mrb[0].mxu0 %v4770
        %v5569 = vpop.f32.mrb[0].mxu0
        %v5570 = vadd.f32 0.0, %v5569
        %v5571 = vpop.f32.mrb[0].mxu0
        %v5572 = vpop.f32.mrb[0].mxu0
        %v5573 = vadd.f32 0.0, %v5572
        %v5574 = vpop.f32.mrb[0].mxu0
        %5575 = vdwg.mxu0
        %v5576 = vrot.slane %v5254, 7
        %v5577 = vrot.slane %v5258, 7
        %v5578 = vrot.slane %v5264, 7
        %v5579 = vrot.slane %v5268, 7
        %v5580 = vrot.slane %v5274, 7
        %v5581 = vrot.slane %v5278, 7
        %v5582 = vrot.slane %v5284, 7
        %v5583 = vrot.slane %v5288, 7
        %v5584 = vsel %vm978, %v5582, %v5583
        %v5585 = vsel %vm978, %v5581, %v5582
        %v5586 = vsel %vm978, %v5580, %v5581
        %v5587 = vsel %vm978, %v5579, %v5580
        %v5588 = vsel %vm978, %v5578, %v5579
        %v5589 = vsel %vm978, %v5577, %v5578
        %v5590 = vsel %vm978, %v5576, %v5577
        %v5591 = vsel %vm978, %v5583, %v5576
        %v5592 = vmul.f32 %v5584, %v998
        %v5593 = vmul.f32 %v5591, %v1003
        %v5594 = vmul.f32 %v5590, %v1008
        %v5595 = vmul.f32 %v5589, %v1013
        %v5596 = vmul.f32 %v5588, %v1018
        %v5597 = vmul.f32 %v5587, %v1023
        %v5598 = vmul.f32 %v5586, %v1028
        %v5599 = vmul.f32 %v5585, %v1033
        %v5600 = vmul.f32 %v5290, %v1055
        %v5601 = vmul.f32 %v5256, %v1060
        %v5602 = vmul.f32 %v5260, %v1065
        %v5603 = vmul.f32 %v5266, %v1070
        %v5604 = vmul.f32 %v5270, %v1075
        %v5605 = vmul.f32 %v5276, %v1080
        %v5606 = vmul.f32 %v5280, %v1085
        %v5607 = vmul.f32 %v5286, %v1090
        %v5608 = vadd.f32 %v5592, %v5600
        %v5609 = vadd.f32 %v5593, %v5601
        %v5610 = vadd.f32 %v5594, %v5602
        %v5611 = vadd.f32 %v5595, %v5603
        %v5612 = vadd.f32 %v5596, %v5604
        %v5613 = vadd.f32 %v5597, %v5605
        %v5614 = vadd.f32 %v5598, %v5606
        %v5615 = vadd.f32 %v5599, %v5607
        %v5616 = vrot.slane %v5327, 1
        %v5617 = vrot.slane %v5331, 1
        %v5618 = vrot.slane %v5337, 1
        %v5619 = vrot.slane %v5341, 1
        %v5620 = vrot.slane %v5347, 1
        %v5621 = vrot.slane %v5351, 1
        %v5622 = vrot.slane %v5357, 1
        %v5623 = vrot.slane %v5361, 1
        %v5624 = vsel %vm1116, %v5622, %v5623
        %v5625 = vsel %vm1116, %v5621, %v5622
        %v5626 = vsel %vm1116, %v5620, %v5621
        %v5627 = vsel %vm1116, %v5619, %v5620
        %v5628 = vsel %vm1116, %v5618, %v5619
        %v5629 = vsel %vm1116, %v5617, %v5618
        %v5630 = vsel %vm1116, %v5616, %v5617
        %v5631 = vsel %vm1116, %v5623, %v5616
        %v5632 = vmul.f32 %v5631, %v1137
        %v5633 = vmul.f32 %v5630, %v1142
        %v5634 = vmul.f32 %v5629, %v1147
        %v5635 = vmul.f32 %v5628, %v1152
        %v5636 = vmul.f32 %v5627, %v1157
        %v5637 = vmul.f32 %v5626, %v1162
        %v5638 = vmul.f32 %v5625, %v1167
        %v5639 = vmul.f32 %v5624, %v1172
        %v5640 = vadd.f32 %v5608, %v5632
        %v5641 = vadd.f32 %v5609, %v5633
        %v5642 = vadd.f32 %v5610, %v5634
        %v5643 = vadd.f32 %v5611, %v5635
        %v5644 = vadd.f32 %v5612, %v5636
        %v5645 = vadd.f32 %v5613, %v5637
        %v5646 = vadd.f32 %v5614, %v5638
        %v5647 = vadd.f32 %v5615, %v5639
        %v5648 = vrot.slane %v5329, 7
        %v5649 = vrot.slane %v5333, 7
        %v5650 = vrot.slane %v5339, 7
        %v5651 = vrot.slane %v5343, 7
        %v5652 = vrot.slane %v5349, 7
        %v5653 = vrot.slane %v5353, 7
        %v5654 = vrot.slane %v5359, 7
        %v5655 = vrot.slane %v5363, 7
        %v5656 = vsel %vm978, %v5654, %v5655
        %v5657 = vsel %vm978, %v5653, %v5654
        %v5658 = vsel %vm978, %v5652, %v5653
        %v5659 = vsel %vm978, %v5651, %v5652
        %v5660 = vsel %vm978, %v5650, %v5651
        %v5661 = vsel %vm978, %v5649, %v5650
        %v5662 = vsel %vm978, %v5648, %v5649
        %v5663 = vsel %vm978, %v5655, %v5648
        %v5664 = vmul.f32 %v5663, %v1218
        %v5665 = vmul.f32 %v5662, %v1223
        %v5666 = vmul.f32 %v5661, %v1228
        %v5667 = vmul.f32 %v5660, %v1233
        %v5668 = vmul.f32 %v5659, %v1238
        %v5669 = vmul.f32 %v5658, %v1243
        %v5670 = vmul.f32 %v5657, %v1248
        %v5671 = vmul.f32 %v5656, %v1253
        %v5672 = vadd.f32 %v5640, %v5664
        %v5673 = vadd.f32 %v5641, %v5665
        %v5674 = vadd.f32 %v5642, %v5666
        %v5675 = vadd.f32 %v5643, %v5667
        %v5676 = vadd.f32 %v5644, %v5668
        %v5677 = vadd.f32 %v5645, %v5669
        %v5678 = vadd.f32 %v5646, %v5670
        %v5679 = vadd.f32 %v5647, %v5671
        %v5680 = vadd.f32 %v5672, %v5400
        %v5681 = vadd.f32 %v5673, %v5404
        %v5682 = vadd.f32 %v5674, %v5410
        %v5683 = vadd.f32 %v5675, %v5414
        %v5684 = vadd.f32 %v5676, %v5420
        %v5685 = vadd.f32 %v5677, %v5424
        %v5686 = vadd.f32 %v5678, %v5430
        %v5687 = vadd.f32 %v5679, %v5434
        %v5688 = vrot.slane %v5402, 1
        %v5689 = vrot.slane %v5406, 1
        %v5690 = vrot.slane %v5412, 1
        %v5691 = vrot.slane %v5416, 1
        %v5692 = vrot.slane %v5422, 1
        %v5693 = vrot.slane %v5426, 1
        %v5694 = vrot.slane %v5432, 1
        %v5695 = vrot.slane %v5436, 1
        %v5696 = vsel %vm1116, %v5694, %v5695
        %v5697 = vsel %vm1116, %v5693, %v5694
        %v5698 = vsel %vm1116, %v5692, %v5693
        %v5699 = vsel %vm1116, %v5691, %v5692
        %v5700 = vsel %vm1116, %v5690, %v5691
        %v5701 = vsel %vm1116, %v5689, %v5690
        %v5702 = vsel %vm1116, %v5688, %v5689
        %v5703 = vsel %vm1116, %v5695, %v5688
        %v5704 = vmul.f32 %v5702, %v1307
        %v5705 = vmul.f32 %v5701, %v1312
        %v5706 = vmul.f32 %v5700, %v1317
        %v5707 = vmul.f32 %v5699, %v1322
        %v5708 = vmul.f32 %v5698, %v1327
        %v5709 = vmul.f32 %v5697, %v1332
        %v5710 = vmul.f32 %v5696, %v1337
        %v5711 = vmul.f32 %v5703, %v1342
        %v5712 = vadd.f32 %v5680, %v5704
        %v5713 = vadd.f32 %v5681, %v5705
        %v5714 = vadd.f32 %v5682, %v5706
        %v5715 = vadd.f32 %v5683, %v5707
        %v5716 = vadd.f32 %v5684, %v5708
        %v5717 = vadd.f32 %v5685, %v5709
        %v5718 = vadd.f32 %v5686, %v5710
        %v5719 = vadd.f32 %v5687, %v5711
        %v5720 = vrot.slane %v5473, 7
        %v5721 = vrot.slane %v5477, 7
        %v5722 = vrot.slane %v5483, 7
        %v5723 = vrot.slane %v5487, 7
        %v5724 = vrot.slane %v5493, 7
        %v5725 = vrot.slane %v5497, 7
        %v5726 = vrot.slane %v5503, 7
        %v5727 = vrot.slane %v5507, 7
        %v5728 = vsel %vm978, %v5726, %v5727
        %v5729 = vsel %vm978, %v5725, %v5726
        %v5730 = vsel %vm978, %v5724, %v5725
        %v5731 = vsel %vm978, %v5723, %v5724
        %v5732 = vsel %vm978, %v5722, %v5723
        %v5733 = vsel %vm978, %v5721, %v5722
        %v5734 = vsel %vm978, %v5720, %v5721
        %v5735 = vsel %vm978, %v5727, %v5720
        %v5736 = vmul.f32 %v5734, %v1388
        %v5737 = vmul.f32 %v5733, %v1393
        %v5738 = vmul.f32 %v5732, %v1398
        %v5739 = vmul.f32 %v5731, %v1403
        %v5740 = vmul.f32 %v5730, %v1408
        %v5741 = vmul.f32 %v5729, %v1413
        %v5742 = vmul.f32 %v5728, %v1418
        %v5743 = vmul.f32 %v5735, %v1423
        %v5744 = vadd.f32 %v5712, %v5736
        %v5745 = vadd.f32 %v5713, %v5737
        %v5746 = vadd.f32 %v5714, %v5738
        %v5747 = vadd.f32 %v5715, %v5739
        %v5748 = vadd.f32 %v5716, %v5740
        %v5749 = vadd.f32 %v5717, %v5741
        %v5750 = vadd.f32 %v5718, %v5742
        %v5751 = vadd.f32 %v5719, %v5743
        %v5752 = vmul.f32 %v5479, %v1453
        %v5753 = vmul.f32 %v5485, %v1458
        %v5754 = vmul.f32 %v5489, %v1463
        %v5755 = vmul.f32 %v5495, %v1468
        %v5756 = vmul.f32 %v5499, %v1473
        %v5757 = vmul.f32 %v5505, %v1478
        %v5758 = vmul.f32 %v5509, %v1483
        %v5759 = vmul.f32 %v5475, %v1488
        %v5760 = vadd.f32 %v5744, %v5752
        %v5761 = vadd.f32 %v5745, %v5753
        %v5762 = vadd.f32 %v5746, %v5754
        %v5763 = vadd.f32 %v5747, %v5755
        %v5764 = vadd.f32 %v5748, %v5756
        %v5765 = vadd.f32 %v5749, %v5757
        %v5766 = vadd.f32 %v5750, %v5758
        %v5767 = vadd.f32 %v5751, %v5759
        %v5768 = vrot.slane %v5546, 1
        %v5769 = vrot.slane %v5549, 1
        %v5770 = vrot.slane %v5554, 1
        %v5771 = vrot.slane %v5557, 1
        %v5772 = vrot.slane %v5562, 1
        %v5773 = vrot.slane %v5565, 1
        %v5774 = vrot.slane %v5570, 1
        %v5775 = vrot.slane %v5573, 1
        %v5776 = vsel %vm1116, %v5774, %v5775
        %v5777 = vsel %vm1116, %v5773, %v5774
        %v5778 = vsel %vm1116, %v5772, %v5773
        %v5779 = vsel %vm1116, %v5771, %v5772
        %v5780 = vsel %vm1116, %v5770, %v5771
        %v5781 = vsel %vm1116, %v5769, %v5770
        %v5782 = vsel %vm1116, %v5768, %v5769
        %v5783 = vsel %vm1116, %v5775, %v5768
        %v5784 = vmul.f32 %v5781, %v1534
        %v5785 = vmul.f32 %v5780, %v1539
        %v5786 = vmul.f32 %v5779, %v1544
        %v5787 = vmul.f32 %v5778, %v1549
        %v5788 = vmul.f32 %v5777, %v1554
        %v5789 = vmul.f32 %v5776, %v1559
        %v5790 = vmul.f32 %v5783, %v1564
        %v5791 = vmul.f32 %v5782, %v1569
        %v5792 = vadd.f32 %v5760, %v5784
        %v5793 = vadd.f32 %v5761, %v5785
        %v5794 = vadd.f32 %v5762, %v5786
        %v5795 = vadd.f32 %v5763, %v5787
        %v5796 = vadd.f32 %v5764, %v5788
        %v5797 = vadd.f32 %v5765, %v5789
        %v5798 = vadd.f32 %v5766, %v5790
        %v5799 = vadd.f32 %v5767, %v5791
        %v5800 = vlaneseq
        %v5801 = vshrl.u32 %v5800, 7
        %v5802 = vsub.s32 0, %v5801
        %v5803 = vrot.slane %v4766, %v5802
        %v5804 = vadd.f32 %v5792, %v5803
        %v5805 = vadd.f32 %v5793, %v5803
        %v5806 = vadd.f32 %v5794, %v5803
        %v5807 = vadd.f32 %v5795, %v5803
        %v5808 = vadd.f32 %v5796, %v5803
        %v5809 = vadd.f32 %v5797, %v5803
        %v5810 = vadd.f32 %v5798, %v5803
        %v5811 = vadd.f32 %v5799, %v5803
        %v5812 = vmax.f32 %v5804, 0.0
        %v5813 = vmax.f32 %v5805, 0.0
        %v5814 = vmax.f32 %v5806, 0.0
        %v5815 = vmax.f32 %v5807, 0.0
        %v5816 = vmax.f32 %v5808, 0.0
        %v5817 = vmax.f32 %v5809, 0.0
        %v5818 = vmax.f32 %v5810, 0.0
        %v5819 = vmax.f32 %v5811, 0.0
        %v5820 = vld [vmem:[%s13 + $0x6] sm:$0x1]
        %v5821 = vpack.c.bf16 %v5813, %v5812
        %v5822 = vpack.c.bf16 %v5815, %v5814
        %v5823 = vpack.c.bf16 %v5817, %v5816
        %v5824 = vpack.c.bf16 %v5819, %v5818
        %v5825 = vld [vmem:[#allocation8] sm:$0xff]
        %v5826 = vld [vmem:[#allocation8 + $0x8] sm:$0xff]
        %v5827 = vld [vmem:[#allocation8 + $0x10] sm:$0xff]
        %v5828 = vld [vmem:[#allocation8 + $0x18] sm:$0xff]
        %v5829 = vld [vmem:[#allocation8 + $0x20] sm:$0xf]
        %v5830 = vld [vmem:[#allocation8 + $0x24] sm:$0xff]
        %v5831 = vld [vmem:[#allocation8 + $0x2c] sm:$0xff]
        %v5832 = vld [vmem:[#allocation8 + $0x34] sm:$0xff]
        %v5833 = vld [vmem:[#allocation8 + $0x3c] sm:$0xff]
        %v5834 = vld [vmem:[#allocation8 + $0x44] sm:$0xf]
        %v5835 = vld [vmem:[#allocation8 + $0x48] sm:$0xff]
        %v5836 = vld [vmem:[#allocation8 + $0x50] sm:$0xff]
        %v5837 = vld [vmem:[#allocation8 + $0x58] sm:$0xff]
        %v5838 = vld [vmem:[#allocation8 + $0x60] sm:$0xff]
        %v5839 = vld [vmem:[#allocation8 + $0x68] sm:$0xf]
        %v5840 = vld [vmem:[#allocation8 + $0x6c] sm:$0xff]
        %v5841 = vld [vmem:[#allocation8 + $0x74] sm:$0xff]
        %v5842 = vld [vmem:[#allocation8 + $0x7c] sm:$0xff]
        %v5843 = vld [vmem:[#allocation8 + $0x84] sm:$0xff]
        %v5844 = vld [vmem:[#allocation8 + $0x8c] sm:$0xf]
        %v5845 = vld [vmem:[#allocation8 + $0x90] sm:$0xff]
        %v5846 = vld [vmem:[#allocation8 + $0x98] sm:$0xff]
        %v5847 = vld [vmem:[#allocation8 + $0xa0] sm:$0xff]
        %v5848 = vld [vmem:[#allocation8 + $0xa8] sm:$0xff]
        %v5849 = vld [vmem:[#allocation8 + $0xb0] sm:$0xf]
        %v5850 = vld [vmem:[#allocation8 + $0xb4] sm:$0xff]
        %v5851 = vld [vmem:[#allocation8 + $0xbc] sm:$0xff]
        %v5852 = vld [vmem:[#allocation8 + $0xc4] sm:$0xff]
        %v5853 = vld [vmem:[#allocation8 + $0xcc] sm:$0xff]
        %v5854 = vld [vmem:[#allocation8 + $0xd4] sm:$0xf]
        %v5855 = vld [vmem:[#allocation8 + $0xd8] sm:$0xff]
        %v5856 = vld [vmem:[#allocation8 + $0xe0] sm:$0xff]
        %v5857 = vld [vmem:[#allocation8 + $0xe8] sm:$0xff]
        %v5858 = vld [vmem:[#allocation8 + $0xf0] sm:$0xff]
        %v5859 = vld [vmem:[#allocation8 + $0xf8] sm:$0xf]
        %v5860 = vld [vmem:[#allocation8 + $0xfc] sm:$0xff]
        %v5861 = vld [vmem:[#allocation8 + $0x104] sm:$0xff]
        %v5862 = vld [vmem:[#allocation8 + $0x10c] sm:$0xff]
        %v5863 = vld [vmem:[#allocation8 + $0x114] sm:$0xff]
        %v5864 = vld [vmem:[#allocation8 + $0x11c] sm:$0xf]
        %v5905 = vunpack.c.l.b16 %v5825
        %v5906 = vunpack.c.h.b16 %v5825
        %v5907 = vunpack.c.l.b16 %v5826
        %v5908 = vunpack.c.h.b16 %v5826
        %v5909 = vunpack.c.l.b16 %v5827
        %v5910 = vunpack.c.h.b16 %v5827
        %v5911 = vunpack.c.l.b16 %v5828
        %v5912 = vunpack.c.h.b16 %v5828
        %v5913 = vunpack.c.l.b16 %v5829
        %v5914 = vunpack.c.l.b16 %v5830
        %v5915 = vunpack.c.h.b16 %v5830
        %v5916 = vunpack.c.l.b16 %v5831
        %v5917 = vunpack.c.h.b16 %v5831
        %v5918 = vunpack.c.l.b16 %v5832
        %v5919 = vunpack.c.h.b16 %v5832
        %v5920 = vunpack.c.l.b16 %v5833
        %v5921 = vunpack.c.h.b16 %v5833
        %v5922 = vunpack.c.l.b16 %v5834
        %v5923 = vunpack.c.l.b16 %v5835
        %v5924 = vunpack.c.h.b16 %v5835
        %v5925 = vunpack.c.l.b16 %v5836
        %v5926 = vunpack.c.h.b16 %v5836
        %v5927 = vunpack.c.l.b16 %v5837
        %v5928 = vunpack.c.h.b16 %v5837
        %v5929 = vunpack.c.l.b16 %v5838
        %v5930 = vunpack.c.h.b16 %v5838
        %v5931 = vunpack.c.l.b16 %v5839
        %v5932 = vunpack.c.l.b16 %v5840
        %v5933 = vunpack.c.h.b16 %v5840
        %v5934 = vunpack.c.l.b16 %v5841
        %v5935 = vunpack.c.h.b16 %v5841
        %v5936 = vunpack.c.l.b16 %v5842
        %v5937 = vunpack.c.h.b16 %v5842
        %v5938 = vunpack.c.l.b16 %v5843
        %v5939 = vunpack.c.h.b16 %v5843
        %v5940 = vunpack.c.l.b16 %v5844
        %v5941 = vunpack.c.l.b16 %v5845
        %v5942 = vunpack.c.h.b16 %v5845
        %v5943 = vunpack.c.l.b16 %v5846
        %v5944 = vunpack.c.h.b16 %v5846
        %v5945 = vunpack.c.l.b16 %v5847
        %v5946 = vunpack.c.h.b16 %v5847
        %v5947 = vunpack.c.l.b16 %v5848
        %v5948 = vunpack.c.h.b16 %v5848
        %v5949 = vunpack.c.l.b16 %v5849
        %v5950 = vunpack.c.l.b16 %v5850
        %v5951 = vunpack.c.h.b16 %v5850
        %v5952 = vunpack.c.l.b16 %v5851
        %v5953 = vunpack.c.h.b16 %v5851
        %v5954 = vunpack.c.l.b16 %v5852
        %v5955 = vunpack.c.h.b16 %v5852
        %v5956 = vunpack.c.l.b16 %v5853
        %v5957 = vunpack.c.h.b16 %v5853
        %v5958 = vunpack.c.l.b16 %v5854
        %v5959 = vunpack.c.l.b16 %v5855
        %v5960 = vunpack.c.h.b16 %v5855
        %v5961 = vunpack.c.l.b16 %v5856
        %v5962 = vunpack.c.h.b16 %v5856
        %v5963 = vunpack.c.l.b16 %v5857
        %v5964 = vunpack.c.h.b16 %v5857
        %v5965 = vunpack.c.l.b16 %v5858
        %v5966 = vunpack.c.h.b16 %v5858
        %v5967 = vunpack.c.l.b16 %v5859
        %v5968 = vunpack.c.l.b16 %v5860
        %v5969 = vunpack.c.h.b16 %v5860
        %v5970 = vunpack.c.l.b16 %v5861
        %v5971 = vunpack.c.h.b16 %v5861
        %v5972 = vunpack.c.l.b16 %v5862
        %v5973 = vunpack.c.h.b16 %v5862
        %v5974 = vunpack.c.l.b16 %v5863
        %v5975 = vunpack.c.h.b16 %v5863
        %v5976 = vunpack.c.l.b16 %v5864
        %v5977 = vpack.c.b16 %v5914, %v5905
        %v5978 = vpack.c.b16 %v5915, %v5906
        %v5979 = vpack.c.b16 %v5916, %v5907
        %v5980 = vpack.c.b16 %v5917, %v5908
        %v5981 = vpack.c.b16 %v5918, %v5909
        %v5982 = vpack.c.b16 %v5919, %v5910
        %v5983 = vpack.c.b16 %v5920, %v5911
        %v5984 = vpack.c.b16 %v5921, %v5912
        %v5985 = vpack.c.b16 %v5922, %v5913
        %v5986 = vpack.c.b16 %v5932, %v5923
        %v5987 = vpack.c.b16 %v5933, %v5924
        %v5988 = vpack.c.b16 %v5934, %v5925
        %v5989 = vpack.c.b16 %v5935, %v5926
        %v5990 = vpack.c.b16 %v5936, %v5927
        %v5991 = vpack.c.b16 %v5937, %v5928
        %v5992 = vpack.c.b16 %v5938, %v5929
        %v5993 = vpack.c.b16 %v5939, %v5930
        %v5994 = vpack.c.b16 %v5940, %v5931
        %v5995 = vpack.c.b16 %v5950, %v5941
        %v5996 = vpack.c.b16 %v5951, %v5942
        %v5997 = vpack.c.b16 %v5952, %v5943
        %v5998 = vpack.c.b16 %v5953, %v5944
        %v5999 = vpack.c.b16 %v5954, %v5945
        %v6000 = vpack.c.b16 %v5955, %v5946
        %v6001 = vpack.c.b16 %v5956, %v5947
        %v6002 = vpack.c.b16 %v5957, %v5948
        %v6003 = vpack.c.b16 %v5958, %v5949
        %v6004 = vpack.c.b16 %v5968, %v5959
        %v6005 = vpack.c.b16 %v5969, %v5960
        %v6006 = vpack.c.b16 %v5970, %v5961
        %v6007 = vpack.c.b16 %v5971, %v5962
        %v6008 = vpack.c.b16 %v5972, %v5963
        %v6009 = vpack.c.b16 %v5973, %v5964
        %v6010 = vpack.c.b16 %v5974, %v5965
        %v6011 = vpack.c.b16 %v5975, %v5966
        %v6012 = vpack.c.b16 %v5976, %v5967
        %v6050 = vsel %vm1836, %v5821, 0
        %v6053 = vsel %vm1836, %v5822, 0
        %v6056 = vsel %vm1836, %v5823, 0
        %v6059 = vsel %vm1836, %v5824, 0
        %6061 = vmatprep.subr.bf16.mxu0 %v5978
        %6062 = vmatpush1.bf16.msra.mxu0 %v5977
        %6063 = vmatprep.subr.bf16.mxu0 %v5987
        %6064 = vmatpush1.bf16.msra.mxu0 %v5986
        %6065 = vmatprep.subr.bf16.mxu0 %v5996
        %6066 = vmatpush1.bf16.msra.mxu0 %v5995
        %6067 = vmatprep.subr.bf16.mxu0 %v6005
        %6068 = vmatpush1.bf16.msra.mxu0 %v6004
        %6069 = vmatprep.subr.bf16.mxu0 0
        %6070 = vmatpush1.bf16.msra.mxu0 0
        %6071 = vmatprep.subr.bf16.mxu0 0
        %6072 = vmatpush1.bf16.msra.mxu0 0
        %6073 = vmatprep.subr.bf16.mxu0 0
        %6074 = vmatpush1.bf16.msra.mxu0 0
        %6075 = vmatprep.subr.bf16.mxu0 0
        %6076 = vmatpush1.bf16.msra.mxu0 0
        %6077 = vmatprep.subr.bf16.mxu0 0
        %6078 = vmatpush1.bf16.msra.mxu0 0
        %6079 = vmatprep.subr.bf16.mxu0 0
        %6080 = vmatpush1.bf16.msra.mxu0 0
        %6081 = vmatprep.subr.bf16.mxu0 0
        %6082 = vmatpush1.bf16.msra.mxu0 0
        %6083 = vmatprep.subr.bf16.mxu0 0
        %6084 = vmatpush1.bf16.msra.mxu0 0
        %6085 = vmatprep.subr.bf16.mxu0 0
        %6086 = vmatpush1.bf16.msra.mxu0 0
        %6087 = vmatprep.subr.bf16.mxu0 0
        %6088 = vmatpush1.bf16.msra.mxu0 0
        %6089 = vmatprep.subr.bf16.mxu0 0
        %6090 = vmatpush1.bf16.msra.mxu0 0
        %6091 = vmatprep.subr.bf16.mxu0 0
        %6092 = vmatpush1.bf16.msra.mxu0 0
        %6093 = vmatprep.mubr.bf16.mxu0 0
        %6094 = vmatmul.mubr.bf16.gmra.mrb[0].mxu0 %v6050
        %v6095 = vpop.f32.mrb[0].mxu0
        %v6096 = vadd.f32 0.0, %v6095
        %v6097 = vpop.f32.mrb[0].mxu0
        %v6098 = vadd.f32 0.0, %v6097
        %v6099 = vpop.f32.mrb[0].mxu0
        %v6100 = vadd.f32 0.0, %v6099
        %v6101 = vpop.f32.mrb[0].mxu0
        %v6102 = vadd.f32 0.0, %v6101
        %6103 = vmatprep.mubr.bf16.mxu0 0
        %6104 = vmatmul.mubr.bf16.gmra.mrb[0].mxu0 %v6053
        %v6105 = vpop.f32.mrb[0].mxu0
        %v6106 = vadd.f32 0.0, %v6105
        %v6107 = vpop.f32.mrb[0].mxu0
        %v6108 = vadd.f32 0.0, %v6107
        %v6109 = vpop.f32.mrb[0].mxu0
        %v6110 = vadd.f32 0.0, %v6109
        %v6111 = vpop.f32.mrb[0].mxu0
        %v6112 = vadd.f32 0.0, %v6111
        %6113 = vmatprep.mubr.bf16.mxu0 0
        %6114 = vmatmul.mubr.bf16.gmra.mrb[0].mxu0 %v6056
        %v6115 = vpop.f32.mrb[0].mxu0
        %v6116 = vadd.f32 0.0, %v6115
        %v6117 = vpop.f32.mrb[0].mxu0
        %v6118 = vadd.f32 0.0, %v6117
        %v6119 = vpop.f32.mrb[0].mxu0
        %v6120 = vadd.f32 0.0, %v6119
        %v6121 = vpop.f32.mrb[0].mxu0
        %v6122 = vadd.f32 0.0, %v6121
        %6123 = vmatprep.mubr.bf16.mxu0 0
        %6124 = vmatmul.mubr.bf16.gmra.mrb[0].mxu0 %v6059
        %v6125 = vpop.f32.mrb[0].mxu0
        %v6126 = vadd.f32 0.0, %v6125
        %v6127 = vpop.f32.mrb[0].mxu0
        %v6128 = vadd.f32 0.0, %v6127
        %v6129 = vpop.f32.mrb[0].mxu0
        %v6130 = vadd.f32 0.0, %v6129
        %v6131 = vpop.f32.mrb[0].mxu0
        %v6132 = vadd.f32 0.0, %v6131
        %6133 = vdwg.mxu0
        %6134 = vmatprep.subr.bf16.mxu0 %v5980
        %6135 = vmatpush1.bf16.msra.mxu0 %v5979
        %6136 = vmatprep.subr.bf16.mxu0 %v5989
        %6137 = vmatpush1.bf16.msra.mxu0 %v5988
        %6138 = vmatprep.subr.bf16.mxu0 %v5998
        %6139 = vmatpush1.bf16.msra.mxu0 %v5997
        %6140 = vmatprep.subr.bf16.mxu0 %v6007
        %6141 = vmatpush1.bf16.msra.mxu0 %v6006
        %6142 = vmatprep.subr.bf16.mxu0 0
        %6143 = vmatpush1.bf16.msra.mxu0 0
        %6144 = vmatprep.subr.bf16.mxu0 0
        %6145 = vmatpush1.bf16.msra.mxu0 0
        %6146 = vmatprep.subr.bf16.mxu0 0
        %6147 = vmatpush1.bf16.msra.mxu0 0
        %6148 = vmatprep.subr.bf16.mxu0 0
        %6149 = vmatpush1.bf16.msra.mxu0 0
        %6150 = vmatprep.subr.bf16.mxu0 0
        %6151 = vmatpush1.bf16.msra.mxu0 0
        %6152 = vmatprep.subr.bf16.mxu0 0
        %6153 = vmatpush1.bf16.msra.mxu0 0
        %6154 = vmatprep.subr.bf16.mxu0 0
        %6155 = vmatpush1.bf16.msra.mxu0 0
        %6156 = vmatprep.subr.bf16.mxu0 0
        %6157 = vmatpush1.bf16.msra.mxu0 0
        %6158 = vmatprep.subr.bf16.mxu0 0
        %6159 = vmatpush1.bf16.msra.mxu0 0
        %6160 = vmatprep.subr.bf16.mxu0 0
        %6161 = vmatpush1.bf16.msra.mxu0 0
        %6162 = vmatprep.subr.bf16.mxu0 0
        %6163 = vmatpush1.bf16.msra.mxu0 0
        %6164 = vmatprep.subr.bf16.mxu0 0
        %6165 = vmatpush1.bf16.msra.mxu0 0
        %6166 = vmatprep.mubr.bf16.mxu0 0
        %6167 = vmatmul.mubr.bf16.gmra.mrb[0].mxu0 %v6050
        %v6168 = vpop.f32.mrb[0].mxu0
        %v6169 = vadd.f32 0.0, %v6168
        %v6170 = vpop.f32.mrb[0].mxu0
        %v6171 = vadd.f32 0.0, %v6170
        %v6172 = vpop.f32.mrb[0].mxu0
        %v6173 = vadd.f32 0.0, %v6172
        %v6174 = vpop.f32.mrb[0].mxu0
        %v6175 = vadd.f32 0.0, %v6174
        %6176 = vmatprep.mubr.bf16.mxu0 0
        %6177 = vmatmul.mubr.bf16.gmra.mrb[0].mxu0 %v6053
        %v6178 = vpop.f32.mrb[0].mxu0
        %v6179 = vadd.f32 0.0, %v6178
        %v6180 = vpop.f32.mrb[0].mxu0
        %v6181 = vadd.f32 0.0, %v6180
        %v6182 = vpop.f32.mrb[0].mxu0
        %v6183 = vadd.f32 0.0, %v6182
        %v6184 = vpop.f32.mrb[0].mxu0
        %v6185 = vadd.f32 0.0, %v6184
        %6186 = vmatprep.mubr.bf16.mxu0 0
        %6187 = vmatmul.mubr.bf16.gmra.mrb[0].mxu0 %v6056
        %v6188 = vpop.f32.mrb[0].mxu0
        %v6189 = vadd.f32 0.0, %v6188
        %v6190 = vpop.f32.mrb[0].mxu0
        %v6191 = vadd.f32 0.0, %v6190
        %v6192 = vpop.f32.mrb[0].mxu0
        %v6193 = vadd.f32 0.0, %v6192
        %v6194 = vpop.f32.mrb[0].mxu0
        %v6195 = vadd.f32 0.0, %v6194
        %6196 = vmatprep.mubr.bf16.mxu0 0
        %6197 = vmatmul.mubr.bf16.gmra.mrb[0].mxu0 %v6059
        %v6198 = vpop.f32.mrb[0].mxu0
        %v6199 = vadd.f32 0.0, %v6198
        %v6200 = vpop.f32.mrb[0].mxu0
        %v6201 = vadd.f32 0.0, %v6200
        %v6202 = vpop.f32.mrb[0].mxu0
        %v6203 = vadd.f32 0.0, %v6202
        %v6204 = vpop.f32.mrb[0].mxu0
        %v6205 = vadd.f32 0.0, %v6204
        %6206 = vdwg.mxu0
        %6207 = vmatprep.subr.bf16.mxu0 %v5982
        %6208 = vmatpush1.bf16.msra.mxu0 %v5981
        %6209 = vmatprep.subr.bf16.mxu0 %v5991
        %6210 = vmatpush1.bf16.msra.mxu0 %v5990
        %6211 = vmatprep.subr.bf16.mxu0 %v6000
        %6212 = vmatpush1.bf16.msra.mxu0 %v5999
        %6213 = vmatprep.subr.bf16.mxu0 %v6009
        %6214 = vmatpush1.bf16.msra.mxu0 %v6008
        %6215 = vmatprep.subr.bf16.mxu0 0
        %6216 = vmatpush1.bf16.msra.mxu0 0
        %6217 = vmatprep.subr.bf16.mxu0 0
        %6218 = vmatpush1.bf16.msra.mxu0 0
        %6219 = vmatprep.subr.bf16.mxu0 0
        %6220 = vmatpush1.bf16.msra.mxu0 0
        %6221 = vmatprep.subr.bf16.mxu0 0
        %6222 = vmatpush1.bf16.msra.mxu0 0
        %6223 = vmatprep.subr.bf16.mxu0 0
        %6224 = vmatpush1.bf16.msra.mxu0 0
        %6225 = vmatprep.subr.bf16.mxu0 0
        %6226 = vmatpush1.bf16.msra.mxu0 0
        %6227 = vmatprep.subr.bf16.mxu0 0
        %6228 = vmatpush1.bf16.msra.mxu0 0
        %6229 = vmatprep.subr.bf16.mxu0 0
        %6230 = vmatpush1.bf16.msra.mxu0 0
        %6231 = vmatprep.subr.bf16.mxu0 0
        %6232 = vmatpush1.bf16.msra.mxu0 0
        %6233 = vmatprep.subr.bf16.mxu0 0
        %6234 = vmatpush1.bf16.msra.mxu0 0
        %6235 = vmatprep.subr.bf16.mxu0 0
        %6236 = vmatpush1.bf16.msra.mxu0 0
        %6237 = vmatprep.subr.bf16.mxu0 0
        %6238 = vmatpush1.bf16.msra.mxu0 0
        %6239 = vmatprep.mubr.bf16.mxu0 0
        %6240 = vmatmul.mubr.bf16.gmra.mrb[0].mxu0 %v6050
        %v6241 = vpop.f32.mrb[0].mxu0
        %v6242 = vadd.f32 0.0, %v6241
        %v6243 = vpop.f32.mrb[0].mxu0
        %v6244 = vadd.f32 0.0, %v6243
        %v6245 = vpop.f32.mrb[0].mxu0
        %v6246 = vadd.f32 0.0, %v6245
        %v6247 = vpop.f32.mrb[0].mxu0
        %v6248 = vadd.f32 0.0, %v6247
        %6249 = vmatprep.mubr.bf16.mxu0 0
        %6250 = vmatmul.mubr.bf16.gmra.mrb[0].mxu0 %v6053
        %v6251 = vpop.f32.mrb[0].mxu0
        %v6252 = vadd.f32 0.0, %v6251
        %v6253 = vpop.f32.mrb[0].mxu0
        %v6254 = vadd.f32 0.0, %v6253
        %v6255 = vpop.f32.mrb[0].mxu0
        %v6256 = vadd.f32 0.0, %v6255
        %v6257 = vpop.f32.mrb[0].mxu0
        %v6258 = vadd.f32 0.0, %v6257
        %6259 = vmatprep.mubr.bf16.mxu0 0
        %6260 = vmatmul.mubr.bf16.gmra.mrb[0].mxu0 %v6056
        %v6261 = vpop.f32.mrb[0].mxu0
        %v6262 = vadd.f32 0.0, %v6261
        %v6263 = vpop.f32.mrb[0].mxu0
        %v6264 = vadd.f32 0.0, %v6263
        %v6265 = vpop.f32.mrb[0].mxu0
        %v6266 = vadd.f32 0.0, %v6265
        %v6267 = vpop.f32.mrb[0].mxu0
        %v6268 = vadd.f32 0.0, %v6267
        %6269 = vmatprep.mubr.bf16.mxu0 0
        %6270 = vmatmul.mubr.bf16.gmra.mrb[0].mxu0 %v6059
        %v6271 = vpop.f32.mrb[0].mxu0
        %v6272 = vadd.f32 0.0, %v6271
        %v6273 = vpop.f32.mrb[0].mxu0
        %v6274 = vadd.f32 0.0, %v6273
        %v6275 = vpop.f32.mrb[0].mxu0
        %v6276 = vadd.f32 0.0, %v6275
        %v6277 = vpop.f32.mrb[0].mxu0
        %v6278 = vadd.f32 0.0, %v6277
        %6279 = vdwg.mxu0
        %6280 = vmatprep.subr.bf16.mxu0 %v5984
        %6281 = vmatpush1.bf16.msra.mxu0 %v5983
        %6282 = vmatprep.subr.bf16.mxu0 %v5993
        %6283 = vmatpush1.bf16.msra.mxu0 %v5992
        %6284 = vmatprep.subr.bf16.mxu0 %v6002
        %6285 = vmatpush1.bf16.msra.mxu0 %v6001
        %6286 = vmatprep.subr.bf16.mxu0 %v6011
        %6287 = vmatpush1.bf16.msra.mxu0 %v6010
        %6288 = vmatprep.subr.bf16.mxu0 0
        %6289 = vmatpush1.bf16.msra.mxu0 0
        %6290 = vmatprep.subr.bf16.mxu0 0
        %6291 = vmatpush1.bf16.msra.mxu0 0
        %6292 = vmatprep.subr.bf16.mxu0 0
        %6293 = vmatpush1.bf16.msra.mxu0 0
        %6294 = vmatprep.subr.bf16.mxu0 0
        %6295 = vmatpush1.bf16.msra.mxu0 0
        %6296 = vmatprep.subr.bf16.mxu0 0
        %6297 = vmatpush1.bf16.msra.mxu0 0
        %6298 = vmatprep.subr.bf16.mxu0 0
        %6299 = vmatpush1.bf16.msra.mxu0 0
        %6300 = vmatprep.subr.bf16.mxu0 0
        %6301 = vmatpush1.bf16.msra.mxu0 0
        %6302 = vmatprep.subr.bf16.mxu0 0
        %6303 = vmatpush1.bf16.msra.mxu0 0
        %6304 = vmatprep.subr.bf16.mxu0 0
        %6305 = vmatpush1.bf16.msra.mxu0 0
        %6306 = vmatprep.subr.bf16.mxu0 0
        %6307 = vmatpush1.bf16.msra.mxu0 0
        %6308 = vmatprep.subr.bf16.mxu0 0
        %6309 = vmatpush1.bf16.msra.mxu0 0
        %6310 = vmatprep.subr.bf16.mxu0 0
        %6311 = vmatpush1.bf16.msra.mxu0 0
        %6312 = vmatprep.mubr.bf16.mxu0 0
        %6313 = vmatmul.mubr.bf16.gmra.mrb[0].mxu0 %v6050
        %v6314 = vpop.f32.mrb[0].mxu0
        %v6315 = vadd.f32 0.0, %v6314
        %v6316 = vpop.f32.mrb[0].mxu0
        %v6317 = vadd.f32 0.0, %v6316
        %v6318 = vpop.f32.mrb[0].mxu0
        %v6319 = vadd.f32 0.0, %v6318
        %v6320 = vpop.f32.mrb[0].mxu0
        %v6321 = vadd.f32 0.0, %v6320
        %6322 = vmatprep.mubr.bf16.mxu0 0
        %6323 = vmatmul.mubr.bf16.gmra.mrb[0].mxu0 %v6053
        %v6324 = vpop.f32.mrb[0].mxu0
        %v6325 = vadd.f32 0.0, %v6324
        %v6326 = vpop.f32.mrb[0].mxu0
        %v6327 = vadd.f32 0.0, %v6326
        %v6328 = vpop.f32.mrb[0].mxu0
        %v6329 = vadd.f32 0.0, %v6328
        %v6330 = vpop.f32.mrb[0].mxu0
        %v6331 = vadd.f32 0.0, %v6330
        %6332 = vmatprep.mubr.bf16.mxu0 0
        %6333 = vmatmul.mubr.bf16.gmra.mrb[0].mxu0 %v6056
        %v6334 = vpop.f32.mrb[0].mxu0
        %v6335 = vadd.f32 0.0, %v6334
        %v6336 = vpop.f32.mrb[0].mxu0
        %v6337 = vadd.f32 0.0, %v6336
        %v6338 = vpop.f32.mrb[0].mxu0
        %v6339 = vadd.f32 0.0, %v6338
        %v6340 = vpop.f32.mrb[0].mxu0
        %v6341 = vadd.f32 0.0, %v6340
        %6342 = vmatprep.mubr.bf16.mxu0 0
        %6343 = vmatmul.mubr.bf16.gmra.mrb[0].mxu0 %v6059
        %v6344 = vpop.f32.mrb[0].mxu0
        %v6345 = vadd.f32 0.0, %v6344
        %v6346 = vpop.f32.mrb[0].mxu0
        %v6347 = vadd.f32 0.0, %v6346
        %v6348 = vpop.f32.mrb[0].mxu0
        %v6349 = vadd.f32 0.0, %v6348
        %v6350 = vpop.f32.mrb[0].mxu0
        %v6351 = vadd.f32 0.0, %v6350
        %6352 = vdwg.mxu0
        %6353 = vmatprep.subr.bf16.mxu0 0
        %6354 = vmatpush1.bf16.msra.mxu0 %v5985
        %6355 = vmatprep.subr.bf16.mxu0 0
        %6356 = vmatpush1.bf16.msra.mxu0 %v5994
        %6357 = vmatprep.subr.bf16.mxu0 0
        %6358 = vmatpush1.bf16.msra.mxu0 %v6003
        %6359 = vmatprep.subr.bf16.mxu0 0
        %6360 = vmatpush1.bf16.msra.mxu0 %v6012
        %6361 = vmatprep.subr.bf16.mxu0 0
        %6362 = vmatpush1.bf16.msra.mxu0 0
        %6363 = vmatprep.subr.bf16.mxu0 0
        %6364 = vmatpush1.bf16.msra.mxu0 0
        %6365 = vmatprep.subr.bf16.mxu0 0
        %6366 = vmatpush1.bf16.msra.mxu0 0
        %6367 = vmatprep.subr.bf16.mxu0 0
        %6368 = vmatpush1.bf16.msra.mxu0 0
        %6369 = vmatprep.subr.bf16.mxu0 0
        %6370 = vmatpush1.bf16.msra.mxu0 0
        %6371 = vmatprep.subr.bf16.mxu0 0
        %6372 = vmatpush1.bf16.msra.mxu0 0
        %6373 = vmatprep.subr.bf16.mxu0 0
        %6374 = vmatpush1.bf16.msra.mxu0 0
        %6375 = vmatprep.subr.bf16.mxu0 0
        %6376 = vmatpush1.bf16.msra.mxu0 0
        %6377 = vmatprep.subr.bf16.mxu0 0
        %6378 = vmatpush1.bf16.msra.mxu0 0
        %6379 = vmatprep.subr.bf16.mxu0 0
        %6380 = vmatpush1.bf16.msra.mxu0 0
        %6381 = vmatprep.subr.bf16.mxu0 0
        %6382 = vmatpush1.bf16.msra.mxu0 0
        %6383 = vmatprep.subr.bf16.mxu0 0
        %6384 = vmatpush1.bf16.msra.mxu0 0
        %6385 = vmatprep.mubr.bf16.mxu0 0
        %6386 = vmatmul.mubr.bf16.gmra.mrb[0].mxu0 %v6050
        %v6387 = vpop.f32.mrb[0].mxu0
        %v6388 = vadd.f32 0.0, %v6387
        %v6389 = vpop.f32.mrb[0].mxu0
        %v6390 = vpop.f32.mrb[0].mxu0
        %v6391 = vadd.f32 0.0, %v6390
        %v6392 = vpop.f32.mrb[0].mxu0
        %6393 = vmatprep.mubr.bf16.mxu0 0
        %6394 = vmatmul.mubr.bf16.gmra.mrb[0].mxu0 %v6053
        %v6395 = vpop.f32.mrb[0].mxu0
        %v6396 = vadd.f32 0.0, %v6395
        %v6397 = vpop.f32.mrb[0].mxu0
        %v6398 = vpop.f32.mrb[0].mxu0
        %v6399 = vadd.f32 0.0, %v6398
        %v6400 = vpop.f32.mrb[0].mxu0
        %6401 = vmatprep.mubr.bf16.mxu0 0
        %6402 = vmatmul.mubr.bf16.gmra.mrb[0].mxu0 %v6056
        %v6403 = vpop.f32.mrb[0].mxu0
        %v6404 = vadd.f32 0.0, %v6403
        %v6405 = vpop.f32.mrb[0].mxu0
        %v6406 = vpop.f32.mrb[0].mxu0
        %v6407 = vadd.f32 0.0, %v6406
        %v6408 = vpop.f32.mrb[0].mxu0
        %6409 = vmatprep.mubr.bf16.mxu0 0
        %6410 = vmatmul.mubr.bf16.gmra.mrb[0].mxu0 %v6059
        %v6411 = vpop.f32.mrb[0].mxu0
        %v6412 = vadd.f32 0.0, %v6411
        %v6413 = vpop.f32.mrb[0].mxu0
        %v6414 = vpop.f32.mrb[0].mxu0
        %v6415 = vadd.f32 0.0, %v6414
        %v6416 = vpop.f32.mrb[0].mxu0
        %6417 = vdwg.mxu0
        %v6418 = vrot.slane %v6096, 7
        %v6419 = vrot.slane %v6100, 7
        %v6420 = vrot.slane %v6106, 7
        %v6421 = vrot.slane %v6110, 7
        %v6422 = vrot.slane %v6116, 7
        %v6423 = vrot.slane %v6120, 7
        %v6424 = vrot.slane %v6126, 7
        %v6425 = vrot.slane %v6130, 7
        %v6426 = vsel %vm978, %v6424, %v6425
        %v6427 = vsel %vm978, %v6423, %v6424
        %v6428 = vsel %vm978, %v6422, %v6423
        %v6429 = vsel %vm978, %v6421, %v6422
        %v6430 = vsel %vm978, %v6420, %v6421
        %v6431 = vsel %vm978, %v6419, %v6420
        %v6432 = vsel %vm978, %v6418, %v6419
        %v6433 = vsel %vm978, %v6425, %v6418
        %v6434 = vmul.f32 %v6426, %v998
        %v6435 = vmul.f32 %v6433, %v1003
        %v6436 = vmul.f32 %v6432, %v1008
        %v6437 = vmul.f32 %v6431, %v1013
        %v6438 = vmul.f32 %v6430, %v1018
        %v6439 = vmul.f32 %v6429, %v1023
        %v6440 = vmul.f32 %v6428, %v1028
        %v6441 = vmul.f32 %v6427, %v1033
        %v6442 = vmul.f32 %v6132, %v1055
        %v6443 = vmul.f32 %v6098, %v1060
        %v6444 = vmul.f32 %v6102, %v1065
        %v6445 = vmul.f32 %v6108, %v1070
        %v6446 = vmul.f32 %v6112, %v1075
        %v6447 = vmul.f32 %v6118, %v1080
        %v6448 = vmul.f32 %v6122, %v1085
        %v6449 = vmul.f32 %v6128, %v1090
        %v6450 = vadd.f32 %v6434, %v6442
        %v6451 = vadd.f32 %v6435, %v6443
        %v6452 = vadd.f32 %v6436, %v6444
        %v6453 = vadd.f32 %v6437, %v6445
        %v6454 = vadd.f32 %v6438, %v6446
        %v6455 = vadd.f32 %v6439, %v6447
        %v6456 = vadd.f32 %v6440, %v6448
        %v6457 = vadd.f32 %v6441, %v6449
        %v6458 = vrot.slane %v6169, 1
        %v6459 = vrot.slane %v6173, 1
        %v6460 = vrot.slane %v6179, 1
        %v6461 = vrot.slane %v6183, 1
        %v6462 = vrot.slane %v6189, 1
        %v6463 = vrot.slane %v6193, 1
        %v6464 = vrot.slane %v6199, 1
        %v6465 = vrot.slane %v6203, 1
        %v6466 = vsel %vm1116, %v6464, %v6465
        %v6467 = vsel %vm1116, %v6463, %v6464
        %v6468 = vsel %vm1116, %v6462, %v6463
        %v6469 = vsel %vm1116, %v6461, %v6462
        %v6470 = vsel %vm1116, %v6460, %v6461
        %v6471 = vsel %vm1116, %v6459, %v6460
        %v6472 = vsel %vm1116, %v6458, %v6459
        %v6473 = vsel %vm1116, %v6465, %v6458
        %v6474 = vmul.f32 %v6473, %v1137
        %v6475 = vmul.f32 %v6472, %v1142
        %v6476 = vmul.f32 %v6471, %v1147
        %v6477 = vmul.f32 %v6470, %v1152
        %v6478 = vmul.f32 %v6469, %v1157
        %v6479 = vmul.f32 %v6468, %v1162
        %v6480 = vmul.f32 %v6467, %v1167
        %v6481 = vmul.f32 %v6466, %v1172
        %v6482 = vadd.f32 %v6450, %v6474
        %v6483 = vadd.f32 %v6451, %v6475
        %v6484 = vadd.f32 %v6452, %v6476
        %v6485 = vadd.f32 %v6453, %v6477
        %v6486 = vadd.f32 %v6454, %v6478
        %v6487 = vadd.f32 %v6455, %v6479
        %v6488 = vadd.f32 %v6456, %v6480
        %v6489 = vadd.f32 %v6457, %v6481
        %v6490 = vrot.slane %v6171, 7
        %v6491 = vrot.slane %v6175, 7
        %v6492 = vrot.slane %v6181, 7
        %v6493 = vrot.slane %v6185, 7
        %v6494 = vrot.slane %v6191, 7
        %v6495 = vrot.slane %v6195, 7
        %v6496 = vrot.slane %v6201, 7
        %v6497 = vrot.slane %v6205, 7
        %v6498 = vsel %vm978, %v6496, %v6497
        %v6499 = vsel %vm978, %v6495, %v6496
        %v6500 = vsel %vm978, %v6494, %v6495
        %v6501 = vsel %vm978, %v6493, %v6494
        %v6502 = vsel %vm978, %v6492, %v6493
        %v6503 = vsel %vm978, %v6491, %v6492
        %v6504 = vsel %vm978, %v6490, %v6491
        %v6505 = vsel %vm978, %v6497, %v6490
        %v6506 = vmul.f32 %v6505, %v1218
        %v6507 = vmul.f32 %v6504, %v1223
        %v6508 = vmul.f32 %v6503, %v1228
        %v6509 = vmul.f32 %v6502, %v1233
        %v6510 = vmul.f32 %v6501, %v1238
        %v6511 = vmul.f32 %v6500, %v1243
        %v6512 = vmul.f32 %v6499, %v1248
        %v6513 = vmul.f32 %v6498, %v1253
        %v6514 = vadd.f32 %v6482, %v6506
        %v6515 = vadd.f32 %v6483, %v6507
        %v6516 = vadd.f32 %v6484, %v6508
        %v6517 = vadd.f32 %v6485, %v6509
        %v6518 = vadd.f32 %v6486, %v6510
        %v6519 = vadd.f32 %v6487, %v6511
        %v6520 = vadd.f32 %v6488, %v6512
        %v6521 = vadd.f32 %v6489, %v6513
        %v6522 = vadd.f32 %v6514, %v6242
        %v6523 = vadd.f32 %v6515, %v6246
        %v6524 = vadd.f32 %v6516, %v6252
        %v6525 = vadd.f32 %v6517, %v6256
        %v6526 = vadd.f32 %v6518, %v6262
        %v6527 = vadd.f32 %v6519, %v6266
        %v6528 = vadd.f32 %v6520, %v6272
        %v6529 = vadd.f32 %v6521, %v6276
        %v6530 = vrot.slane %v6244, 1
        %v6531 = vrot.slane %v6248, 1
        %v6532 = vrot.slane %v6254, 1
        %v6533 = vrot.slane %v6258, 1
        %v6534 = vrot.slane %v6264, 1
        %v6535 = vrot.slane %v6268, 1
        %v6536 = vrot.slane %v6274, 1
        %v6537 = vrot.slane %v6278, 1
        %v6538 = vsel %vm1116, %v6536, %v6537
        %v6539 = vsel %vm1116, %v6535, %v6536
        %v6540 = vsel %vm1116, %v6534, %v6535
        %v6541 = vsel %vm1116, %v6533, %v6534
        %v6542 = vsel %vm1116, %v6532, %v6533
        %v6543 = vsel %vm1116, %v6531, %v6532
        %v6544 = vsel %vm1116, %v6530, %v6531
        %v6545 = vsel %vm1116, %v6537, %v6530
        %v6546 = vmul.f32 %v6544, %v1307
        %v6547 = vmul.f32 %v6543, %v1312
        %v6548 = vmul.f32 %v6542, %v1317
        %v6549 = vmul.f32 %v6541, %v1322
        %v6550 = vmul.f32 %v6540, %v1327
        %v6551 = vmul.f32 %v6539, %v1332
        %v6552 = vmul.f32 %v6538, %v1337
        %v6553 = vmul.f32 %v6545, %v1342
        %v6554 = vadd.f32 %v6522, %v6546
        %v6555 = vadd.f32 %v6523, %v6547
        %v6556 = vadd.f32 %v6524, %v6548
        %v6557 = vadd.f32 %v6525, %v6549
        %v6558 = vadd.f32 %v6526, %v6550
        %v6559 = vadd.f32 %v6527, %v6551
        %v6560 = vadd.f32 %v6528, %v6552
        %v6561 = vadd.f32 %v6529, %v6553
        %v6562 = vrot.slane %v6315, 7
        %v6563 = vrot.slane %v6319, 7
        %v6564 = vrot.slane %v6325, 7
        %v6565 = vrot.slane %v6329, 7
        %v6566 = vrot.slane %v6335, 7
        %v6567 = vrot.slane %v6339, 7
        %v6568 = vrot.slane %v6345, 7
        %v6569 = vrot.slane %v6349, 7
        %v6570 = vsel %vm978, %v6568, %v6569
        %v6571 = vsel %vm978, %v6567, %v6568
        %v6572 = vsel %vm978, %v6566, %v6567
        %v6573 = vsel %vm978, %v6565, %v6566
        %v6574 = vsel %vm978, %v6564, %v6565
        %v6575 = vsel %vm978, %v6563, %v6564
        %v6576 = vsel %vm978, %v6562, %v6563
        %v6577 = vsel %vm978, %v6569, %v6562
        %v6578 = vmul.f32 %v6576, %v1388
        %v6579 = vmul.f32 %v6575, %v1393
        %v6580 = vmul.f32 %v6574, %v1398
        %v6581 = vmul.f32 %v6573, %v1403
        %v6582 = vmul.f32 %v6572, %v1408
        %v6583 = vmul.f32 %v6571, %v1413
        %v6584 = vmul.f32 %v6570, %v1418
        %v6585 = vmul.f32 %v6577, %v1423
        %v6586 = vadd.f32 %v6554, %v6578
        %v6587 = vadd.f32 %v6555, %v6579
        %v6588 = vadd.f32 %v6556, %v6580
        %v6589 = vadd.f32 %v6557, %v6581
        %v6590 = vadd.f32 %v6558, %v6582
        %v6591 = vadd.f32 %v6559, %v6583
        %v6592 = vadd.f32 %v6560, %v6584
        %v6593 = vadd.f32 %v6561, %v6585
        %v6594 = vmul.f32 %v6321, %v1453
        %v6595 = vmul.f32 %v6327, %v1458
        %v6596 = vmul.f32 %v6331, %v1463
        %v6597 = vmul.f32 %v6337, %v1468
        %v6598 = vmul.f32 %v6341, %v1473
        %v6599 = vmul.f32 %v6347, %v1478
        %v6600 = vmul.f32 %v6351, %v1483
        %v6601 = vmul.f32 %v6317, %v1488
        %v6602 = vadd.f32 %v6586, %v6594
        %v6603 = vadd.f32 %v6587, %v6595
        %v6604 = vadd.f32 %v6588, %v6596
        %v6605 = vadd.f32 %v6589, %v6597
        %v6606 = vadd.f32 %v6590, %v6598
        %v6607 = vadd.f32 %v6591, %v6599
        %v6608 = vadd.f32 %v6592, %v6600
        %v6609 = vadd.f32 %v6593, %v6601
        %v6610 = vrot.slane %v6388, 1
        %v6611 = vrot.slane %v6391, 1
        %v6612 = vrot.slane %v6396, 1
        %v6613 = vrot.slane %v6399, 1
        %v6614 = vrot.slane %v6404, 1
        %v6615 = vrot.slane %v6407, 1
        %v6616 = vrot.slane %v6412, 1
        %v6617 = vrot.slane %v6415, 1
        %v6618 = vsel %vm1116, %v6616, %v6617
        %v6619 = vsel %vm1116, %v6615, %v6616
        %v6620 = vsel %vm1116, %v6614, %v6615
        %v6621 = vsel %vm1116, %v6613, %v6614
        %v6622 = vsel %vm1116, %v6612, %v6613
        %v6623 = vsel %vm1116, %v6611, %v6612
        %v6624 = vsel %vm1116, %v6610, %v6611
        %v6625 = vsel %vm1116, %v6617, %v6610
        %v6626 = vmul.f32 %v6623, %v1534
        %v6627 = vmul.f32 %v6622, %v1539
        %v6628 = vmul.f32 %v6621, %v1544
        %v6629 = vmul.f32 %v6620, %v1549
        %v6630 = vmul.f32 %v6619, %v1554
        %v6631 = vmul.f32 %v6618, %v1559
        %v6632 = vmul.f32 %v6625, %v1564
        %v6633 = vmul.f32 %v6624, %v1569
        %v6634 = vadd.f32 %v6602, %v6626
        %v6635 = vadd.f32 %v6603, %v6627
        %v6636 = vadd.f32 %v6604, %v6628
        %v6637 = vadd.f32 %v6605, %v6629
        %v6638 = vadd.f32 %v6606, %v6630
        %v6639 = vadd.f32 %v6607, %v6631
        %v6640 = vadd.f32 %v6608, %v6632
        %v6641 = vadd.f32 %v6609, %v6633
        %v6642 = vlaneseq
        %v6643 = vshrl.u32 %v6642, 7
        %v6644 = vsub.s32 0, %v6643
        %v6645 = vrot.slane %v5820, %v6644
        %v6646 = vadd.f32 %v6634, %v6645
        %v6647 = vadd.f32 %v6635, %v6645
        %v6648 = vadd.f32 %v6636, %v6645
        %v6649 = vadd.f32 %v6637, %v6645
        %v6650 = vadd.f32 %v6638, %v6645
        %v6651 = vadd.f32 %v6639, %v6645
        %v6652 = vadd.f32 %v6640, %v6645
        %v6653 = vadd.f32 %v6641, %v6645
        %v6654 = vtanh.pop %v6646
        %v6655 = vtanh.pop %v6647
        %v6656 = vtanh.pop %v6648
        %v6657 = vtanh.pop %v6649
        %v6658 = vtanh.pop %v6650
        %v6659 = vtanh.pop %v6651
        %v6660 = vtanh.pop %v6652
        %v6661 = vtanh.pop %v6653
        %6662 = vst.msk [vmem:[%s520] sm:$0xff] %vm570, %v6654
        %6663 = vst.msk [vmem:[%s520 + $0x8] sm:$0xff] %vm570, %v6655
        %6664 = vst.msk [vmem:[%s520 + $0x10] sm:$0xff] %vm570, %v6656
        %6665 = vst.msk [vmem:[%s520 + $0x18] sm:$0xff] %vm570, %v6657
        %6666 = vst.msk [vmem:[%s520 + $0x20] sm:$0xff] %vm570, %v6658
        %6667 = vst.msk [vmem:[%s520 + $0x28] sm:$0xff] %vm570, %v6659
        %6668 = vst.msk [vmem:[%s520 + $0x30] sm:$0xff] %vm570, %v6660
        %6669 = vst.msk [vmem:[%s520 + $0x38] sm:$0xff] %vm570, %v6661
        %s6670 = sand.u32 %s338, 1
        %s6671 = scalar_lea.sflag [#allocation4], %s6670
        %s6672 = sand.u32 %s338, 1
        %s6673 = smul.addr %s6672, 64
        %s6674 = scalar_lea.vmem [#allocation10], %s6673
        // Predicated region
        $region93: #{aecv3d_forward.1} parent=75 // pred_check
          %p6675 = pneg %p348
        $region94: #{aecv3d_forward.1} parent=75 // pred_check_branch
          %6677 = sbr.rel (%p6675) target = $region96
        $region95: #{aecv3d_forward.1} parent=75 // pred_region
          %s6678 = smul.u32 8, %s31
          %s6680 = ssub.s32 1024, 1024
          %6681 = vsyncadd %s6671, %s6680
          %s6682 = smul.addr %s6678, 128
          %s6683 = scalar_lea.hbm %s14, %s6682
          %s6684 = sshll.u32 %s6674, 4
          %s6685 = int_to_ptr.vmem [resolvable:$true] %s6684
          %6690 = dma.vmem_to_hbm [thread:$0]  %s6685, 1024, %s6683, %s6671, 128, 128, 8
        $region96: #{aecv3d_forward.1} parent=75 // pred_fallthru
          _
      $region76: #{aecv3d_forward.1} parent=5 // pred_fallthru
        _
      %p6691 = scmp.le.s32.totalorder 2, %s26
      // Predicated region
      $region97: #{aecv3d_forward.1} parent=5 // pred_check
        %p6692 = pneg %p6691
      $region98: #{aecv3d_forward.1} parent=5 // pred_check_branch
        %6694 = sbr.rel (%p6692) target = $region100
      $region99: #{aecv3d_forward.1} parent=5 // pred_region
        %s6695 = ssub.s32 %s26, 2
        // Predicated region
        $region101: #{aecv3d_forward.1} parent=99 // pred_check
          %p6696 = pneg %p354
        $region102: #{aecv3d_forward.1} parent=99 // pred_check_branch
          %6698 = sbr.rel (%p6696) target = $region104
        $region103: #{aecv3d_forward.1} parent=99 // pred_region
          %s6699 = sand.u32 %s339, 1
          %s6700 = scalar_lea.sflag [#allocation4], %s6699
          %s6701 = sand.u32 %s339, 1
          %s6702 = smul.addr %s6701, 64
          %s6703 = scalar_lea.vmem [#allocation10], %s6702
          %6704 = dma.done %s6700, 1024
        $region104: #{aecv3d_forward.1} parent=99 // pred_fallthru
          _
      $region100: #{aecv3d_forward.1} parent=5 // pred_fallthru
        _
    $region6: #{aecv3d_forward.1} parent=1 // loop_footer
      %s30 = sadd.s32 1, %s26
    $region7: #{aecv3d_forward.1} parent=1 // loop_footer_branch
      %25 = sbr.rel target = $region3
    $region8: #{aecv3d_forward.1} parent=1 // loop_exit
      _
    %6705 = vsyncpa [#allocation3], 1
    %s6706 = scalar_lea.sflag [#allocation3], 1
    %6707 = vsyncpa %s6706, 1
    %6708 = vsyncpa [#allocation6], 1
    %6709 = vsyncpa [#allocation9], 1
    %6710 = vsyncpa [#allocation4], 1
    %s6711 = scalar_lea.sflag [#allocation4], 1
    %6712 = vsyncpa %s6711, 1

</llo_original>
